<compile_context>
chip_gen: v7x
topology: tpu7x:2x2x1
jax: 0.10.0
libtpu: 0.0.40
codegen_flags: <defaults>
</compile_context>

<pallas_src>
import functools
import numpy as np

import jax
import jax.numpy as jnp
from jax import lax
from jax.experimental import pallas as pl
from jax.experimental.pallas import tpu as pltpu


_N_LAYERS = 9
_ACTS = ("relu", "relu", "relu", "none", "none", "relu", "relu", "relu", "sigmoid")


def _ru(x, m):
    return ((x + m - 1) // m) * m


def _full_spec(shape):
    # no grid -> index_map takes no args, whole array is one VMEM block
    return pl.BlockSpec(shape, lambda: (0,) * len(shape))


# ----------------------------------------------------------------------------
# Pallas kernel: the whole CVAE forward pass
# ----------------------------------------------------------------------------
def _cvae_kernel(*refs):
    n = _N_LAYERS
    x_ref, eps_ref = refs[0], refs[1]
    s_refs = refs[2:2 + n]                 # (kh*Rout_pad, Rin_pad) bf16 0/1
    b_refs = refs[2 + n:2 + 2 * n]         # (1 or Rout_pad, Nout_pad) f32
    a_hbm = refs[2 + 2 * n:2 + 3 * n]      # (kh, Kin_pad, Nout_pad) bf16, HBM
    lat_ref = refs[2 + 3 * n]
    recon_ref = refs[3 + 3 * n]
    a_vmem = refs[4 + 3 * n:4 + 4 * n]     # per-layer VMEM scratch for A
    sem = refs[4 + 4 * n]                  # DMA semaphores, shape (n,)

    # Kick off ALL densified-weight DMAs now; the DMA engine streams them
    # HBM -> VMEM in the background while the MXU computes earlier layers.
    copies = [pltpu.make_async_copy(a_hbm[i], a_vmem[i], sem.at[i])
              for i in range(n)]
    for c in copies:
        c.start()

    def layer(x, idx):
        s = s_refs[idx][...]
        kh = a_vmem[idx].shape[0]
        rout_pad = s.shape[0] // kh
        xb = x.astype(jnp.bfloat16)
        # ONE stacked 0/1 row-selection matmul covering all kh kernel-row taps.
        y = jnp.dot(s, xb, preferred_element_type=jnp.float32)
        yb = y.astype(jnp.bfloat16)         # lossless: y holds selected xb values
        copies[idx].wait()                  # weights needed from here on
        acc = None
        for t in range(kh):                 # kh independent MXU matmuls
            h = jnp.dot(yb[t * rout_pad:(t + 1) * rout_pad, :], a_vmem[idx][t],
                        preferred_element_type=jnp.float32)
            acc = h if acc is None else acc + h
        acc = acc + b_refs[idx][...]        # (1,N) broadcast (or per-row) bias
        act = _ACTS[idx]
        if act == "relu":
            acc = jnp.maximum(acc, 0.0)
        elif act == "sigmoid":
            acc = jax.nn.sigmoid(acc)
        return acc

    h = x_ref[...]
    h = layer(h, 0)            # enc conv1  28 -> 14
    h = layer(h, 1)            # enc conv2  14 -> 7
    h = layer(h, 2)            # enc conv3   7 -> 3
    lat = layer(h, 3)          # flatten + merged [mu | logvar] linear
    lat_ref[...] = lat         # mu in cols [0,128), logvar in cols [128,256)

    mu = lat[:, :128]
    logvar = lat[:, 128:]
    # reparameterize; padded lanes/rows of eps are 0 so padding stays benign
    z = mu + eps_ref[...] * jnp.exp(0.5 * logvar)

    h = layer(z, 4)            # dec dense + unflatten to 3x3x128
    h = layer(h, 5)            # deconv1   3 -> 6
    h = layer(h, 6)            # deconv2   6 -> 12
    h = layer(h, 7)            # deconv3  12 -> 24
    h = layer(h, 8)            # deconv4  24 -> 28  (+ sigmoid)
    recon_ref[...] = h


# ----------------------------------------------------------------------------
# Host-side (one-time) densification of the PyTorch-layout weights
# Layout: activations are 2-D, rows = batch*H (padded to x8), cols = W*C
# (padded to x128).  Per layer:  Out = sum_t  slab_t(S_all @ X) @ A_t + bias.
# ----------------------------------------------------------------------------
def _conv_mats(w, b, batch, hin, win, stride, pad, rin_pad, kin_pad):
    """PyTorch Conv2d weight (Cout, Cin, kh, kw) -> stacked-S, A stack, bias."""
    cout, cin, kh, kw = w.shape
    hout = (hin + 2 * pad - kh) // stride + 1
    wout = (win + 2 * pad - kw) // stride + 1
    rout_pad = _ru(batch * hout, 8)
    nout_pad = _ru(wout * cout, 128)
    s = np.zeros((kh * rout_pad, rin_pad), np.float32)
    a = np.zeros((kh, kin_pad, nout_pad), np.float32)
    for t in range(kh):
        for bi in range(batch):
            for oh in range(hout):
                h = stride * oh + t - pad
                if 0 <= h < hin:
                    s[t * rout_pad + bi * hout + oh, bi * hin + h] = 1.0
        for ow in range(wout):
            for j in range(kw):
                wi = stride * ow + j - pad
                if 0 <= wi < win:
                    a[t, wi * cin:(wi + 1) * cin,
                      ow * cout:(ow + 1) * cout] = w[:, :, t, j].T
    bias = np.zeros((1, nout_pad), np.float32)
    bias[0, :wout * cout] = np.tile(b, wout)
    return s, a, bias, hout, wout, rout_pad, nout_pad


def _deconv_mats(w, b, batch, hin, win, stride, pad, rin_pad, kin_pad):
    """PyTorch ConvTranspose2d weight (Cin, Cout, kh, kw) -> S, A, bias."""
    cin, cout, kh, kw = w.shape
    hout = (hin - 1) * stride - 2 * pad + kh
    wout = (win - 1) * stride - 2 * pad + kw
    rout_pad = _ru(batch * hout, 8)
    nout_pad = _ru(wout * cout, 128)
    s = np.zeros((kh * rout_pad, rin_pad), np.float32)
    a = np.zeros((kh, kin_pad, nout_pad), np.float32)
    for t in range(kh):
        for bi in range(batch):
            for h in range(hin):
                oh = stride * h + t - pad
                if 0 <= oh < hout:
                    s[t * rout_pad + bi * hout + oh, bi * hin + h] = 1.0
        for wi in range(win):
            for j in range(kw):
                ow = stride * wi + j - pad
                if 0 <= ow < wout:
                    a[t, wi * cin:(wi + 1) * cin,
                      ow * cout:(ow + 1) * cout] = w[:, :, t, j]
    bias = np.zeros((1, nout_pad), np.float32)
    bias[0, :wout * cout] = np.tile(b, wout)
    return s, a, bias, hout, wout, rout_pad, nout_pad


def _latent_mats(wmu, bmu, wlv, blv, batch, rin_pad, kin_pad):
    """nn.Flatten (NCHW of 128x3x3) + merged [mu | logvar] Linear.

    mu goes to output cols [0, 128), logvar to [128, 256) so the kernel's
    reparameterize uses only 128-lane-aligned slices."""
    ld = wmu.shape[0]
    assert ld <= 128
    rout_pad = _ru(batch, 8)
    nout_pad = 256
    s = np.zeros((3 * rout_pad, rin_pad), np.float32)
    a = np.zeros((3, kin_pad, nout_pad), np.float32)
    for oh in range(3):
        for bi in range(batch):
            s[oh * rout_pad + bi, bi * 3 + oh] = 1.0
        for ow in range(3):
            for c in range(128):
                f = c * 9 + oh * 3 + ow              # PyTorch flatten index
                a[oh, ow * 128 + c, :ld] = wmu[:, f]
                a[oh, ow * 128 + c, 128:128 + ld] = wlv[:, f]
    bias = np.zeros((1, nout_pad), np.float32)
    bias[0, :ld] = bmu
    bias[0, 128:128 + ld] = blv
    return s, a, bias, rout_pad, nout_pad


def _dense_mats(wd, bd, batch, rin_pad, kin_pad):
    """Linear(latent -> 1152) + .view(-1, 128, 3, 3) (NCHW order)."""
    ld = wd.shape[1]
    assert ld <= 128
    rout_pad = _ru(batch * 3, 8)
    nout_pad = 384
    s = np.zeros((3 * rout_pad, rin_pad), np.float32)
    a = np.zeros((3, kin_pad, nout_pad), np.float32)
    # bias depends on the output spatial row h -> keep a per-row bias here
    bias = np.zeros((rout_pad, nout_pad), np.float32)
    for h in range(3):
        for bi in range(batch):
            s[h * rout_pad + bi * 3 + h, bi] = 1.0
        for w_ in range(3):
            for c in range(128):
                f = c * 9 + h * 3 + w_
                a[h, :ld, w_ * 128 + c] = wd[f, :]
                for bi in range(batch):
                    bias[bi * 3 + h, w_ * 128 + c] = bd[f]
    return s, a, bias, rout_pad, nout_pad


def build_matrices(params, batch, input_channels, latent_dim, output_channels):
    """Densify all layers once (host side).  Returns dict of per-layer tuples."""
    p = {k: np.asarray(v, np.float32) for k, v in params.items()}
    S, A, B = [], [], []

    def add(s, a, b):
        # 0/1 selection + densified weights in bf16 (0/1 exact, halves DMA);
        # biases stay f32.
        S.append(jnp.asarray(s, jnp.bfloat16))
        A.append(jnp.asarray(a, jnp.bfloat16))
        B.append(jnp.asarray(b, jnp.float32))

    rin, kin = _ru(batch * 28, 8), _ru(28 * input_channels, 128)
    hw = (28, 28)
    s, a, b_, h, w, rin, kin = _conv_mats(p["enc_conv1_w"], p["enc_conv1_b"],
                                          batch, hw[0], hw[1], 2, 1, rin, kin)
    add(s, a, b_); hw = (h, w)
    s, a, b_, h, w, rin, kin = _conv_mats(p["enc_conv2_w"], p["enc_conv2_b"],
                                          batch, hw[0], hw[1], 2, 1, rin, kin)
    add(s, a, b_); hw = (h, w)
    s, a, b_, h, w, rin, kin = _conv_mats(p["enc_conv3_w"], p["enc_conv3_b"],
                                          batch, hw[0], hw[1], 2, 1, rin, kin)
    add(s, a, b_); hw = (h, w)
    assert hw == (3, 3)

    s, a, b_, _, _ = _latent_mats(p["mu_w"], p["mu_b"], p["lv_w"], p["lv_b"],
                                  batch, rin, kin)
    add(s, a, b_)

    # decoder dense: z lives in an (ru(batch,8), 128) padded block
    s, a, b_, rin, kin = _dense_mats(p["dec_dense_w"], p["dec_dense_b"],
                                     batch, _ru(batch, 8), 128)
    add(s, a, b_)
    hw = (3, 3)
    s, a, b_, h, w, rin, kin = _deconv_mats(p["dec_deconv1_w"], p["dec_deconv1_b"],
                                            batch, hw[0], hw[1], 2, 1, rin, kin)
    add(s, a, b_); hw = (h, w)
    s, a, b_, h, w, rin, kin = _deconv_mats(p["dec_deconv2_w"], p["dec_deconv2_b"],
                                            batch, hw[0], hw[1], 2, 1, rin, kin)
    add(s, a, b_); hw = (h, w)
    s, a, b_, h, w, rin, kin = _deconv_mats(p["dec_deconv3_w"], p["dec_deconv3_b"],
                                            batch, hw[0], hw[1], 2, 1, rin, kin)
    add(s, a, b_); hw = (h, w)
    s, a, b_, h, w, rin, kin = _deconv_mats(p["dec_deconv4_w"], p["dec_deconv4_b"],
                                            batch, hw[0], hw[1], 1, 0, rin, kin)
    add(s, a, b_); hw = (h, w)
    assert hw == (28, 28)
    return {"S": tuple(S), "A": tuple(A), "bias": tuple(B)}


# ----------------------------------------------------------------------------
# Parameters (deterministic init, PyTorch weight layouts)
# ----------------------------------------------------------------------------
def init_params(key, input_channels, latent_dim, output_channels):
    flat = 128 * 3 * 3  # 1152

    def nrm(k, shape, scale=0.05):
        return scale * jax.random.normal(k, shape, dtype=jnp.float32)

    ks = jax.random.split(key, 20)
    return {
        "enc_conv1_w": nrm(ks[0], (32, input_channels, 4, 4)),
        "enc_conv1_b": nrm(ks[10], (32,), 0.02),
        "enc_conv2_w": nrm(ks[1], (64, 32, 4, 4)),
        "enc_conv2_b": nrm(ks[11], (64,), 0.02),
        "enc_conv3_w": nrm(ks[2], (128, 64, 4, 4)),
        "enc_conv3_b": nrm(ks[12], (128,), 0.02),
        "mu_w": nrm(ks[3], (latent_dim, flat)),
        "mu_b": nrm(ks[13], (latent_dim,), 0.02),
        "lv_w": nrm(ks[4], (latent_dim, flat)),
        "lv_b": nrm(ks[14], (latent_dim,), 0.02),
        "dec_dense_w": nrm(ks[5], (flat, latent_dim)),
        "dec_dense_b": nrm(ks[15], (flat,), 0.02),
        "dec_deconv1_w": nrm(ks[6], (128, 64, 4, 4)),
        "dec_deconv1_b": nrm(ks[16], (64,), 0.02),
        "dec_deconv2_w": nrm(ks[7], (64, 32, 4, 4)),
        "dec_deconv2_b": nrm(ks[17], (32,), 0.02),
        "dec_deconv3_w": nrm(ks[8], (32, output_channels, 4, 4)),
        "dec_deconv3_b": nrm(ks[18], (output_channels,), 0.02),
        "dec_deconv4_w": nrm(ks[9], (output_channels, output_channels, 5, 5)),
        "dec_deconv4_b": nrm(ks[19], (output_channels,), 0.02),
    }


# ----------------------------------------------------------------------------
# Forward: one pallas_call + boundary layout conversion
# ----------------------------------------------------------------------------
@functools.partial(jax.jit, static_argnums=(3,))
def cvae_forward(mats, x, eps, output_channels):
    batch, in_c, hh, ww = x.shape
    ld = eps.shape[1]

    rows, cols = batch * hh, ww * in_c
    rows_p, cols_p = _ru(rows, 8), _ru(cols, 128)
    # NCHW -> internal (batch*H, W*C) layout, zero-padded to tile boundaries
    x2d = x.transpose(0, 2, 3, 1).reshape(rows, cols).astype(jnp.float32)
    x2d = jnp.pad(x2d, ((0, rows_p - rows), (0, cols_p - cols)))

    rb = _ru(batch, 8)
    eps_pad = jnp.zeros((rb, 128), jnp.float32).at[:batch, :ld].set(
        eps.astype(jnp.float32))

    out_rows, out_cols = batch * 28, 28 * output_channels
    out_rows_p, out_cols_p = _ru(out_rows, 8), _ru(out_cols, 128)

    S, A, B = mats["S"], mats["A"], mats["bias"]

    out_shape = (
        jax.ShapeDtypeStruct((rb, 256), jnp.float32),          # [mu | logvar]
        jax.ShapeDtypeStruct((out_rows_p, out_cols_p), jnp.float32),
    )

    in_specs = ([_full_spec(x2d.shape), _full_spec(eps_pad.shape)]
                + [_full_spec(s.shape) for s in S]
                + [_full_spec(b.shape) for b in B]
                + [pl.BlockSpec(memory_space=pl.ANY) for _ in A])
    out_specs = (_full_spec(out_shape[0].shape), _full_spec(out_shape[1].shape))
    scratch_shapes = ([pltpu.VMEM(a.shape, jnp.bfloat16) for a in A]
                      + [pltpu.SemaphoreType.DMA((len(A),))])

    lat, recon2d = pl.pallas_call(
        _cvae_kernel,
        out_shape=out_shape,
        in_specs=in_specs,
        out_specs=out_specs,
        scratch_shapes=scratch_shapes,
        compiler_params=pltpu.CompilerParams(
            vmem_limit_bytes=32 * 1024 * 1024),
    )(x2d, eps_pad, *S, *B, *A)

    mu = lat[:batch, :ld]
    logvar = lat[:batch, 128:128 + ld]
    recon = recon2d[:out_rows, :out_cols].reshape(batch, 28, 28, output_channels)
    recon = recon.transpose(0, 3, 1, 2)   # -> NCHW
    return recon, mu, logvar


# ----------------------------------------------------------------------------
# Pure-JAX f32 reference (PyTorch semantics) for a numerical self-check
# ----------------------------------------------------------------------------
def _reference_forward(params, x, eps):
    prec = lax.Precision.HIGHEST

    def conv(x, w, b, stride, pad):
        y = lax.conv_general_dilated(
            x, w, window_strides=(stride, stride),
            padding=[(pad, pad), (pad, pad)],
            dimension_numbers=("NCHW", "OIHW", "NCHW"), precision=prec)
        return y + b.reshape(1, -1, 1, 1)

    def deconv(x, w, b, stride, pad):
        k = w.shape[2]
        w_c = jnp.flip(jnp.transpose(w, (1, 0, 2, 3)), axis=(2, 3))
        y = lax.conv_general_dilated(
            x, w_c, window_strides=(1, 1),
            padding=[(k - 1 - pad, k - 1 - pad)] * 2,
            lhs_dilation=(stride, stride),
            dimension_numbers=("NCHW", "OIHW", "NCHW"), precision=prec)
        return y + b.reshape(1, -1, 1, 1)

    batch = x.shape[0]
    h = jax.nn.relu(conv(x, params["enc_conv1_w"], params["enc_conv1_b"], 2, 1))
    h = jax.nn.relu(conv(h, params["enc_conv2_w"], params["enc_conv2_b"], 2, 1))
    h = jax.nn.relu(conv(h, params["enc_conv3_w"], params["enc_conv3_b"], 2, 1))
    flat = h.reshape(batch, -1)
    mu = jnp.dot(flat, params["mu_w"].T, precision=prec) + params["mu_b"]
    logvar = jnp.dot(flat, params["lv_w"].T, precision=prec) + params["lv_b"]
    z = mu + eps * jnp.exp(0.5 * logvar)
    d = jnp.dot(z, params["dec_dense_w"].T, precision=prec) + params["dec_dense_b"]
    h = d.reshape(batch, 128, 3, 3)
    h = jax.nn.relu(deconv(h, params["dec_deconv1_w"], params["dec_deconv1_b"], 2, 1))
    h = jax.nn.relu(deconv(h, params["dec_deconv2_w"], params["dec_deconv2_b"], 2, 1))
    h = jax.nn.relu(deconv(h, params["dec_deconv3_w"], params["dec_deconv3_b"], 2, 1))
    recon = jax.nn.sigmoid(deconv(h, params["dec_deconv4_w"], params["dec_deconv4_b"], 1, 0))
    return recon, mu, logvar


# ----------------------------------------------------------------------------
if __name__ == "__main__":
    BATCH = 2
    INPUT_CHANNELS = 3
    LATENT_DIM = 16
    OUTPUT_CHANNELS = 3
    H = W = 28  # fixed by the architecture (flattened_dim = 128*3*3)

    root = jax.random.PRNGKey(0)
    k_params, k_x, k_eps = jax.random.split(root, 3)

    params = init_params(k_params, INPUT_CHANNELS, LATENT_DIM, OUTPUT_CHANNELS)
    mats = build_matrices(params, BATCH, INPUT_CHANNELS, LATENT_DIM, OUTPUT_CHANNELS)

    x = jax.random.normal(k_x, (BATCH, INPUT_CHANNELS, H, W), dtype=jnp.float32)
    # torch.randn_like(std) -> explicit eps input (host-side RNG)
    eps = jax.random.normal(k_eps, (BATCH, LATENT_DIM), dtype=jnp.float32)

    recon, mu, logvar = cvae_forward(mats, x, eps, OUTPUT_CHANNELS)
    jax.block_until_ready((recon, mu, logvar))

    # shape / range sanity
    assert recon.shape == (BATCH, OUTPUT_CHANNELS, 28, 28), recon.shape
    assert mu.shape == (BATCH, LATENT_DIM) and logvar.shape == (BATCH, LATENT_DIM)
    assert bool(jnp.all(jnp.isfinite(recon)))
    assert bool(jnp.all(recon >= 0.0)) and bool(jnp.all(recon <= 1.0))

    # numerical check against a plain-JAX f32 reference of the PyTorch model
    # (kernel runs bf16 matmuls with f32 accumulation -> loose tolerance)
    r_ref, mu_ref, lv_ref = _reference_forward(params, x, eps)
    assert np.allclose(np.asarray(mu), np.asarray(mu_ref), atol=3e-2)
    assert np.allclose(np.asarray(logvar), np.asarray(lv_ref), atol=3e-2)
    assert np.allclose(np.asarray(recon), np.asarray(r_ref), atol=3e-2)

    print("KERNEL_OK")
</pallas_src>

<mosaic_0001>
module attributes {stable_mosaic.version = 11 : i64} {
  func.func @_cvae_kernel(%arg0: memref<56x128xf32, #tpu.memory_space<vmem>>, %arg1: memref<8x128xf32, #tpu.memory_space<vmem>>, %arg2: memref<128x56xbf16, #tpu.memory_space<vmem>>, %arg3: memref<64x32xbf16, #tpu.memory_space<vmem>>, %arg4: memref<32x16xbf16, #tpu.memory_space<vmem>>, %arg5: memref<24x8xbf16, #tpu.memory_space<vmem>>, %arg6: memref<24x8xbf16, #tpu.memory_space<vmem>>, %arg7: memref<64x8xbf16, #tpu.memory_space<vmem>>, %arg8: memref<96x16xbf16, #tpu.memory_space<vmem>>, %arg9: memref<192x24xbf16, #tpu.memory_space<vmem>>, %arg10: memref<280x48xbf16, #tpu.memory_space<vmem>>, %arg11: memref<1x512xf32, #tpu.memory_space<vmem>>, %arg12: memref<1x512xf32, #tpu.memory_space<vmem>>, %arg13: memref<1x384xf32, #tpu.memory_space<vmem>>, %arg14: memref<1x256xf32, #tpu.memory_space<vmem>>, %arg15: memref<8x384xf32, #tpu.memory_space<vmem>>, %arg16: memref<1x384xf32, #tpu.memory_space<vmem>>, %arg17: memref<1x384xf32, #tpu.memory_space<vmem>>, %arg18: memref<1x128xf32, #tpu.memory_space<vmem>>, %arg19: memref<1x128xf32, #tpu.memory_space<vmem>>, %arg20: memref<4x128x512xbf16, #tpu.memory_space<any>>, %arg21: memref<4x512x512xbf16, #tpu.memory_space<any>>, %arg22: memref<4x512x384xbf16, #tpu.memory_space<any>>, %arg23: memref<3x384x256xbf16, #tpu.memory_space<any>>, %arg24: memref<3x128x384xbf16, #tpu.memory_space<any>>, %arg25: memref<4x384x384xbf16, #tpu.memory_space<any>>, %arg26: memref<4x384x384xbf16, #tpu.memory_space<any>>, %arg27: memref<4x384x128xbf16, #tpu.memory_space<any>>, %arg28: memref<5x128x128xbf16, #tpu.memory_space<any>>, %arg29: memref<8x256xf32, #tpu.memory_space<vmem>>, %arg30: memref<56x128xf32, #tpu.memory_space<vmem>>, %arg31: memref<4x128x512xbf16, #tpu.memory_space<vmem>>, %arg32: memref<4x512x512xbf16, #tpu.memory_space<vmem>>, %arg33: memref<4x512x384xbf16, #tpu.memory_space<vmem>>, %arg34: memref<3x384x256xbf16, #tpu.memory_space<vmem>>, %arg35: memref<3x128x384xbf16, #tpu.memory_space<vmem>>, %arg36: memref<4x384x384xbf16, #tpu.memory_space<vmem>>, %arg37: memref<4x384x384xbf16, #tpu.memory_space<vmem>>, %arg38: memref<4x384x128xbf16, #tpu.memory_space<vmem>>, %arg39: memref<5x128x128xbf16, #tpu.memory_space<vmem>>, %arg40: memref<9x!tpu.dma_semaphore, #tpu.memory_space<semaphore_mem>>) attributes {dimension_semantics = [], scalar_prefetch = 0 : i64, scratch_operands = 10 : i64, tpu.core_type = #tpu.core_type<tc>} {
    %c0_i32 = arith.constant 0 : i32
    %0 = tpu.memref_slice %arg40[%c0_i32] : memref<9x!tpu.dma_semaphore, #tpu.memory_space<semaphore_mem>> -> memref<1x!tpu.dma_semaphore, #tpu.memory_space<semaphore_mem>>
    %1 = tpu.memref_squeeze %0 : memref<1x!tpu.dma_semaphore, #tpu.memory_space<semaphore_mem>> -> memref<!tpu.dma_semaphore, #tpu.memory_space<semaphore_mem>>
    tpu.enqueue_dma source(%arg20 : memref<4x128x512xbf16, #tpu.memory_space<any>>) target(%arg31 : memref<4x128x512xbf16, #tpu.memory_space<vmem>>) target_semaphore(%1 : memref<!tpu.dma_semaphore, #tpu.memory_space<semaphore_mem>>)
    %c1_i32 = arith.constant 1 : i32
    %2 = tpu.memref_slice %arg40[%c1_i32] : memref<9x!tpu.dma_semaphore, #tpu.memory_space<semaphore_mem>> -> memref<1x!tpu.dma_semaphore, #tpu.memory_space<semaphore_mem>>
    %3 = tpu.memref_squeeze %2 : memref<1x!tpu.dma_semaphore, #tpu.memory_space<semaphore_mem>> -> memref<!tpu.dma_semaphore, #tpu.memory_space<semaphore_mem>>
    tpu.enqueue_dma source(%arg21 : memref<4x512x512xbf16, #tpu.memory_space<any>>) target(%arg32 : memref<4x512x512xbf16, #tpu.memory_space<vmem>>) target_semaphore(%3 : memref<!tpu.dma_semaphore, #tpu.memory_space<semaphore_mem>>)
    %c2_i32 = arith.constant 2 : i32
    %4 = tpu.memref_slice %arg40[%c2_i32] : memref<9x!tpu.dma_semaphore, #tpu.memory_space<semaphore_mem>> -> memref<1x!tpu.dma_semaphore, #tpu.memory_space<semaphore_mem>>
    %5 = tpu.memref_squeeze %4 : memref<1x!tpu.dma_semaphore, #tpu.memory_space<semaphore_mem>> -> memref<!tpu.dma_semaphore, #tpu.memory_space<semaphore_mem>>
    tpu.enqueue_dma source(%arg22 : memref<4x512x384xbf16, #tpu.memory_space<any>>) target(%arg33 : memref<4x512x384xbf16, #tpu.memory_space<vmem>>) target_semaphore(%5 : memref<!tpu.dma_semaphore, #tpu.memory_space<semaphore_mem>>)
    %c3_i32 = arith.constant 3 : i32
    %6 = tpu.memref_slice %arg40[%c3_i32] : memref<9x!tpu.dma_semaphore, #tpu.memory_space<semaphore_mem>> -> memref<1x!tpu.dma_semaphore, #tpu.memory_space<semaphore_mem>>
    %7 = tpu.memref_squeeze %6 : memref<1x!tpu.dma_semaphore, #tpu.memory_space<semaphore_mem>> -> memref<!tpu.dma_semaphore, #tpu.memory_space<semaphore_mem>>
    tpu.enqueue_dma source(%arg23 : memref<3x384x256xbf16, #tpu.memory_space<any>>) target(%arg34 : memref<3x384x256xbf16, #tpu.memory_space<vmem>>) target_semaphore(%7 : memref<!tpu.dma_semaphore, #tpu.memory_space<semaphore_mem>>)
    %c4_i32 = arith.constant 4 : i32
    %8 = tpu.memref_slice %arg40[%c4_i32] : memref<9x!tpu.dma_semaphore, #tpu.memory_space<semaphore_mem>> -> memref<1x!tpu.dma_semaphore, #tpu.memory_space<semaphore_mem>>
    %9 = tpu.memref_squeeze %8 : memref<1x!tpu.dma_semaphore, #tpu.memory_space<semaphore_mem>> -> memref<!tpu.dma_semaphore, #tpu.memory_space<semaphore_mem>>
    tpu.enqueue_dma source(%arg24 : memref<3x128x384xbf16, #tpu.memory_space<any>>) target(%arg35 : memref<3x128x384xbf16, #tpu.memory_space<vmem>>) target_semaphore(%9 : memref<!tpu.dma_semaphore, #tpu.memory_space<semaphore_mem>>)
    %c5_i32 = arith.constant 5 : i32
    %10 = tpu.memref_slice %arg40[%c5_i32] : memref<9x!tpu.dma_semaphore, #tpu.memory_space<semaphore_mem>> -> memref<1x!tpu.dma_semaphore, #tpu.memory_space<semaphore_mem>>
    %11 = tpu.memref_squeeze %10 : memref<1x!tpu.dma_semaphore, #tpu.memory_space<semaphore_mem>> -> memref<!tpu.dma_semaphore, #tpu.memory_space<semaphore_mem>>
    tpu.enqueue_dma source(%arg25 : memref<4x384x384xbf16, #tpu.memory_space<any>>) target(%arg36 : memref<4x384x384xbf16, #tpu.memory_space<vmem>>) target_semaphore(%11 : memref<!tpu.dma_semaphore, #tpu.memory_space<semaphore_mem>>)
    %c6_i32 = arith.constant 6 : i32
    %12 = tpu.memref_slice %arg40[%c6_i32] : memref<9x!tpu.dma_semaphore, #tpu.memory_space<semaphore_mem>> -> memref<1x!tpu.dma_semaphore, #tpu.memory_space<semaphore_mem>>
    %13 = tpu.memref_squeeze %12 : memref<1x!tpu.dma_semaphore, #tpu.memory_space<semaphore_mem>> -> memref<!tpu.dma_semaphore, #tpu.memory_space<semaphore_mem>>
    tpu.enqueue_dma source(%arg26 : memref<4x384x384xbf16, #tpu.memory_space<any>>) target(%arg37 : memref<4x384x384xbf16, #tpu.memory_space<vmem>>) target_semaphore(%13 : memref<!tpu.dma_semaphore, #tpu.memory_space<semaphore_mem>>)
    %c7_i32 = arith.constant 7 : i32
    %14 = tpu.memref_slice %arg40[%c7_i32] : memref<9x!tpu.dma_semaphore, #tpu.memory_space<semaphore_mem>> -> memref<1x!tpu.dma_semaphore, #tpu.memory_space<semaphore_mem>>
    %15 = tpu.memref_squeeze %14 : memref<1x!tpu.dma_semaphore, #tpu.memory_space<semaphore_mem>> -> memref<!tpu.dma_semaphore, #tpu.memory_space<semaphore_mem>>
    tpu.enqueue_dma source(%arg27 : memref<4x384x128xbf16, #tpu.memory_space<any>>) target(%arg38 : memref<4x384x128xbf16, #tpu.memory_space<vmem>>) target_semaphore(%15 : memref<!tpu.dma_semaphore, #tpu.memory_space<semaphore_mem>>)
    %c8_i32 = arith.constant 8 : i32
    %16 = tpu.memref_slice %arg40[%c8_i32] : memref<9x!tpu.dma_semaphore, #tpu.memory_space<semaphore_mem>> -> memref<1x!tpu.dma_semaphore, #tpu.memory_space<semaphore_mem>>
    %17 = tpu.memref_squeeze %16 : memref<1x!tpu.dma_semaphore, #tpu.memory_space<semaphore_mem>> -> memref<!tpu.dma_semaphore, #tpu.memory_space<semaphore_mem>>
    tpu.enqueue_dma source(%arg28 : memref<5x128x128xbf16, #tpu.memory_space<any>>) target(%arg39 : memref<5x128x128xbf16, #tpu.memory_space<vmem>>) target_semaphore(%17 : memref<!tpu.dma_semaphore, #tpu.memory_space<semaphore_mem>>)
    %c0 = arith.constant 0 : index
    %c0_0 = arith.constant 0 : index
    %18 = vector.load %arg0[%c0, %c0_0] : memref<56x128xf32, #tpu.memory_space<vmem>>, vector<56x128xf32>
    %c0_1 = arith.constant 0 : index
    %c0_2 = arith.constant 0 : index
    %19 = vector.load %arg2[%c0_1, %c0_2] : memref<128x56xbf16, #tpu.memory_space<vmem>>, vector<128x56xbf16>
    %20 = arith.truncf %18 : vector<56x128xf32> to vector<56x128xbf16>
    %cst = arith.constant dense<0.000000e+00> : vector<128x128xf32>
    %21 = tpu.matmul %19, %20, %cst {dimension_numbers = #tpu.dot_dimension_numbers<[1], [0], [0], [1], [0, 0, 1, 1], [], []>} : vector<128x56xbf16>, vector<56x128xbf16>, vector<128x128xf32> -> vector<128x128xf32>
    %22 = arith.truncf %21 : vector<128x128xf32> to vector<128x128xbf16>
    %c0_i32_3 = arith.constant 0 : i32
    %23 = tpu.memref_slice %arg40[%c0_i32_3] : memref<9x!tpu.dma_semaphore, #tpu.memory_space<semaphore_mem>> -> memref<1x!tpu.dma_semaphore, #tpu.memory_space<semaphore_mem>>
    %24 = tpu.memref_squeeze %23 : memref<1x!tpu.dma_semaphore, #tpu.memory_space<semaphore_mem>> -> memref<!tpu.dma_semaphore, #tpu.memory_space<semaphore_mem>>
    tpu.wait_dma2 semaphore(%24 : memref<!tpu.dma_semaphore, #tpu.memory_space<semaphore_mem>>) src(%arg20 : memref<4x128x512xbf16, #tpu.memory_space<any>>) dst(%arg31 : memref<4x128x512xbf16, #tpu.memory_space<vmem>>)
    %25 = vector.extract_strided_slice %22 {offsets = [0, 0], sizes = [32, 128], strides = [1, 1]} : vector<128x128xbf16> to vector<32x128xbf16>
    %c0_4 = arith.constant 0 : index
    %c0_5 = arith.constant 0 : index
    %c0_6 = arith.constant 0 : index
    %26 = vector.load %arg31[%c0_4, %c0_5, %c0_6] : memref<4x128x512xbf16, #tpu.memory_space<vmem>>, vector<1x128x512xbf16>
    %27 = vector.shape_cast %26 : vector<1x128x512xbf16> to vector<128x512xbf16>
    %cst_7 = arith.constant dense<0.000000e+00> : vector<32x512xf32>
    %28 = tpu.matmul %25, %27, %cst_7 {dimension_numbers = #tpu.dot_dimension_numbers<[1], [0], [0], [1], [0, 0, 1, 1], [], []>} : vector<32x128xbf16>, vector<128x512xbf16>, vector<32x512xf32> -> vector<32x512xf32>
    %29 = vector.extract_strided_slice %22 {offsets = [32, 0], sizes = [32, 128], strides = [1, 1]} : vector<128x128xbf16> to vector<32x128xbf16>
    %c1 = arith.constant 1 : index
    %c0_8 = arith.constant 0 : index
    %c0_9 = arith.constant 0 : index
    %30 = vector.load %arg31[%c1, %c0_8, %c0_9] : memref<4x128x512xbf16, #tpu.memory_space<vmem>>, vector<1x128x512xbf16>
    %31 = vector.shape_cast %30 : vector<1x128x512xbf16> to vector<128x512xbf16>
    %cst_10 = arith.constant dense<0.000000e+00> : vector<32x512xf32>
    %32 = tpu.matmul %29, %31, %cst_10 {dimension_numbers = #tpu.dot_dimension_numbers<[1], [0], [0], [1], [0, 0, 1, 1], [], []>} : vector<32x128xbf16>, vector<128x512xbf16>, vector<32x512xf32> -> vector<32x512xf32>
    %33 = arith.addf %28, %32 : vector<32x512xf32>
    %34 = vector.extract_strided_slice %22 {offsets = [64, 0], sizes = [32, 128], strides = [1, 1]} : vector<128x128xbf16> to vector<32x128xbf16>
    %c2 = arith.constant 2 : index
    %c0_11 = arith.constant 0 : index
    %c0_12 = arith.constant 0 : index
    %35 = vector.load %arg31[%c2, %c0_11, %c0_12] : memref<4x128x512xbf16, #tpu.memory_space<vmem>>, vector<1x128x512xbf16>
    %36 = vector.shape_cast %35 : vector<1x128x512xbf16> to vector<128x512xbf16>
    %cst_13 = arith.constant dense<0.000000e+00> : vector<32x512xf32>
    %37 = tpu.matmul %34, %36, %cst_13 {dimension_numbers = #tpu.dot_dimension_numbers<[1], [0], [0], [1], [0, 0, 1, 1], [], []>} : vector<32x128xbf16>, vector<128x512xbf16>, vector<32x512xf32> -> vector<32x512xf32>
    %38 = arith.addf %33, %37 : vector<32x512xf32>
    %39 = vector.extract_strided_slice %22 {offsets = [96, 0], sizes = [32, 128], strides = [1, 1]} : vector<128x128xbf16> to vector<32x128xbf16>
    %c3 = arith.constant 3 : index
    %c0_14 = arith.constant 0 : index
    %c0_15 = arith.constant 0 : index
    %40 = vector.load %arg31[%c3, %c0_14, %c0_15] : memref<4x128x512xbf16, #tpu.memory_space<vmem>>, vector<1x128x512xbf16>
    %41 = vector.shape_cast %40 : vector<1x128x512xbf16> to vector<128x512xbf16>
    %cst_16 = arith.constant dense<0.000000e+00> : vector<32x512xf32>
    %42 = tpu.matmul %39, %41, %cst_16 {dimension_numbers = #tpu.dot_dimension_numbers<[1], [0], [0], [1], [0, 0, 1, 1], [], []>} : vector<32x128xbf16>, vector<128x512xbf16>, vector<32x512xf32> -> vector<32x512xf32>
    %43 = arith.addf %38, %42 : vector<32x512xf32>
    %c0_17 = arith.constant 0 : index
    %c0_18 = arith.constant 0 : index
    %44 = vector.load %arg11[%c0_17, %c0_18] : memref<1x512xf32, #tpu.memory_space<vmem>>, vector<1x512xf32>
    %45 = vector.broadcast %44 : vector<1x512xf32> to vector<32x512xf32>
    %46 = arith.addf %43, %45 : vector<32x512xf32>
    %cst_19 = arith.constant 0.000000e+00 : f32
    %47 = vector.broadcast %cst_19 : f32 to vector<32x512xf32>
    %48 = arith.maximumf %46, %47 : vector<32x512xf32>
    %c0_20 = arith.constant 0 : index
    %c0_21 = arith.constant 0 : index
    %49 = vector.load %arg3[%c0_20, %c0_21] : memref<64x32xbf16, #tpu.memory_space<vmem>>, vector<64x32xbf16>
    %50 = arith.truncf %48 : vector<32x512xf32> to vector<32x512xbf16>
    %cst_22 = arith.constant dense<0.000000e+00> : vector<64x512xf32>
    %51 = tpu.matmul %49, %50, %cst_22 {dimension_numbers = #tpu.dot_dimension_numbers<[1], [0], [0], [1], [0, 0, 1, 1], [], []>} : vector<64x32xbf16>, vector<32x512xbf16>, vector<64x512xf32> -> vector<64x512xf32>
    %52 = arith.truncf %51 : vector<64x512xf32> to vector<64x512xbf16>
    %c1_i32_23 = arith.constant 1 : i32
    %53 = tpu.memref_slice %arg40[%c1_i32_23] : memref<9x!tpu.dma_semaphore, #tpu.memory_space<semaphore_mem>> -> memref<1x!tpu.dma_semaphore, #tpu.memory_space<semaphore_mem>>
    %54 = tpu.memref_squeeze %53 : memref<1x!tpu.dma_semaphore, #tpu.memory_space<semaphore_mem>> -> memref<!tpu.dma_semaphore, #tpu.memory_space<semaphore_mem>>
    tpu.wait_dma2 semaphore(%54 : memref<!tpu.dma_semaphore, #tpu.memory_space<semaphore_mem>>) src(%arg21 : memref<4x512x512xbf16, #tpu.memory_space<any>>) dst(%arg32 : memref<4x512x512xbf16, #tpu.memory_space<vmem>>)
    %55 = vector.extract_strided_slice %52 {offsets = [0, 0], sizes = [16, 512], strides = [1, 1]} : vector<64x512xbf16> to vector<16x512xbf16>
    %c0_24 = arith.constant 0 : index
    %c0_25 = arith.constant 0 : index
    %c0_26 = arith.constant 0 : index
    %56 = vector.load %arg32[%c0_24, %c0_25, %c0_26] : memref<4x512x512xbf16, #tpu.memory_space<vmem>>, vector<1x512x512xbf16>
    %57 = vector.shape_cast %56 : vector<1x512x512xbf16> to vector<512x512xbf16>
    %cst_27 = arith.constant dense<0.000000e+00> : vector<16x512xf32>
    %58 = tpu.matmul %55, %57, %cst_27 {dimension_numbers = #tpu.dot_dimension_numbers<[1], [0], [0], [1], [0, 0, 1, 1], [], []>} : vector<16x512xbf16>, vector<512x512xbf16>, vector<16x512xf32> -> vector<16x512xf32>
    %59 = vector.extract_strided_slice %52 {offsets = [16, 0], sizes = [16, 512], strides = [1, 1]} : vector<64x512xbf16> to vector<16x512xbf16>
    %c1_28 = arith.constant 1 : index
    %c0_29 = arith.constant 0 : index
    %c0_30 = arith.constant 0 : index
    %60 = vector.load %arg32[%c1_28, %c0_29, %c0_30] : memref<4x512x512xbf16, #tpu.memory_space<vmem>>, vector<1x512x512xbf16>
    %61 = vector.shape_cast %60 : vector<1x512x512xbf16> to vector<512x512xbf16>
    %cst_31 = arith.constant dense<0.000000e+00> : vector<16x512xf32>
    %62 = tpu.matmul %59, %61, %cst_31 {dimension_numbers = #tpu.dot_dimension_numbers<[1], [0], [0], [1], [0, 0, 1, 1], [], []>} : vector<16x512xbf16>, vector<512x512xbf16>, vector<16x512xf32> -> vector<16x512xf32>
    %63 = arith.addf %58, %62 : vector<16x512xf32>
    %64 = vector.extract_strided_slice %52 {offsets = [32, 0], sizes = [16, 512], strides = [1, 1]} : vector<64x512xbf16> to vector<16x512xbf16>
    %c2_32 = arith.constant 2 : index
    %c0_33 = arith.constant 0 : index
    %c0_34 = arith.constant 0 : index
    %65 = vector.load %arg32[%c2_32, %c0_33, %c0_34] : memref<4x512x512xbf16, #tpu.memory_space<vmem>>, vector<1x512x512xbf16>
    %66 = vector.shape_cast %65 : vector<1x512x512xbf16> to vector<512x512xbf16>
    %cst_35 = arith.constant dense<0.000000e+00> : vector<16x512xf32>
    %67 = tpu.matmul %64, %66, %cst_35 {dimension_numbers = #tpu.dot_dimension_numbers<[1], [0], [0], [1], [0, 0, 1, 1], [], []>} : vector<16x512xbf16>, vector<512x512xbf16>, vector<16x512xf32> -> vector<16x512xf32>
    %68 = arith.addf %63, %67 : vector<16x512xf32>
    %69 = vector.extract_strided_slice %52 {offsets = [48, 0], sizes = [16, 512], strides = [1, 1]} : vector<64x512xbf16> to vector<16x512xbf16>
    %c3_36 = arith.constant 3 : index
    %c0_37 = arith.constant 0 : index
    %c0_38 = arith.constant 0 : index
    %70 = vector.load %arg32[%c3_36, %c0_37, %c0_38] : memref<4x512x512xbf16, #tpu.memory_space<vmem>>, vector<1x512x512xbf16>
    %71 = vector.shape_cast %70 : vector<1x512x512xbf16> to vector<512x512xbf16>
    %cst_39 = arith.constant dense<0.000000e+00> : vector<16x512xf32>
    %72 = tpu.matmul %69, %71, %cst_39 {dimension_numbers = #tpu.dot_dimension_numbers<[1], [0], [0], [1], [0, 0, 1, 1], [], []>} : vector<16x512xbf16>, vector<512x512xbf16>, vector<16x512xf32> -> vector<16x512xf32>
    %73 = arith.addf %68, %72 : vector<16x512xf32>
    %c0_40 = arith.constant 0 : index
    %c0_41 = arith.constant 0 : index
    %74 = vector.load %arg12[%c0_40, %c0_41] : memref<1x512xf32, #tpu.memory_space<vmem>>, vector<1x512xf32>
    %75 = vector.broadcast %74 : vector<1x512xf32> to vector<16x512xf32>
    %76 = arith.addf %73, %75 : vector<16x512xf32>
    %cst_42 = arith.constant 0.000000e+00 : f32
    %77 = vector.broadcast %cst_42 : f32 to vector<16x512xf32>
    %78 = arith.maximumf %76, %77 : vector<16x512xf32>
    %c0_43 = arith.constant 0 : index
    %c0_44 = arith.constant 0 : index
    %79 = vector.load %arg4[%c0_43, %c0_44] : memref<32x16xbf16, #tpu.memory_space<vmem>>, vector<32x16xbf16>
    %80 = arith.truncf %78 : vector<16x512xf32> to vector<16x512xbf16>
    %cst_45 = arith.constant dense<0.000000e+00> : vector<32x512xf32>
    %81 = tpu.matmul %79, %80, %cst_45 {dimension_numbers = #tpu.dot_dimension_numbers<[1], [0], [0], [1], [0, 0, 1, 1], [], []>} : vector<32x16xbf16>, vector<16x512xbf16>, vector<32x512xf32> -> vector<32x512xf32>
    %82 = arith.truncf %81 : vector<32x512xf32> to vector<32x512xbf16>
    %c2_i32_46 = arith.constant 2 : i32
    %83 = tpu.memref_slice %arg40[%c2_i32_46] : memref<9x!tpu.dma_semaphore, #tpu.memory_space<semaphore_mem>> -> memref<1x!tpu.dma_semaphore, #tpu.memory_space<semaphore_mem>>
    %84 = tpu.memref_squeeze %83 : memref<1x!tpu.dma_semaphore, #tpu.memory_space<semaphore_mem>> -> memref<!tpu.dma_semaphore, #tpu.memory_space<semaphore_mem>>
    tpu.wait_dma2 semaphore(%84 : memref<!tpu.dma_semaphore, #tpu.memory_space<semaphore_mem>>) src(%arg22 : memref<4x512x384xbf16, #tpu.memory_space<any>>) dst(%arg33 : memref<4x512x384xbf16, #tpu.memory_space<vmem>>)
    %85 = vector.extract_strided_slice %82 {offsets = [0, 0], sizes = [8, 512], strides = [1, 1]} : vector<32x512xbf16> to vector<8x512xbf16>
    %c0_47 = arith.constant 0 : index
    %c0_48 = arith.constant 0 : index
    %c0_49 = arith.constant 0 : index
    %86 = vector.load %arg33[%c0_47, %c0_48, %c0_49] : memref<4x512x384xbf16, #tpu.memory_space<vmem>>, vector<1x512x384xbf16>
    %87 = vector.shape_cast %86 : vector<1x512x384xbf16> to vector<512x384xbf16>
    %cst_50 = arith.constant dense<0.000000e+00> : vector<8x384xf32>
    %88 = tpu.matmul %85, %87, %cst_50 {dimension_numbers = #tpu.dot_dimension_numbers<[1], [0], [0], [1], [0, 0, 1, 1], [], []>} : vector<8x512xbf16>, vector<512x384xbf16>, vector<8x384xf32> -> vector<8x384xf32>
    %89 = vector.extract_strided_slice %82 {offsets = [8, 0], sizes = [8, 512], strides = [1, 1]} : vector<32x512xbf16> to vector<8x512xbf16>
    %c1_51 = arith.constant 1 : index
    %c0_52 = arith.constant 0 : index
    %c0_53 = arith.constant 0 : index
    %90 = vector.load %arg33[%c1_51, %c0_52, %c0_53] : memref<4x512x384xbf16, #tpu.memory_space<vmem>>, vector<1x512x384xbf16>
    %91 = vector.shape_cast %90 : vector<1x512x384xbf16> to vector<512x384xbf16>
    %cst_54 = arith.constant dense<0.000000e+00> : vector<8x384xf32>
    %92 = tpu.matmul %89, %91, %cst_54 {dimension_numbers = #tpu.dot_dimension_numbers<[1], [0], [0], [1], [0, 0, 1, 1], [], []>} : vector<8x512xbf16>, vector<512x384xbf16>, vector<8x384xf32> -> vector<8x384xf32>
    %93 = arith.addf %88, %92 : vector<8x384xf32>
    %94 = vector.extract_strided_slice %82 {offsets = [16, 0], sizes = [8, 512], strides = [1, 1]} : vector<32x512xbf16> to vector<8x512xbf16>
    %c2_55 = arith.constant 2 : index
    %c0_56 = arith.constant 0 : index
    %c0_57 = arith.constant 0 : index
    %95 = vector.load %arg33[%c2_55, %c0_56, %c0_57] : memref<4x512x384xbf16, #tpu.memory_space<vmem>>, vector<1x512x384xbf16>
    %96 = vector.shape_cast %95 : vector<1x512x384xbf16> to vector<512x384xbf16>
    %cst_58 = arith.constant dense<0.000000e+00> : vector<8x384xf32>
    %97 = tpu.matmul %94, %96, %cst_58 {dimension_numbers = #tpu.dot_dimension_numbers<[1], [0], [0], [1], [0, 0, 1, 1], [], []>} : vector<8x512xbf16>, vector<512x384xbf16>, vector<8x384xf32> -> vector<8x384xf32>
    %98 = arith.addf %93, %97 : vector<8x384xf32>
    %99 = vector.extract_strided_slice %82 {offsets = [24, 0], sizes = [8, 512], strides = [1, 1]} : vector<32x512xbf16> to vector<8x512xbf16>
    %c3_59 = arith.constant 3 : index
    %c0_60 = arith.constant 0 : index
    %c0_61 = arith.constant 0 : index
    %100 = vector.load %arg33[%c3_59, %c0_60, %c0_61] : memref<4x512x384xbf16, #tpu.memory_space<vmem>>, vector<1x512x384xbf16>
    %101 = vector.shape_cast %100 : vector<1x512x384xbf16> to vector<512x384xbf16>
    %cst_62 = arith.constant dense<0.000000e+00> : vector<8x384xf32>
    %102 = tpu.matmul %99, %101, %cst_62 {dimension_numbers = #tpu.dot_dimension_numbers<[1], [0], [0], [1], [0, 0, 1, 1], [], []>} : vector<8x512xbf16>, vector<512x384xbf16>, vector<8x384xf32> -> vector<8x384xf32>
    %103 = arith.addf %98, %102 : vector<8x384xf32>
    %c0_63 = arith.constant 0 : index
    %c0_64 = arith.constant 0 : index
    %104 = vector.load %arg13[%c0_63, %c0_64] : memref<1x384xf32, #tpu.memory_space<vmem>>, vector<1x384xf32>
    %105 = vector.broadcast %104 : vector<1x384xf32> to vector<8x384xf32>
    %106 = arith.addf %103, %105 : vector<8x384xf32>
    %cst_65 = arith.constant 0.000000e+00 : f32
    %107 = vector.broadcast %cst_65 : f32 to vector<8x384xf32>
    %108 = arith.maximumf %106, %107 : vector<8x384xf32>
    %c0_66 = arith.constant 0 : index
    %c0_67 = arith.constant 0 : index
    %109 = vector.load %arg5[%c0_66, %c0_67] : memref<24x8xbf16, #tpu.memory_space<vmem>>, vector<24x8xbf16>
    %110 = arith.truncf %108 : vector<8x384xf32> to vector<8x384xbf16>
    %cst_68 = arith.constant dense<0.000000e+00> : vector<24x384xf32>
    %111 = tpu.matmul %109, %110, %cst_68 {dimension_numbers = #tpu.dot_dimension_numbers<[1], [0], [0], [1], [0, 0, 1, 1], [], []>} : vector<24x8xbf16>, vector<8x384xbf16>, vector<24x384xf32> -> vector<24x384xf32>
    %112 = arith.truncf %111 : vector<24x384xf32> to vector<24x384xbf16>
    %c3_i32_69 = arith.constant 3 : i32
    %113 = tpu.memref_slice %arg40[%c3_i32_69] : memref<9x!tpu.dma_semaphore, #tpu.memory_space<semaphore_mem>> -> memref<1x!tpu.dma_semaphore, #tpu.memory_space<semaphore_mem>>
    %114 = tpu.memref_squeeze %113 : memref<1x!tpu.dma_semaphore, #tpu.memory_space<semaphore_mem>> -> memref<!tpu.dma_semaphore, #tpu.memory_space<semaphore_mem>>
    tpu.wait_dma2 semaphore(%114 : memref<!tpu.dma_semaphore, #tpu.memory_space<semaphore_mem>>) src(%arg23 : memref<3x384x256xbf16, #tpu.memory_space<any>>) dst(%arg34 : memref<3x384x256xbf16, #tpu.memory_space<vmem>>)
    %115 = vector.extract_strided_slice %112 {offsets = [0, 0], sizes = [8, 384], strides = [1, 1]} : vector<24x384xbf16> to vector<8x384xbf16>
    %c0_70 = arith.constant 0 : index
    %c0_71 = arith.constant 0 : index
    %c0_72 = arith.constant 0 : index
    %116 = vector.load %arg34[%c0_70, %c0_71, %c0_72] : memref<3x384x256xbf16, #tpu.memory_space<vmem>>, vector<1x384x256xbf16>
    %117 = vector.shape_cast %116 : vector<1x384x256xbf16> to vector<384x256xbf16>
    %cst_73 = arith.constant dense<0.000000e+00> : vector<8x256xf32>
    %118 = tpu.matmul %115, %117, %cst_73 {dimension_numbers = #tpu.dot_dimension_numbers<[1], [0], [0], [1], [0, 0, 1, 1], [], []>} : vector<8x384xbf16>, vector<384x256xbf16>, vector<8x256xf32> -> vector<8x256xf32>
    %119 = vector.extract_strided_slice %112 {offsets = [8, 0], sizes = [8, 384], strides = [1, 1]} : vector<24x384xbf16> to vector<8x384xbf16>
    %c1_74 = arith.constant 1 : index
    %c0_75 = arith.constant 0 : index
    %c0_76 = arith.constant 0 : index
    %120 = vector.load %arg34[%c1_74, %c0_75, %c0_76] : memref<3x384x256xbf16, #tpu.memory_space<vmem>>, vector<1x384x256xbf16>
    %121 = vector.shape_cast %120 : vector<1x384x256xbf16> to vector<384x256xbf16>
    %cst_77 = arith.constant dense<0.000000e+00> : vector<8x256xf32>
    %122 = tpu.matmul %119, %121, %cst_77 {dimension_numbers = #tpu.dot_dimension_numbers<[1], [0], [0], [1], [0, 0, 1, 1], [], []>} : vector<8x384xbf16>, vector<384x256xbf16>, vector<8x256xf32> -> vector<8x256xf32>
    %123 = arith.addf %118, %122 : vector<8x256xf32>
    %124 = vector.extract_strided_slice %112 {offsets = [16, 0], sizes = [8, 384], strides = [1, 1]} : vector<24x384xbf16> to vector<8x384xbf16>
    %c2_78 = arith.constant 2 : index
    %c0_79 = arith.constant 0 : index
    %c0_80 = arith.constant 0 : index
    %125 = vector.load %arg34[%c2_78, %c0_79, %c0_80] : memref<3x384x256xbf16, #tpu.memory_space<vmem>>, vector<1x384x256xbf16>
    %126 = vector.shape_cast %125 : vector<1x384x256xbf16> to vector<384x256xbf16>
    %cst_81 = arith.constant dense<0.000000e+00> : vector<8x256xf32>
    %127 = tpu.matmul %124, %126, %cst_81 {dimension_numbers = #tpu.dot_dimension_numbers<[1], [0], [0], [1], [0, 0, 1, 1], [], []>} : vector<8x384xbf16>, vector<384x256xbf16>, vector<8x256xf32> -> vector<8x256xf32>
    %128 = arith.addf %123, %127 : vector<8x256xf32>
    %c0_82 = arith.constant 0 : index
    %c0_83 = arith.constant 0 : index
    %129 = vector.load %arg14[%c0_82, %c0_83] : memref<1x256xf32, #tpu.memory_space<vmem>>, vector<1x256xf32>
    %130 = vector.broadcast %129 : vector<1x256xf32> to vector<8x256xf32>
    %131 = arith.addf %128, %130 : vector<8x256xf32>
    %c0_84 = arith.constant 0 : index
    %c0_85 = arith.constant 0 : index
    %132 = vector.load %arg29[%c0_84, %c0_85] : memref<8x256xf32, #tpu.memory_space<vmem>>, vector<8x256xf32>
    tpu.vector_store %arg29[%c0_84, %c0_85], %131 {strides = array<i32>} : memref<8x256xf32, #tpu.memory_space<vmem>>, vector<8x256xf32>,
    %133 = vector.extract_strided_slice %131 {offsets = [0, 0], sizes = [8, 128], strides = [1, 1]} : vector<8x256xf32> to vector<8x128xf32>
    %134 = vector.extract_strided_slice %131 {offsets = [0, 128], sizes = [8, 128], strides = [1, 1]} : vector<8x256xf32> to vector<8x128xf32>
    %c0_86 = arith.constant 0 : index
    %c0_87 = arith.constant 0 : index
    %135 = vector.load %arg1[%c0_86, %c0_87] : memref<8x128xf32, #tpu.memory_space<vmem>>, vector<8x128xf32>
    %cst_88 = arith.constant 5.000000e-01 : f32
    %136 = vector.broadcast %cst_88 : f32 to vector<8x128xf32>
    %137 = arith.mulf %136, %134 : vector<8x128xf32>
    %138 = math.exp %137 : vector<8x128xf32>
    %139 = arith.mulf %135, %138 : vector<8x128xf32>
    %140 = arith.addf %133, %139 : vector<8x128xf32>
    %c0_89 = arith.constant 0 : index
    %c0_90 = arith.constant 0 : index
    %141 = vector.load %arg6[%c0_89, %c0_90] : memref<24x8xbf16, #tpu.memory_space<vmem>>, vector<24x8xbf16>
    %142 = arith.truncf %140 : vector<8x128xf32> to vector<8x128xbf16>
    %cst_91 = arith.constant dense<0.000000e+00> : vector<24x128xf32>
    %143 = tpu.matmul %141, %142, %cst_91 {dimension_numbers = #tpu.dot_dimension_numbers<[1], [0], [0], [1], [0, 0, 1, 1], [], []>} : vector<24x8xbf16>, vector<8x128xbf16>, vector<24x128xf32> -> vector<24x128xf32>
    %144 = arith.truncf %143 : vector<24x128xf32> to vector<24x128xbf16>
    %c4_i32_92 = arith.constant 4 : i32
    %145 = tpu.memref_slice %arg40[%c4_i32_92] : memref<9x!tpu.dma_semaphore, #tpu.memory_space<semaphore_mem>> -> memref<1x!tpu.dma_semaphore, #tpu.memory_space<semaphore_mem>>
    %146 = tpu.memref_squeeze %145 : memref<1x!tpu.dma_semaphore, #tpu.memory_space<semaphore_mem>> -> memref<!tpu.dma_semaphore, #tpu.memory_space<semaphore_mem>>
    tpu.wait_dma2 semaphore(%146 : memref<!tpu.dma_semaphore, #tpu.memory_space<semaphore_mem>>) src(%arg24 : memref<3x128x384xbf16, #tpu.memory_space<any>>) dst(%arg35 : memref<3x128x384xbf16, #tpu.memory_space<vmem>>)
    %147 = vector.extract_strided_slice %144 {offsets = [0, 0], sizes = [8, 128], strides = [1, 1]} : vector<24x128xbf16> to vector<8x128xbf16>
    %c0_93 = arith.constant 0 : index
    %c0_94 = arith.constant 0 : index
    %c0_95 = arith.constant 0 : index
    %148 = vector.load %arg35[%c0_93, %c0_94, %c0_95] : memref<3x128x384xbf16, #tpu.memory_space<vmem>>, vector<1x128x384xbf16>
    %149 = vector.shape_cast %148 : vector<1x128x384xbf16> to vector<128x384xbf16>
    %cst_96 = arith.constant dense<0.000000e+00> : vector<8x384xf32>
    %150 = tpu.matmul %147, %149, %cst_96 {dimension_numbers = #tpu.dot_dimension_numbers<[1], [0], [0], [1], [0, 0, 1, 1], [], []>} : vector<8x128xbf16>, vector<128x384xbf16>, vector<8x384xf32> -> vector<8x384xf32>
    %151 = vector.extract_strided_slice %144 {offsets = [8, 0], sizes = [8, 128], strides = [1, 1]} : vector<24x128xbf16> to vector<8x128xbf16>
    %c1_97 = arith.constant 1 : index
    %c0_98 = arith.constant 0 : index
    %c0_99 = arith.constant 0 : index
    %152 = vector.load %arg35[%c1_97, %c0_98, %c0_99] : memref<3x128x384xbf16, #tpu.memory_space<vmem>>, vector<1x128x384xbf16>
    %153 = vector.shape_cast %152 : vector<1x128x384xbf16> to vector<128x384xbf16>
    %cst_100 = arith.constant dense<0.000000e+00> : vector<8x384xf32>
    %154 = tpu.matmul %151, %153, %cst_100 {dimension_numbers = #tpu.dot_dimension_numbers<[1], [0], [0], [1], [0, 0, 1, 1], [], []>} : vector<8x128xbf16>, vector<128x384xbf16>, vector<8x384xf32> -> vector<8x384xf32>
    %155 = arith.addf %150, %154 : vector<8x384xf32>
    %156 = vector.extract_strided_slice %144 {offsets = [16, 0], sizes = [8, 128], strides = [1, 1]} : vector<24x128xbf16> to vector<8x128xbf16>
    %c2_101 = arith.constant 2 : index
    %c0_102 = arith.constant 0 : index
    %c0_103 = arith.constant 0 : index
    %157 = vector.load %arg35[%c2_101, %c0_102, %c0_103] : memref<3x128x384xbf16, #tpu.memory_space<vmem>>, vector<1x128x384xbf16>
    %158 = vector.shape_cast %157 : vector<1x128x384xbf16> to vector<128x384xbf16>
    %cst_104 = arith.constant dense<0.000000e+00> : vector<8x384xf32>
    %159 = tpu.matmul %156, %158, %cst_104 {dimension_numbers = #tpu.dot_dimension_numbers<[1], [0], [0], [1], [0, 0, 1, 1], [], []>} : vector<8x128xbf16>, vector<128x384xbf16>, vector<8x384xf32> -> vector<8x384xf32>
    %160 = arith.addf %155, %159 : vector<8x384xf32>
    %c0_105 = arith.constant 0 : index
    %c0_106 = arith.constant 0 : index
    %161 = vector.load %arg15[%c0_105, %c0_106] : memref<8x384xf32, #tpu.memory_space<vmem>>, vector<8x384xf32>
    %162 = arith.addf %160, %161 : vector<8x384xf32>
    %c0_107 = arith.constant 0 : index
    %c0_108 = arith.constant 0 : index
    %163 = vector.load %arg7[%c0_107, %c0_108] : memref<64x8xbf16, #tpu.memory_space<vmem>>, vector<64x8xbf16>
    %164 = arith.truncf %162 : vector<8x384xf32> to vector<8x384xbf16>
    %cst_109 = arith.constant dense<0.000000e+00> : vector<64x384xf32>
    %165 = tpu.matmul %163, %164, %cst_109 {dimension_numbers = #tpu.dot_dimension_numbers<[1], [0], [0], [1], [0, 0, 1, 1], [], []>} : vector<64x8xbf16>, vector<8x384xbf16>, vector<64x384xf32> -> vector<64x384xf32>
    %166 = arith.truncf %165 : vector<64x384xf32> to vector<64x384xbf16>
    %c5_i32_110 = arith.constant 5 : i32
    %167 = tpu.memref_slice %arg40[%c5_i32_110] : memref<9x!tpu.dma_semaphore, #tpu.memory_space<semaphore_mem>> -> memref<1x!tpu.dma_semaphore, #tpu.memory_space<semaphore_mem>>
    %168 = tpu.memref_squeeze %167 : memref<1x!tpu.dma_semaphore, #tpu.memory_space<semaphore_mem>> -> memref<!tpu.dma_semaphore, #tpu.memory_space<semaphore_mem>>
    tpu.wait_dma2 semaphore(%168 : memref<!tpu.dma_semaphore, #tpu.memory_space<semaphore_mem>>) src(%arg25 : memref<4x384x384xbf16, #tpu.memory_space<any>>) dst(%arg36 : memref<4x384x384xbf16, #tpu.memory_space<vmem>>)
    %169 = vector.extract_strided_slice %166 {offsets = [0, 0], sizes = [16, 384], strides = [1, 1]} : vector<64x384xbf16> to vector<16x384xbf16>
    %c0_111 = arith.constant 0 : index
    %c0_112 = arith.constant 0 : index
    %c0_113 = arith.constant 0 : index
    %170 = vector.load %arg36[%c0_111, %c0_112, %c0_113] : memref<4x384x384xbf16, #tpu.memory_space<vmem>>, vector<1x384x384xbf16>
    %171 = vector.shape_cast %170 : vector<1x384x384xbf16> to vector<384x384xbf16>
    %cst_114 = arith.constant dense<0.000000e+00> : vector<16x384xf32>
    %172 = tpu.matmul %169, %171, %cst_114 {dimension_numbers = #tpu.dot_dimension_numbers<[1], [0], [0], [1], [0, 0, 1, 1], [], []>} : vector<16x384xbf16>, vector<384x384xbf16>, vector<16x384xf32> -> vector<16x384xf32>
    %173 = vector.extract_strided_slice %166 {offsets = [16, 0], sizes = [16, 384], strides = [1, 1]} : vector<64x384xbf16> to vector<16x384xbf16>
    %c1_115 = arith.constant 1 : index
    %c0_116 = arith.constant 0 : index
    %c0_117 = arith.constant 0 : index
    %174 = vector.load %arg36[%c1_115, %c0_116, %c0_117] : memref<4x384x384xbf16, #tpu.memory_space<vmem>>, vector<1x384x384xbf16>
    %175 = vector.shape_cast %174 : vector<1x384x384xbf16> to vector<384x384xbf16>
    %cst_118 = arith.constant dense<0.000000e+00> : vector<16x384xf32>
    %176 = tpu.matmul %173, %175, %cst_118 {dimension_numbers = #tpu.dot_dimension_numbers<[1], [0], [0], [1], [0, 0, 1, 1], [], []>} : vector<16x384xbf16>, vector<384x384xbf16>, vector<16x384xf32> -> vector<16x384xf32>
    %177 = arith.addf %172, %176 : vector<16x384xf32>
    %178 = vector.extract_strided_slice %166 {offsets = [32, 0], sizes = [16, 384], strides = [1, 1]} : vector<64x384xbf16> to vector<16x384xbf16>
    %c2_119 = arith.constant 2 : index
    %c0_120 = arith.constant 0 : index
    %c0_121 = arith.constant 0 : index
    %179 = vector.load %arg36[%c2_119, %c0_120, %c0_121] : memref<4x384x384xbf16, #tpu.memory_space<vmem>>, vector<1x384x384xbf16>
    %180 = vector.shape_cast %179 : vector<1x384x384xbf16> to vector<384x384xbf16>
    %cst_122 = arith.constant dense<0.000000e+00> : vector<16x384xf32>
    %181 = tpu.matmul %178, %180, %cst_122 {dimension_numbers = #tpu.dot_dimension_numbers<[1], [0], [0], [1], [0, 0, 1, 1], [], []>} : vector<16x384xbf16>, vector<384x384xbf16>, vector<16x384xf32> -> vector<16x384xf32>
    %182 = arith.addf %177, %181 : vector<16x384xf32>
    %183 = vector.extract_strided_slice %166 {offsets = [48, 0], sizes = [16, 384], strides = [1, 1]} : vector<64x384xbf16> to vector<16x384xbf16>
    %c3_123 = arith.constant 3 : index
    %c0_124 = arith.constant 0 : index
    %c0_125 = arith.constant 0 : index
    %184 = vector.load %arg36[%c3_123, %c0_124, %c0_125] : memref<4x384x384xbf16, #tpu.memory_space<vmem>>, vector<1x384x384xbf16>
    %185 = vector.shape_cast %184 : vector<1x384x384xbf16> to vector<384x384xbf16>
    %cst_126 = arith.constant dense<0.000000e+00> : vector<16x384xf32>
    %186 = tpu.matmul %183, %185, %cst_126 {dimension_numbers = #tpu.dot_dimension_numbers<[1], [0], [0], [1], [0, 0, 1, 1], [], []>} : vector<16x384xbf16>, vector<384x384xbf16>, vector<16x384xf32> -> vector<16x384xf32>
    %187 = arith.addf %182, %186 : vector<16x384xf32>
    %c0_127 = arith.constant 0 : index
    %c0_128 = arith.constant 0 : index
    %188 = vector.load %arg16[%c0_127, %c0_128] : memref<1x384xf32, #tpu.memory_space<vmem>>, vector<1x384xf32>
    %189 = vector.broadcast %188 : vector<1x384xf32> to vector<16x384xf32>
    %190 = arith.addf %187, %189 : vector<16x384xf32>
    %cst_129 = arith.constant 0.000000e+00 : f32
    %191 = vector.broadcast %cst_129 : f32 to vector<16x384xf32>
    %192 = arith.maximumf %190, %191 : vector<16x384xf32>
    %c0_130 = arith.constant 0 : index
    %c0_131 = arith.constant 0 : index
    %193 = vector.load %arg8[%c0_130, %c0_131] : memref<96x16xbf16, #tpu.memory_space<vmem>>, vector<96x16xbf16>
    %194 = arith.truncf %192 : vector<16x384xf32> to vector<16x384xbf16>
    %cst_132 = arith.constant dense<0.000000e+00> : vector<96x384xf32>
    %195 = tpu.matmul %193, %194, %cst_132 {dimension_numbers = #tpu.dot_dimension_numbers<[1], [0], [0], [1], [0, 0, 1, 1], [], []>} : vector<96x16xbf16>, vector<16x384xbf16>, vector<96x384xf32> -> vector<96x384xf32>
    %196 = arith.truncf %195 : vector<96x384xf32> to vector<96x384xbf16>
    %c6_i32_133 = arith.constant 6 : i32
    %197 = tpu.memref_slice %arg40[%c6_i32_133] : memref<9x!tpu.dma_semaphore, #tpu.memory_space<semaphore_mem>> -> memref<1x!tpu.dma_semaphore, #tpu.memory_space<semaphore_mem>>
    %198 = tpu.memref_squeeze %197 : memref<1x!tpu.dma_semaphore, #tpu.memory_space<semaphore_mem>> -> memref<!tpu.dma_semaphore, #tpu.memory_space<semaphore_mem>>
    tpu.wait_dma2 semaphore(%198 : memref<!tpu.dma_semaphore, #tpu.memory_space<semaphore_mem>>) src(%arg26 : memref<4x384x384xbf16, #tpu.memory_space<any>>) dst(%arg37 : memref<4x384x384xbf16, #tpu.memory_space<vmem>>)
    %199 = vector.extract_strided_slice %196 {offsets = [0, 0], sizes = [24, 384], strides = [1, 1]} : vector<96x384xbf16> to vector<24x384xbf16>
    %c0_134 = arith.constant 0 : index
    %c0_135 = arith.constant 0 : index
    %c0_136 = arith.constant 0 : index
    %200 = vector.load %arg37[%c0_134, %c0_135, %c0_136] : memref<4x384x384xbf16, #tpu.memory_space<vmem>>, vector<1x384x384xbf16>
    %201 = vector.shape_cast %200 : vector<1x384x384xbf16> to vector<384x384xbf16>
    %cst_137 = arith.constant dense<0.000000e+00> : vector<24x384xf32>
    %202 = tpu.matmul %199, %201, %cst_137 {dimension_numbers = #tpu.dot_dimension_numbers<[1], [0], [0], [1], [0, 0, 1, 1], [], []>} : vector<24x384xbf16>, vector<384x384xbf16>, vector<24x384xf32> -> vector<24x384xf32>
    %203 = vector.extract_strided_slice %196 {offsets = [24, 0], sizes = [24, 384], strides = [1, 1]} : vector<96x384xbf16> to vector<24x384xbf16>
    %c1_138 = arith.constant 1 : index
    %c0_139 = arith.constant 0 : index
    %c0_140 = arith.constant 0 : index
    %204 = vector.load %arg37[%c1_138, %c0_139, %c0_140] : memref<4x384x384xbf16, #tpu.memory_space<vmem>>, vector<1x384x384xbf16>
    %205 = vector.shape_cast %204 : vector<1x384x384xbf16> to vector<384x384xbf16>
    %cst_141 = arith.constant dense<0.000000e+00> : vector<24x384xf32>
    %206 = tpu.matmul %203, %205, %cst_141 {dimension_numbers = #tpu.dot_dimension_numbers<[1], [0], [0], [1], [0, 0, 1, 1], [], []>} : vector<24x384xbf16>, vector<384x384xbf16>, vector<24x384xf32> -> vector<24x384xf32>
    %207 = arith.addf %202, %206 : vector<24x384xf32>
    %208 = vector.extract_strided_slice %196 {offsets = [48, 0], sizes = [24, 384], strides = [1, 1]} : vector<96x384xbf16> to vector<24x384xbf16>
    %c2_142 = arith.constant 2 : index
    %c0_143 = arith.constant 0 : index
    %c0_144 = arith.constant 0 : index
    %209 = vector.load %arg37[%c2_142, %c0_143, %c0_144] : memref<4x384x384xbf16, #tpu.memory_space<vmem>>, vector<1x384x384xbf16>
    %210 = vector.shape_cast %209 : vector<1x384x384xbf16> to vector<384x384xbf16>
    %cst_145 = arith.constant dense<0.000000e+00> : vector<24x384xf32>
    %211 = tpu.matmul %208, %210, %cst_145 {dimension_numbers = #tpu.dot_dimension_numbers<[1], [0], [0], [1], [0, 0, 1, 1], [], []>} : vector<24x384xbf16>, vector<384x384xbf16>, vector<24x384xf32> -> vector<24x384xf32>
    %212 = arith.addf %207, %211 : vector<24x384xf32>
    %213 = vector.extract_strided_slice %196 {offsets = [72, 0], sizes = [24, 384], strides = [1, 1]} : vector<96x384xbf16> to vector<24x384xbf16>
    %c3_146 = arith.constant 3 : index
    %c0_147 = arith.constant 0 : index
    %c0_148 = arith.constant 0 : index
    %214 = vector.load %arg37[%c3_146, %c0_147, %c0_148] : memref<4x384x384xbf16, #tpu.memory_space<vmem>>, vector<1x384x384xbf16>
    %215 = vector.shape_cast %214 : vector<1x384x384xbf16> to vector<384x384xbf16>
    %cst_149 = arith.constant dense<0.000000e+00> : vector<24x384xf32>
    %216 = tpu.matmul %213, %215, %cst_149 {dimension_numbers = #tpu.dot_dimension_numbers<[1], [0], [0], [1], [0, 0, 1, 1], [], []>} : vector<24x384xbf16>, vector<384x384xbf16>, vector<24x384xf32> -> vector<24x384xf32>
    %217 = arith.addf %212, %216 : vector<24x384xf32>
    %c0_150 = arith.constant 0 : index
    %c0_151 = arith.constant 0 : index
    %218 = vector.load %arg17[%c0_150, %c0_151] : memref<1x384xf32, #tpu.memory_space<vmem>>, vector<1x384xf32>
    %219 = vector.broadcast %218 : vector<1x384xf32> to vector<24x384xf32>
    %220 = arith.addf %217, %219 : vector<24x384xf32>
    %cst_152 = arith.constant 0.000000e+00 : f32
    %221 = vector.broadcast %cst_152 : f32 to vector<24x384xf32>
    %222 = arith.maximumf %220, %221 : vector<24x384xf32>
    %c0_153 = arith.constant 0 : index
    %c0_154 = arith.constant 0 : index
    %223 = vector.load %arg9[%c0_153, %c0_154] : memref<192x24xbf16, #tpu.memory_space<vmem>>, vector<192x24xbf16>
    %224 = arith.truncf %222 : vector<24x384xf32> to vector<24x384xbf16>
    %cst_155 = arith.constant dense<0.000000e+00> : vector<192x384xf32>
    %225 = tpu.matmul %223, %224, %cst_155 {dimension_numbers = #tpu.dot_dimension_numbers<[1], [0], [0], [1], [0, 0, 1, 1], [], []>} : vector<192x24xbf16>, vector<24x384xbf16>, vector<192x384xf32> -> vector<192x384xf32>
    %226 = arith.truncf %225 : vector<192x384xf32> to vector<192x384xbf16>
    %c7_i32_156 = arith.constant 7 : i32
    %227 = tpu.memref_slice %arg40[%c7_i32_156] : memref<9x!tpu.dma_semaphore, #tpu.memory_space<semaphore_mem>> -> memref<1x!tpu.dma_semaphore, #tpu.memory_space<semaphore_mem>>
    %228 = tpu.memref_squeeze %227 : memref<1x!tpu.dma_semaphore, #tpu.memory_space<semaphore_mem>> -> memref<!tpu.dma_semaphore, #tpu.memory_space<semaphore_mem>>
    tpu.wait_dma2 semaphore(%228 : memref<!tpu.dma_semaphore, #tpu.memory_space<semaphore_mem>>) src(%arg27 : memref<4x384x128xbf16, #tpu.memory_space<any>>) dst(%arg38 : memref<4x384x128xbf16, #tpu.memory_space<vmem>>)
    %229 = vector.extract_strided_slice %226 {offsets = [0, 0], sizes = [48, 384], strides = [1, 1]} : vector<192x384xbf16> to vector<48x384xbf16>
    %c0_157 = arith.constant 0 : index
    %c0_158 = arith.constant 0 : index
    %c0_159 = arith.constant 0 : index
    %230 = vector.load %arg38[%c0_157, %c0_158, %c0_159] : memref<4x384x128xbf16, #tpu.memory_space<vmem>>, vector<1x384x128xbf16>
    %231 = vector.shape_cast %230 : vector<1x384x128xbf16> to vector<384x128xbf16>
    %cst_160 = arith.constant dense<0.000000e+00> : vector<48x128xf32>
    %232 = tpu.matmul %229, %231, %cst_160 {dimension_numbers = #tpu.dot_dimension_numbers<[1], [0], [0], [1], [0, 0, 1, 1], [], []>} : vector<48x384xbf16>, vector<384x128xbf16>, vector<48x128xf32> -> vector<48x128xf32>
    %233 = vector.extract_strided_slice %226 {offsets = [48, 0], sizes = [48, 384], strides = [1, 1]} : vector<192x384xbf16> to vector<48x384xbf16>
    %c1_161 = arith.constant 1 : index
    %c0_162 = arith.constant 0 : index
    %c0_163 = arith.constant 0 : index
    %234 = vector.load %arg38[%c1_161, %c0_162, %c0_163] : memref<4x384x128xbf16, #tpu.memory_space<vmem>>, vector<1x384x128xbf16>
    %235 = vector.shape_cast %234 : vector<1x384x128xbf16> to vector<384x128xbf16>
    %cst_164 = arith.constant dense<0.000000e+00> : vector<48x128xf32>
    %236 = tpu.matmul %233, %235, %cst_164 {dimension_numbers = #tpu.dot_dimension_numbers<[1], [0], [0], [1], [0, 0, 1, 1], [], []>} : vector<48x384xbf16>, vector<384x128xbf16>, vector<48x128xf32> -> vector<48x128xf32>
    %237 = arith.addf %232, %236 : vector<48x128xf32>
    %238 = vector.extract_strided_slice %226 {offsets = [96, 0], sizes = [48, 384], strides = [1, 1]} : vector<192x384xbf16> to vector<48x384xbf16>
    %c2_165 = arith.constant 2 : index
    %c0_166 = arith.constant 0 : index
    %c0_167 = arith.constant 0 : index
    %239 = vector.load %arg38[%c2_165, %c0_166, %c0_167] : memref<4x384x128xbf16, #tpu.memory_space<vmem>>, vector<1x384x128xbf16>
    %240 = vector.shape_cast %239 : vector<1x384x128xbf16> to vector<384x128xbf16>
    %cst_168 = arith.constant dense<0.000000e+00> : vector<48x128xf32>
    %241 = tpu.matmul %238, %240, %cst_168 {dimension_numbers = #tpu.dot_dimension_numbers<[1], [0], [0], [1], [0, 0, 1, 1], [], []>} : vector<48x384xbf16>, vector<384x128xbf16>, vector<48x128xf32> -> vector<48x128xf32>
    %242 = arith.addf %237, %241 : vector<48x128xf32>
    %243 = vector.extract_strided_slice %226 {offsets = [144, 0], sizes = [48, 384], strides = [1, 1]} : vector<192x384xbf16> to vector<48x384xbf16>
    %c3_169 = arith.constant 3 : index
    %c0_170 = arith.constant 0 : index
    %c0_171 = arith.constant 0 : index
    %244 = vector.load %arg38[%c3_169, %c0_170, %c0_171] : memref<4x384x128xbf16, #tpu.memory_space<vmem>>, vector<1x384x128xbf16>
    %245 = vector.shape_cast %244 : vector<1x384x128xbf16> to vector<384x128xbf16>
    %cst_172 = arith.constant dense<0.000000e+00> : vector<48x128xf32>
    %246 = tpu.matmul %243, %245, %cst_172 {dimension_numbers = #tpu.dot_dimension_numbers<[1], [0], [0], [1], [0, 0, 1, 1], [], []>} : vector<48x384xbf16>, vector<384x128xbf16>, vector<48x128xf32> -> vector<48x128xf32>
    %247 = arith.addf %242, %246 : vector<48x128xf32>
    %c0_173 = arith.constant 0 : index
    %c0_174 = arith.constant 0 : index
    %248 = vector.load %arg18[%c0_173, %c0_174] : memref<1x128xf32, #tpu.memory_space<vmem>>, vector<1x128xf32>
    %249 = vector.broadcast %248 : vector<1x128xf32> to vector<48x128xf32>
    %250 = arith.addf %247, %249 : vector<48x128xf32>
    %cst_175 = arith.constant 0.000000e+00 : f32
    %251 = vector.broadcast %cst_175 : f32 to vector<48x128xf32>
    %252 = arith.maximumf %250, %251 : vector<48x128xf32>
    %c0_176 = arith.constant 0 : index
    %c0_177 = arith.constant 0 : index
    %253 = vector.load %arg10[%c0_176, %c0_177] : memref<280x48xbf16, #tpu.memory_space<vmem>>, vector<280x48xbf16>
    %254 = arith.truncf %252 : vector<48x128xf32> to vector<48x128xbf16>
    %cst_178 = arith.constant dense<0.000000e+00> : vector<280x128xf32>
    %255 = tpu.matmul %253, %254, %cst_178 {dimension_numbers = #tpu.dot_dimension_numbers<[1], [0], [0], [1], [0, 0, 1, 1], [], []>} : vector<280x48xbf16>, vector<48x128xbf16>, vector<280x128xf32> -> vector<280x128xf32>
    %256 = arith.truncf %255 : vector<280x128xf32> to vector<280x128xbf16>
    %c8_i32_179 = arith.constant 8 : i32
    %257 = tpu.memref_slice %arg40[%c8_i32_179] : memref<9x!tpu.dma_semaphore, #tpu.memory_space<semaphore_mem>> -> memref<1x!tpu.dma_semaphore, #tpu.memory_space<semaphore_mem>>
    %258 = tpu.memref_squeeze %257 : memref<1x!tpu.dma_semaphore, #tpu.memory_space<semaphore_mem>> -> memref<!tpu.dma_semaphore, #tpu.memory_space<semaphore_mem>>
    tpu.wait_dma2 semaphore(%258 : memref<!tpu.dma_semaphore, #tpu.memory_space<semaphore_mem>>) src(%arg28 : memref<5x128x128xbf16, #tpu.memory_space<any>>) dst(%arg39 : memref<5x128x128xbf16, #tpu.memory_space<vmem>>)
    %259 = vector.extract_strided_slice %256 {offsets = [0, 0], sizes = [56, 128], strides = [1, 1]} : vector<280x128xbf16> to vector<56x128xbf16>
    %c0_180 = arith.constant 0 : index
    %c0_181 = arith.constant 0 : index
    %c0_182 = arith.constant 0 : index
    %260 = vector.load %arg39[%c0_180, %c0_181, %c0_182] : memref<5x128x128xbf16, #tpu.memory_space<vmem>>, vector<1x128x128xbf16>
    %261 = vector.shape_cast %260 : vector<1x128x128xbf16> to vector<128x128xbf16>
    %cst_183 = arith.constant dense<0.000000e+00> : vector<56x128xf32>
    %262 = tpu.matmul %259, %261, %cst_183 {dimension_numbers = #tpu.dot_dimension_numbers<[1], [0], [0], [1], [0, 0, 1, 1], [], []>} : vector<56x128xbf16>, vector<128x128xbf16>, vector<56x128xf32> -> vector<56x128xf32>
    %263 = vector.extract_strided_slice %256 {offsets = [56, 0], sizes = [56, 128], strides = [1, 1]} : vector<280x128xbf16> to vector<56x128xbf16>
    %c1_184 = arith.constant 1 : index
    %c0_185 = arith.constant 0 : index
    %c0_186 = arith.constant 0 : index
    %264 = vector.load %arg39[%c1_184, %c0_185, %c0_186] : memref<5x128x128xbf16, #tpu.memory_space<vmem>>, vector<1x128x128xbf16>
    %265 = vector.shape_cast %264 : vector<1x128x128xbf16> to vector<128x128xbf16>
    %cst_187 = arith.constant dense<0.000000e+00> : vector<56x128xf32>
    %266 = tpu.matmul %263, %265, %cst_187 {dimension_numbers = #tpu.dot_dimension_numbers<[1], [0], [0], [1], [0, 0, 1, 1], [], []>} : vector<56x128xbf16>, vector<128x128xbf16>, vector<56x128xf32> -> vector<56x128xf32>
    %267 = arith.addf %262, %266 : vector<56x128xf32>
    %268 = vector.extract_strided_slice %256 {offsets = [112, 0], sizes = [56, 128], strides = [1, 1]} : vector<280x128xbf16> to vector<56x128xbf16>
    %c2_188 = arith.constant 2 : index
    %c0_189 = arith.constant 0 : index
    %c0_190 = arith.constant 0 : index
    %269 = vector.load %arg39[%c2_188, %c0_189, %c0_190] : memref<5x128x128xbf16, #tpu.memory_space<vmem>>, vector<1x128x128xbf16>
    %270 = vector.shape_cast %269 : vector<1x128x128xbf16> to vector<128x128xbf16>
    %cst_191 = arith.constant dense<0.000000e+00> : vector<56x128xf32>
    %271 = tpu.matmul %268, %270, %cst_191 {dimension_numbers = #tpu.dot_dimension_numbers<[1], [0], [0], [1], [0, 0, 1, 1], [], []>} : vector<56x128xbf16>, vector<128x128xbf16>, vector<56x128xf32> -> vector<56x128xf32>
    %272 = arith.addf %267, %271 : vector<56x128xf32>
    %273 = vector.extract_strided_slice %256 {offsets = [168, 0], sizes = [56, 128], strides = [1, 1]} : vector<280x128xbf16> to vector<56x128xbf16>
    %c3_192 = arith.constant 3 : index
    %c0_193 = arith.constant 0 : index
    %c0_194 = arith.constant 0 : index
    %274 = vector.load %arg39[%c3_192, %c0_193, %c0_194] : memref<5x128x128xbf16, #tpu.memory_space<vmem>>, vector<1x128x128xbf16>
    %275 = vector.shape_cast %274 : vector<1x128x128xbf16> to vector<128x128xbf16>
    %cst_195 = arith.constant dense<0.000000e+00> : vector<56x128xf32>
    %276 = tpu.matmul %273, %275, %cst_195 {dimension_numbers = #tpu.dot_dimension_numbers<[1], [0], [0], [1], [0, 0, 1, 1], [], []>} : vector<56x128xbf16>, vector<128x128xbf16>, vector<56x128xf32> -> vector<56x128xf32>
    %277 = arith.addf %272, %276 : vector<56x128xf32>
    %278 = vector.extract_strided_slice %256 {offsets = [224, 0], sizes = [56, 128], strides = [1, 1]} : vector<280x128xbf16> to vector<56x128xbf16>
    %c4 = arith.constant 4 : index
    %c0_196 = arith.constant 0 : index
    %c0_197 = arith.constant 0 : index
    %279 = vector.load %arg39[%c4, %c0_196, %c0_197] : memref<5x128x128xbf16, #tpu.memory_space<vmem>>, vector<1x128x128xbf16>
    %280 = vector.shape_cast %279 : vector<1x128x128xbf16> to vector<128x128xbf16>
    %cst_198 = arith.constant dense<0.000000e+00> : vector<56x128xf32>
    %281 = tpu.matmul %278, %280, %cst_198 {dimension_numbers = #tpu.dot_dimension_numbers<[1], [0], [0], [1], [0, 0, 1, 1], [], []>} : vector<56x128xbf16>, vector<128x128xbf16>, vector<56x128xf32> -> vector<56x128xf32>
    %282 = arith.addf %277, %281 : vector<56x128xf32>
    %c0_199 = arith.constant 0 : index
    %c0_200 = arith.constant 0 : index
    %283 = vector.load %arg19[%c0_199, %c0_200] : memref<1x128xf32, #tpu.memory_space<vmem>>, vector<1x128xf32>
    %284 = vector.broadcast %283 : vector<1x128xf32> to vector<56x128xf32>
    %285 = arith.addf %282, %284 : vector<56x128xf32>
    %286 = arith.negf %285 : vector<56x128xf32>
    %287 = math.exp %286 : vector<56x128xf32>
    %cst_201 = arith.constant 1.000000e+00 : f32
    %288 = vector.broadcast %cst_201 : f32 to vector<56x128xf32>
    %289 = arith.addf %288, %287 : vector<56x128xf32>
    %290 = arith.divf %288, %289 : vector<56x128xf32>
    %c0_202 = arith.constant 0 : index
    %c0_203 = arith.constant 0 : index
    %291 = vector.load %arg30[%c0_202, %c0_203] : memref<56x128xf32, #tpu.memory_space<vmem>>, vector<56x128xf32>
    tpu.vector_store %arg30[%c0_202, %c0_203], %290 {strides = array<i32>} : memref<56x128xf32, #tpu.memory_space<vmem>>, vector<56x128xf32>,
    return
  }
}

</mosaic_0001>

<llo_original>
// kernel: cvae_forward.1
$region0: #{cvae_forward.1}
  #allocation0 [shape = 'u32[]', space=smem, size = 0x4, offset = 0x4, fixed_abs, tag = 'smem constant byte address 0x4 - core index']
  #allocation1 [shape = 'u32[144,128]{1,0:T(1,128)}', space=vmem, size = 0x12000, scoped, tag = 'internal scratch']
  #allocation2 [shape = 'bf16[4,128,512]{2,1,0:T(16,128)(2,1)}', space=vmem, size = 0x80000, scoped, tag = 'scratch operand']
  #allocation3 [shape = 'bf16[4,512,512]{2,1,0:T(16,128)(2,1)}', space=vmem, size = 0x200000, scoped, tag = 'scratch operand']
  #allocation4 [shape = 'bf16[4,512,384]{2,1,0:T(16,128)(2,1)}', space=vmem, size = 0x180000, scoped, tag = 'scratch operand']
  #allocation5 [shape = 'bf16[3,384,256]{2,1,0:T(16,128)(2,1)}', space=vmem, size = 0x90000, scoped, tag = 'scratch operand']
  #allocation6 [shape = 'bf16[3,128,384]{2,1,0:T(16,128)(2,1)}', space=vmem, size = 0x48000, scoped, tag = 'scratch operand']
  #allocation7 [shape = 'bf16[4,384,384]{2,1,0:T(16,128)(2,1)}', space=vmem, size = 0x120000, scoped, tag = 'scratch operand']
  #allocation8 [shape = 'bf16[4,384,384]{2,1,0:T(16,128)(2,1)}', space=vmem, size = 0x120000, scoped, tag = 'scratch operand']
  #allocation9 [shape = 'bf16[4,384,128]{2,1,0:T(16,128)(2,1)}', space=vmem, size = 0x60000, scoped, tag = 'scratch operand']
  #allocation10 [shape = 'bf16[5,128,128]{2,1,0:T(16,128)(2,1)}', space=vmem, size = 0x28000, scoped, tag = 'scratch operand']
  #allocation11 [shape = 's32[9]{0}', space=sflag, size = 0x24, scoped, tag = 'scratch operand']
  #allocation26 [shape = 's32[]', space=sflag, size = 0x4, offset = 0, fixed_abs, tag = 'sflag constant byte address 0x0 - dummy sync flag']
  #allocation28 [shape = 's32[]', space=sflag, size = 0x4, offset = 0, fixed_abs, tag = 'sflag constant byte address 0x0 - dummy sync flag']
  #allocation30 [shape = 's32[]', space=sflag, size = 0x4, offset = 0, fixed_abs, tag = 'sflag constant byte address 0x0 - dummy sync flag']
  #allocation32 [shape = 's32[]', space=sflag, size = 0x4, offset = 0, fixed_abs, tag = 'sflag constant byte address 0x0 - dummy sync flag']
  #allocation34 [shape = 's32[]', space=sflag, size = 0x4, offset = 0, fixed_abs, tag = 'sflag constant byte address 0x0 - dummy sync flag']
  #allocation36 [shape = 's32[]', space=sflag, size = 0x4, offset = 0, fixed_abs, tag = 'sflag constant byte address 0x0 - dummy sync flag']
  #allocation38 [shape = 's32[]', space=sflag, size = 0x4, offset = 0, fixed_abs, tag = 'sflag constant byte address 0x0 - dummy sync flag']
  #allocation40 [shape = 's32[]', space=sflag, size = 0x4, offset = 0, fixed_abs, tag = 'sflag constant byte address 0x0 - dummy sync flag']
  #allocation41 [shape = 's32[]', space=sflag, size = 0x4, offset = 0, fixed_abs, tag = 'sflag constant byte address 0x0 - dummy sync flag']
  #allocation42 [shape = 'u32[]', space=smem, size = 0x4, offset = 0x44, fixed_abs, tag = 'smem constant byte address 0x44 - assertion arg 0']
  #allocation43 [shape = 'u32[]', space=smem, size = 0x4, offset = 0x48, fixed_abs, tag = 'smem constant byte address 0x48 - assertion arg 1']
  #allocation44 [shape = 's32[]', space=sflag, size = 0x4, offset = 0, fixed_abs, tag = 'sflag constant byte address 0x0 - dummy sync flag']
  #allocation45 [shape = 's32[]', space=sflag, size = 0x4, offset = 0, fixed_abs, tag = 'sflag constant byte address 0x0 - dummy sync flag']
  %s0 = inlined_call_operand.smem [shape: u32[31], index: -1, kind: input, shape index: {}]
  %s1 = sld [smem:[%s0]]
  %s2 = scalar_lea.smem %s0, 1
  %s3 = sld [smem:[%s2]]
  %s4 = scalar_lea.smem %s0, 2
  %s5 = sld [smem:[%s4]]
  %s6 = scalar_lea.smem %s0, 3
  %s7 = sld [smem:[%s6]]
  %s8 = scalar_lea.smem %s0, 4
  %s9 = sld [smem:[%s8]]
  %s10 = scalar_lea.smem %s0, 5
  %s11 = sld [smem:[%s10]]
  %s12 = scalar_lea.smem %s0, 6
  %s13 = sld [smem:[%s12]]
  %s14 = scalar_lea.smem %s0, 7
  %s15 = sld [smem:[%s14]]
  %s16 = scalar_lea.smem %s0, 8
  %s17 = sld [smem:[%s16]]
  %s18 = scalar_lea.smem %s0, 9
  %s19 = sld [smem:[%s18]]
  %s20 = scalar_lea.smem %s0, 10
  %s21 = sld [smem:[%s20]]
  %s22 = scalar_lea.smem %s0, 11
  %s23 = sld [smem:[%s22]]
  %s24 = scalar_lea.smem %s0, 12
  %s25 = sld [smem:[%s24]]
  %s26 = scalar_lea.smem %s0, 13
  %s27 = sld [smem:[%s26]]
  %s28 = scalar_lea.smem %s0, 14
  %s29 = sld [smem:[%s28]]
  %s30 = scalar_lea.smem %s0, 15
  %s31 = sld [smem:[%s30]]
  %s32 = scalar_lea.smem %s0, 16
  %s33 = sld [smem:[%s32]]
  %s34 = scalar_lea.smem %s0, 17
  %s35 = sld [smem:[%s34]]
  %s36 = scalar_lea.smem %s0, 18
  %s37 = sld [smem:[%s36]]
  %s38 = scalar_lea.smem %s0, 19
  %s39 = sld [smem:[%s38]]
  %s40 = scalar_lea.smem %s0, 20
  %s41 = sld [smem:[%s40]]
  %s42 = scalar_lea.smem %s0, 21
  %s43 = sld [smem:[%s42]]
  %s44 = scalar_lea.smem %s0, 22
  %s45 = sld [smem:[%s44]]
  %s46 = scalar_lea.smem %s0, 23
  %s47 = sld [smem:[%s46]]
  %s48 = scalar_lea.smem %s0, 24
  %s49 = sld [smem:[%s48]]
  %s50 = scalar_lea.smem %s0, 25
  %s51 = sld [smem:[%s50]]
  %s52 = scalar_lea.smem %s0, 26
  %s53 = sld [smem:[%s52]]
  %s54 = scalar_lea.smem %s0, 27
  %s55 = sld [smem:[%s54]]
  %s56 = scalar_lea.smem %s0, 28
  %s57 = sld [smem:[%s56]]
  %s58 = scalar_lea.smem %s0, 29
  %s59 = sld [smem:[%s58]]
  %s60 = scalar_lea.smem %s0, 30
  %s61 = sld [smem:[%s60]]
  %62 = xla_tuple %s59, %s61
  %s63 = sld [smem:[#allocation0]]
  $region142: #{cvae_forward.1} parent=0
    _
  %s65 = ssub.s32 1, %s63
  %s66 = scalar_select 0, %s65, %s63
  $region1: #{cvae_forward.1} parent=0
    #allocation12 [shape = 'u8[2048]{0}', space=vmem, size = 0x800, scoped, tag = 'input window, operand 11, single buffered']
    #allocation13 [shape = 's32[1]{0}', space=sflag, size = 0x4, scoped, tag = 'scoped memory for cvae_forward.1']
    #allocation14 [shape = 'u8[2048]{0}', space=vmem, size = 0x800, scoped, tag = 'input window, operand 12, single buffered']
    #allocation15 [shape = 's32[1]{0}', space=sflag, size = 0x4, scoped, tag = 'scoped memory for cvae_forward.1']
    #allocation16 [shape = 'u8[1536]{0}', space=vmem, size = 0x800, scoped, tag = 'input window, operand 13, single buffered']
    #allocation17 [shape = 'u8[1024]{0}', space=vmem, size = 0x400, scoped, tag = 'input window, operand 14, single buffered']
    #allocation18 [shape = 's32[1]{0}', space=sflag, size = 0x4, scoped, tag = 'scoped memory for cvae_forward.1']
    #allocation19 [shape = 'u8[12288]{0}', space=vmem, size = 0x3000, scoped, tag = 'input window, operand 15, single buffered']
    #allocation20 [shape = 'u8[1536]{0}', space=vmem, size = 0x800, scoped, tag = 'input window, operand 16, single buffered']
    #allocation21 [shape = 's32[1]{0}', space=sflag, size = 0x4, scoped, tag = 'scoped memory for cvae_forward.1']
    #allocation22 [shape = 'u8[1536]{0}', space=vmem, size = 0x800, scoped, tag = 'input window, operand 17, single buffered']
    #allocation23 [shape = 'u8[512]{0}', space=vmem, size = 0x400, scoped, tag = 'input window, operand 18, single buffered']
    #allocation24 [shape = 's32[1]{0}', space=sflag, size = 0x4, scoped, tag = 'scoped memory for cvae_forward.1']
    #allocation25 [shape = 'u8[512]{0}', space=vmem, size = 0x400, scoped, tag = 'input window, operand 19, single buffered']
    #allocation27 [shape = 'u32[9]{0}', space=smem, size = 0x24, scoped, tag = 'DMA stride descriptor']
    #allocation29 [shape = 'u32[9]{0}', space=smem, size = 0x24, scoped, tag = 'DMA stride descriptor']
    #allocation31 [shape = 'u32[9]{0}', space=smem, size = 0x24, scoped, tag = 'DMA stride descriptor']
    #allocation33 [shape = 'u32[9]{0}', space=smem, size = 0x24, scoped, tag = 'DMA stride descriptor']
    #allocation35 [shape = 'u32[9]{0}', space=smem, size = 0x24, scoped, tag = 'DMA stride descriptor']
    #allocation37 [shape = 'u32[9]{0}', space=smem, size = 0x24, scoped, tag = 'DMA stride descriptor']
    #allocation39 [shape = 'u32[9]{0}', space=smem, size = 0x24, scoped, tag = 'DMA stride descriptor']
    %67 = vsyncpa [#allocation13], 0
    %68 = vsyncpa [#allocation15], 0
    %69 = vsyncpa [#allocation18], 0
    %70 = vsyncpa [#allocation21], 0
    %71 = vsyncpa [#allocation24], 0
    // Predicated region
    $region2: #{cvae_forward.1} parent=1 // pred_check
      _
    $region3: #{cvae_forward.1} parent=1 // pred_check_branch
      %73 = sbr.rel (0) target = $region5
    $region4: #{cvae_forward.1} parent=1 // pred_region
      _
    $region5: #{cvae_forward.1} parent=1 // pred_fallthru
      _
    // Predicated region
    $region6: #{cvae_forward.1} parent=1 // pred_check
      _
    $region7: #{cvae_forward.1} parent=1 // pred_check_branch
      %75 = sbr.rel (0) target = $region9
    $region8: #{cvae_forward.1} parent=1 // pred_region
      _
    $region9: #{cvae_forward.1} parent=1 // pred_fallthru
      _
    // Predicated region
    $region10: #{cvae_forward.1} parent=1 // pred_check
      _
    $region11: #{cvae_forward.1} parent=1 // pred_check_branch
      %77 = sbr.rel (0) target = $region13
    $region12: #{cvae_forward.1} parent=1 // pred_region
      _
    $region13: #{cvae_forward.1} parent=1 // pred_fallthru
      _
    // Predicated region
    $region14: #{cvae_forward.1} parent=1 // pred_check
      _
    $region15: #{cvae_forward.1} parent=1 // pred_check_branch
      %79 = sbr.rel (0) target = $region17
    $region16: #{cvae_forward.1} parent=1 // pred_region
      _
    $region17: #{cvae_forward.1} parent=1 // pred_fallthru
      _
    // Predicated region
    $region18: #{cvae_forward.1} parent=1 // pred_check
      _
    $region19: #{cvae_forward.1} parent=1 // pred_check_branch
      %81 = sbr.rel (0) target = $region21
    $region20: #{cvae_forward.1} parent=1 // pred_region
      _
    $region21: #{cvae_forward.1} parent=1 // pred_fallthru
      _
    // Predicated region
    $region22: #{cvae_forward.1} parent=1 // pred_check
      _
    $region23: #{cvae_forward.1} parent=1 // pred_check_branch
      %83 = sbr.rel (0) target = $region25
    $region24: #{cvae_forward.1} parent=1 // pred_region
      _
    $region25: #{cvae_forward.1} parent=1 // pred_fallthru
      _
    // Predicated region
    $region26: #{cvae_forward.1} parent=1 // pred_check
      _
    $region27: #{cvae_forward.1} parent=1 // pred_check_branch
      %85 = sbr.rel (0) target = $region29
    $region28: #{cvae_forward.1} parent=1 // pred_region
      _
    $region29: #{cvae_forward.1} parent=1 // pred_fallthru
      _
    // Predicated region
    $region30: #{cvae_forward.1} parent=1 // pred_check
      _
    $region31: #{cvae_forward.1} parent=1 // pred_check_branch
      %87 = sbr.rel (0) target = $region33
    $region32: #{cvae_forward.1} parent=1 // pred_region
      _
    $region33: #{cvae_forward.1} parent=1 // pred_fallthru
      _
    // Predicated region
    $region34: #{cvae_forward.1} parent=1 // pred_check
      _
    $region35: #{cvae_forward.1} parent=1 // pred_check_branch
      %89 = sbr.rel (0) target = $region37
    $region36: #{cvae_forward.1} parent=1 // pred_region
      _
    $region37: #{cvae_forward.1} parent=1 // pred_fallthru
      _
    // Predicated region
    $region38: #{cvae_forward.1} parent=1 // pred_check
      _
    $region39: #{cvae_forward.1} parent=1 // pred_check_branch
      %91 = sbr.rel (0) target = $region41
    $region40: #{cvae_forward.1} parent=1 // pred_region
      _
    $region41: #{cvae_forward.1} parent=1 // pred_fallthru
      _
    // Predicated region
    $region42: #{cvae_forward.1} parent=1 // pred_check
      _
    $region43: #{cvae_forward.1} parent=1 // pred_check_branch
      %93 = sbr.rel (0) target = $region45
    $region44: #{cvae_forward.1} parent=1 // pred_region
      _
    $region45: #{cvae_forward.1} parent=1 // pred_fallthru
      _
    // Predicated region
    $region46: #{cvae_forward.1} parent=1 // pred_check
      _
    $region47: #{cvae_forward.1} parent=1 // pred_check_branch
      %95 = sbr.rel (0) target = $region49
    $region48: #{cvae_forward.1} parent=1 // pred_region
      %s97 = ssub.s32 64, 64
      %98 = vsyncadd [#allocation13], %s97
      %s100 = sshll.u32 [#allocation12], 4
      %s101 = int_to_ptr.vmem [resolvable:$true] %s100
      %103 = dma.hbm_to_vmem [thread:$0]  %s23, 64, %s101, [#allocation13]
    $region49: #{cvae_forward.1} parent=1 // pred_fallthru
      _
    // Predicated region
    $region50: #{cvae_forward.1} parent=1 // pred_check
      _
    $region51: #{cvae_forward.1} parent=1 // pred_check_branch
      %105 = sbr.rel (0) target = $region53
    $region52: #{cvae_forward.1} parent=1 // pred_region
      %s107 = ssub.s32 64, 64
      %108 = vsyncadd [#allocation15], %s107
      %s110 = sshll.u32 [#allocation14], 4
      %s111 = int_to_ptr.vmem [resolvable:$true] %s110
      %113 = dma.hbm_to_vmem [thread:$0]  %s25, 64, %s111, [#allocation15]
    $region53: #{cvae_forward.1} parent=1 // pred_fallthru
      _
    // Predicated region
    $region54: #{cvae_forward.1} parent=1 // pred_check
      _
    $region55: #{cvae_forward.1} parent=1 // pred_check_branch
      %115 = sbr.rel (0) target = $region57
    $region56: #{cvae_forward.1} parent=1 // pred_region
      %s117 = ssub.s32 48, 48
      %118 = vsyncadd [#allocation15], %s117
      %s120 = sshll.u32 [#allocation16], 4
      %s121 = int_to_ptr.vmem [resolvable:$true] %s120
      %123 = dma.hbm_to_vmem [thread:$0]  %s27, 48, %s121, [#allocation15]
    $region57: #{cvae_forward.1} parent=1 // pred_fallthru
      _
    // Predicated region
    $region58: #{cvae_forward.1} parent=1 // pred_check
      _
    $region59: #{cvae_forward.1} parent=1 // pred_check_branch
      %125 = sbr.rel (0) target = $region61
    $region60: #{cvae_forward.1} parent=1 // pred_region
      %s127 = ssub.s32 32, 32
      %128 = vsyncadd [#allocation18], %s127
      %s130 = sshll.u32 [#allocation17], 4
      %s131 = int_to_ptr.vmem [resolvable:$true] %s130
      %133 = dma.hbm_to_vmem [thread:$0]  %s29, 32, %s131, [#allocation18]
    $region61: #{cvae_forward.1} parent=1 // pred_fallthru
      _
    // Predicated region
    $region62: #{cvae_forward.1} parent=1 // pred_check
      _
    $region63: #{cvae_forward.1} parent=1 // pred_check_branch
      %135 = sbr.rel (0) target = $region65
    $region64: #{cvae_forward.1} parent=1 // pred_region
      %s137 = ssub.s32 384, 384
      %138 = vsyncadd [#allocation18], %s137
      %s140 = sshll.u32 [#allocation19], 4
      %s141 = int_to_ptr.vmem [resolvable:$true] %s140
      %143 = dma.hbm_to_vmem [thread:$0]  %s31, 384, %s141, [#allocation18]
    $region65: #{cvae_forward.1} parent=1 // pred_fallthru
      _
    // Predicated region
    $region66: #{cvae_forward.1} parent=1 // pred_check
      _
    $region67: #{cvae_forward.1} parent=1 // pred_check_branch
      %145 = sbr.rel (0) target = $region69
    $region68: #{cvae_forward.1} parent=1 // pred_region
      %s147 = ssub.s32 48, 48
      %148 = vsyncadd [#allocation21], %s147
      %s150 = sshll.u32 [#allocation20], 4
      %s151 = int_to_ptr.vmem [resolvable:$true] %s150
      %153 = dma.hbm_to_vmem [thread:$0]  %s33, 48, %s151, [#allocation21]
    $region69: #{cvae_forward.1} parent=1 // pred_fallthru
      _
    // Predicated region
    $region70: #{cvae_forward.1} parent=1 // pred_check
      _
    $region71: #{cvae_forward.1} parent=1 // pred_check_branch
      %155 = sbr.rel (0) target = $region73
    $region72: #{cvae_forward.1} parent=1 // pred_region
      %s157 = ssub.s32 48, 48
      %158 = vsyncadd [#allocation21], %s157
      %s160 = sshll.u32 [#allocation22], 4
      %s161 = int_to_ptr.vmem [resolvable:$true] %s160
      %163 = dma.hbm_to_vmem [thread:$0]  %s35, 48, %s161, [#allocation21]
    $region73: #{cvae_forward.1} parent=1 // pred_fallthru
      _
    // Predicated region
    $region74: #{cvae_forward.1} parent=1 // pred_check
      _
    $region75: #{cvae_forward.1} parent=1 // pred_check_branch
      %165 = sbr.rel (0) target = $region77
    $region76: #{cvae_forward.1} parent=1 // pred_region
      %s167 = ssub.s32 16, 16
      %168 = vsyncadd [#allocation24], %s167
      %s170 = sshll.u32 [#allocation23], 4
      %s171 = int_to_ptr.vmem [resolvable:$true] %s170
      %173 = dma.hbm_to_vmem [thread:$0]  %s37, 16, %s171, [#allocation24]
    $region77: #{cvae_forward.1} parent=1 // pred_fallthru
      _
    // Predicated region
    $region78: #{cvae_forward.1} parent=1 // pred_check
      _
    $region79: #{cvae_forward.1} parent=1 // pred_check_branch
      %175 = sbr.rel (0) target = $region81
    $region80: #{cvae_forward.1} parent=1 // pred_region
      %s177 = ssub.s32 16, 16
      %178 = vsyncadd [#allocation24], %s177
      %s180 = sshll.u32 [#allocation25], 4
      %s181 = int_to_ptr.vmem [resolvable:$true] %s180
      %183 = dma.hbm_to_vmem [thread:$0]  %s39, 16, %s181, [#allocation24]
    $region81: #{cvae_forward.1} parent=1 // pred_fallthru
      _
    // Predicated region
    $region82: #{cvae_forward.1} parent=1 // pred_check
      _
    $region83: #{cvae_forward.1} parent=1 // pred_check_branch
      %185 = sbr.rel (0) target = $region85
    $region84: #{cvae_forward.1} parent=1 // pred_region
      %186 = dma.done [#allocation13], 64
    $region85: #{cvae_forward.1} parent=1 // pred_fallthru
      _
    // Predicated region
    $region86: #{cvae_forward.1} parent=1 // pred_check
      _
    $region87: #{cvae_forward.1} parent=1 // pred_check_branch
      %188 = sbr.rel (0) target = $region89
    $region88: #{cvae_forward.1} parent=1 // pred_region
      %189 = dma.done [#allocation15], 64
    $region89: #{cvae_forward.1} parent=1 // pred_fallthru
      _
    // Predicated region
    $region90: #{cvae_forward.1} parent=1 // pred_check
      _
    $region91: #{cvae_forward.1} parent=1 // pred_check_branch
      %191 = sbr.rel (0) target = $region93
    $region92: #{cvae_forward.1} parent=1 // pred_region
      %192 = dma.done [#allocation15], 48
    $region93: #{cvae_forward.1} parent=1 // pred_fallthru
      _
    // Predicated region
    $region94: #{cvae_forward.1} parent=1 // pred_check
      _
    $region95: #{cvae_forward.1} parent=1 // pred_check_branch
      %194 = sbr.rel (0) target = $region97
    $region96: #{cvae_forward.1} parent=1 // pred_region
      %195 = dma.done [#allocation18], 32
    $region97: #{cvae_forward.1} parent=1 // pred_fallthru
      _
    // Predicated region
    $region98: #{cvae_forward.1} parent=1 // pred_check
      _
    $region99: #{cvae_forward.1} parent=1 // pred_check_branch
      %197 = sbr.rel (0) target = $region101
    $region100: #{cvae_forward.1} parent=1 // pred_region
      %198 = dma.done [#allocation18], 384
    $region101: #{cvae_forward.1} parent=1 // pred_fallthru
      _
    // Predicated region
    $region102: #{cvae_forward.1} parent=1 // pred_check
      _
    $region103: #{cvae_forward.1} parent=1 // pred_check_branch
      %200 = sbr.rel (0) target = $region105
    $region104: #{cvae_forward.1} parent=1 // pred_region
      %201 = dma.done [#allocation21], 48
    $region105: #{cvae_forward.1} parent=1 // pred_fallthru
      _
    // Predicated region
    $region106: #{cvae_forward.1} parent=1 // pred_check
      _
    $region107: #{cvae_forward.1} parent=1 // pred_check_branch
      %203 = sbr.rel (0) target = $region109
    $region108: #{cvae_forward.1} parent=1 // pred_region
      %204 = dma.done [#allocation21], 48
    $region109: #{cvae_forward.1} parent=1 // pred_fallthru
      _
    // Predicated region
    $region110: #{cvae_forward.1} parent=1 // pred_check
      _
    $region111: #{cvae_forward.1} parent=1 // pred_check_branch
      %206 = sbr.rel (0) target = $region113
    $region112: #{cvae_forward.1} parent=1 // pred_region
      %207 = dma.done [#allocation24], 16
    $region113: #{cvae_forward.1} parent=1 // pred_fallthru
      _
    // Predicated region
    $region114: #{cvae_forward.1} parent=1 // pred_check
      _
    $region115: #{cvae_forward.1} parent=1 // pred_check_branch
      %209 = sbr.rel (0) target = $region117
    $region116: #{cvae_forward.1} parent=1 // pred_region
      %210 = dma.done [#allocation24], 16
    $region117: #{cvae_forward.1} parent=1 // pred_fallthru
      _
    %s213 = sshll.u32 1, 14
    %s214 = sxor.u32 4294967295, %s213
    %s216 = sld [smem:[#allocation0]]
    %s217 = sadd.s32 2, %s216
    %s219 = sshll.u32 7, 26
    %s220 = sxor.u32 4294967295, %s219
    %s221 = sand.u32 0, %s220
    %s222 = sshll.u32 %s217, 26
    %s223 = sor.u32 %s221, %s222
    %s224 = sshll.u32 [#allocation2], 4
    %s225 = int_to_ptr.vmem [resolvable:$true] %s224
    %228 = sst [smem:[#allocation27]] 512
    %s229 = scalar_lea.smem [#allocation27], 1
    %230 = sst [smem:[%s229]] 512
    %s231 = scalar_lea.smem [#allocation27], 2
    %232 = sst [smem:[%s231]] 4
    %s233 = scalar_lea.smem [#allocation27], 3
    %234 = sst [smem:[%s233]] 64
    %s235 = scalar_lea.smem [#allocation27], 4
    %236 = sst [smem:[%s235]] 128
    %s237 = scalar_lea.smem [#allocation27], 5
    %238 = sst [smem:[%s237]] 2
    %s239 = scalar_lea.smem [#allocation27], 6
    %240 = sst [smem:[%s239]] 256
    %s241 = scalar_lea.smem [#allocation27], 7
    %242 = sst [smem:[%s241]] 64
    %s243 = scalar_lea.smem [#allocation27], 8
    %244 = sst [smem:[%s243]] 4
    %246 = dma.general %s41, 16384, %s225, [#allocation11], [#allocation26], [#allocation27], %s223, 0
    %s247 = scalar_lea.sflag [#allocation11], 1
    %s249 = sshll.u32 1, 14
    %s250 = sxor.u32 4294967295, %s249
    %s252 = sadd.s32 2, %s216
    %s254 = sshll.u32 7, 26
    %s255 = sxor.u32 4294967295, %s254
    %s256 = sand.u32 0, %s255
    %s257 = sshll.u32 %s252, 26
    %s258 = sor.u32 %s256, %s257
    %s259 = sshll.u32 [#allocation3], 4
    %s260 = int_to_ptr.vmem [resolvable:$true] %s259
    %263 = sst [smem:[#allocation29]] 512
    %s264 = scalar_lea.smem [#allocation29], 1
    %265 = sst [smem:[%s264]] 512
    %s266 = scalar_lea.smem [#allocation29], 2
    %267 = sst [smem:[%s266]] 4
    %s268 = scalar_lea.smem [#allocation29], 3
    %269 = sst [smem:[%s268]] 64
    %s270 = scalar_lea.smem [#allocation29], 4
    %271 = sst [smem:[%s270]] 128
    %s272 = scalar_lea.smem [#allocation29], 5
    %273 = sst [smem:[%s272]] 2
    %s274 = scalar_lea.smem [#allocation29], 6
    %275 = sst [smem:[%s274]] 256
    %s276 = scalar_lea.smem [#allocation29], 7
    %277 = sst [smem:[%s276]] 64
    %s278 = scalar_lea.smem [#allocation29], 8
    %279 = sst [smem:[%s278]] 4
    %281 = dma.general %s43, 65536, %s260, %s247, [#allocation28], [#allocation29], %s258, 0
    %s282 = scalar_lea.sflag [#allocation11], 2
    %s284 = sshll.u32 1, 14
    %s285 = sxor.u32 4294967295, %s284
    %s287 = sadd.s32 2, %s216
    %s289 = sshll.u32 7, 26
    %s290 = sxor.u32 4294967295, %s289
    %s291 = sand.u32 0, %s290
    %s292 = sshll.u32 %s287, 26
    %s293 = sor.u32 %s291, %s292
    %s294 = sshll.u32 [#allocation4], 4
    %s295 = int_to_ptr.vmem [resolvable:$true] %s294
    %298 = sst [smem:[#allocation31]] 384
    %s299 = scalar_lea.smem [#allocation31], 1
    %300 = sst [smem:[%s299]] 384
    %s301 = scalar_lea.smem [#allocation31], 2
    %302 = sst [smem:[%s301]] 3
    %s303 = scalar_lea.smem [#allocation31], 3
    %304 = sst [smem:[%s303]] 64
    %s305 = scalar_lea.smem [#allocation31], 4
    %306 = sst [smem:[%s305]] 128
    %s307 = scalar_lea.smem [#allocation31], 5
    %308 = sst [smem:[%s307]] 2
    %s309 = scalar_lea.smem [#allocation31], 6
    %310 = sst [smem:[%s309]] 192
    %s311 = scalar_lea.smem [#allocation31], 7
    %312 = sst [smem:[%s311]] 64
    %s313 = scalar_lea.smem [#allocation31], 8
    %314 = sst [smem:[%s313]] 4
    %316 = dma.general %s45, 49152, %s295, %s282, [#allocation30], [#allocation31], %s293, 0
    %s317 = scalar_lea.sflag [#allocation11], 3
    %s319 = sshll.u32 1, 14
    %s320 = sxor.u32 4294967295, %s319
    %s322 = sadd.s32 2, %s216
    %s324 = sshll.u32 7, 26
    %s325 = sxor.u32 4294967295, %s324
    %s326 = sand.u32 0, %s325
    %s327 = sshll.u32 %s322, 26
    %s328 = sor.u32 %s326, %s327
    %s329 = sshll.u32 [#allocation5], 4
    %s330 = int_to_ptr.vmem [resolvable:$true] %s329
    %333 = sst [smem:[#allocation33]] 256
    %s334 = scalar_lea.smem [#allocation33], 1
    %335 = sst [smem:[%s334]] 256
    %s336 = scalar_lea.smem [#allocation33], 2
    %337 = sst [smem:[%s336]] 2
    %s338 = scalar_lea.smem [#allocation33], 3
    %339 = sst [smem:[%s338]] 64
    %s340 = scalar_lea.smem [#allocation33], 4
    %341 = sst [smem:[%s340]] 128
    %s342 = scalar_lea.smem [#allocation33], 5
    %343 = sst [smem:[%s342]] 2
    %s344 = scalar_lea.smem [#allocation33], 6
    %345 = sst [smem:[%s344]] 128
    %s346 = scalar_lea.smem [#allocation33], 7
    %347 = sst [smem:[%s346]] 64
    %s348 = scalar_lea.smem [#allocation33], 8
    %349 = sst [smem:[%s348]] 4
    %351 = dma.general %s47, 18432, %s330, %s317, [#allocation32], [#allocation33], %s328, 0
    %s352 = scalar_lea.sflag [#allocation11], 4
    %s354 = sshll.u32 1, 14
    %s355 = sxor.u32 4294967295, %s354
    %s357 = sadd.s32 2, %s216
    %s359 = sshll.u32 7, 26
    %s360 = sxor.u32 4294967295, %s359
    %s361 = sand.u32 0, %s360
    %s362 = sshll.u32 %s357, 26
    %s363 = sor.u32 %s361, %s362
    %s364 = sshll.u32 [#allocation6], 4
    %s365 = int_to_ptr.vmem [resolvable:$true] %s364
    %368 = sst [smem:[#allocation35]] 384
    %s369 = scalar_lea.smem [#allocation35], 1
    %370 = sst [smem:[%s369]] 384
    %s371 = scalar_lea.smem [#allocation35], 2
    %372 = sst [smem:[%s371]] 3
    %s373 = scalar_lea.smem [#allocation35], 3
    %374 = sst [smem:[%s373]] 64
    %s375 = scalar_lea.smem [#allocation35], 4
    %376 = sst [smem:[%s375]] 128
    %s377 = scalar_lea.smem [#allocation35], 5
    %378 = sst [smem:[%s377]] 2
    %s379 = scalar_lea.smem [#allocation35], 6
    %380 = sst [smem:[%s379]] 192
    %s381 = scalar_lea.smem [#allocation35], 7
    %382 = sst [smem:[%s381]] 64
    %s383 = scalar_lea.smem [#allocation35], 8
    %384 = sst [smem:[%s383]] 4
    %386 = dma.general %s49, 9216, %s365, %s352, [#allocation34], [#allocation35], %s363, 0
    %s387 = scalar_lea.sflag [#allocation11], 5
    %s389 = sshll.u32 1, 14
    %s390 = sxor.u32 4294967295, %s389
    %s392 = sadd.s32 2, %s216
    %s394 = sshll.u32 7, 26
    %s395 = sxor.u32 4294967295, %s394
    %s396 = sand.u32 0, %s395
    %s397 = sshll.u32 %s392, 26
    %s398 = sor.u32 %s396, %s397
    %s399 = sshll.u32 [#allocation7], 4
    %s400 = int_to_ptr.vmem [resolvable:$true] %s399
    %403 = sst [smem:[#allocation37]] 384
    %s404 = scalar_lea.smem [#allocation37], 1
    %405 = sst [smem:[%s404]] 384
    %s406 = scalar_lea.smem [#allocation37], 2
    %407 = sst [smem:[%s406]] 3
    %s408 = scalar_lea.smem [#allocation37], 3
    %409 = sst [smem:[%s408]] 64
    %s410 = scalar_lea.smem [#allocation37], 4
    %411 = sst [smem:[%s410]] 128
    %s412 = scalar_lea.smem [#allocation37], 5
    %413 = sst [smem:[%s412]] 2
    %s414 = scalar_lea.smem [#allocation37], 6
    %415 = sst [smem:[%s414]] 192
    %s416 = scalar_lea.smem [#allocation37], 7
    %417 = sst [smem:[%s416]] 64
    %s418 = scalar_lea.smem [#allocation37], 8
    %419 = sst [smem:[%s418]] 4
    %421 = dma.general %s51, 36864, %s400, %s387, [#allocation36], [#allocation37], %s398, 0
    %s422 = scalar_lea.sflag [#allocation11], 6
    %s424 = sshll.u32 1, 14
    %s425 = sxor.u32 4294967295, %s424
    %s427 = sadd.s32 2, %s216
    %s429 = sshll.u32 7, 26
    %s430 = sxor.u32 4294967295, %s429
    %s431 = sand.u32 0, %s430
    %s432 = sshll.u32 %s427, 26
    %s433 = sor.u32 %s431, %s432
    %s434 = sshll.u32 [#allocation8], 4
    %s435 = int_to_ptr.vmem [resolvable:$true] %s434
    %438 = sst [smem:[#allocation39]] 384
    %s439 = scalar_lea.smem [#allocation39], 1
    %440 = sst [smem:[%s439]] 384
    %s441 = scalar_lea.smem [#allocation39], 2
    %442 = sst [smem:[%s441]] 3
    %s443 = scalar_lea.smem [#allocation39], 3
    %444 = sst [smem:[%s443]] 64
    %s445 = scalar_lea.smem [#allocation39], 4
    %446 = sst [smem:[%s445]] 128
    %s447 = scalar_lea.smem [#allocation39], 5
    %448 = sst [smem:[%s447]] 2
    %s449 = scalar_lea.smem [#allocation39], 6
    %450 = sst [smem:[%s449]] 192
    %s451 = scalar_lea.smem [#allocation39], 7
    %452 = sst [smem:[%s451]] 64
    %s453 = scalar_lea.smem [#allocation39], 8
    %454 = sst [smem:[%s453]] 4
    %456 = dma.general %s53, 36864, %s435, %s422, [#allocation38], [#allocation39], %s433, 0
    %s457 = scalar_lea.sflag [#allocation11], 7
    // Predicated region
    $region118: #{cvae_forward.1} parent=1 // pred_check
      _
    $region119: #{cvae_forward.1} parent=1 // pred_check_branch
      %459 = sbr.rel target = $region121
    $region120: #{cvae_forward.1} parent=1 // pred_region
      %460 = sst [smem:[#allocation42]] [#allocation41]
      %461 = sst [smem:[#allocation43]] [#allocation40]
    $region121: #{cvae_forward.1} parent=1 // pred_fallthru
      _
    %463 = shalt.err (0)
    %s465 = sshll.u32 [#allocation9], 4
    %s466 = int_to_ptr.vmem [resolvable:$true] %s465
    %468 = dma.hbm_to_vmem [thread:$0]  %s55, 12288, %s466, %s457
    %s469 = scalar_lea.sflag [#allocation11], 8
    // Predicated region
    $region122: #{cvae_forward.1} parent=1 // pred_check
      _
    $region123: #{cvae_forward.1} parent=1 // pred_check_branch
      %471 = sbr.rel target = $region125
    $region124: #{cvae_forward.1} parent=1 // pred_region
      %472 = sst [smem:[#allocation42]] [#allocation45]
      %473 = sst [smem:[#allocation43]] [#allocation44]
    $region125: #{cvae_forward.1} parent=1 // pred_fallthru
      _
    %475 = shalt.err (0)
    %s477 = sshll.u32 [#allocation10], 4
    %s478 = int_to_ptr.vmem [resolvable:$true] %s477
    %480 = dma.hbm_to_vmem [thread:$0]  %s57, 5120, %s478, %s469
    %v481 = vld [vmem:[%s1] sm:$0xff]
    %v482 = vld [vmem:[%s1 + $0x8] sm:$0xff]
    %v483 = vld [vmem:[%s1 + $0x10] sm:$0xff]
    %v484 = vld [vmem:[%s1 + $0x18] sm:$0xff]
    %v485 = vld [vmem:[%s1 + $0x20] sm:$0xff]
    %v486 = vld [vmem:[%s1 + $0x28] sm:$0xff]
    %v487 = vld [vmem:[%s1 + $0x30] sm:$0xff]
    %v488 = vld [vmem:[%s5] sm:$0xf]
    %v489 = vld [vmem:[%s5 + $0x4] sm:$0xf]
    %v490 = vld [vmem:[%s5 + $0x8] sm:$0xf]
    %v491 = vld [vmem:[%s5 + $0xc] sm:$0xf]
    %v492 = vld [vmem:[%s5 + $0x10] sm:$0xf]
    %v493 = vld [vmem:[%s5 + $0x14] sm:$0xf]
    %v494 = vld [vmem:[%s5 + $0x18] sm:$0xf]
    %v495 = vld [vmem:[%s5 + $0x1c] sm:$0xf]
    %v496 = vld [vmem:[%s5 + $0x20] sm:$0xf]
    %v497 = vld [vmem:[%s5 + $0x24] sm:$0xf]
    %v498 = vld [vmem:[%s5 + $0x28] sm:$0xf]
    %v499 = vld [vmem:[%s5 + $0x2c] sm:$0xf]
    %v500 = vld [vmem:[%s5 + $0x30] sm:$0xf]
    %v501 = vld [vmem:[%s5 + $0x34] sm:$0xf]
    %v502 = vld [vmem:[%s5 + $0x38] sm:$0xf]
    %v503 = vld [vmem:[%s5 + $0x3c] sm:$0xf]
    %v504 = vpack.c.bf16 %v482, %v481
    %v505 = vpack.c.bf16 %v484, %v483
    %v506 = vpack.c.bf16 %v486, %v485
    %v507 = vpack.c.bf16 %v487, %v487
    %v524 = vunpack.c.l.b16 %v488
    %v525 = vunpack.c.l.b16 %v489
    %v526 = vunpack.c.l.b16 %v490
    %v527 = vunpack.c.l.b16 %v491
    %v528 = vunpack.c.l.b16 %v492
    %v529 = vunpack.c.l.b16 %v493
    %v530 = vunpack.c.l.b16 %v494
    %v531 = vunpack.c.l.b16 %v495
    %v532 = vunpack.c.l.b16 %v496
    %v533 = vunpack.c.l.b16 %v497
    %v534 = vunpack.c.l.b16 %v498
    %v535 = vunpack.c.l.b16 %v499
    %v536 = vunpack.c.l.b16 %v500
    %v537 = vunpack.c.l.b16 %v501
    %v538 = vunpack.c.l.b16 %v502
    %v539 = vunpack.c.l.b16 %v503
    %v540 = vpack.c.b16 %v525, %v524
    %v541 = vpack.c.b16 %v527, %v526
    %v542 = vpack.c.b16 %v529, %v528
    %v543 = vpack.c.b16 %v531, %v530
    %v544 = vpack.c.b16 %v533, %v532
    %v545 = vpack.c.b16 %v535, %v534
    %v546 = vpack.c.b16 %v537, %v536
    %v547 = vpack.c.b16 %v539, %v538
    %vm548 = vcmask 457728
    %v550 = vsel %vm548, %v540, 0
    %v553 = vsel %vm548, %v541, 0
    %v556 = vsel %vm548, %v542, 0
    %v559 = vsel %vm548, %v543, 0
    %v562 = vsel %vm548, %v544, 0
    %v565 = vsel %vm548, %v545, 0
    %v568 = vsel %vm548, %v546, 0
    %v571 = vsel %vm548, %v547, 0
    %vm573 = vcmask 1043456
    %v575 = vsel %vm573, %v507, 0
    %577 = vmatprep.subr.bf16.mxu0 0
    %578 = vmatpush1.bf16.msra.mxu0 %v504
    %579 = vmatprep.subr.bf16.mxu0 0
    %580 = vmatpush1.bf16.msra.mxu0 %v505
    %581 = vmatprep.subr.bf16.mxu0 0
    %582 = vmatpush1.bf16.msra.mxu0 %v506
    %583 = vmatprep.subr.bf16.mxu0 0
    %584 = vmatpush1.bf16.msra.mxu0 %v575
    %585 = vmatprep.subr.bf16.mxu0 0
    %586 = vmatpush1.bf16.msra.mxu0 0
    %587 = vmatprep.subr.bf16.mxu0 0
    %588 = vmatpush1.bf16.msra.mxu0 0
    %589 = vmatprep.subr.bf16.mxu0 0
    %590 = vmatpush1.bf16.msra.mxu0 0
    %591 = vmatprep.subr.bf16.mxu0 0
    %592 = vmatpush1.bf16.msra.mxu0 0
    %593 = vmatprep.subr.bf16.mxu0 0
    %594 = vmatpush1.bf16.msra.mxu0 0
    %595 = vmatprep.subr.bf16.mxu0 0
    %596 = vmatpush1.bf16.msra.mxu0 0
    %597 = vmatprep.subr.bf16.mxu0 0
    %598 = vmatpush1.bf16.msra.mxu0 0
    %599 = vmatprep.subr.bf16.mxu0 0
    %600 = vmatpush1.bf16.msra.mxu0 0
    %601 = vmatprep.subr.bf16.mxu0 0
    %602 = vmatpush1.bf16.msra.mxu0 0
    %603 = vmatprep.subr.bf16.mxu0 0
    %604 = vmatpush1.bf16.msra.mxu0 0
    %605 = vmatprep.subr.bf16.mxu0 0
    %606 = vmatpush1.bf16.msra.mxu0 0
    %607 = vmatprep.subr.bf16.mxu0 0
    %608 = vmatpush1.bf16.msra.mxu0 0
    %609 = vmatprep.mubr.bf16.mxu0 0
    %610 = vmatmul.mubr.bf16.gmra.mrb[0].mxu0 %v550
    %v611 = vpop.f32.mrb[0].mxu0
    %v612 = vadd.f32 0.0, %v611
    %v613 = vpop.f32.mrb[0].mxu0
    %v614 = vpop.f32.mrb[0].mxu0
    %v615 = vadd.f32 0.0, %v614
    %v616 = vpop.f32.mrb[0].mxu0
    %617 = vmatprep.mubr.bf16.mxu0 0
    %618 = vmatmul.mubr.bf16.gmra.mrb[0].mxu0 %v553
    %v619 = vpop.f32.mrb[0].mxu0
    %v620 = vadd.f32 0.0, %v619
    %v621 = vpop.f32.mrb[0].mxu0
    %v622 = vpop.f32.mrb[0].mxu0
    %v623 = vadd.f32 0.0, %v622
    %v624 = vpop.f32.mrb[0].mxu0
    %625 = vmatprep.mubr.bf16.mxu0 0
    %626 = vmatmul.mubr.bf16.gmra.mrb[0].mxu0 %v556
    %v627 = vpop.f32.mrb[0].mxu0
    %v628 = vadd.f32 0.0, %v627
    %v629 = vpop.f32.mrb[0].mxu0
    %v630 = vpop.f32.mrb[0].mxu0
    %v631 = vadd.f32 0.0, %v630
    %v632 = vpop.f32.mrb[0].mxu0
    %633 = vmatprep.mubr.bf16.mxu0 0
    %634 = vmatmul.mubr.bf16.gmra.mrb[0].mxu0 %v559
    %v635 = vpop.f32.mrb[0].mxu0
    %v636 = vadd.f32 0.0, %v635
    %v637 = vpop.f32.mrb[0].mxu0
    %v638 = vpop.f32.mrb[0].mxu0
    %v639 = vadd.f32 0.0, %v638
    %v640 = vpop.f32.mrb[0].mxu0
    %641 = vmatprep.mubr.bf16.mxu0 0
    %642 = vmatmul.mubr.bf16.gmra.mrb[0].mxu0 %v562
    %v643 = vpop.f32.mrb[0].mxu0
    %v644 = vadd.f32 0.0, %v643
    %v645 = vpop.f32.mrb[0].mxu0
    %v646 = vpop.f32.mrb[0].mxu0
    %v647 = vadd.f32 0.0, %v646
    %v648 = vpop.f32.mrb[0].mxu0
    %649 = vmatprep.mubr.bf16.mxu0 0
    %650 = vmatmul.mubr.bf16.gmra.mrb[0].mxu0 %v565
    %v651 = vpop.f32.mrb[0].mxu0
    %v652 = vadd.f32 0.0, %v651
    %v653 = vpop.f32.mrb[0].mxu0
    %v654 = vpop.f32.mrb[0].mxu0
    %v655 = vadd.f32 0.0, %v654
    %v656 = vpop.f32.mrb[0].mxu0
    %657 = vmatprep.mubr.bf16.mxu0 0
    %658 = vmatmul.mubr.bf16.gmra.mrb[0].mxu0 %v568
    %v659 = vpop.f32.mrb[0].mxu0
    %v660 = vadd.f32 0.0, %v659
    %v661 = vpop.f32.mrb[0].mxu0
    %v662 = vpop.f32.mrb[0].mxu0
    %v663 = vadd.f32 0.0, %v662
    %v664 = vpop.f32.mrb[0].mxu0
    %665 = vmatprep.mubr.bf16.mxu0 0
    %666 = vmatmul.mubr.bf16.gmra.mrb[0].mxu0 %v571
    %v667 = vpop.f32.mrb[0].mxu0
    %v668 = vadd.f32 0.0, %v667
    %v669 = vpop.f32.mrb[0].mxu0
    %v670 = vpop.f32.mrb[0].mxu0
    %v671 = vadd.f32 0.0, %v670
    %v672 = vpop.f32.mrb[0].mxu0
    %673 = vdwg.mxu0
    %v674 = vpack.c.bf16 %v615, %v612
    %v675 = vpack.c.bf16 %v623, %v620
    %v676 = vpack.c.bf16 %v631, %v628
    %v677 = vpack.c.bf16 %v639, %v636
    %v678 = vpack.c.bf16 %v647, %v644
    %v679 = vpack.c.bf16 %v655, %v652
    %v680 = vpack.c.bf16 %v663, %v660
    %v681 = vpack.c.bf16 %v671, %v668
    %s682 = smul.u32 4, 4
    %s683 = smul.u32 %s682, 16
    %s684 = smul.u32 %s683, 4
    %s685 = sshll.u32 %s684, 4
    %686 = dma.done [#allocation11], %s685
    %v687 = vld [vmem:[#allocation2] sm:$0xff]
    %v688 = vld [vmem:[#allocation2 + $0x8] sm:$0xff]
    %v689 = vld [vmem:[#allocation2 + $0x10] sm:$0xff]
    %v690 = vld [vmem:[#allocation2 + $0x18] sm:$0xff]
    %v691 = vld [vmem:[#allocation2 + $0x20] sm:$0xff]
    %v692 = vld [vmem:[#allocation2 + $0x28] sm:$0xff]
    %v693 = vld [vmem:[#allocation2 + $0x30] sm:$0xff]
    %v694 = vld [vmem:[#allocation2 + $0x38] sm:$0xff]
    %v695 = vld [vmem:[#allocation2 + $0x40] sm:$0xff]
    %v696 = vld [vmem:[#allocation2 + $0x48] sm:$0xff]
    %v697 = vld [vmem:[#allocation2 + $0x50] sm:$0xff]
    %v698 = vld [vmem:[#allocation2 + $0x58] sm:$0xff]
    %v699 = vld [vmem:[#allocation2 + $0x60] sm:$0xff]
    %v700 = vld [vmem:[#allocation2 + $0x68] sm:$0xff]
    %v701 = vld [vmem:[#allocation2 + $0x70] sm:$0xff]
    %v702 = vld [vmem:[#allocation2 + $0x78] sm:$0xff]
    %v703 = vld [vmem:[#allocation2 + $0x80] sm:$0xff]
    %v704 = vld [vmem:[#allocation2 + $0x88] sm:$0xff]
    %v705 = vld [vmem:[#allocation2 + $0x90] sm:$0xff]
    %v706 = vld [vmem:[#allocation2 + $0x98] sm:$0xff]
    %v707 = vld [vmem:[#allocation2 + $0xa0] sm:$0xff]
    %v708 = vld [vmem:[#allocation2 + $0xa8] sm:$0xff]
    %v709 = vld [vmem:[#allocation2 + $0xb0] sm:$0xff]
    %v710 = vld [vmem:[#allocation2 + $0xb8] sm:$0xff]
    %v711 = vld [vmem:[#allocation2 + $0xc0] sm:$0xff]
    %v712 = vld [vmem:[#allocation2 + $0xc8] sm:$0xff]
    %v713 = vld [vmem:[#allocation2 + $0xd0] sm:$0xff]
    %v714 = vld [vmem:[#allocation2 + $0xd8] sm:$0xff]
    %v715 = vld [vmem:[#allocation2 + $0xe0] sm:$0xff]
    %v716 = vld [vmem:[#allocation2 + $0xe8] sm:$0xff]
    %v717 = vld [vmem:[#allocation2 + $0xf0] sm:$0xff]
    %v718 = vld [vmem:[#allocation2 + $0xf8] sm:$0xff]
    %s719 = scalar_lea.vmem [#allocation2], 256
    %v720 = vld [vmem:[%s719] sm:$0xff]
    %v721 = vld [vmem:[%s719 + $0x8] sm:$0xff]
    %v722 = vld [vmem:[%s719 + $0x10] sm:$0xff]
    %v723 = vld [vmem:[%s719 + $0x18] sm:$0xff]
    %v724 = vld [vmem:[%s719 + $0x20] sm:$0xff]
    %v725 = vld [vmem:[%s719 + $0x28] sm:$0xff]
    %v726 = vld [vmem:[%s719 + $0x30] sm:$0xff]
    %v727 = vld [vmem:[%s719 + $0x38] sm:$0xff]
    %v728 = vld [vmem:[%s719 + $0x40] sm:$0xff]
    %v729 = vld [vmem:[%s719 + $0x48] sm:$0xff]
    %v730 = vld [vmem:[%s719 + $0x50] sm:$0xff]
    %v731 = vld [vmem:[%s719 + $0x58] sm:$0xff]
    %v732 = vld [vmem:[%s719 + $0x60] sm:$0xff]
    %v733 = vld [vmem:[%s719 + $0x68] sm:$0xff]
    %v734 = vld [vmem:[%s719 + $0x70] sm:$0xff]
    %v735 = vld [vmem:[%s719 + $0x78] sm:$0xff]
    %v736 = vld [vmem:[%s719 + $0x80] sm:$0xff]
    %v737 = vld [vmem:[%s719 + $0x88] sm:$0xff]
    %v738 = vld [vmem:[%s719 + $0x90] sm:$0xff]
    %v739 = vld [vmem:[%s719 + $0x98] sm:$0xff]
    %v740 = vld [vmem:[%s719 + $0xa0] sm:$0xff]
    %v741 = vld [vmem:[%s719 + $0xa8] sm:$0xff]
    %v742 = vld [vmem:[%s719 + $0xb0] sm:$0xff]
    %v743 = vld [vmem:[%s719 + $0xb8] sm:$0xff]
    %v744 = vld [vmem:[%s719 + $0xc0] sm:$0xff]
    %v745 = vld [vmem:[%s719 + $0xc8] sm:$0xff]
    %v746 = vld [vmem:[%s719 + $0xd0] sm:$0xff]
    %v747 = vld [vmem:[%s719 + $0xd8] sm:$0xff]
    %v748 = vld [vmem:[%s719 + $0xe0] sm:$0xff]
    %v749 = vld [vmem:[%s719 + $0xe8] sm:$0xff]
    %v750 = vld [vmem:[%s719 + $0xf0] sm:$0xff]
    %v751 = vld [vmem:[%s719 + $0xf8] sm:$0xff]
    %752 = vmatprep.subr.bf16.mxu0 %v721
    %753 = vmatpush1.bf16.msra.mxu0 %v720
    %754 = vmatprep.subr.bf16.mxu0 %v725
    %755 = vmatpush1.bf16.msra.mxu0 %v724
    %756 = vmatprep.subr.bf16.mxu0 %v729
    %757 = vmatpush1.bf16.msra.mxu0 %v728
    %758 = vmatprep.subr.bf16.mxu0 %v733
    %759 = vmatpush1.bf16.msra.mxu0 %v732
    %760 = vmatprep.subr.bf16.mxu0 %v737
    %761 = vmatpush1.bf16.msra.mxu0 %v736
    %762 = vmatprep.subr.bf16.mxu0 %v741
    %763 = vmatpush1.bf16.msra.mxu0 %v740
    %764 = vmatprep.subr.bf16.mxu0 %v745
    %765 = vmatpush1.bf16.msra.mxu0 %v744
    %766 = vmatprep.subr.bf16.mxu0 %v749
    %767 = vmatpush1.bf16.msra.mxu0 %v748
    %768 = vmatprep.subr.bf16.mxu0 0
    %769 = vmatpush1.bf16.msra.mxu0 0
    %770 = vmatprep.subr.bf16.mxu0 0
    %771 = vmatpush1.bf16.msra.mxu0 0
    %772 = vmatprep.subr.bf16.mxu0 0
    %773 = vmatpush1.bf16.msra.mxu0 0
    %774 = vmatprep.subr.bf16.mxu0 0
    %775 = vmatpush1.bf16.msra.mxu0 0
    %776 = vmatprep.subr.bf16.mxu0 0
    %777 = vmatpush1.bf16.msra.mxu0 0
    %778 = vmatprep.subr.bf16.mxu0 0
    %779 = vmatpush1.bf16.msra.mxu0 0
    %780 = vmatprep.subr.bf16.mxu0 0
    %781 = vmatpush1.bf16.msra.mxu0 0
    %782 = vmatprep.subr.bf16.mxu0 0
    %783 = vmatpush1.bf16.msra.mxu0 0
    %784 = vmatprep.mubr.bf16.mxu0 0
    %785 = vmatmul.mubr.bf16.gmra.mrb[0].mxu0 %v676
    %v786 = vpop.f32.mrb[0].mxu0
    %v787 = vadd.f32 0.0, %v786
    %v788 = vpop.f32.mrb[0].mxu0
    %v789 = vadd.f32 0.0, %v788
    %v790 = vpop.f32.mrb[0].mxu0
    %v791 = vadd.f32 0.0, %v790
    %v792 = vpop.f32.mrb[0].mxu0
    %v793 = vadd.f32 0.0, %v792
    %794 = vmatprep.mubr.bf16.mxu0 0
    %795 = vmatmul.mubr.bf16.gmra.mrb[0].mxu0 %v677
    %v796 = vpop.f32.mrb[0].mxu0
    %v797 = vadd.f32 0.0, %v796
    %v798 = vpop.f32.mrb[0].mxu0
    %v799 = vadd.f32 0.0, %v798
    %v800 = vpop.f32.mrb[0].mxu0
    %v801 = vadd.f32 0.0, %v800
    %v802 = vpop.f32.mrb[0].mxu0
    %v803 = vadd.f32 0.0, %v802
    %804 = vdwg.mxu0
    %805 = vmatprep.subr.bf16.mxu0 %v723
    %806 = vmatpush1.bf16.msra.mxu0 %v722
    %807 = vmatprep.subr.bf16.mxu0 %v727
    %808 = vmatpush1.bf16.msra.mxu0 %v726
    %809 = vmatprep.subr.bf16.mxu0 %v731
    %810 = vmatpush1.bf16.msra.mxu0 %v730
    %811 = vmatprep.subr.bf16.mxu0 %v735
    %812 = vmatpush1.bf16.msra.mxu0 %v734
    %813 = vmatprep.subr.bf16.mxu0 %v739
    %814 = vmatpush1.bf16.msra.mxu0 %v738
    %815 = vmatprep.subr.bf16.mxu0 %v743
    %816 = vmatpush1.bf16.msra.mxu0 %v742
    %817 = vmatprep.subr.bf16.mxu0 %v747
    %818 = vmatpush1.bf16.msra.mxu0 %v746
    %819 = vmatprep.subr.bf16.mxu0 %v751
    %820 = vmatpush1.bf16.msra.mxu0 %v750
    %821 = vmatprep.subr.bf16.mxu0 0
    %822 = vmatpush1.bf16.msra.mxu0 0
    %823 = vmatprep.subr.bf16.mxu0 0
    %824 = vmatpush1.bf16.msra.mxu0 0
    %825 = vmatprep.subr.bf16.mxu0 0
    %826 = vmatpush1.bf16.msra.mxu0 0
    %827 = vmatprep.subr.bf16.mxu0 0
    %828 = vmatpush1.bf16.msra.mxu0 0
    %829 = vmatprep.subr.bf16.mxu0 0
    %830 = vmatpush1.bf16.msra.mxu0 0
    %831 = vmatprep.subr.bf16.mxu0 0
    %832 = vmatpush1.bf16.msra.mxu0 0
    %833 = vmatprep.subr.bf16.mxu0 0
    %834 = vmatpush1.bf16.msra.mxu0 0
    %835 = vmatprep.subr.bf16.mxu0 0
    %836 = vmatpush1.bf16.msra.mxu0 0
    %837 = vmatprep.mubr.bf16.mxu0 0
    %838 = vmatmul.mubr.bf16.gmra.mrb[0].mxu0 %v676
    %v839 = vpop.f32.mrb[0].mxu0
    %v840 = vadd.f32 0.0, %v839
    %v841 = vpop.f32.mrb[0].mxu0
    %v842 = vadd.f32 0.0, %v841
    %v843 = vpop.f32.mrb[0].mxu0
    %v844 = vadd.f32 0.0, %v843
    %v845 = vpop.f32.mrb[0].mxu0
    %v846 = vadd.f32 0.0, %v845
    %847 = vmatprep.mubr.bf16.mxu0 0
    %848 = vmatmul.mubr.bf16.gmra.mrb[0].mxu0 %v677
    %v849 = vpop.f32.mrb[0].mxu0
    %v850 = vadd.f32 0.0, %v849
    %v851 = vpop.f32.mrb[0].mxu0
    %v852 = vadd.f32 0.0, %v851
    %v853 = vpop.f32.mrb[0].mxu0
    %v854 = vadd.f32 0.0, %v853
    %v855 = vpop.f32.mrb[0].mxu0
    %v856 = vadd.f32 0.0, %v855
    %857 = vdwg.mxu0
    %858 = vmatprep.subr.bf16.mxu0 %v688
    %859 = vmatpush1.bf16.msra.mxu0 %v687
    %860 = vmatprep.subr.bf16.mxu0 %v692
    %861 = vmatpush1.bf16.msra.mxu0 %v691
    %862 = vmatprep.subr.bf16.mxu0 %v696
    %863 = vmatpush1.bf16.msra.mxu0 %v695
    %864 = vmatprep.subr.bf16.mxu0 %v700
    %865 = vmatpush1.bf16.msra.mxu0 %v699
    %866 = vmatprep.subr.bf16.mxu0 %v704
    %867 = vmatpush1.bf16.msra.mxu0 %v703
    %868 = vmatprep.subr.bf16.mxu0 %v708
    %869 = vmatpush1.bf16.msra.mxu0 %v707
    %870 = vmatprep.subr.bf16.mxu0 %v712
    %871 = vmatpush1.bf16.msra.mxu0 %v711
    %872 = vmatprep.subr.bf16.mxu0 %v716
    %873 = vmatpush1.bf16.msra.mxu0 %v715
    %874 = vmatprep.subr.bf16.mxu0 0
    %875 = vmatpush1.bf16.msra.mxu0 0
    %876 = vmatprep.subr.bf16.mxu0 0
    %877 = vmatpush1.bf16.msra.mxu0 0
    %878 = vmatprep.subr.bf16.mxu0 0
    %879 = vmatpush1.bf16.msra.mxu0 0
    %880 = vmatprep.subr.bf16.mxu0 0
    %881 = vmatpush1.bf16.msra.mxu0 0
    %882 = vmatprep.subr.bf16.mxu0 0
    %883 = vmatpush1.bf16.msra.mxu0 0
    %884 = vmatprep.subr.bf16.mxu0 0
    %885 = vmatpush1.bf16.msra.mxu0 0
    %886 = vmatprep.subr.bf16.mxu0 0
    %887 = vmatpush1.bf16.msra.mxu0 0
    %888 = vmatprep.subr.bf16.mxu0 0
    %889 = vmatpush1.bf16.msra.mxu0 0
    %890 = vmatprep.mubr.bf16.mxu0 0
    %891 = vmatmul.mubr.bf16.gmra.mrb[0].mxu0 %v674
    %v892 = vpop.f32.mrb[0].mxu0
    %v893 = vadd.f32 %v787, %v892
    %v894 = vpop.f32.mrb[0].mxu0
    %v895 = vadd.f32 %v789, %v894
    %v896 = vpop.f32.mrb[0].mxu0
    %v897 = vadd.f32 %v791, %v896
    %v898 = vpop.f32.mrb[0].mxu0
    %v899 = vadd.f32 %v793, %v898
    %900 = vmatprep.mubr.bf16.mxu0 0
    %901 = vmatmul.mubr.bf16.gmra.mrb[0].mxu0 %v675
    %v902 = vpop.f32.mrb[0].mxu0
    %v903 = vadd.f32 %v797, %v902
    %v904 = vpop.f32.mrb[0].mxu0
    %v905 = vadd.f32 %v799, %v904
    %v906 = vpop.f32.mrb[0].mxu0
    %v907 = vadd.f32 %v801, %v906
    %v908 = vpop.f32.mrb[0].mxu0
    %v909 = vadd.f32 %v803, %v908
    %910 = vdwg.mxu0
    %911 = vmatprep.subr.bf16.mxu0 %v690
    %912 = vmatpush1.bf16.msra.mxu0 %v689
    %913 = vmatprep.subr.bf16.mxu0 %v694
    %914 = vmatpush1.bf16.msra.mxu0 %v693
    %915 = vmatprep.subr.bf16.mxu0 %v698
    %916 = vmatpush1.bf16.msra.mxu0 %v697
    %917 = vmatprep.subr.bf16.mxu0 %v702
    %918 = vmatpush1.bf16.msra.mxu0 %v701
    %919 = vmatprep.subr.bf16.mxu0 %v706
    %920 = vmatpush1.bf16.msra.mxu0 %v705
    %921 = vmatprep.subr.bf16.mxu0 %v710
    %922 = vmatpush1.bf16.msra.mxu0 %v709
    %923 = vmatprep.subr.bf16.mxu0 %v714
    %924 = vmatpush1.bf16.msra.mxu0 %v713
    %925 = vmatprep.subr.bf16.mxu0 %v718
    %926 = vmatpush1.bf16.msra.mxu0 %v717
    %927 = vmatprep.subr.bf16.mxu0 0
    %928 = vmatpush1.bf16.msra.mxu0 0
    %929 = vmatprep.subr.bf16.mxu0 0
    %930 = vmatpush1.bf16.msra.mxu0 0
    %931 = vmatprep.subr.bf16.mxu0 0
    %932 = vmatpush1.bf16.msra.mxu0 0
    %933 = vmatprep.subr.bf16.mxu0 0
    %934 = vmatpush1.bf16.msra.mxu0 0
    %935 = vmatprep.subr.bf16.mxu0 0
    %936 = vmatpush1.bf16.msra.mxu0 0
    %937 = vmatprep.subr.bf16.mxu0 0
    %938 = vmatpush1.bf16.msra.mxu0 0
    %939 = vmatprep.subr.bf16.mxu0 0
    %940 = vmatpush1.bf16.msra.mxu0 0
    %941 = vmatprep.subr.bf16.mxu0 0
    %942 = vmatpush1.bf16.msra.mxu0 0
    %943 = vmatprep.mubr.bf16.mxu0 0
    %944 = vmatmul.mubr.bf16.gmra.mrb[0].mxu0 %v674
    %v945 = vpop.f32.mrb[0].mxu0
    %v946 = vadd.f32 %v840, %v945
    %v947 = vpop.f32.mrb[0].mxu0
    %v948 = vadd.f32 %v842, %v947
    %v949 = vpop.f32.mrb[0].mxu0
    %v950 = vadd.f32 %v844, %v949
    %v951 = vpop.f32.mrb[0].mxu0
    %v952 = vadd.f32 %v846, %v951
    %953 = vmatprep.mubr.bf16.mxu0 0
    %954 = vmatmul.mubr.bf16.gmra.mrb[0].mxu0 %v675
    %v955 = vpop.f32.mrb[0].mxu0
    %v956 = vadd.f32 %v850, %v955
    %v957 = vpop.f32.mrb[0].mxu0
    %v958 = vadd.f32 %v852, %v957
    %v959 = vpop.f32.mrb[0].mxu0
    %v960 = vadd.f32 %v854, %v959
    %v961 = vpop.f32.mrb[0].mxu0
    %v962 = vadd.f32 %v856, %v961
    %963 = vdwg.mxu0
    %s964 = scalar_lea.vmem [#allocation2], 512
    %v965 = vld [vmem:[%s964] sm:$0xff]
    %v966 = vld [vmem:[%s964 + $0x8] sm:$0xff]
    %v967 = vld [vmem:[%s964 + $0x10] sm:$0xff]
    %v968 = vld [vmem:[%s964 + $0x18] sm:$0xff]
    %v969 = vld [vmem:[%s964 + $0x20] sm:$0xff]
    %v970 = vld [vmem:[%s964 + $0x28] sm:$0xff]
    %v971 = vld [vmem:[%s964 + $0x30] sm:$0xff]
    %v972 = vld [vmem:[%s964 + $0x38] sm:$0xff]
    %v973 = vld [vmem:[%s964 + $0x40] sm:$0xff]
    %v974 = vld [vmem:[%s964 + $0x48] sm:$0xff]
    %v975 = vld [vmem:[%s964 + $0x50] sm:$0xff]
    %v976 = vld [vmem:[%s964 + $0x58] sm:$0xff]
    %v977 = vld [vmem:[%s964 + $0x60] sm:$0xff]
    %v978 = vld [vmem:[%s964 + $0x68] sm:$0xff]
    %v979 = vld [vmem:[%s964 + $0x70] sm:$0xff]
    %v980 = vld [vmem:[%s964 + $0x78] sm:$0xff]
    %v981 = vld [vmem:[%s964 + $0x80] sm:$0xff]
    %v982 = vld [vmem:[%s964 + $0x88] sm:$0xff]
    %v983 = vld [vmem:[%s964 + $0x90] sm:$0xff]
    %v984 = vld [vmem:[%s964 + $0x98] sm:$0xff]
    %v985 = vld [vmem:[%s964 + $0xa0] sm:$0xff]
    %v986 = vld [vmem:[%s964 + $0xa8] sm:$0xff]
    %v987 = vld [vmem:[%s964 + $0xb0] sm:$0xff]
    %v988 = vld [vmem:[%s964 + $0xb8] sm:$0xff]
    %v989 = vld [vmem:[%s964 + $0xc0] sm:$0xff]
    %v990 = vld [vmem:[%s964 + $0xc8] sm:$0xff]
    %v991 = vld [vmem:[%s964 + $0xd0] sm:$0xff]
    %v992 = vld [vmem:[%s964 + $0xd8] sm:$0xff]
    %v993 = vld [vmem:[%s964 + $0xe0] sm:$0xff]
    %v994 = vld [vmem:[%s964 + $0xe8] sm:$0xff]
    %v995 = vld [vmem:[%s964 + $0xf0] sm:$0xff]
    %v996 = vld [vmem:[%s964 + $0xf8] sm:$0xff]
    %997 = vmatprep.subr.bf16.mxu0 %v966
    %998 = vmatpush1.bf16.msra.mxu0 %v965
    %999 = vmatprep.subr.bf16.mxu0 %v970
    %1000 = vmatpush1.bf16.msra.mxu0 %v969
    %1001 = vmatprep.subr.bf16.mxu0 %v974
    %1002 = vmatpush1.bf16.msra.mxu0 %v973
    %1003 = vmatprep.subr.bf16.mxu0 %v978
    %1004 = vmatpush1.bf16.msra.mxu0 %v977
    %1005 = vmatprep.subr.bf16.mxu0 %v982
    %1006 = vmatpush1.bf16.msra.mxu0 %v981
    %1007 = vmatprep.subr.bf16.mxu0 %v986
    %1008 = vmatpush1.bf16.msra.mxu0 %v985
    %1009 = vmatprep.subr.bf16.mxu0 %v990
    %1010 = vmatpush1.bf16.msra.mxu0 %v989
    %1011 = vmatprep.subr.bf16.mxu0 %v994
    %1012 = vmatpush1.bf16.msra.mxu0 %v993
    %1013 = vmatprep.subr.bf16.mxu0 0
    %1014 = vmatpush1.bf16.msra.mxu0 0
    %1015 = vmatprep.subr.bf16.mxu0 0
    %1016 = vmatpush1.bf16.msra.mxu0 0
    %1017 = vmatprep.subr.bf16.mxu0 0
    %1018 = vmatpush1.bf16.msra.mxu0 0
    %1019 = vmatprep.subr.bf16.mxu0 0
    %1020 = vmatpush1.bf16.msra.mxu0 0
    %1021 = vmatprep.subr.bf16.mxu0 0
    %1022 = vmatpush1.bf16.msra.mxu0 0
    %1023 = vmatprep.subr.bf16.mxu0 0
    %1024 = vmatpush1.bf16.msra.mxu0 0
    %1025 = vmatprep.subr.bf16.mxu0 0
    %1026 = vmatpush1.bf16.msra.mxu0 0
    %1027 = vmatprep.subr.bf16.mxu0 0
    %1028 = vmatpush1.bf16.msra.mxu0 0
    %1029 = vmatprep.mubr.bf16.mxu0 0
    %1030 = vmatmul.mubr.bf16.gmra.mrb[0].mxu0 %v678
    %v1031 = vpop.f32.mrb[0].mxu0
    %v1032 = vadd.f32 0.0, %v1031
    %v1033 = vpop.f32.mrb[0].mxu0
    %v1034 = vadd.f32 0.0, %v1033
    %v1035 = vpop.f32.mrb[0].mxu0
    %v1036 = vadd.f32 0.0, %v1035
    %v1037 = vpop.f32.mrb[0].mxu0
    %v1038 = vadd.f32 0.0, %v1037
    %1039 = vmatprep.mubr.bf16.mxu0 0
    %1040 = vmatmul.mubr.bf16.gmra.mrb[0].mxu0 %v679
    %v1041 = vpop.f32.mrb[0].mxu0
    %v1042 = vadd.f32 0.0, %v1041
    %v1043 = vpop.f32.mrb[0].mxu0
    %v1044 = vadd.f32 0.0, %v1043
    %v1045 = vpop.f32.mrb[0].mxu0
    %v1046 = vadd.f32 0.0, %v1045
    %v1047 = vpop.f32.mrb[0].mxu0
    %v1048 = vadd.f32 0.0, %v1047
    %1049 = vdwg.mxu0
    %1050 = vmatprep.subr.bf16.mxu0 %v968
    %1051 = vmatpush1.bf16.msra.mxu0 %v967
    %1052 = vmatprep.subr.bf16.mxu0 %v972
    %1053 = vmatpush1.bf16.msra.mxu0 %v971
    %1054 = vmatprep.subr.bf16.mxu0 %v976
    %1055 = vmatpush1.bf16.msra.mxu0 %v975
    %1056 = vmatprep.subr.bf16.mxu0 %v980
    %1057 = vmatpush1.bf16.msra.mxu0 %v979
    %1058 = vmatprep.subr.bf16.mxu0 %v984
    %1059 = vmatpush1.bf16.msra.mxu0 %v983
    %1060 = vmatprep.subr.bf16.mxu0 %v988
    %1061 = vmatpush1.bf16.msra.mxu0 %v987
    %1062 = vmatprep.subr.bf16.mxu0 %v992
    %1063 = vmatpush1.bf16.msra.mxu0 %v991
    %1064 = vmatprep.subr.bf16.mxu0 %v996
    %1065 = vmatpush1.bf16.msra.mxu0 %v995
    %1066 = vmatprep.subr.bf16.mxu0 0
    %1067 = vmatpush1.bf16.msra.mxu0 0
    %1068 = vmatprep.subr.bf16.mxu0 0
    %1069 = vmatpush1.bf16.msra.mxu0 0
    %1070 = vmatprep.subr.bf16.mxu0 0
    %1071 = vmatpush1.bf16.msra.mxu0 0
    %1072 = vmatprep.subr.bf16.mxu0 0
    %1073 = vmatpush1.bf16.msra.mxu0 0
    %1074 = vmatprep.subr.bf16.mxu0 0
    %1075 = vmatpush1.bf16.msra.mxu0 0
    %1076 = vmatprep.subr.bf16.mxu0 0
    %1077 = vmatpush1.bf16.msra.mxu0 0
    %1078 = vmatprep.subr.bf16.mxu0 0
    %1079 = vmatpush1.bf16.msra.mxu0 0
    %1080 = vmatprep.subr.bf16.mxu0 0
    %1081 = vmatpush1.bf16.msra.mxu0 0
    %1082 = vmatprep.mubr.bf16.mxu0 0
    %1083 = vmatmul.mubr.bf16.gmra.mrb[0].mxu0 %v678
    %v1084 = vpop.f32.mrb[0].mxu0
    %v1085 = vadd.f32 0.0, %v1084
    %v1086 = vpop.f32.mrb[0].mxu0
    %v1087 = vadd.f32 0.0, %v1086
    %v1088 = vpop.f32.mrb[0].mxu0
    %v1089 = vadd.f32 0.0, %v1088
    %v1090 = vpop.f32.mrb[0].mxu0
    %v1091 = vadd.f32 0.0, %v1090
    %1092 = vmatprep.mubr.bf16.mxu0 0
    %1093 = vmatmul.mubr.bf16.gmra.mrb[0].mxu0 %v679
    %v1094 = vpop.f32.mrb[0].mxu0
    %v1095 = vadd.f32 0.0, %v1094
    %v1096 = vpop.f32.mrb[0].mxu0
    %v1097 = vadd.f32 0.0, %v1096
    %v1098 = vpop.f32.mrb[0].mxu0
    %v1099 = vadd.f32 0.0, %v1098
    %v1100 = vpop.f32.mrb[0].mxu0
    %v1101 = vadd.f32 0.0, %v1100
    %1102 = vdwg.mxu0
    %v1103 = vadd.f32 %v893, %v1032
    %v1104 = vadd.f32 %v895, %v1034
    %v1105 = vadd.f32 %v946, %v1085
    %v1106 = vadd.f32 %v948, %v1087
    %v1107 = vadd.f32 %v897, %v1036
    %v1108 = vadd.f32 %v899, %v1038
    %v1109 = vadd.f32 %v950, %v1089
    %v1110 = vadd.f32 %v952, %v1091
    %v1111 = vadd.f32 %v903, %v1042
    %v1112 = vadd.f32 %v905, %v1044
    %v1113 = vadd.f32 %v956, %v1095
    %v1114 = vadd.f32 %v958, %v1097
    %v1115 = vadd.f32 %v907, %v1046
    %v1116 = vadd.f32 %v909, %v1048
    %v1117 = vadd.f32 %v960, %v1099
    %v1118 = vadd.f32 %v962, %v1101
    %s1119 = scalar_lea.vmem [#allocation2], 768
    %v1120 = vld [vmem:[%s1119] sm:$0xff]
    %v1121 = vld [vmem:[%s1119 + $0x8] sm:$0xff]
    %v1122 = vld [vmem:[%s1119 + $0x10] sm:$0xff]
    %v1123 = vld [vmem:[%s1119 + $0x18] sm:$0xff]
    %v1124 = vld [vmem:[%s1119 + $0x20] sm:$0xff]
    %v1125 = vld [vmem:[%s1119 + $0x28] sm:$0xff]
    %v1126 = vld [vmem:[%s1119 + $0x30] sm:$0xff]
    %v1127 = vld [vmem:[%s1119 + $0x38] sm:$0xff]
    %v1128 = vld [vmem:[%s1119 + $0x40] sm:$0xff]
    %v1129 = vld [vmem:[%s1119 + $0x48] sm:$0xff]
    %v1130 = vld [vmem:[%s1119 + $0x50] sm:$0xff]
    %v1131 = vld [vmem:[%s1119 + $0x58] sm:$0xff]
    %v1132 = vld [vmem:[%s1119 + $0x60] sm:$0xff]
    %v1133 = vld [vmem:[%s1119 + $0x68] sm:$0xff]
    %v1134 = vld [vmem:[%s1119 + $0x70] sm:$0xff]
    %v1135 = vld [vmem:[%s1119 + $0x78] sm:$0xff]
    %v1136 = vld [vmem:[%s1119 + $0x80] sm:$0xff]
    %v1137 = vld [vmem:[%s1119 + $0x88] sm:$0xff]
    %v1138 = vld [vmem:[%s1119 + $0x90] sm:$0xff]
    %v1139 = vld [vmem:[%s1119 + $0x98] sm:$0xff]
    %v1140 = vld [vmem:[%s1119 + $0xa0] sm:$0xff]
    %v1141 = vld [vmem:[%s1119 + $0xa8] sm:$0xff]
    %v1142 = vld [vmem:[%s1119 + $0xb0] sm:$0xff]
    %v1143 = vld [vmem:[%s1119 + $0xb8] sm:$0xff]
    %v1144 = vld [vmem:[%s1119 + $0xc0] sm:$0xff]
    %v1145 = vld [vmem:[%s1119 + $0xc8] sm:$0xff]
    %v1146 = vld [vmem:[%s1119 + $0xd0] sm:$0xff]
    %v1147 = vld [vmem:[%s1119 + $0xd8] sm:$0xff]
    %v1148 = vld [vmem:[%s1119 + $0xe0] sm:$0xff]
    %v1149 = vld [vmem:[%s1119 + $0xe8] sm:$0xff]
    %v1150 = vld [vmem:[%s1119 + $0xf0] sm:$0xff]
    %v1151 = vld [vmem:[%s1119 + $0xf8] sm:$0xff]
    %1152 = vmatprep.subr.bf16.mxu0 %v1121
    %1153 = vmatpush1.bf16.msra.mxu0 %v1120
    %1154 = vmatprep.subr.bf16.mxu0 %v1125
    %1155 = vmatpush1.bf16.msra.mxu0 %v1124
    %1156 = vmatprep.subr.bf16.mxu0 %v1129
    %1157 = vmatpush1.bf16.msra.mxu0 %v1128
    %1158 = vmatprep.subr.bf16.mxu0 %v1133
    %1159 = vmatpush1.bf16.msra.mxu0 %v1132
    %1160 = vmatprep.subr.bf16.mxu0 %v1137
    %1161 = vmatpush1.bf16.msra.mxu0 %v1136
    %1162 = vmatprep.subr.bf16.mxu0 %v1141
    %1163 = vmatpush1.bf16.msra.mxu0 %v1140
    %1164 = vmatprep.subr.bf16.mxu0 %v1145
    %1165 = vmatpush1.bf16.msra.mxu0 %v1144
    %1166 = vmatprep.subr.bf16.mxu0 %v1149
    %1167 = vmatpush1.bf16.msra.mxu0 %v1148
    %1168 = vmatprep.subr.bf16.mxu0 0
    %1169 = vmatpush1.bf16.msra.mxu0 0
    %1170 = vmatprep.subr.bf16.mxu0 0
    %1171 = vmatpush1.bf16.msra.mxu0 0
    %1172 = vmatprep.subr.bf16.mxu0 0
    %1173 = vmatpush1.bf16.msra.mxu0 0
    %1174 = vmatprep.subr.bf16.mxu0 0
    %1175 = vmatpush1.bf16.msra.mxu0 0
    %1176 = vmatprep.subr.bf16.mxu0 0
    %1177 = vmatpush1.bf16.msra.mxu0 0
    %1178 = vmatprep.subr.bf16.mxu0 0
    %1179 = vmatpush1.bf16.msra.mxu0 0
    %1180 = vmatprep.subr.bf16.mxu0 0
    %1181 = vmatpush1.bf16.msra.mxu0 0
    %1182 = vmatprep.subr.bf16.mxu0 0
    %1183 = vmatpush1.bf16.msra.mxu0 0
    %1184 = vmatprep.mubr.bf16.mxu0 0
    %1185 = vmatmul.mubr.bf16.gmra.mrb[0].mxu0 %v680
    %v1186 = vpop.f32.mrb[0].mxu0
    %v1187 = vadd.f32 0.0, %v1186
    %v1188 = vpop.f32.mrb[0].mxu0
    %v1189 = vadd.f32 0.0, %v1188
    %v1190 = vpop.f32.mrb[0].mxu0
    %v1191 = vadd.f32 0.0, %v1190
    %v1192 = vpop.f32.mrb[0].mxu0
    %v1193 = vadd.f32 0.0, %v1192
    %1194 = vmatprep.mubr.bf16.mxu0 0
    %1195 = vmatmul.mubr.bf16.gmra.mrb[0].mxu0 %v681
    %v1196 = vpop.f32.mrb[0].mxu0
    %v1197 = vadd.f32 0.0, %v1196
    %v1198 = vpop.f32.mrb[0].mxu0
    %v1199 = vadd.f32 0.0, %v1198
    %v1200 = vpop.f32.mrb[0].mxu0
    %v1201 = vadd.f32 0.0, %v1200
    %v1202 = vpop.f32.mrb[0].mxu0
    %v1203 = vadd.f32 0.0, %v1202
    %1204 = vdwg.mxu0
    %1205 = vmatprep.subr.bf16.mxu0 %v1123
    %1206 = vmatpush1.bf16.msra.mxu0 %v1122
    %1207 = vmatprep.subr.bf16.mxu0 %v1127
    %1208 = vmatpush1.bf16.msra.mxu0 %v1126
    %1209 = vmatprep.subr.bf16.mxu0 %v1131
    %1210 = vmatpush1.bf16.msra.mxu0 %v1130
    %1211 = vmatprep.subr.bf16.mxu0 %v1135
    %1212 = vmatpush1.bf16.msra.mxu0 %v1134
    %1213 = vmatprep.subr.bf16.mxu0 %v1139
    %1214 = vmatpush1.bf16.msra.mxu0 %v1138
    %1215 = vmatprep.subr.bf16.mxu0 %v1143
    %1216 = vmatpush1.bf16.msra.mxu0 %v1142
    %1217 = vmatprep.subr.bf16.mxu0 %v1147
    %1218 = vmatpush1.bf16.msra.mxu0 %v1146
    %1219 = vmatprep.subr.bf16.mxu0 %v1151
    %1220 = vmatpush1.bf16.msra.mxu0 %v1150
    %1221 = vmatprep.subr.bf16.mxu0 0
    %1222 = vmatpush1.bf16.msra.mxu0 0
    %1223 = vmatprep.subr.bf16.mxu0 0
    %1224 = vmatpush1.bf16.msra.mxu0 0
    %1225 = vmatprep.subr.bf16.mxu0 0
    %1226 = vmatpush1.bf16.msra.mxu0 0
    %1227 = vmatprep.subr.bf16.mxu0 0
    %1228 = vmatpush1.bf16.msra.mxu0 0
    %1229 = vmatprep.subr.bf16.mxu0 0
    %1230 = vmatpush1.bf16.msra.mxu0 0
    %1231 = vmatprep.subr.bf16.mxu0 0
    %1232 = vmatpush1.bf16.msra.mxu0 0
    %1233 = vmatprep.subr.bf16.mxu0 0
    %1234 = vmatpush1.bf16.msra.mxu0 0
    %1235 = vmatprep.subr.bf16.mxu0 0
    %1236 = vmatpush1.bf16.msra.mxu0 0
    %1237 = vmatprep.mubr.bf16.mxu0 0
    %1238 = vmatmul.mubr.bf16.gmra.mrb[0].mxu0 %v680
    %v1239 = vpop.f32.mrb[0].mxu0
    %v1240 = vadd.f32 0.0, %v1239
    %v1241 = vpop.f32.mrb[0].mxu0
    %v1242 = vadd.f32 0.0, %v1241
    %v1243 = vpop.f32.mrb[0].mxu0
    %v1244 = vadd.f32 0.0, %v1243
    %v1245 = vpop.f32.mrb[0].mxu0
    %v1246 = vadd.f32 0.0, %v1245
    %1247 = vmatprep.mubr.bf16.mxu0 0
    %1248 = vmatmul.mubr.bf16.gmra.mrb[0].mxu0 %v681
    %v1249 = vpop.f32.mrb[0].mxu0
    %v1250 = vadd.f32 0.0, %v1249
    %v1251 = vpop.f32.mrb[0].mxu0
    %v1252 = vadd.f32 0.0, %v1251
    %v1253 = vpop.f32.mrb[0].mxu0
    %v1254 = vadd.f32 0.0, %v1253
    %v1255 = vpop.f32.mrb[0].mxu0
    %v1256 = vadd.f32 0.0, %v1255
    %1257 = vdwg.mxu0
    %v1258 = vadd.f32 %v1103, %v1187
    %v1259 = vadd.f32 %v1104, %v1189
    %v1260 = vadd.f32 %v1105, %v1240
    %v1261 = vadd.f32 %v1106, %v1242
    %v1262 = vadd.f32 %v1107, %v1191
    %v1263 = vadd.f32 %v1108, %v1193
    %v1264 = vadd.f32 %v1109, %v1244
    %v1265 = vadd.f32 %v1110, %v1246
    %v1266 = vadd.f32 %v1111, %v1197
    %v1267 = vadd.f32 %v1112, %v1199
    %v1268 = vadd.f32 %v1113, %v1250
    %v1269 = vadd.f32 %v1114, %v1252
    %v1270 = vadd.f32 %v1115, %v1201
    %v1271 = vadd.f32 %v1116, %v1203
    %v1272 = vadd.f32 %v1117, %v1254
    %v1273 = vadd.f32 %v1118, %v1256
    %v1274 = vld [vmem:[#allocation12] sm:$0xf]
    %v1276 = vlaneseq
    %v1277 = vshrl.u32 %v1276, 7
    %v1278 = vsub.s32 0, %v1277
    %v1279 = vrot.slane %v1274, %v1278
    %v1280 = vlaneseq
    %v1281 = vshrl.u32 %v1280, 7
    %v1282 = vsub.s32 1, %v1281
    %v1283 = vrot.slane %v1274, %v1282
    %v1284 = vlaneseq
    %v1285 = vshrl.u32 %v1284, 7
    %v1286 = vsub.s32 2, %v1285
    %v1287 = vrot.slane %v1274, %v1286
    %v1288 = vlaneseq
    %v1289 = vshrl.u32 %v1288, 7
    %v1290 = vsub.s32 3, %v1289
    %v1291 = vrot.slane %v1274, %v1290
    %v1296 = vadd.f32 %v1258, %v1279
    %v1297 = vadd.f32 %v1259, %v1283
    %v1298 = vadd.f32 %v1260, %v1287
    %v1299 = vadd.f32 %v1261, %v1291
    %v1300 = vadd.f32 %v1262, %v1279
    %v1301 = vadd.f32 %v1263, %v1283
    %v1302 = vadd.f32 %v1264, %v1287
    %v1303 = vadd.f32 %v1265, %v1291
    %v1304 = vadd.f32 %v1266, %v1279
    %v1305 = vadd.f32 %v1267, %v1283
    %v1306 = vadd.f32 %v1268, %v1287
    %v1307 = vadd.f32 %v1269, %v1291
    %v1308 = vadd.f32 %v1270, %v1279
    %v1309 = vadd.f32 %v1271, %v1283
    %v1310 = vadd.f32 %v1272, %v1287
    %v1311 = vadd.f32 %v1273, %v1291
    %v1312 = vmax.f32 %v1296, 0.0
    %v1313 = vmax.f32 %v1297, 0.0
    %v1314 = vmax.f32 %v1298, 0.0
    %v1315 = vmax.f32 %v1299, 0.0
    %v1316 = vmax.f32 %v1300, 0.0
    %v1317 = vmax.f32 %v1301, 0.0
    %v1318 = vmax.f32 %v1302, 0.0
    %v1319 = vmax.f32 %v1303, 0.0
    %v1320 = vmax.f32 %v1304, 0.0
    %v1321 = vmax.f32 %v1305, 0.0
    %v1322 = vmax.f32 %v1306, 0.0
    %v1323 = vmax.f32 %v1307, 0.0
    %v1324 = vmax.f32 %v1308, 0.0
    %v1325 = vmax.f32 %v1309, 0.0
    %v1326 = vmax.f32 %v1310, 0.0
    %v1327 = vmax.f32 %v1311, 0.0
    %v1328 = vld [vmem:[%s7] sm:$0xf]
    %v1329 = vld [vmem:[%s7 + $0x4] sm:$0xf]
    %v1330 = vld [vmem:[%s7 + $0x8] sm:$0xf]
    %v1331 = vld [vmem:[%s7 + $0xc] sm:$0xf]
    %v1332 = vld [vmem:[%s7 + $0x10] sm:$0xf]
    %v1333 = vld [vmem:[%s7 + $0x14] sm:$0xf]
    %v1334 = vld [vmem:[%s7 + $0x18] sm:$0xf]
    %v1335 = vld [vmem:[%s7 + $0x1c] sm:$0xf]
    %v1336 = vpack.c.bf16 %v1316, %v1312
    %v1337 = vpack.c.bf16 %v1317, %v1313
    %v1338 = vpack.c.bf16 %v1318, %v1314
    %v1339 = vpack.c.bf16 %v1319, %v1315
    %v1340 = vpack.c.bf16 %v1324, %v1320
    %v1341 = vpack.c.bf16 %v1325, %v1321
    %v1342 = vpack.c.bf16 %v1326, %v1322
    %v1343 = vpack.c.bf16 %v1327, %v1323
    %v1352 = vunpack.c.l.b16 %v1328
    %v1353 = vunpack.c.l.b16 %v1329
    %v1354 = vunpack.c.l.b16 %v1330
    %v1355 = vunpack.c.l.b16 %v1331
    %v1356 = vunpack.c.l.b16 %v1332
    %v1357 = vunpack.c.l.b16 %v1333
    %v1358 = vunpack.c.l.b16 %v1334
    %v1359 = vunpack.c.l.b16 %v1335
    %v1360 = vpack.c.b16 %v1353, %v1352
    %v1361 = vpack.c.b16 %v1355, %v1354
    %v1362 = vpack.c.b16 %v1357, %v1356
    %v1363 = vpack.c.b16 %v1359, %v1358
    %vm1364 = vcmask 261120
    %v1366 = vsel %vm1364, %v1360, 0
    %v1369 = vsel %vm1364, %v1361, 0
    %v1372 = vsel %vm1364, %v1362, 0
    %v1375 = vsel %vm1364, %v1363, 0
    %1377 = vmatprep.subr.bf16.mxu0 %v1337
    %1378 = vmatpush1.bf16.msra.mxu0 %v1336
    %1379 = vmatprep.subr.bf16.mxu0 %v1341
    %1380 = vmatpush1.bf16.msra.mxu0 %v1340
    %1381 = vmatprep.subr.bf16.mxu0 0
    %1382 = vmatpush1.bf16.msra.mxu0 0
    %1383 = vmatprep.subr.bf16.mxu0 0
    %1384 = vmatpush1.bf16.msra.mxu0 0
    %1385 = vmatprep.subr.bf16.mxu0 0
    %1386 = vmatpush1.bf16.msra.mxu0 0
    %1387 = vmatprep.subr.bf16.mxu0 0
    %1388 = vmatpush1.bf16.msra.mxu0 0
    %1389 = vmatprep.subr.bf16.mxu0 0
    %1390 = vmatpush1.bf16.msra.mxu0 0
    %1391 = vmatprep.subr.bf16.mxu0 0
    %1392 = vmatpush1.bf16.msra.mxu0 0
    %1393 = vmatprep.subr.bf16.mxu0 0
    %1394 = vmatpush1.bf16.msra.mxu0 0
    %1395 = vmatprep.subr.bf16.mxu0 0
    %1396 = vmatpush1.bf16.msra.mxu0 0
    %1397 = vmatprep.subr.bf16.mxu0 0
    %1398 = vmatpush1.bf16.msra.mxu0 0
    %1399 = vmatprep.subr.bf16.mxu0 0
    %1400 = vmatpush1.bf16.msra.mxu0 0
    %1401 = vmatprep.subr.bf16.mxu0 0
    %1402 = vmatpush1.bf16.msra.mxu0 0
    %1403 = vmatprep.subr.bf16.mxu0 0
    %1404 = vmatpush1.bf16.msra.mxu0 0
    %1405 = vmatprep.subr.bf16.mxu0 0
    %1406 = vmatpush1.bf16.msra.mxu0 0
    %1407 = vmatprep.subr.bf16.mxu0 0
    %1408 = vmatpush1.bf16.msra.mxu0 0
    %1409 = vmatprep.mubr.bf16.mxu0 0
    %1410 = vmatmul.mubr.bf16.gmra.mrb[0].mxu0 %v1366
    %v1411 = vpop.f32.mrb[0].mxu0
    %v1412 = vadd.f32 0.0, %v1411
    %v1413 = vpop.f32.mrb[0].mxu0
    %v1414 = vadd.f32 0.0, %v1413
    %v1415 = vpop.f32.mrb[0].mxu0
    %v1416 = vadd.f32 0.0, %v1415
    %v1417 = vpop.f32.mrb[0].mxu0
    %v1418 = vadd.f32 0.0, %v1417
    %1419 = vmatprep.mubr.bf16.mxu0 0
    %1420 = vmatmul.mubr.bf16.gmra.mrb[0].mxu0 %v1369
    %v1421 = vpop.f32.mrb[0].mxu0
    %v1422 = vadd.f32 0.0, %v1421
    %v1423 = vpop.f32.mrb[0].mxu0
    %v1424 = vadd.f32 0.0, %v1423
    %v1425 = vpop.f32.mrb[0].mxu0
    %v1426 = vadd.f32 0.0, %v1425
    %v1427 = vpop.f32.mrb[0].mxu0
    %v1428 = vadd.f32 0.0, %v1427
    %1429 = vmatprep.mubr.bf16.mxu0 0
    %1430 = vmatmul.mubr.bf16.gmra.mrb[0].mxu0 %v1372
    %v1431 = vpop.f32.mrb[0].mxu0
    %v1432 = vadd.f32 0.0, %v1431
    %v1433 = vpop.f32.mrb[0].mxu0
    %v1434 = vadd.f32 0.0, %v1433
    %v1435 = vpop.f32.mrb[0].mxu0
    %v1436 = vadd.f32 0.0, %v1435
    %v1437 = vpop.f32.mrb[0].mxu0
    %v1438 = vadd.f32 0.0, %v1437
    %1439 = vmatprep.mubr.bf16.mxu0 0
    %1440 = vmatmul.mubr.bf16.gmra.mrb[0].mxu0 %v1375
    %v1441 = vpop.f32.mrb[0].mxu0
    %v1442 = vadd.f32 0.0, %v1441
    %v1443 = vpop.f32.mrb[0].mxu0
    %v1444 = vadd.f32 0.0, %v1443
    %v1445 = vpop.f32.mrb[0].mxu0
    %v1446 = vadd.f32 0.0, %v1445
    %v1447 = vpop.f32.mrb[0].mxu0
    %v1448 = vadd.f32 0.0, %v1447
    %1449 = vdwg.mxu0
    %1450 = vmatprep.subr.bf16.mxu0 %v1339
    %1451 = vmatpush1.bf16.msra.mxu0 %v1338
    %1452 = vmatprep.subr.bf16.mxu0 %v1343
    %1453 = vmatpush1.bf16.msra.mxu0 %v1342
    %1454 = vmatprep.subr.bf16.mxu0 0
    %1455 = vmatpush1.bf16.msra.mxu0 0
    %1456 = vmatprep.subr.bf16.mxu0 0
    %1457 = vmatpush1.bf16.msra.mxu0 0
    %1458 = vmatprep.subr.bf16.mxu0 0
    %1459 = vmatpush1.bf16.msra.mxu0 0
    %1460 = vmatprep.subr.bf16.mxu0 0
    %1461 = vmatpush1.bf16.msra.mxu0 0
    %1462 = vmatprep.subr.bf16.mxu0 0
    %1463 = vmatpush1.bf16.msra.mxu0 0
    %1464 = vmatprep.subr.bf16.mxu0 0
    %1465 = vmatpush1.bf16.msra.mxu0 0
    %1466 = vmatprep.subr.bf16.mxu0 0
    %1467 = vmatpush1.bf16.msra.mxu0 0
    %1468 = vmatprep.subr.bf16.mxu0 0
    %1469 = vmatpush1.bf16.msra.mxu0 0
    %1470 = vmatprep.subr.bf16.mxu0 0
    %1471 = vmatpush1.bf16.msra.mxu0 0
    %1472 = vmatprep.subr.bf16.mxu0 0
    %1473 = vmatpush1.bf16.msra.mxu0 0
    %1474 = vmatprep.subr.bf16.mxu0 0
    %1475 = vmatpush1.bf16.msra.mxu0 0
    %1476 = vmatprep.subr.bf16.mxu0 0
    %1477 = vmatpush1.bf16.msra.mxu0 0
    %1478 = vmatprep.subr.bf16.mxu0 0
    %1479 = vmatpush1.bf16.msra.mxu0 0
    %1480 = vmatprep.subr.bf16.mxu0 0
    %1481 = vmatpush1.bf16.msra.mxu0 0
    %1482 = vmatprep.mubr.bf16.mxu0 0
    %1483 = vmatmul.mubr.bf16.gmra.mrb[0].mxu0 %v1366
    %v1484 = vpop.f32.mrb[0].mxu0
    %v1485 = vadd.f32 0.0, %v1484
    %v1486 = vpop.f32.mrb[0].mxu0
    %v1487 = vadd.f32 0.0, %v1486
    %v1488 = vpop.f32.mrb[0].mxu0
    %v1489 = vadd.f32 0.0, %v1488
    %v1490 = vpop.f32.mrb[0].mxu0
    %v1491 = vadd.f32 0.0, %v1490
    %1492 = vmatprep.mubr.bf16.mxu0 0
    %1493 = vmatmul.mubr.bf16.gmra.mrb[0].mxu0 %v1369
    %v1494 = vpop.f32.mrb[0].mxu0
    %v1495 = vadd.f32 0.0, %v1494
    %v1496 = vpop.f32.mrb[0].mxu0
    %v1497 = vadd.f32 0.0, %v1496
    %v1498 = vpop.f32.mrb[0].mxu0
    %v1499 = vadd.f32 0.0, %v1498
    %v1500 = vpop.f32.mrb[0].mxu0
    %v1501 = vadd.f32 0.0, %v1500
    %1502 = vmatprep.mubr.bf16.mxu0 0
    %1503 = vmatmul.mubr.bf16.gmra.mrb[0].mxu0 %v1372
    %v1504 = vpop.f32.mrb[0].mxu0
    %v1505 = vadd.f32 0.0, %v1504
    %v1506 = vpop.f32.mrb[0].mxu0
    %v1507 = vadd.f32 0.0, %v1506
    %v1508 = vpop.f32.mrb[0].mxu0
    %v1509 = vadd.f32 0.0, %v1508
    %v1510 = vpop.f32.mrb[0].mxu0
    %v1511 = vadd.f32 0.0, %v1510
    %1512 = vmatprep.mubr.bf16.mxu0 0
    %1513 = vmatmul.mubr.bf16.gmra.mrb[0].mxu0 %v1375
    %v1514 = vpop.f32.mrb[0].mxu0
    %v1515 = vadd.f32 0.0, %v1514
    %v1516 = vpop.f32.mrb[0].mxu0
    %v1517 = vadd.f32 0.0, %v1516
    %v1518 = vpop.f32.mrb[0].mxu0
    %v1519 = vadd.f32 0.0, %v1518
    %v1520 = vpop.f32.mrb[0].mxu0
    %v1521 = vadd.f32 0.0, %v1520
    %1522 = vdwg.mxu0
    %v1523 = vpack.c.bf16 %v1416, %v1412
    %v1524 = vpack.c.bf16 %v1418, %v1414
    %v1525 = vpack.c.bf16 %v1489, %v1485
    %v1526 = vpack.c.bf16 %v1491, %v1487
    %v1527 = vpack.c.bf16 %v1426, %v1422
    %v1528 = vpack.c.bf16 %v1428, %v1424
    %v1529 = vpack.c.bf16 %v1499, %v1495
    %v1530 = vpack.c.bf16 %v1501, %v1497
    %v1531 = vpack.c.bf16 %v1436, %v1432
    %v1532 = vpack.c.bf16 %v1438, %v1434
    %v1533 = vpack.c.bf16 %v1509, %v1505
    %v1534 = vpack.c.bf16 %v1511, %v1507
    %v1535 = vpack.c.bf16 %v1446, %v1442
    %v1536 = vpack.c.bf16 %v1448, %v1444
    %v1537 = vpack.c.bf16 %v1519, %v1515
    %v1538 = vpack.c.bf16 %v1521, %v1517
    %s1539 = smul.u32 %s682, 64
    %s1540 = smul.u32 %s1539, 4
    %s1541 = sshll.u32 %s1540, 4
    %1542 = dma.done %s247, %s1541
    %v1543 = vld [vmem:[#allocation3] sm:$0xff]
    %v1544 = vld [vmem:[#allocation3 + $0x8] sm:$0xff]
    %v1545 = vld [vmem:[#allocation3 + $0x10] sm:$0xff]
    %v1546 = vld [vmem:[#allocation3 + $0x18] sm:$0xff]
    %v1547 = vld [vmem:[#allocation3 + $0x20] sm:$0xff]
    %v1548 = vld [vmem:[#allocation3 + $0x28] sm:$0xff]
    %v1549 = vld [vmem:[#allocation3 + $0x30] sm:$0xff]
    %v1550 = vld [vmem:[#allocation3 + $0x38] sm:$0xff]
    %v1551 = vld [vmem:[#allocation3 + $0x40] sm:$0xff]
    %v1552 = vld [vmem:[#allocation3 + $0x48] sm:$0xff]
    %v1553 = vld [vmem:[#allocation3 + $0x50] sm:$0xff]
    %v1554 = vld [vmem:[#allocation3 + $0x58] sm:$0xff]
    %v1555 = vld [vmem:[#allocation3 + $0x60] sm:$0xff]
    %v1556 = vld [vmem:[#allocation3 + $0x68] sm:$0xff]
    %v1557 = vld [vmem:[#allocation3 + $0x70] sm:$0xff]
    %v1558 = vld [vmem:[#allocation3 + $0x78] sm:$0xff]
    %v1559 = vld [vmem:[#allocation3 + $0x80] sm:$0xff]
    %v1560 = vld [vmem:[#allocation3 + $0x88] sm:$0xff]
    %v1561 = vld [vmem:[#allocation3 + $0x90] sm:$0xff]
    %v1562 = vld [vmem:[#allocation3 + $0x98] sm:$0xff]
    %v1563 = vld [vmem:[#allocation3 + $0xa0] sm:$0xff]
    %v1564 = vld [vmem:[#allocation3 + $0xa8] sm:$0xff]
    %v1565 = vld [vmem:[#allocation3 + $0xb0] sm:$0xff]
    %v1566 = vld [vmem:[#allocation3 + $0xb8] sm:$0xff]
    %v1567 = vld [vmem:[#allocation3 + $0xc0] sm:$0xff]
    %v1568 = vld [vmem:[#allocation3 + $0xc8] sm:$0xff]
    %v1569 = vld [vmem:[#allocation3 + $0xd0] sm:$0xff]
    %v1570 = vld [vmem:[#allocation3 + $0xd8] sm:$0xff]
    %v1571 = vld [vmem:[#allocation3 + $0xe0] sm:$0xff]
    %v1572 = vld [vmem:[#allocation3 + $0xe8] sm:$0xff]
    %v1573 = vld [vmem:[#allocation3 + $0xf0] sm:$0xff]
    %v1574 = vld [vmem:[#allocation3 + $0xf8] sm:$0xff]
    %v1575 = vld [vmem:[#allocation3 + $0x100] sm:$0xff]
    %v1576 = vld [vmem:[#allocation3 + $0x108] sm:$0xff]
    %v1577 = vld [vmem:[#allocation3 + $0x110] sm:$0xff]
    %v1578 = vld [vmem:[#allocation3 + $0x118] sm:$0xff]
    %v1579 = vld [vmem:[#allocation3 + $0x120] sm:$0xff]
    %v1580 = vld [vmem:[#allocation3 + $0x128] sm:$0xff]
    %v1581 = vld [vmem:[#allocation3 + $0x130] sm:$0xff]
    %v1582 = vld [vmem:[#allocation3 + $0x138] sm:$0xff]
    %v1583 = vld [vmem:[#allocation3 + $0x140] sm:$0xff]
    %v1584 = vld [vmem:[#allocation3 + $0x148] sm:$0xff]
    %v1585 = vld [vmem:[#allocation3 + $0x150] sm:$0xff]
    %v1586 = vld [vmem:[#allocation3 + $0x158] sm:$0xff]
    %v1587 = vld [vmem:[#allocation3 + $0x160] sm:$0xff]
    %v1588 = vld [vmem:[#allocation3 + $0x168] sm:$0xff]
    %v1589 = vld [vmem:[#allocation3 + $0x170] sm:$0xff]
    %v1590 = vld [vmem:[#allocation3 + $0x178] sm:$0xff]
    %v1591 = vld [vmem:[#allocation3 + $0x180] sm:$0xff]
    %v1592 = vld [vmem:[#allocation3 + $0x188] sm:$0xff]
    %v1593 = vld [vmem:[#allocation3 + $0x190] sm:$0xff]
    %v1594 = vld [vmem:[#allocation3 + $0x198] sm:$0xff]
    %v1595 = vld [vmem:[#allocation3 + $0x1a0] sm:$0xff]
    %v1596 = vld [vmem:[#allocation3 + $0x1a8] sm:$0xff]
    %v1597 = vld [vmem:[#allocation3 + $0x1b0] sm:$0xff]
    %v1598 = vld [vmem:[#allocation3 + $0x1b8] sm:$0xff]
    %v1599 = vld [vmem:[#allocation3 + $0x1c0] sm:$0xff]
    %v1600 = vld [vmem:[#allocation3 + $0x1c8] sm:$0xff]
    %v1601 = vld [vmem:[#allocation3 + $0x1d0] sm:$0xff]
    %v1602 = vld [vmem:[#allocation3 + $0x1d8] sm:$0xff]
    %v1603 = vld [vmem:[#allocation3 + $0x1e0] sm:$0xff]
    %v1604 = vld [vmem:[#allocation3 + $0x1e8] sm:$0xff]
    %v1605 = vld [vmem:[#allocation3 + $0x1f0] sm:$0xff]
    %v1606 = vld [vmem:[#allocation3 + $0x1f8] sm:$0xff]
    %v1607 = vld [vmem:[#allocation3 + $0x200] sm:$0xff]
    %v1608 = vld [vmem:[#allocation3 + $0x208] sm:$0xff]
    %v1609 = vld [vmem:[#allocation3 + $0x210] sm:$0xff]
    %v1610 = vld [vmem:[#allocation3 + $0x218] sm:$0xff]
    %v1611 = vld [vmem:[#allocation3 + $0x220] sm:$0xff]
    %v1612 = vld [vmem:[#allocation3 + $0x228] sm:$0xff]
    %v1613 = vld [vmem:[#allocation3 + $0x230] sm:$0xff]
    %v1614 = vld [vmem:[#allocation3 + $0x238] sm:$0xff]
    %v1615 = vld [vmem:[#allocation3 + $0x240] sm:$0xff]
    %v1616 = vld [vmem:[#allocation3 + $0x248] sm:$0xff]
    %v1617 = vld [vmem:[#allocation3 + $0x250] sm:$0xff]
    %v1618 = vld [vmem:[#allocation3 + $0x258] sm:$0xff]
    %v1619 = vld [vmem:[#allocation3 + $0x260] sm:$0xff]
    %v1620 = vld [vmem:[#allocation3 + $0x268] sm:$0xff]
    %v1621 = vld [vmem:[#allocation3 + $0x270] sm:$0xff]
    %v1622 = vld [vmem:[#allocation3 + $0x278] sm:$0xff]
    %v1623 = vld [vmem:[#allocation3 + $0x280] sm:$0xff]
    %v1624 = vld [vmem:[#allocation3 + $0x288] sm:$0xff]
    %v1625 = vld [vmem:[#allocation3 + $0x290] sm:$0xff]
    %v1626 = vld [vmem:[#allocation3 + $0x298] sm:$0xff]
    %v1627 = vld [vmem:[#allocation3 + $0x2a0] sm:$0xff]
    %v1628 = vld [vmem:[#allocation3 + $0x2a8] sm:$0xff]
    %v1629 = vld [vmem:[#allocation3 + $0x2b0] sm:$0xff]
    %v1630 = vld [vmem:[#allocation3 + $0x2b8] sm:$0xff]
    %v1631 = vld [vmem:[#allocation3 + $0x2c0] sm:$0xff]
    %v1632 = vld [vmem:[#allocation3 + $0x2c8] sm:$0xff]
    %v1633 = vld [vmem:[#allocation3 + $0x2d0] sm:$0xff]
    %v1634 = vld [vmem:[#allocation3 + $0x2d8] sm:$0xff]
    %v1635 = vld [vmem:[#allocation3 + $0x2e0] sm:$0xff]
    %v1636 = vld [vmem:[#allocation3 + $0x2e8] sm:$0xff]
    %v1637 = vld [vmem:[#allocation3 + $0x2f0] sm:$0xff]
    %v1638 = vld [vmem:[#allocation3 + $0x2f8] sm:$0xff]
    %v1639 = vld [vmem:[#allocation3 + $0x300] sm:$0xff]
    %v1640 = vld [vmem:[#allocation3 + $0x308] sm:$0xff]
    %v1641 = vld [vmem:[#allocation3 + $0x310] sm:$0xff]
    %v1642 = vld [vmem:[#allocation3 + $0x318] sm:$0xff]
    %v1643 = vld [vmem:[#allocation3 + $0x320] sm:$0xff]
    %v1644 = vld [vmem:[#allocation3 + $0x328] sm:$0xff]
    %v1645 = vld [vmem:[#allocation3 + $0x330] sm:$0xff]
    %v1646 = vld [vmem:[#allocation3 + $0x338] sm:$0xff]
    %v1647 = vld [vmem:[#allocation3 + $0x340] sm:$0xff]
    %v1648 = vld [vmem:[#allocation3 + $0x348] sm:$0xff]
    %v1649 = vld [vmem:[#allocation3 + $0x350] sm:$0xff]
    %v1650 = vld [vmem:[#allocation3 + $0x358] sm:$0xff]
    %v1651 = vld [vmem:[#allocation3 + $0x360] sm:$0xff]
    %v1652 = vld [vmem:[#allocation3 + $0x368] sm:$0xff]
    %v1653 = vld [vmem:[#allocation3 + $0x370] sm:$0xff]
    %v1654 = vld [vmem:[#allocation3 + $0x378] sm:$0xff]
    %v1655 = vld [vmem:[#allocation3 + $0x380] sm:$0xff]
    %v1656 = vld [vmem:[#allocation3 + $0x388] sm:$0xff]
    %v1657 = vld [vmem:[#allocation3 + $0x390] sm:$0xff]
    %v1658 = vld [vmem:[#allocation3 + $0x398] sm:$0xff]
    %v1659 = vld [vmem:[#allocation3 + $0x3a0] sm:$0xff]
    %v1660 = vld [vmem:[#allocation3 + $0x3a8] sm:$0xff]
    %v1661 = vld [vmem:[#allocation3 + $0x3b0] sm:$0xff]
    %v1662 = vld [vmem:[#allocation3 + $0x3b8] sm:$0xff]
    %v1663 = vld [vmem:[#allocation3 + $0x3c0] sm:$0xff]
    %v1664 = vld [vmem:[#allocation3 + $0x3c8] sm:$0xff]
    %v1665 = vld [vmem:[#allocation3 + $0x3d0] sm:$0xff]
    %v1666 = vld [vmem:[#allocation3 + $0x3d8] sm:$0xff]
    %v1667 = vld [vmem:[#allocation3 + $0x3e0] sm:$0xff]
    %v1668 = vld [vmem:[#allocation3 + $0x3e8] sm:$0xff]
    %v1669 = vld [vmem:[#allocation3 + $0x3f0] sm:$0xff]
    %v1670 = vld [vmem:[#allocation3 + $0x3f8] sm:$0xff]
    %s1671 = scalar_lea.vmem [#allocation3], 1024
    %v1672 = vld [vmem:[%s1671] sm:$0xff]
    %v1673 = vld [vmem:[%s1671 + $0x8] sm:$0xff]
    %v1674 = vld [vmem:[%s1671 + $0x10] sm:$0xff]
    %v1675 = vld [vmem:[%s1671 + $0x18] sm:$0xff]
    %v1676 = vld [vmem:[%s1671 + $0x20] sm:$0xff]
    %v1677 = vld [vmem:[%s1671 + $0x28] sm:$0xff]
    %v1678 = vld [vmem:[%s1671 + $0x30] sm:$0xff]
    %v1679 = vld [vmem:[%s1671 + $0x38] sm:$0xff]
    %v1680 = vld [vmem:[%s1671 + $0x40] sm:$0xff]
    %v1681 = vld [vmem:[%s1671 + $0x48] sm:$0xff]
    %v1682 = vld [vmem:[%s1671 + $0x50] sm:$0xff]
    %v1683 = vld [vmem:[%s1671 + $0x58] sm:$0xff]
    %v1684 = vld [vmem:[%s1671 + $0x60] sm:$0xff]
    %v1685 = vld [vmem:[%s1671 + $0x68] sm:$0xff]
    %v1686 = vld [vmem:[%s1671 + $0x70] sm:$0xff]
    %v1687 = vld [vmem:[%s1671 + $0x78] sm:$0xff]
    %v1688 = vld [vmem:[%s1671 + $0x80] sm:$0xff]
    %v1689 = vld [vmem:[%s1671 + $0x88] sm:$0xff]
    %v1690 = vld [vmem:[%s1671 + $0x90] sm:$0xff]
    %v1691 = vld [vmem:[%s1671 + $0x98] sm:$0xff]
    %v1692 = vld [vmem:[%s1671 + $0xa0] sm:$0xff]
    %v1693 = vld [vmem:[%s1671 + $0xa8] sm:$0xff]
    %v1694 = vld [vmem:[%s1671 + $0xb0] sm:$0xff]
    %v1695 = vld [vmem:[%s1671 + $0xb8] sm:$0xff]
    %v1696 = vld [vmem:[%s1671 + $0xc0] sm:$0xff]
    %v1697 = vld [vmem:[%s1671 + $0xc8] sm:$0xff]
    %v1698 = vld [vmem:[%s1671 + $0xd0] sm:$0xff]
    %v1699 = vld [vmem:[%s1671 + $0xd8] sm:$0xff]
    %v1700 = vld [vmem:[%s1671 + $0xe0] sm:$0xff]
    %v1701 = vld [vmem:[%s1671 + $0xe8] sm:$0xff]
    %v1702 = vld [vmem:[%s1671 + $0xf0] sm:$0xff]
    %v1703 = vld [vmem:[%s1671 + $0xf8] sm:$0xff]
    %v1704 = vld [vmem:[%s1671 + $0x100] sm:$0xff]
    %v1705 = vld [vmem:[%s1671 + $0x108] sm:$0xff]
    %v1706 = vld [vmem:[%s1671 + $0x110] sm:$0xff]
    %v1707 = vld [vmem:[%s1671 + $0x118] sm:$0xff]
    %v1708 = vld [vmem:[%s1671 + $0x120] sm:$0xff]
    %v1709 = vld [vmem:[%s1671 + $0x128] sm:$0xff]
    %v1710 = vld [vmem:[%s1671 + $0x130] sm:$0xff]
    %v1711 = vld [vmem:[%s1671 + $0x138] sm:$0xff]
    %v1712 = vld [vmem:[%s1671 + $0x140] sm:$0xff]
    %v1713 = vld [vmem:[%s1671 + $0x148] sm:$0xff]
    %v1714 = vld [vmem:[%s1671 + $0x150] sm:$0xff]
    %v1715 = vld [vmem:[%s1671 + $0x158] sm:$0xff]
    %v1716 = vld [vmem:[%s1671 + $0x160] sm:$0xff]
    %v1717 = vld [vmem:[%s1671 + $0x168] sm:$0xff]
    %v1718 = vld [vmem:[%s1671 + $0x170] sm:$0xff]
    %v1719 = vld [vmem:[%s1671 + $0x178] sm:$0xff]
    %v1720 = vld [vmem:[%s1671 + $0x180] sm:$0xff]
    %v1721 = vld [vmem:[%s1671 + $0x188] sm:$0xff]
    %v1722 = vld [vmem:[%s1671 + $0x190] sm:$0xff]
    %v1723 = vld [vmem:[%s1671 + $0x198] sm:$0xff]
    %v1724 = vld [vmem:[%s1671 + $0x1a0] sm:$0xff]
    %v1725 = vld [vmem:[%s1671 + $0x1a8] sm:$0xff]
    %v1726 = vld [vmem:[%s1671 + $0x1b0] sm:$0xff]
    %v1727 = vld [vmem:[%s1671 + $0x1b8] sm:$0xff]
    %v1728 = vld [vmem:[%s1671 + $0x1c0] sm:$0xff]
    %v1729 = vld [vmem:[%s1671 + $0x1c8] sm:$0xff]
    %v1730 = vld [vmem:[%s1671 + $0x1d0] sm:$0xff]
    %v1731 = vld [vmem:[%s1671 + $0x1d8] sm:$0xff]
    %v1732 = vld [vmem:[%s1671 + $0x1e0] sm:$0xff]
    %v1733 = vld [vmem:[%s1671 + $0x1e8] sm:$0xff]
    %v1734 = vld [vmem:[%s1671 + $0x1f0] sm:$0xff]
    %v1735 = vld [vmem:[%s1671 + $0x1f8] sm:$0xff]
    %v1736 = vld [vmem:[%s1671 + $0x200] sm:$0xff]
    %v1737 = vld [vmem:[%s1671 + $0x208] sm:$0xff]
    %v1738 = vld [vmem:[%s1671 + $0x210] sm:$0xff]
    %v1739 = vld [vmem:[%s1671 + $0x218] sm:$0xff]
    %v1740 = vld [vmem:[%s1671 + $0x220] sm:$0xff]
    %v1741 = vld [vmem:[%s1671 + $0x228] sm:$0xff]
    %v1742 = vld [vmem:[%s1671 + $0x230] sm:$0xff]
    %v1743 = vld [vmem:[%s1671 + $0x238] sm:$0xff]
    %v1744 = vld [vmem:[%s1671 + $0x240] sm:$0xff]
    %v1745 = vld [vmem:[%s1671 + $0x248] sm:$0xff]
    %v1746 = vld [vmem:[%s1671 + $0x250] sm:$0xff]
    %v1747 = vld [vmem:[%s1671 + $0x258] sm:$0xff]
    %v1748 = vld [vmem:[%s1671 + $0x260] sm:$0xff]
    %v1749 = vld [vmem:[%s1671 + $0x268] sm:$0xff]
    %v1750 = vld [vmem:[%s1671 + $0x270] sm:$0xff]
    %v1751 = vld [vmem:[%s1671 + $0x278] sm:$0xff]
    %v1752 = vld [vmem:[%s1671 + $0x280] sm:$0xff]
    %v1753 = vld [vmem:[%s1671 + $0x288] sm:$0xff]
    %v1754 = vld [vmem:[%s1671 + $0x290] sm:$0xff]
    %v1755 = vld [vmem:[%s1671 + $0x298] sm:$0xff]
    %v1756 = vld [vmem:[%s1671 + $0x2a0] sm:$0xff]
    %v1757 = vld [vmem:[%s1671 + $0x2a8] sm:$0xff]
    %v1758 = vld [vmem:[%s1671 + $0x2b0] sm:$0xff]
    %v1759 = vld [vmem:[%s1671 + $0x2b8] sm:$0xff]
    %v1760 = vld [vmem:[%s1671 + $0x2c0] sm:$0xff]
    %v1761 = vld [vmem:[%s1671 + $0x2c8] sm:$0xff]
    %v1762 = vld [vmem:[%s1671 + $0x2d0] sm:$0xff]
    %v1763 = vld [vmem:[%s1671 + $0x2d8] sm:$0xff]
    %v1764 = vld [vmem:[%s1671 + $0x2e0] sm:$0xff]
    %v1765 = vld [vmem:[%s1671 + $0x2e8] sm:$0xff]
    %v1766 = vld [vmem:[%s1671 + $0x2f0] sm:$0xff]
    %v1767 = vld [vmem:[%s1671 + $0x2f8] sm:$0xff]
    %v1768 = vld [vmem:[%s1671 + $0x300] sm:$0xff]
    %v1769 = vld [vmem:[%s1671 + $0x308] sm:$0xff]
    %v1770 = vld [vmem:[%s1671 + $0x310] sm:$0xff]
    %v1771 = vld [vmem:[%s1671 + $0x318] sm:$0xff]
    %v1772 = vld [vmem:[%s1671 + $0x320] sm:$0xff]
    %v1773 = vld [vmem:[%s1671 + $0x328] sm:$0xff]
    %v1774 = vld [vmem:[%s1671 + $0x330] sm:$0xff]
    %v1775 = vld [vmem:[%s1671 + $0x338] sm:$0xff]
    %v1776 = vld [vmem:[%s1671 + $0x340] sm:$0xff]
    %v1777 = vld [vmem:[%s1671 + $0x348] sm:$0xff]
    %v1778 = vld [vmem:[%s1671 + $0x350] sm:$0xff]
    %v1779 = vld [vmem:[%s1671 + $0x358] sm:$0xff]
    %v1780 = vld [vmem:[%s1671 + $0x360] sm:$0xff]
    %v1781 = vld [vmem:[%s1671 + $0x368] sm:$0xff]
    %v1782 = vld [vmem:[%s1671 + $0x370] sm:$0xff]
    %v1783 = vld [vmem:[%s1671 + $0x378] sm:$0xff]
    %v1784 = vld [vmem:[%s1671 + $0x380] sm:$0xff]
    %v1785 = vld [vmem:[%s1671 + $0x388] sm:$0xff]
    %v1786 = vld [vmem:[%s1671 + $0x390] sm:$0xff]
    %v1787 = vld [vmem:[%s1671 + $0x398] sm:$0xff]
    %v1788 = vld [vmem:[%s1671 + $0x3a0] sm:$0xff]
    %v1789 = vld [vmem:[%s1671 + $0x3a8] sm:$0xff]
    %v1790 = vld [vmem:[%s1671 + $0x3b0] sm:$0xff]
    %v1791 = vld [vmem:[%s1671 + $0x3b8] sm:$0xff]
    %v1792 = vld [vmem:[%s1671 + $0x3c0] sm:$0xff]
    %v1793 = vld [vmem:[%s1671 + $0x3c8] sm:$0xff]
    %v1794 = vld [vmem:[%s1671 + $0x3d0] sm:$0xff]
    %v1795 = vld [vmem:[%s1671 + $0x3d8] sm:$0xff]
    %v1796 = vld [vmem:[%s1671 + $0x3e0] sm:$0xff]
    %v1797 = vld [vmem:[%s1671 + $0x3e8] sm:$0xff]
    %v1798 = vld [vmem:[%s1671 + $0x3f0] sm:$0xff]
    %v1799 = vld [vmem:[%s1671 + $0x3f8] sm:$0xff]
    %1800 = vmatprep.subr.bf16.mxu0 %v1673
    %1801 = vmatpush1.bf16.msra.mxu0 %v1672
    %1802 = vmatprep.subr.bf16.mxu0 %v1677
    %1803 = vmatpush1.bf16.msra.mxu0 %v1676
    %1804 = vmatprep.subr.bf16.mxu0 %v1681
    %1805 = vmatpush1.bf16.msra.mxu0 %v1680
    %1806 = vmatprep.subr.bf16.mxu0 %v1685
    %1807 = vmatpush1.bf16.msra.mxu0 %v1684
    %1808 = vmatprep.subr.bf16.mxu0 %v1689
    %1809 = vmatpush1.bf16.msra.mxu0 %v1688
    %1810 = vmatprep.subr.bf16.mxu0 %v1693
    %1811 = vmatpush1.bf16.msra.mxu0 %v1692
    %1812 = vmatprep.subr.bf16.mxu0 %v1697
    %1813 = vmatpush1.bf16.msra.mxu0 %v1696
    %1814 = vmatprep.subr.bf16.mxu0 %v1701
    %1815 = vmatpush1.bf16.msra.mxu0 %v1700
    %1816 = vmatprep.subr.bf16.mxu0 %v1705
    %1817 = vmatpush1.bf16.msra.mxu0 %v1704
    %1818 = vmatprep.subr.bf16.mxu0 %v1709
    %1819 = vmatpush1.bf16.msra.mxu0 %v1708
    %1820 = vmatprep.subr.bf16.mxu0 %v1713
    %1821 = vmatpush1.bf16.msra.mxu0 %v1712
    %1822 = vmatprep.subr.bf16.mxu0 %v1717
    %1823 = vmatpush1.bf16.msra.mxu0 %v1716
    %1824 = vmatprep.subr.bf16.mxu0 %v1721
    %1825 = vmatpush1.bf16.msra.mxu0 %v1720
    %1826 = vmatprep.subr.bf16.mxu0 %v1725
    %1827 = vmatpush1.bf16.msra.mxu0 %v1724
    %1828 = vmatprep.subr.bf16.mxu0 %v1729
    %1829 = vmatpush1.bf16.msra.mxu0 %v1728
    %1830 = vmatprep.subr.bf16.mxu0 %v1733
    %1831 = vmatpush1.bf16.msra.mxu0 %v1732
    %1832 = vmatprep.mubr.bf16.mxu0 %v1528
    %1833 = vmatmul.mubr.bf16.gmra.mrb[0].mxu0 %v1527
    %v1834 = vpop.f32.mrb[0].mxu0
    %v1835 = vadd.f32 0.0, %v1834
    %v1836 = vpop.f32.mrb[0].mxu0
    %v1837 = vadd.f32 0.0, %v1836
    %v1838 = vpop.f32.mrb[0].mxu0
    %v1839 = vadd.f32 0.0, %v1838
    %v1840 = vpop.f32.mrb[0].mxu0
    %v1841 = vadd.f32 0.0, %v1840
    %1842 = vdwg.mxu0
    %1843 = vmatprep.subr.bf16.mxu0 %v1737
    %1844 = vmatpush1.bf16.msra.mxu0 %v1736
    %1845 = vmatprep.subr.bf16.mxu0 %v1741
    %1846 = vmatpush1.bf16.msra.mxu0 %v1740
    %1847 = vmatprep.subr.bf16.mxu0 %v1745
    %1848 = vmatpush1.bf16.msra.mxu0 %v1744
    %1849 = vmatprep.subr.bf16.mxu0 %v1749
    %1850 = vmatpush1.bf16.msra.mxu0 %v1748
    %1851 = vmatprep.subr.bf16.mxu0 %v1753
    %1852 = vmatpush1.bf16.msra.mxu0 %v1752
    %1853 = vmatprep.subr.bf16.mxu0 %v1757
    %1854 = vmatpush1.bf16.msra.mxu0 %v1756
    %1855 = vmatprep.subr.bf16.mxu0 %v1761
    %1856 = vmatpush1.bf16.msra.mxu0 %v1760
    %1857 = vmatprep.subr.bf16.mxu0 %v1765
    %1858 = vmatpush1.bf16.msra.mxu0 %v1764
    %1859 = vmatprep.subr.bf16.mxu0 %v1769
    %1860 = vmatpush1.bf16.msra.mxu0 %v1768
    %1861 = vmatprep.subr.bf16.mxu0 %v1773
    %1862 = vmatpush1.bf16.msra.mxu0 %v1772
    %1863 = vmatprep.subr.bf16.mxu0 %v1777
    %1864 = vmatpush1.bf16.msra.mxu0 %v1776
    %1865 = vmatprep.subr.bf16.mxu0 %v1781
    %1866 = vmatpush1.bf16.msra.mxu0 %v1780
    %1867 = vmatprep.subr.bf16.mxu0 %v1785
    %1868 = vmatpush1.bf16.msra.mxu0 %v1784
    %1869 = vmatprep.subr.bf16.mxu0 %v1789
    %1870 = vmatpush1.bf16.msra.mxu0 %v1788
    %1871 = vmatprep.subr.bf16.mxu0 %v1793
    %1872 = vmatpush1.bf16.msra.mxu0 %v1792
    %1873 = vmatprep.subr.bf16.mxu0 %v1797
    %1874 = vmatpush1.bf16.msra.mxu0 %v1796
    %1875 = vmatprep.mubr.bf16.mxu0 %v1530
    %1876 = vmatmul.mubr.bf16.gmra.mrb[0].mxu0 %v1529
    %v1877 = vpop.f32.mrb[0].mxu0
    %v1878 = vadd.f32 %v1835, %v1877
    %v1879 = vpop.f32.mrb[0].mxu0
    %v1880 = vadd.f32 %v1837, %v1879
    %v1881 = vpop.f32.mrb[0].mxu0
    %v1882 = vadd.f32 %v1839, %v1881
    %v1883 = vpop.f32.mrb[0].mxu0
    %v1884 = vadd.f32 %v1841, %v1883
    %1885 = vdwg.mxu0
    %1886 = vmatprep.subr.bf16.mxu0 %v1675
    %1887 = vmatpush1.bf16.msra.mxu0 %v1674
    %1888 = vmatprep.subr.bf16.mxu0 %v1679
    %1889 = vmatpush1.bf16.msra.mxu0 %v1678
    %1890 = vmatprep.subr.bf16.mxu0 %v1683
    %1891 = vmatpush1.bf16.msra.mxu0 %v1682
    %1892 = vmatprep.subr.bf16.mxu0 %v1687
    %1893 = vmatpush1.bf16.msra.mxu0 %v1686
    %1894 = vmatprep.subr.bf16.mxu0 %v1691
    %1895 = vmatpush1.bf16.msra.mxu0 %v1690
    %1896 = vmatprep.subr.bf16.mxu0 %v1695
    %1897 = vmatpush1.bf16.msra.mxu0 %v1694
    %1898 = vmatprep.subr.bf16.mxu0 %v1699
    %1899 = vmatpush1.bf16.msra.mxu0 %v1698
    %1900 = vmatprep.subr.bf16.mxu0 %v1703
    %1901 = vmatpush1.bf16.msra.mxu0 %v1702
    %1902 = vmatprep.subr.bf16.mxu0 %v1707
    %1903 = vmatpush1.bf16.msra.mxu0 %v1706
    %1904 = vmatprep.subr.bf16.mxu0 %v1711
    %1905 = vmatpush1.bf16.msra.mxu0 %v1710
    %1906 = vmatprep.subr.bf16.mxu0 %v1715
    %1907 = vmatpush1.bf16.msra.mxu0 %v1714
    %1908 = vmatprep.subr.bf16.mxu0 %v1719
    %1909 = vmatpush1.bf16.msra.mxu0 %v1718
    %1910 = vmatprep.subr.bf16.mxu0 %v1723
    %1911 = vmatpush1.bf16.msra.mxu0 %v1722
    %1912 = vmatprep.subr.bf16.mxu0 %v1727
    %1913 = vmatpush1.bf16.msra.mxu0 %v1726
    %1914 = vmatprep.subr.bf16.mxu0 %v1731
    %1915 = vmatpush1.bf16.msra.mxu0 %v1730
    %1916 = vmatprep.subr.bf16.mxu0 %v1735
    %1917 = vmatpush1.bf16.msra.mxu0 %v1734
    %1918 = vmatprep.mubr.bf16.mxu0 %v1528
    %1919 = vmatmul.mubr.bf16.gmra.mrb[0].mxu0 %v1527
    %v1920 = vpop.f32.mrb[0].mxu0
    %v1921 = vadd.f32 0.0, %v1920
    %v1922 = vpop.f32.mrb[0].mxu0
    %v1923 = vadd.f32 0.0, %v1922
    %v1924 = vpop.f32.mrb[0].mxu0
    %v1925 = vadd.f32 0.0, %v1924
    %v1926 = vpop.f32.mrb[0].mxu0
    %v1927 = vadd.f32 0.0, %v1926
    %1928 = vdwg.mxu0
    %1929 = vmatprep.subr.bf16.mxu0 %v1739
    %1930 = vmatpush1.bf16.msra.mxu0 %v1738
    %1931 = vmatprep.subr.bf16.mxu0 %v1743
    %1932 = vmatpush1.bf16.msra.mxu0 %v1742
    %1933 = vmatprep.subr.bf16.mxu0 %v1747
    %1934 = vmatpush1.bf16.msra.mxu0 %v1746
    %1935 = vmatprep.subr.bf16.mxu0 %v1751
    %1936 = vmatpush1.bf16.msra.mxu0 %v1750
    %1937 = vmatprep.subr.bf16.mxu0 %v1755
    %1938 = vmatpush1.bf16.msra.mxu0 %v1754
    %1939 = vmatprep.subr.bf16.mxu0 %v1759
    %1940 = vmatpush1.bf16.msra.mxu0 %v1758
    %1941 = vmatprep.subr.bf16.mxu0 %v1763
    %1942 = vmatpush1.bf16.msra.mxu0 %v1762
    %1943 = vmatprep.subr.bf16.mxu0 %v1767
    %1944 = vmatpush1.bf16.msra.mxu0 %v1766
    %1945 = vmatprep.subr.bf16.mxu0 %v1771
    %1946 = vmatpush1.bf16.msra.mxu0 %v1770
    %1947 = vmatprep.subr.bf16.mxu0 %v1775
    %1948 = vmatpush1.bf16.msra.mxu0 %v1774
    %1949 = vmatprep.subr.bf16.mxu0 %v1779
    %1950 = vmatpush1.bf16.msra.mxu0 %v1778
    %1951 = vmatprep.subr.bf16.mxu0 %v1783
    %1952 = vmatpush1.bf16.msra.mxu0 %v1782
    %1953 = vmatprep.subr.bf16.mxu0 %v1787
    %1954 = vmatpush1.bf16.msra.mxu0 %v1786
    %1955 = vmatprep.subr.bf16.mxu0 %v1791
    %1956 = vmatpush1.bf16.msra.mxu0 %v1790
    %1957 = vmatprep.subr.bf16.mxu0 %v1795
    %1958 = vmatpush1.bf16.msra.mxu0 %v1794
    %1959 = vmatprep.subr.bf16.mxu0 %v1799
    %1960 = vmatpush1.bf16.msra.mxu0 %v1798
    %1961 = vmatprep.mubr.bf16.mxu0 %v1530
    %1962 = vmatmul.mubr.bf16.gmra.mrb[0].mxu0 %v1529
    %v1963 = vpop.f32.mrb[0].mxu0
    %v1964 = vadd.f32 %v1921, %v1963
    %v1965 = vpop.f32.mrb[0].mxu0
    %v1966 = vadd.f32 %v1923, %v1965
    %v1967 = vpop.f32.mrb[0].mxu0
    %v1968 = vadd.f32 %v1925, %v1967
    %v1969 = vpop.f32.mrb[0].mxu0
    %v1970 = vadd.f32 %v1927, %v1969
    %1971 = vdwg.mxu0
    %1972 = vmatprep.subr.bf16.mxu0 %v1544
    %1973 = vmatpush1.bf16.msra.mxu0 %v1543
    %1974 = vmatprep.subr.bf16.mxu0 %v1548
    %1975 = vmatpush1.bf16.msra.mxu0 %v1547
    %1976 = vmatprep.subr.bf16.mxu0 %v1552
    %1977 = vmatpush1.bf16.msra.mxu0 %v1551
    %1978 = vmatprep.subr.bf16.mxu0 %v1556
    %1979 = vmatpush1.bf16.msra.mxu0 %v1555
    %1980 = vmatprep.subr.bf16.mxu0 %v1560
    %1981 = vmatpush1.bf16.msra.mxu0 %v1559
    %1982 = vmatprep.subr.bf16.mxu0 %v1564
    %1983 = vmatpush1.bf16.msra.mxu0 %v1563
    %1984 = vmatprep.subr.bf16.mxu0 %v1568
    %1985 = vmatpush1.bf16.msra.mxu0 %v1567
    %1986 = vmatprep.subr.bf16.mxu0 %v1572
    %1987 = vmatpush1.bf16.msra.mxu0 %v1571
    %1988 = vmatprep.subr.bf16.mxu0 %v1576
    %1989 = vmatpush1.bf16.msra.mxu0 %v1575
    %1990 = vmatprep.subr.bf16.mxu0 %v1580
    %1991 = vmatpush1.bf16.msra.mxu0 %v1579
    %1992 = vmatprep.subr.bf16.mxu0 %v1584
    %1993 = vmatpush1.bf16.msra.mxu0 %v1583
    %1994 = vmatprep.subr.bf16.mxu0 %v1588
    %1995 = vmatpush1.bf16.msra.mxu0 %v1587
    %1996 = vmatprep.subr.bf16.mxu0 %v1592
    %1997 = vmatpush1.bf16.msra.mxu0 %v1591
    %1998 = vmatprep.subr.bf16.mxu0 %v1596
    %1999 = vmatpush1.bf16.msra.mxu0 %v1595
    %2000 = vmatprep.subr.bf16.mxu0 %v1600
    %2001 = vmatpush1.bf16.msra.mxu0 %v1599
    %2002 = vmatprep.subr.bf16.mxu0 %v1604
    %2003 = vmatpush1.bf16.msra.mxu0 %v1603
    %2004 = vmatprep.mubr.bf16.mxu0 %v1524
    %2005 = vmatmul.mubr.bf16.gmra.mrb[0].mxu0 %v1523
    %v2006 = vpop.f32.mrb[0].mxu0
    %v2007 = vadd.f32 %v1878, %v2006
    %v2008 = vpop.f32.mrb[0].mxu0
    %v2009 = vadd.f32 %v1880, %v2008
    %v2010 = vpop.f32.mrb[0].mxu0
    %v2011 = vadd.f32 %v1882, %v2010
    %v2012 = vpop.f32.mrb[0].mxu0
    %v2013 = vadd.f32 %v1884, %v2012
    %2014 = vdwg.mxu0
    %2015 = vmatprep.subr.bf16.mxu0 %v1608
    %2016 = vmatpush1.bf16.msra.mxu0 %v1607
    %2017 = vmatprep.subr.bf16.mxu0 %v1612
    %2018 = vmatpush1.bf16.msra.mxu0 %v1611
    %2019 = vmatprep.subr.bf16.mxu0 %v1616
    %2020 = vmatpush1.bf16.msra.mxu0 %v1615
    %2021 = vmatprep.subr.bf16.mxu0 %v1620
    %2022 = vmatpush1.bf16.msra.mxu0 %v1619
    %2023 = vmatprep.subr.bf16.mxu0 %v1624
    %2024 = vmatpush1.bf16.msra.mxu0 %v1623
    %2025 = vmatprep.subr.bf16.mxu0 %v1628
    %2026 = vmatpush1.bf16.msra.mxu0 %v1627
    %2027 = vmatprep.subr.bf16.mxu0 %v1632
    %2028 = vmatpush1.bf16.msra.mxu0 %v1631
    %2029 = vmatprep.subr.bf16.mxu0 %v1636
    %2030 = vmatpush1.bf16.msra.mxu0 %v1635
    %2031 = vmatprep.subr.bf16.mxu0 %v1640
    %2032 = vmatpush1.bf16.msra.mxu0 %v1639
    %2033 = vmatprep.subr.bf16.mxu0 %v1644
    %2034 = vmatpush1.bf16.msra.mxu0 %v1643
    %2035 = vmatprep.subr.bf16.mxu0 %v1648
    %2036 = vmatpush1.bf16.msra.mxu0 %v1647
    %2037 = vmatprep.subr.bf16.mxu0 %v1652
    %2038 = vmatpush1.bf16.msra.mxu0 %v1651
    %2039 = vmatprep.subr.bf16.mxu0 %v1656
    %2040 = vmatpush1.bf16.msra.mxu0 %v1655
    %2041 = vmatprep.subr.bf16.mxu0 %v1660
    %2042 = vmatpush1.bf16.msra.mxu0 %v1659
    %2043 = vmatprep.subr.bf16.mxu0 %v1664
    %2044 = vmatpush1.bf16.msra.mxu0 %v1663
    %2045 = vmatprep.subr.bf16.mxu0 %v1668
    %2046 = vmatpush1.bf16.msra.mxu0 %v1667
    %2047 = vmatprep.mubr.bf16.mxu0 %v1526
    %2048 = vmatmul.mubr.bf16.gmra.mrb[0].mxu0 %v1525
    %v2049 = vpop.f32.mrb[0].mxu0
    %v2050 = vadd.f32 %v2007, %v2049
    %v2051 = vpop.f32.mrb[0].mxu0
    %v2052 = vadd.f32 %v2009, %v2051
    %v2053 = vpop.f32.mrb[0].mxu0
    %v2054 = vadd.f32 %v2011, %v2053
    %v2055 = vpop.f32.mrb[0].mxu0
    %v2056 = vadd.f32 %v2013, %v2055
    %2057 = vdwg.mxu0
    %2058 = vmatprep.subr.bf16.mxu0 %v1546
    %2059 = vmatpush1.bf16.msra.mxu0 %v1545
    %2060 = vmatprep.subr.bf16.mxu0 %v1550
    %2061 = vmatpush1.bf16.msra.mxu0 %v1549
    %2062 = vmatprep.subr.bf16.mxu0 %v1554
    %2063 = vmatpush1.bf16.msra.mxu0 %v1553
    %2064 = vmatprep.subr.bf16.mxu0 %v1558
    %2065 = vmatpush1.bf16.msra.mxu0 %v1557
    %2066 = vmatprep.subr.bf16.mxu0 %v1562
    %2067 = vmatpush1.bf16.msra.mxu0 %v1561
    %2068 = vmatprep.subr.bf16.mxu0 %v1566
    %2069 = vmatpush1.bf16.msra.mxu0 %v1565
    %2070 = vmatprep.subr.bf16.mxu0 %v1570
    %2071 = vmatpush1.bf16.msra.mxu0 %v1569
    %2072 = vmatprep.subr.bf16.mxu0 %v1574
    %2073 = vmatpush1.bf16.msra.mxu0 %v1573
    %2074 = vmatprep.subr.bf16.mxu0 %v1578
    %2075 = vmatpush1.bf16.msra.mxu0 %v1577
    %2076 = vmatprep.subr.bf16.mxu0 %v1582
    %2077 = vmatpush1.bf16.msra.mxu0 %v1581
    %2078 = vmatprep.subr.bf16.mxu0 %v1586
    %2079 = vmatpush1.bf16.msra.mxu0 %v1585
    %2080 = vmatprep.subr.bf16.mxu0 %v1590
    %2081 = vmatpush1.bf16.msra.mxu0 %v1589
    %2082 = vmatprep.subr.bf16.mxu0 %v1594
    %2083 = vmatpush1.bf16.msra.mxu0 %v1593
    %2084 = vmatprep.subr.bf16.mxu0 %v1598
    %2085 = vmatpush1.bf16.msra.mxu0 %v1597
    %2086 = vmatprep.subr.bf16.mxu0 %v1602
    %2087 = vmatpush1.bf16.msra.mxu0 %v1601
    %2088 = vmatprep.subr.bf16.mxu0 %v1606
    %2089 = vmatpush1.bf16.msra.mxu0 %v1605
    %2090 = vmatprep.mubr.bf16.mxu0 %v1524
    %2091 = vmatmul.mubr.bf16.gmra.mrb[0].mxu0 %v1523
    %v2092 = vpop.f32.mrb[0].mxu0
    %v2093 = vadd.f32 %v1964, %v2092
    %v2094 = vpop.f32.mrb[0].mxu0
    %v2095 = vadd.f32 %v1966, %v2094
    %v2096 = vpop.f32.mrb[0].mxu0
    %v2097 = vadd.f32 %v1968, %v2096
    %v2098 = vpop.f32.mrb[0].mxu0
    %v2099 = vadd.f32 %v1970, %v2098
    %2100 = vdwg.mxu0
    %2101 = vmatprep.subr.bf16.mxu0 %v1610
    %2102 = vmatpush1.bf16.msra.mxu0 %v1609
    %2103 = vmatprep.subr.bf16.mxu0 %v1614
    %2104 = vmatpush1.bf16.msra.mxu0 %v1613
    %2105 = vmatprep.subr.bf16.mxu0 %v1618
    %2106 = vmatpush1.bf16.msra.mxu0 %v1617
    %2107 = vmatprep.subr.bf16.mxu0 %v1622
    %2108 = vmatpush1.bf16.msra.mxu0 %v1621
    %2109 = vmatprep.subr.bf16.mxu0 %v1626
    %2110 = vmatpush1.bf16.msra.mxu0 %v1625
    %2111 = vmatprep.subr.bf16.mxu0 %v1630
    %2112 = vmatpush1.bf16.msra.mxu0 %v1629
    %2113 = vmatprep.subr.bf16.mxu0 %v1634
    %2114 = vmatpush1.bf16.msra.mxu0 %v1633
    %2115 = vmatprep.subr.bf16.mxu0 %v1638
    %2116 = vmatpush1.bf16.msra.mxu0 %v1637
    %2117 = vmatprep.subr.bf16.mxu0 %v1642
    %2118 = vmatpush1.bf16.msra.mxu0 %v1641
    %2119 = vmatprep.subr.bf16.mxu0 %v1646
    %2120 = vmatpush1.bf16.msra.mxu0 %v1645
    %2121 = vmatprep.subr.bf16.mxu0 %v1650
    %2122 = vmatpush1.bf16.msra.mxu0 %v1649
    %2123 = vmatprep.subr.bf16.mxu0 %v1654
    %2124 = vmatpush1.bf16.msra.mxu0 %v1653
    %2125 = vmatprep.subr.bf16.mxu0 %v1658
    %2126 = vmatpush1.bf16.msra.mxu0 %v1657
    %2127 = vmatprep.subr.bf16.mxu0 %v1662
    %2128 = vmatpush1.bf16.msra.mxu0 %v1661
    %2129 = vmatprep.subr.bf16.mxu0 %v1666
    %2130 = vmatpush1.bf16.msra.mxu0 %v1665
    %2131 = vmatprep.subr.bf16.mxu0 %v1670
    %2132 = vmatpush1.bf16.msra.mxu0 %v1669
    %2133 = vmatprep.mubr.bf16.mxu0 %v1526
    %2134 = vmatmul.mubr.bf16.gmra.mrb[0].mxu0 %v1525
    %v2135 = vpop.f32.mrb[0].mxu0
    %v2136 = vadd.f32 %v2093, %v2135
    %v2137 = vpop.f32.mrb[0].mxu0
    %v2138 = vadd.f32 %v2095, %v2137
    %v2139 = vpop.f32.mrb[0].mxu0
    %v2140 = vadd.f32 %v2097, %v2139
    %v2141 = vpop.f32.mrb[0].mxu0
    %v2142 = vadd.f32 %v2099, %v2141
    %2143 = vdwg.mxu0
    %s2144 = scalar_lea.vmem [#allocation3], 2048
    %v2145 = vld [vmem:[%s2144] sm:$0xff]
    %v2146 = vld [vmem:[%s2144 + $0x8] sm:$0xff]
    %v2147 = vld [vmem:[%s2144 + $0x10] sm:$0xff]
    %v2148 = vld [vmem:[%s2144 + $0x18] sm:$0xff]
    %v2149 = vld [vmem:[%s2144 + $0x20] sm:$0xff]
    %v2150 = vld [vmem:[%s2144 + $0x28] sm:$0xff]
    %v2151 = vld [vmem:[%s2144 + $0x30] sm:$0xff]
    %v2152 = vld [vmem:[%s2144 + $0x38] sm:$0xff]
    %v2153 = vld [vmem:[%s2144 + $0x40] sm:$0xff]
    %v2154 = vld [vmem:[%s2144 + $0x48] sm:$0xff]
    %v2155 = vld [vmem:[%s2144 + $0x50] sm:$0xff]
    %v2156 = vld [vmem:[%s2144 + $0x58] sm:$0xff]
    %v2157 = vld [vmem:[%s2144 + $0x60] sm:$0xff]
    %v2158 = vld [vmem:[%s2144 + $0x68] sm:$0xff]
    %v2159 = vld [vmem:[%s2144 + $0x70] sm:$0xff]
    %v2160 = vld [vmem:[%s2144 + $0x78] sm:$0xff]
    %v2161 = vld [vmem:[%s2144 + $0x80] sm:$0xff]
    %v2162 = vld [vmem:[%s2144 + $0x88] sm:$0xff]
    %v2163 = vld [vmem:[%s2144 + $0x90] sm:$0xff]
    %v2164 = vld [vmem:[%s2144 + $0x98] sm:$0xff]
    %v2165 = vld [vmem:[%s2144 + $0xa0] sm:$0xff]
    %v2166 = vld [vmem:[%s2144 + $0xa8] sm:$0xff]
    %v2167 = vld [vmem:[%s2144 + $0xb0] sm:$0xff]
    %v2168 = vld [vmem:[%s2144 + $0xb8] sm:$0xff]
    %v2169 = vld [vmem:[%s2144 + $0xc0] sm:$0xff]
    %v2170 = vld [vmem:[%s2144 + $0xc8] sm:$0xff]
    %v2171 = vld [vmem:[%s2144 + $0xd0] sm:$0xff]
    %v2172 = vld [vmem:[%s2144 + $0xd8] sm:$0xff]
    %v2173 = vld [vmem:[%s2144 + $0xe0] sm:$0xff]
    %v2174 = vld [vmem:[%s2144 + $0xe8] sm:$0xff]
    %v2175 = vld [vmem:[%s2144 + $0xf0] sm:$0xff]
    %v2176 = vld [vmem:[%s2144 + $0xf8] sm:$0xff]
    %v2177 = vld [vmem:[%s2144 + $0x100] sm:$0xff]
    %v2178 = vld [vmem:[%s2144 + $0x108] sm:$0xff]
    %v2179 = vld [vmem:[%s2144 + $0x110] sm:$0xff]
    %v2180 = vld [vmem:[%s2144 + $0x118] sm:$0xff]
    %v2181 = vld [vmem:[%s2144 + $0x120] sm:$0xff]
    %v2182 = vld [vmem:[%s2144 + $0x128] sm:$0xff]
    %v2183 = vld [vmem:[%s2144 + $0x130] sm:$0xff]
    %v2184 = vld [vmem:[%s2144 + $0x138] sm:$0xff]
    %v2185 = vld [vmem:[%s2144 + $0x140] sm:$0xff]
    %v2186 = vld [vmem:[%s2144 + $0x148] sm:$0xff]
    %v2187 = vld [vmem:[%s2144 + $0x150] sm:$0xff]
    %v2188 = vld [vmem:[%s2144 + $0x158] sm:$0xff]
    %v2189 = vld [vmem:[%s2144 + $0x160] sm:$0xff]
    %v2190 = vld [vmem:[%s2144 + $0x168] sm:$0xff]
    %v2191 = vld [vmem:[%s2144 + $0x170] sm:$0xff]
    %v2192 = vld [vmem:[%s2144 + $0x178] sm:$0xff]
    %v2193 = vld [vmem:[%s2144 + $0x180] sm:$0xff]
    %v2194 = vld [vmem:[%s2144 + $0x188] sm:$0xff]
    %v2195 = vld [vmem:[%s2144 + $0x190] sm:$0xff]
    %v2196 = vld [vmem:[%s2144 + $0x198] sm:$0xff]
    %v2197 = vld [vmem:[%s2144 + $0x1a0] sm:$0xff]
    %v2198 = vld [vmem:[%s2144 + $0x1a8] sm:$0xff]
    %v2199 = vld [vmem:[%s2144 + $0x1b0] sm:$0xff]
    %v2200 = vld [vmem:[%s2144 + $0x1b8] sm:$0xff]
    %v2201 = vld [vmem:[%s2144 + $0x1c0] sm:$0xff]
    %v2202 = vld [vmem:[%s2144 + $0x1c8] sm:$0xff]
    %v2203 = vld [vmem:[%s2144 + $0x1d0] sm:$0xff]
    %v2204 = vld [vmem:[%s2144 + $0x1d8] sm:$0xff]
    %v2205 = vld [vmem:[%s2144 + $0x1e0] sm:$0xff]
    %v2206 = vld [vmem:[%s2144 + $0x1e8] sm:$0xff]
    %v2207 = vld [vmem:[%s2144 + $0x1f0] sm:$0xff]
    %v2208 = vld [vmem:[%s2144 + $0x1f8] sm:$0xff]
    %v2209 = vld [vmem:[%s2144 + $0x200] sm:$0xff]
    %v2210 = vld [vmem:[%s2144 + $0x208] sm:$0xff]
    %v2211 = vld [vmem:[%s2144 + $0x210] sm:$0xff]
    %v2212 = vld [vmem:[%s2144 + $0x218] sm:$0xff]
    %v2213 = vld [vmem:[%s2144 + $0x220] sm:$0xff]
    %v2214 = vld [vmem:[%s2144 + $0x228] sm:$0xff]
    %v2215 = vld [vmem:[%s2144 + $0x230] sm:$0xff]
    %v2216 = vld [vmem:[%s2144 + $0x238] sm:$0xff]
    %v2217 = vld [vmem:[%s2144 + $0x240] sm:$0xff]
    %v2218 = vld [vmem:[%s2144 + $0x248] sm:$0xff]
    %v2219 = vld [vmem:[%s2144 + $0x250] sm:$0xff]
    %v2220 = vld [vmem:[%s2144 + $0x258] sm:$0xff]
    %v2221 = vld [vmem:[%s2144 + $0x260] sm:$0xff]
    %v2222 = vld [vmem:[%s2144 + $0x268] sm:$0xff]
    %v2223 = vld [vmem:[%s2144 + $0x270] sm:$0xff]
    %v2224 = vld [vmem:[%s2144 + $0x278] sm:$0xff]
    %v2225 = vld [vmem:[%s2144 + $0x280] sm:$0xff]
    %v2226 = vld [vmem:[%s2144 + $0x288] sm:$0xff]
    %v2227 = vld [vmem:[%s2144 + $0x290] sm:$0xff]
    %v2228 = vld [vmem:[%s2144 + $0x298] sm:$0xff]
    %v2229 = vld [vmem:[%s2144 + $0x2a0] sm:$0xff]
    %v2230 = vld [vmem:[%s2144 + $0x2a8] sm:$0xff]
    %v2231 = vld [vmem:[%s2144 + $0x2b0] sm:$0xff]
    %v2232 = vld [vmem:[%s2144 + $0x2b8] sm:$0xff]
    %v2233 = vld [vmem:[%s2144 + $0x2c0] sm:$0xff]
    %v2234 = vld [vmem:[%s2144 + $0x2c8] sm:$0xff]
    %v2235 = vld [vmem:[%s2144 + $0x2d0] sm:$0xff]
    %v2236 = vld [vmem:[%s2144 + $0x2d8] sm:$0xff]
    %v2237 = vld [vmem:[%s2144 + $0x2e0] sm:$0xff]
    %v2238 = vld [vmem:[%s2144 + $0x2e8] sm:$0xff]
    %v2239 = vld [vmem:[%s2144 + $0x2f0] sm:$0xff]
    %v2240 = vld [vmem:[%s2144 + $0x2f8] sm:$0xff]
    %v2241 = vld [vmem:[%s2144 + $0x300] sm:$0xff]
    %v2242 = vld [vmem:[%s2144 + $0x308] sm:$0xff]
    %v2243 = vld [vmem:[%s2144 + $0x310] sm:$0xff]
    %v2244 = vld [vmem:[%s2144 + $0x318] sm:$0xff]
    %v2245 = vld [vmem:[%s2144 + $0x320] sm:$0xff]
    %v2246 = vld [vmem:[%s2144 + $0x328] sm:$0xff]
    %v2247 = vld [vmem:[%s2144 + $0x330] sm:$0xff]
    %v2248 = vld [vmem:[%s2144 + $0x338] sm:$0xff]
    %v2249 = vld [vmem:[%s2144 + $0x340] sm:$0xff]
    %v2250 = vld [vmem:[%s2144 + $0x348] sm:$0xff]
    %v2251 = vld [vmem:[%s2144 + $0x350] sm:$0xff]
    %v2252 = vld [vmem:[%s2144 + $0x358] sm:$0xff]
    %v2253 = vld [vmem:[%s2144 + $0x360] sm:$0xff]
    %v2254 = vld [vmem:[%s2144 + $0x368] sm:$0xff]
    %v2255 = vld [vmem:[%s2144 + $0x370] sm:$0xff]
    %v2256 = vld [vmem:[%s2144 + $0x378] sm:$0xff]
    %v2257 = vld [vmem:[%s2144 + $0x380] sm:$0xff]
    %v2258 = vld [vmem:[%s2144 + $0x388] sm:$0xff]
    %v2259 = vld [vmem:[%s2144 + $0x390] sm:$0xff]
    %v2260 = vld [vmem:[%s2144 + $0x398] sm:$0xff]
    %v2261 = vld [vmem:[%s2144 + $0x3a0] sm:$0xff]
    %v2262 = vld [vmem:[%s2144 + $0x3a8] sm:$0xff]
    %v2263 = vld [vmem:[%s2144 + $0x3b0] sm:$0xff]
    %v2264 = vld [vmem:[%s2144 + $0x3b8] sm:$0xff]
    %v2265 = vld [vmem:[%s2144 + $0x3c0] sm:$0xff]
    %v2266 = vld [vmem:[%s2144 + $0x3c8] sm:$0xff]
    %v2267 = vld [vmem:[%s2144 + $0x3d0] sm:$0xff]
    %v2268 = vld [vmem:[%s2144 + $0x3d8] sm:$0xff]
    %v2269 = vld [vmem:[%s2144 + $0x3e0] sm:$0xff]
    %v2270 = vld [vmem:[%s2144 + $0x3e8] sm:$0xff]
    %v2271 = vld [vmem:[%s2144 + $0x3f0] sm:$0xff]
    %v2272 = vld [vmem:[%s2144 + $0x3f8] sm:$0xff]
    %2273 = vmatprep.subr.bf16.mxu0 %v2146
    %2274 = vmatpush1.bf16.msra.mxu0 %v2145
    %2275 = vmatprep.subr.bf16.mxu0 %v2150
    %2276 = vmatpush1.bf16.msra.mxu0 %v2149
    %2277 = vmatprep.subr.bf16.mxu0 %v2154
    %2278 = vmatpush1.bf16.msra.mxu0 %v2153
    %2279 = vmatprep.subr.bf16.mxu0 %v2158
    %2280 = vmatpush1.bf16.msra.mxu0 %v2157
    %2281 = vmatprep.subr.bf16.mxu0 %v2162
    %2282 = vmatpush1.bf16.msra.mxu0 %v2161
    %2283 = vmatprep.subr.bf16.mxu0 %v2166
    %2284 = vmatpush1.bf16.msra.mxu0 %v2165
    %2285 = vmatprep.subr.bf16.mxu0 %v2170
    %2286 = vmatpush1.bf16.msra.mxu0 %v2169
    %2287 = vmatprep.subr.bf16.mxu0 %v2174
    %2288 = vmatpush1.bf16.msra.mxu0 %v2173
    %2289 = vmatprep.subr.bf16.mxu0 %v2178
    %2290 = vmatpush1.bf16.msra.mxu0 %v2177
    %2291 = vmatprep.subr.bf16.mxu0 %v2182
    %2292 = vmatpush1.bf16.msra.mxu0 %v2181
    %2293 = vmatprep.subr.bf16.mxu0 %v2186
    %2294 = vmatpush1.bf16.msra.mxu0 %v2185
    %2295 = vmatprep.subr.bf16.mxu0 %v2190
    %2296 = vmatpush1.bf16.msra.mxu0 %v2189
    %2297 = vmatprep.subr.bf16.mxu0 %v2194
    %2298 = vmatpush1.bf16.msra.mxu0 %v2193
    %2299 = vmatprep.subr.bf16.mxu0 %v2198
    %2300 = vmatpush1.bf16.msra.mxu0 %v2197
    %2301 = vmatprep.subr.bf16.mxu0 %v2202
    %2302 = vmatpush1.bf16.msra.mxu0 %v2201
    %2303 = vmatprep.subr.bf16.mxu0 %v2206
    %2304 = vmatpush1.bf16.msra.mxu0 %v2205
    %2305 = vmatprep.mubr.bf16.mxu0 %v1532
    %2306 = vmatmul.mubr.bf16.gmra.mrb[0].mxu0 %v1531
    %v2307 = vpop.f32.mrb[0].mxu0
    %v2308 = vadd.f32 0.0, %v2307
    %v2309 = vpop.f32.mrb[0].mxu0
    %v2310 = vadd.f32 0.0, %v2309
    %v2311 = vpop.f32.mrb[0].mxu0
    %v2312 = vadd.f32 0.0, %v2311
    %v2313 = vpop.f32.mrb[0].mxu0
    %v2314 = vadd.f32 0.0, %v2313
    %2315 = vdwg.mxu0
    %2316 = vmatprep.subr.bf16.mxu0 %v2210
    %2317 = vmatpush1.bf16.msra.mxu0 %v2209
    %2318 = vmatprep.subr.bf16.mxu0 %v2214
    %2319 = vmatpush1.bf16.msra.mxu0 %v2213
    %2320 = vmatprep.subr.bf16.mxu0 %v2218
    %2321 = vmatpush1.bf16.msra.mxu0 %v2217
    %2322 = vmatprep.subr.bf16.mxu0 %v2222
    %2323 = vmatpush1.bf16.msra.mxu0 %v2221
    %2324 = vmatprep.subr.bf16.mxu0 %v2226
    %2325 = vmatpush1.bf16.msra.mxu0 %v2225
    %2326 = vmatprep.subr.bf16.mxu0 %v2230
    %2327 = vmatpush1.bf16.msra.mxu0 %v2229
    %2328 = vmatprep.subr.bf16.mxu0 %v2234
    %2329 = vmatpush1.bf16.msra.mxu0 %v2233
    %2330 = vmatprep.subr.bf16.mxu0 %v2238
    %2331 = vmatpush1.bf16.msra.mxu0 %v2237
    %2332 = vmatprep.subr.bf16.mxu0 %v2242
    %2333 = vmatpush1.bf16.msra.mxu0 %v2241
    %2334 = vmatprep.subr.bf16.mxu0 %v2246
    %2335 = vmatpush1.bf16.msra.mxu0 %v2245
    %2336 = vmatprep.subr.bf16.mxu0 %v2250
    %2337 = vmatpush1.bf16.msra.mxu0 %v2249
    %2338 = vmatprep.subr.bf16.mxu0 %v2254
    %2339 = vmatpush1.bf16.msra.mxu0 %v2253
    %2340 = vmatprep.subr.bf16.mxu0 %v2258
    %2341 = vmatpush1.bf16.msra.mxu0 %v2257
    %2342 = vmatprep.subr.bf16.mxu0 %v2262
    %2343 = vmatpush1.bf16.msra.mxu0 %v2261
    %2344 = vmatprep.subr.bf16.mxu0 %v2266
    %2345 = vmatpush1.bf16.msra.mxu0 %v2265
    %2346 = vmatprep.subr.bf16.mxu0 %v2270
    %2347 = vmatpush1.bf16.msra.mxu0 %v2269
    %2348 = vmatprep.mubr.bf16.mxu0 %v1534
    %2349 = vmatmul.mubr.bf16.gmra.mrb[0].mxu0 %v1533
    %v2350 = vpop.f32.mrb[0].mxu0
    %v2351 = vadd.f32 %v2308, %v2350
    %v2352 = vpop.f32.mrb[0].mxu0
    %v2353 = vadd.f32 %v2310, %v2352
    %v2354 = vpop.f32.mrb[0].mxu0
    %v2355 = vadd.f32 %v2312, %v2354
    %v2356 = vpop.f32.mrb[0].mxu0
    %v2357 = vadd.f32 %v2314, %v2356
    %2358 = vdwg.mxu0
    %2359 = vmatprep.subr.bf16.mxu0 %v2148
    %2360 = vmatpush1.bf16.msra.mxu0 %v2147
    %2361 = vmatprep.subr.bf16.mxu0 %v2152
    %2362 = vmatpush1.bf16.msra.mxu0 %v2151
    %2363 = vmatprep.subr.bf16.mxu0 %v2156
    %2364 = vmatpush1.bf16.msra.mxu0 %v2155
    %2365 = vmatprep.subr.bf16.mxu0 %v2160
    %2366 = vmatpush1.bf16.msra.mxu0 %v2159
    %2367 = vmatprep.subr.bf16.mxu0 %v2164
    %2368 = vmatpush1.bf16.msra.mxu0 %v2163
    %2369 = vmatprep.subr.bf16.mxu0 %v2168
    %2370 = vmatpush1.bf16.msra.mxu0 %v2167
    %2371 = vmatprep.subr.bf16.mxu0 %v2172
    %2372 = vmatpush1.bf16.msra.mxu0 %v2171
    %2373 = vmatprep.subr.bf16.mxu0 %v2176
    %2374 = vmatpush1.bf16.msra.mxu0 %v2175
    %2375 = vmatprep.subr.bf16.mxu0 %v2180
    %2376 = vmatpush1.bf16.msra.mxu0 %v2179
    %2377 = vmatprep.subr.bf16.mxu0 %v2184
    %2378 = vmatpush1.bf16.msra.mxu0 %v2183
    %2379 = vmatprep.subr.bf16.mxu0 %v2188
    %2380 = vmatpush1.bf16.msra.mxu0 %v2187
    %2381 = vmatprep.subr.bf16.mxu0 %v2192
    %2382 = vmatpush1.bf16.msra.mxu0 %v2191
    %2383 = vmatprep.subr.bf16.mxu0 %v2196
    %2384 = vmatpush1.bf16.msra.mxu0 %v2195
    %2385 = vmatprep.subr.bf16.mxu0 %v2200
    %2386 = vmatpush1.bf16.msra.mxu0 %v2199
    %2387 = vmatprep.subr.bf16.mxu0 %v2204
    %2388 = vmatpush1.bf16.msra.mxu0 %v2203
    %2389 = vmatprep.subr.bf16.mxu0 %v2208
    %2390 = vmatpush1.bf16.msra.mxu0 %v2207
    %2391 = vmatprep.mubr.bf16.mxu0 %v1532
    %2392 = vmatmul.mubr.bf16.gmra.mrb[0].mxu0 %v1531
    %v2393 = vpop.f32.mrb[0].mxu0
    %v2394 = vadd.f32 0.0, %v2393
    %v2395 = vpop.f32.mrb[0].mxu0
    %v2396 = vadd.f32 0.0, %v2395
    %v2397 = vpop.f32.mrb[0].mxu0
    %v2398 = vadd.f32 0.0, %v2397
    %v2399 = vpop.f32.mrb[0].mxu0
    %v2400 = vadd.f32 0.0, %v2399
    %2401 = vdwg.mxu0
    %2402 = vmatprep.subr.bf16.mxu0 %v2212
    %2403 = vmatpush1.bf16.msra.mxu0 %v2211
    %2404 = vmatprep.subr.bf16.mxu0 %v2216
    %2405 = vmatpush1.bf16.msra.mxu0 %v2215
    %2406 = vmatprep.subr.bf16.mxu0 %v2220
    %2407 = vmatpush1.bf16.msra.mxu0 %v2219
    %2408 = vmatprep.subr.bf16.mxu0 %v2224
    %2409 = vmatpush1.bf16.msra.mxu0 %v2223
    %2410 = vmatprep.subr.bf16.mxu0 %v2228
    %2411 = vmatpush1.bf16.msra.mxu0 %v2227
    %2412 = vmatprep.subr.bf16.mxu0 %v2232
    %2413 = vmatpush1.bf16.msra.mxu0 %v2231
    %2414 = vmatprep.subr.bf16.mxu0 %v2236
    %2415 = vmatpush1.bf16.msra.mxu0 %v2235
    %2416 = vmatprep.subr.bf16.mxu0 %v2240
    %2417 = vmatpush1.bf16.msra.mxu0 %v2239
    %2418 = vmatprep.subr.bf16.mxu0 %v2244
    %2419 = vmatpush1.bf16.msra.mxu0 %v2243
    %2420 = vmatprep.subr.bf16.mxu0 %v2248
    %2421 = vmatpush1.bf16.msra.mxu0 %v2247
    %2422 = vmatprep.subr.bf16.mxu0 %v2252
    %2423 = vmatpush1.bf16.msra.mxu0 %v2251
    %2424 = vmatprep.subr.bf16.mxu0 %v2256
    %2425 = vmatpush1.bf16.msra.mxu0 %v2255
    %2426 = vmatprep.subr.bf16.mxu0 %v2260
    %2427 = vmatpush1.bf16.msra.mxu0 %v2259
    %2428 = vmatprep.subr.bf16.mxu0 %v2264
    %2429 = vmatpush1.bf16.msra.mxu0 %v2263
    %2430 = vmatprep.subr.bf16.mxu0 %v2268
    %2431 = vmatpush1.bf16.msra.mxu0 %v2267
    %2432 = vmatprep.subr.bf16.mxu0 %v2272
    %2433 = vmatpush1.bf16.msra.mxu0 %v2271
    %2434 = vmatprep.mubr.bf16.mxu0 %v1534
    %2435 = vmatmul.mubr.bf16.gmra.mrb[0].mxu0 %v1533
    %v2436 = vpop.f32.mrb[0].mxu0
    %v2437 = vadd.f32 %v2394, %v2436
    %v2438 = vpop.f32.mrb[0].mxu0
    %v2439 = vadd.f32 %v2396, %v2438
    %v2440 = vpop.f32.mrb[0].mxu0
    %v2441 = vadd.f32 %v2398, %v2440
    %v2442 = vpop.f32.mrb[0].mxu0
    %v2443 = vadd.f32 %v2400, %v2442
    %2444 = vdwg.mxu0
    %v2445 = vadd.f32 %v2050, %v2351
    %v2446 = vadd.f32 %v2052, %v2353
    %v2447 = vadd.f32 %v2136, %v2437
    %v2448 = vadd.f32 %v2138, %v2439
    %v2449 = vadd.f32 %v2054, %v2355
    %v2450 = vadd.f32 %v2056, %v2357
    %v2451 = vadd.f32 %v2140, %v2441
    %v2452 = vadd.f32 %v2142, %v2443
    %s2453 = scalar_lea.vmem [#allocation3], 3072
    %v2454 = vld [vmem:[%s2453] sm:$0xff]
    %v2455 = vld [vmem:[%s2453 + $0x8] sm:$0xff]
    %v2456 = vld [vmem:[%s2453 + $0x10] sm:$0xff]
    %v2457 = vld [vmem:[%s2453 + $0x18] sm:$0xff]
    %v2458 = vld [vmem:[%s2453 + $0x20] sm:$0xff]
    %v2459 = vld [vmem:[%s2453 + $0x28] sm:$0xff]
    %v2460 = vld [vmem:[%s2453 + $0x30] sm:$0xff]
    %v2461 = vld [vmem:[%s2453 + $0x38] sm:$0xff]
    %v2462 = vld [vmem:[%s2453 + $0x40] sm:$0xff]
    %v2463 = vld [vmem:[%s2453 + $0x48] sm:$0xff]
    %v2464 = vld [vmem:[%s2453 + $0x50] sm:$0xff]
    %v2465 = vld [vmem:[%s2453 + $0x58] sm:$0xff]
    %v2466 = vld [vmem:[%s2453 + $0x60] sm:$0xff]
    %v2467 = vld [vmem:[%s2453 + $0x68] sm:$0xff]
    %v2468 = vld [vmem:[%s2453 + $0x70] sm:$0xff]
    %v2469 = vld [vmem:[%s2453 + $0x78] sm:$0xff]
    %v2470 = vld [vmem:[%s2453 + $0x80] sm:$0xff]
    %v2471 = vld [vmem:[%s2453 + $0x88] sm:$0xff]
    %v2472 = vld [vmem:[%s2453 + $0x90] sm:$0xff]
    %v2473 = vld [vmem:[%s2453 + $0x98] sm:$0xff]
    %v2474 = vld [vmem:[%s2453 + $0xa0] sm:$0xff]
    %v2475 = vld [vmem:[%s2453 + $0xa8] sm:$0xff]
    %v2476 = vld [vmem:[%s2453 + $0xb0] sm:$0xff]
    %v2477 = vld [vmem:[%s2453 + $0xb8] sm:$0xff]
    %v2478 = vld [vmem:[%s2453 + $0xc0] sm:$0xff]
    %v2479 = vld [vmem:[%s2453 + $0xc8] sm:$0xff]
    %v2480 = vld [vmem:[%s2453 + $0xd0] sm:$0xff]
    %v2481 = vld [vmem:[%s2453 + $0xd8] sm:$0xff]
    %v2482 = vld [vmem:[%s2453 + $0xe0] sm:$0xff]
    %v2483 = vld [vmem:[%s2453 + $0xe8] sm:$0xff]
    %v2484 = vld [vmem:[%s2453 + $0xf0] sm:$0xff]
    %v2485 = vld [vmem:[%s2453 + $0xf8] sm:$0xff]
    %v2486 = vld [vmem:[%s2453 + $0x100] sm:$0xff]
    %v2487 = vld [vmem:[%s2453 + $0x108] sm:$0xff]
    %v2488 = vld [vmem:[%s2453 + $0x110] sm:$0xff]
    %v2489 = vld [vmem:[%s2453 + $0x118] sm:$0xff]
    %v2490 = vld [vmem:[%s2453 + $0x120] sm:$0xff]
    %v2491 = vld [vmem:[%s2453 + $0x128] sm:$0xff]
    %v2492 = vld [vmem:[%s2453 + $0x130] sm:$0xff]
    %v2493 = vld [vmem:[%s2453 + $0x138] sm:$0xff]
    %v2494 = vld [vmem:[%s2453 + $0x140] sm:$0xff]
    %v2495 = vld [vmem:[%s2453 + $0x148] sm:$0xff]
    %v2496 = vld [vmem:[%s2453 + $0x150] sm:$0xff]
    %v2497 = vld [vmem:[%s2453 + $0x158] sm:$0xff]
    %v2498 = vld [vmem:[%s2453 + $0x160] sm:$0xff]
    %v2499 = vld [vmem:[%s2453 + $0x168] sm:$0xff]
    %v2500 = vld [vmem:[%s2453 + $0x170] sm:$0xff]
    %v2501 = vld [vmem:[%s2453 + $0x178] sm:$0xff]
    %v2502 = vld [vmem:[%s2453 + $0x180] sm:$0xff]
    %v2503 = vld [vmem:[%s2453 + $0x188] sm:$0xff]
    %v2504 = vld [vmem:[%s2453 + $0x190] sm:$0xff]
    %v2505 = vld [vmem:[%s2453 + $0x198] sm:$0xff]
    %v2506 = vld [vmem:[%s2453 + $0x1a0] sm:$0xff]
    %v2507 = vld [vmem:[%s2453 + $0x1a8] sm:$0xff]
    %v2508 = vld [vmem:[%s2453 + $0x1b0] sm:$0xff]
    %v2509 = vld [vmem:[%s2453 + $0x1b8] sm:$0xff]
    %v2510 = vld [vmem:[%s2453 + $0x1c0] sm:$0xff]
    %v2511 = vld [vmem:[%s2453 + $0x1c8] sm:$0xff]
    %v2512 = vld [vmem:[%s2453 + $0x1d0] sm:$0xff]
    %v2513 = vld [vmem:[%s2453 + $0x1d8] sm:$0xff]
    %v2514 = vld [vmem:[%s2453 + $0x1e0] sm:$0xff]
    %v2515 = vld [vmem:[%s2453 + $0x1e8] sm:$0xff]
    %v2516 = vld [vmem:[%s2453 + $0x1f0] sm:$0xff]
    %v2517 = vld [vmem:[%s2453 + $0x1f8] sm:$0xff]
    %v2518 = vld [vmem:[%s2453 + $0x200] sm:$0xff]
    %v2519 = vld [vmem:[%s2453 + $0x208] sm:$0xff]
    %v2520 = vld [vmem:[%s2453 + $0x210] sm:$0xff]
    %v2521 = vld [vmem:[%s2453 + $0x218] sm:$0xff]
    %v2522 = vld [vmem:[%s2453 + $0x220] sm:$0xff]
    %v2523 = vld [vmem:[%s2453 + $0x228] sm:$0xff]
    %v2524 = vld [vmem:[%s2453 + $0x230] sm:$0xff]
    %v2525 = vld [vmem:[%s2453 + $0x238] sm:$0xff]
    %v2526 = vld [vmem:[%s2453 + $0x240] sm:$0xff]
    %v2527 = vld [vmem:[%s2453 + $0x248] sm:$0xff]
    %v2528 = vld [vmem:[%s2453 + $0x250] sm:$0xff]
    %v2529 = vld [vmem:[%s2453 + $0x258] sm:$0xff]
    %v2530 = vld [vmem:[%s2453 + $0x260] sm:$0xff]
    %v2531 = vld [vmem:[%s2453 + $0x268] sm:$0xff]
    %v2532 = vld [vmem:[%s2453 + $0x270] sm:$0xff]
    %v2533 = vld [vmem:[%s2453 + $0x278] sm:$0xff]
    %v2534 = vld [vmem:[%s2453 + $0x280] sm:$0xff]
    %v2535 = vld [vmem:[%s2453 + $0x288] sm:$0xff]
    %v2536 = vld [vmem:[%s2453 + $0x290] sm:$0xff]
    %v2537 = vld [vmem:[%s2453 + $0x298] sm:$0xff]
    %v2538 = vld [vmem:[%s2453 + $0x2a0] sm:$0xff]
    %v2539 = vld [vmem:[%s2453 + $0x2a8] sm:$0xff]
    %v2540 = vld [vmem:[%s2453 + $0x2b0] sm:$0xff]
    %v2541 = vld [vmem:[%s2453 + $0x2b8] sm:$0xff]
    %v2542 = vld [vmem:[%s2453 + $0x2c0] sm:$0xff]
    %v2543 = vld [vmem:[%s2453 + $0x2c8] sm:$0xff]
    %v2544 = vld [vmem:[%s2453 + $0x2d0] sm:$0xff]
    %v2545 = vld [vmem:[%s2453 + $0x2d8] sm:$0xff]
    %v2546 = vld [vmem:[%s2453 + $0x2e0] sm:$0xff]
    %v2547 = vld [vmem:[%s2453 + $0x2e8] sm:$0xff]
    %v2548 = vld [vmem:[%s2453 + $0x2f0] sm:$0xff]
    %v2549 = vld [vmem:[%s2453 + $0x2f8] sm:$0xff]
    %v2550 = vld [vmem:[%s2453 + $0x300] sm:$0xff]
    %v2551 = vld [vmem:[%s2453 + $0x308] sm:$0xff]
    %v2552 = vld [vmem:[%s2453 + $0x310] sm:$0xff]
    %v2553 = vld [vmem:[%s2453 + $0x318] sm:$0xff]
    %v2554 = vld [vmem:[%s2453 + $0x320] sm:$0xff]
    %v2555 = vld [vmem:[%s2453 + $0x328] sm:$0xff]
    %v2556 = vld [vmem:[%s2453 + $0x330] sm:$0xff]
    %v2557 = vld [vmem:[%s2453 + $0x338] sm:$0xff]
    %v2558 = vld [vmem:[%s2453 + $0x340] sm:$0xff]
    %v2559 = vld [vmem:[%s2453 + $0x348] sm:$0xff]
    %v2560 = vld [vmem:[%s2453 + $0x350] sm:$0xff]
    %v2561 = vld [vmem:[%s2453 + $0x358] sm:$0xff]
    %v2562 = vld [vmem:[%s2453 + $0x360] sm:$0xff]
    %v2563 = vld [vmem:[%s2453 + $0x368] sm:$0xff]
    %v2564 = vld [vmem:[%s2453 + $0x370] sm:$0xff]
    %v2565 = vld [vmem:[%s2453 + $0x378] sm:$0xff]
    %v2566 = vld [vmem:[%s2453 + $0x380] sm:$0xff]
    %v2567 = vld [vmem:[%s2453 + $0x388] sm:$0xff]
    %v2568 = vld [vmem:[%s2453 + $0x390] sm:$0xff]
    %v2569 = vld [vmem:[%s2453 + $0x398] sm:$0xff]
    %v2570 = vld [vmem:[%s2453 + $0x3a0] sm:$0xff]
    %v2571 = vld [vmem:[%s2453 + $0x3a8] sm:$0xff]
    %v2572 = vld [vmem:[%s2453 + $0x3b0] sm:$0xff]
    %v2573 = vld [vmem:[%s2453 + $0x3b8] sm:$0xff]
    %v2574 = vld [vmem:[%s2453 + $0x3c0] sm:$0xff]
    %v2575 = vld [vmem:[%s2453 + $0x3c8] sm:$0xff]
    %v2576 = vld [vmem:[%s2453 + $0x3d0] sm:$0xff]
    %v2577 = vld [vmem:[%s2453 + $0x3d8] sm:$0xff]
    %v2578 = vld [vmem:[%s2453 + $0x3e0] sm:$0xff]
    %v2579 = vld [vmem:[%s2453 + $0x3e8] sm:$0xff]
    %v2580 = vld [vmem:[%s2453 + $0x3f0] sm:$0xff]
    %v2581 = vld [vmem:[%s2453 + $0x3f8] sm:$0xff]
    %2582 = vmatprep.subr.bf16.mxu0 %v2455
    %2583 = vmatpush1.bf16.msra.mxu0 %v2454
    %2584 = vmatprep.subr.bf16.mxu0 %v2459
    %2585 = vmatpush1.bf16.msra.mxu0 %v2458
    %2586 = vmatprep.subr.bf16.mxu0 %v2463
    %2587 = vmatpush1.bf16.msra.mxu0 %v2462
    %2588 = vmatprep.subr.bf16.mxu0 %v2467
    %2589 = vmatpush1.bf16.msra.mxu0 %v2466
    %2590 = vmatprep.subr.bf16.mxu0 %v2471
    %2591 = vmatpush1.bf16.msra.mxu0 %v2470
    %2592 = vmatprep.subr.bf16.mxu0 %v2475
    %2593 = vmatpush1.bf16.msra.mxu0 %v2474
    %2594 = vmatprep.subr.bf16.mxu0 %v2479
    %2595 = vmatpush1.bf16.msra.mxu0 %v2478
    %2596 = vmatprep.subr.bf16.mxu0 %v2483
    %2597 = vmatpush1.bf16.msra.mxu0 %v2482
    %2598 = vmatprep.subr.bf16.mxu0 %v2487
    %2599 = vmatpush1.bf16.msra.mxu0 %v2486
    %2600 = vmatprep.subr.bf16.mxu0 %v2491
    %2601 = vmatpush1.bf16.msra.mxu0 %v2490
    %2602 = vmatprep.subr.bf16.mxu0 %v2495
    %2603 = vmatpush1.bf16.msra.mxu0 %v2494
    %2604 = vmatprep.subr.bf16.mxu0 %v2499
    %2605 = vmatpush1.bf16.msra.mxu0 %v2498
    %2606 = vmatprep.subr.bf16.mxu0 %v2503
    %2607 = vmatpush1.bf16.msra.mxu0 %v2502
    %2608 = vmatprep.subr.bf16.mxu0 %v2507
    %2609 = vmatpush1.bf16.msra.mxu0 %v2506
    %2610 = vmatprep.subr.bf16.mxu0 %v2511
    %2611 = vmatpush1.bf16.msra.mxu0 %v2510
    %2612 = vmatprep.subr.bf16.mxu0 %v2515
    %2613 = vmatpush1.bf16.msra.mxu0 %v2514
    %2614 = vmatprep.mubr.bf16.mxu0 %v1536
    %2615 = vmatmul.mubr.bf16.gmra.mrb[0].mxu0 %v1535
    %v2616 = vpop.f32.mrb[0].mxu0
    %v2617 = vadd.f32 0.0, %v2616
    %v2618 = vpop.f32.mrb[0].mxu0
    %v2619 = vadd.f32 0.0, %v2618
    %v2620 = vpop.f32.mrb[0].mxu0
    %v2621 = vadd.f32 0.0, %v2620
    %v2622 = vpop.f32.mrb[0].mxu0
    %v2623 = vadd.f32 0.0, %v2622
    %2624 = vdwg.mxu0
    %2625 = vmatprep.subr.bf16.mxu0 %v2519
    %2626 = vmatpush1.bf16.msra.mxu0 %v2518
    %2627 = vmatprep.subr.bf16.mxu0 %v2523
    %2628 = vmatpush1.bf16.msra.mxu0 %v2522
    %2629 = vmatprep.subr.bf16.mxu0 %v2527
    %2630 = vmatpush1.bf16.msra.mxu0 %v2526
    %2631 = vmatprep.subr.bf16.mxu0 %v2531
    %2632 = vmatpush1.bf16.msra.mxu0 %v2530
    %2633 = vmatprep.subr.bf16.mxu0 %v2535
    %2634 = vmatpush1.bf16.msra.mxu0 %v2534
    %2635 = vmatprep.subr.bf16.mxu0 %v2539
    %2636 = vmatpush1.bf16.msra.mxu0 %v2538
    %2637 = vmatprep.subr.bf16.mxu0 %v2543
    %2638 = vmatpush1.bf16.msra.mxu0 %v2542
    %2639 = vmatprep.subr.bf16.mxu0 %v2547
    %2640 = vmatpush1.bf16.msra.mxu0 %v2546
    %2641 = vmatprep.subr.bf16.mxu0 %v2551
    %2642 = vmatpush1.bf16.msra.mxu0 %v2550
    %2643 = vmatprep.subr.bf16.mxu0 %v2555
    %2644 = vmatpush1.bf16.msra.mxu0 %v2554
    %2645 = vmatprep.subr.bf16.mxu0 %v2559
    %2646 = vmatpush1.bf16.msra.mxu0 %v2558
    %2647 = vmatprep.subr.bf16.mxu0 %v2563
    %2648 = vmatpush1.bf16.msra.mxu0 %v2562
    %2649 = vmatprep.subr.bf16.mxu0 %v2567
    %2650 = vmatpush1.bf16.msra.mxu0 %v2566
    %2651 = vmatprep.subr.bf16.mxu0 %v2571
    %2652 = vmatpush1.bf16.msra.mxu0 %v2570
    %2653 = vmatprep.subr.bf16.mxu0 %v2575
    %2654 = vmatpush1.bf16.msra.mxu0 %v2574
    %2655 = vmatprep.subr.bf16.mxu0 %v2579
    %2656 = vmatpush1.bf16.msra.mxu0 %v2578
    %2657 = vmatprep.mubr.bf16.mxu0 %v1538
    %2658 = vmatmul.mubr.bf16.gmra.mrb[0].mxu0 %v1537
    %v2659 = vpop.f32.mrb[0].mxu0
    %v2660 = vadd.f32 %v2617, %v2659
    %v2661 = vpop.f32.mrb[0].mxu0
    %v2662 = vadd.f32 %v2619, %v2661
    %v2663 = vpop.f32.mrb[0].mxu0
    %v2664 = vadd.f32 %v2621, %v2663
    %v2665 = vpop.f32.mrb[0].mxu0
    %v2666 = vadd.f32 %v2623, %v2665
    %2667 = vdwg.mxu0
    %2668 = vmatprep.subr.bf16.mxu0 %v2457
    %2669 = vmatpush1.bf16.msra.mxu0 %v2456
    %2670 = vmatprep.subr.bf16.mxu0 %v2461
    %2671 = vmatpush1.bf16.msra.mxu0 %v2460
    %2672 = vmatprep.subr.bf16.mxu0 %v2465
    %2673 = vmatpush1.bf16.msra.mxu0 %v2464
    %2674 = vmatprep.subr.bf16.mxu0 %v2469
    %2675 = vmatpush1.bf16.msra.mxu0 %v2468
    %2676 = vmatprep.subr.bf16.mxu0 %v2473
    %2677 = vmatpush1.bf16.msra.mxu0 %v2472
    %2678 = vmatprep.subr.bf16.mxu0 %v2477
    %2679 = vmatpush1.bf16.msra.mxu0 %v2476
    %2680 = vmatprep.subr.bf16.mxu0 %v2481
    %2681 = vmatpush1.bf16.msra.mxu0 %v2480
    %2682 = vmatprep.subr.bf16.mxu0 %v2485
    %2683 = vmatpush1.bf16.msra.mxu0 %v2484
    %2684 = vmatprep.subr.bf16.mxu0 %v2489
    %2685 = vmatpush1.bf16.msra.mxu0 %v2488
    %2686 = vmatprep.subr.bf16.mxu0 %v2493
    %2687 = vmatpush1.bf16.msra.mxu0 %v2492
    %2688 = vmatprep.subr.bf16.mxu0 %v2497
    %2689 = vmatpush1.bf16.msra.mxu0 %v2496
    %2690 = vmatprep.subr.bf16.mxu0 %v2501
    %2691 = vmatpush1.bf16.msra.mxu0 %v2500
    %2692 = vmatprep.subr.bf16.mxu0 %v2505
    %2693 = vmatpush1.bf16.msra.mxu0 %v2504
    %2694 = vmatprep.subr.bf16.mxu0 %v2509
    %2695 = vmatpush1.bf16.msra.mxu0 %v2508
    %2696 = vmatprep.subr.bf16.mxu0 %v2513
    %2697 = vmatpush1.bf16.msra.mxu0 %v2512
    %2698 = vmatprep.subr.bf16.mxu0 %v2517
    %2699 = vmatpush1.bf16.msra.mxu0 %v2516
    %2700 = vmatprep.mubr.bf16.mxu0 %v1536
    %2701 = vmatmul.mubr.bf16.gmra.mrb[0].mxu0 %v1535
    %v2702 = vpop.f32.mrb[0].mxu0
    %v2703 = vadd.f32 0.0, %v2702
    %v2704 = vpop.f32.mrb[0].mxu0
    %v2705 = vadd.f32 0.0, %v2704
    %v2706 = vpop.f32.mrb[0].mxu0
    %v2707 = vadd.f32 0.0, %v2706
    %v2708 = vpop.f32.mrb[0].mxu0
    %v2709 = vadd.f32 0.0, %v2708
    %2710 = vdwg.mxu0
    %2711 = vmatprep.subr.bf16.mxu0 %v2521
    %2712 = vmatpush1.bf16.msra.mxu0 %v2520
    %2713 = vmatprep.subr.bf16.mxu0 %v2525
    %2714 = vmatpush1.bf16.msra.mxu0 %v2524
    %2715 = vmatprep.subr.bf16.mxu0 %v2529
    %2716 = vmatpush1.bf16.msra.mxu0 %v2528
    %2717 = vmatprep.subr.bf16.mxu0 %v2533
    %2718 = vmatpush1.bf16.msra.mxu0 %v2532
    %2719 = vmatprep.subr.bf16.mxu0 %v2537
    %2720 = vmatpush1.bf16.msra.mxu0 %v2536
    %2721 = vmatprep.subr.bf16.mxu0 %v2541
    %2722 = vmatpush1.bf16.msra.mxu0 %v2540
    %2723 = vmatprep.subr.bf16.mxu0 %v2545
    %2724 = vmatpush1.bf16.msra.mxu0 %v2544
    %2725 = vmatprep.subr.bf16.mxu0 %v2549
    %2726 = vmatpush1.bf16.msra.mxu0 %v2548
    %2727 = vmatprep.subr.bf16.mxu0 %v2553
    %2728 = vmatpush1.bf16.msra.mxu0 %v2552
    %2729 = vmatprep.subr.bf16.mxu0 %v2557
    %2730 = vmatpush1.bf16.msra.mxu0 %v2556
    %2731 = vmatprep.subr.bf16.mxu0 %v2561
    %2732 = vmatpush1.bf16.msra.mxu0 %v2560
    %2733 = vmatprep.subr.bf16.mxu0 %v2565
    %2734 = vmatpush1.bf16.msra.mxu0 %v2564
    %2735 = vmatprep.subr.bf16.mxu0 %v2569
    %2736 = vmatpush1.bf16.msra.mxu0 %v2568
    %2737 = vmatprep.subr.bf16.mxu0 %v2573
    %2738 = vmatpush1.bf16.msra.mxu0 %v2572
    %2739 = vmatprep.subr.bf16.mxu0 %v2577
    %2740 = vmatpush1.bf16.msra.mxu0 %v2576
    %2741 = vmatprep.subr.bf16.mxu0 %v2581
    %2742 = vmatpush1.bf16.msra.mxu0 %v2580
    %2743 = vmatprep.mubr.bf16.mxu0 %v1538
    %2744 = vmatmul.mubr.bf16.gmra.mrb[0].mxu0 %v1537
    %v2745 = vpop.f32.mrb[0].mxu0
    %v2746 = vadd.f32 %v2703, %v2745
    %v2747 = vpop.f32.mrb[0].mxu0
    %v2748 = vadd.f32 %v2705, %v2747
    %v2749 = vpop.f32.mrb[0].mxu0
    %v2750 = vadd.f32 %v2707, %v2749
    %v2751 = vpop.f32.mrb[0].mxu0
    %v2752 = vadd.f32 %v2709, %v2751
    %2753 = vdwg.mxu0
    %v2754 = vadd.f32 %v2445, %v2660
    %v2755 = vadd.f32 %v2446, %v2662
    %v2756 = vadd.f32 %v2447, %v2746
    %v2757 = vadd.f32 %v2448, %v2748
    %v2758 = vadd.f32 %v2449, %v2664
    %v2759 = vadd.f32 %v2450, %v2666
    %v2760 = vadd.f32 %v2451, %v2750
    %v2761 = vadd.f32 %v2452, %v2752
    %v2762 = vld [vmem:[#allocation14] sm:$0xf]
    %v2764 = vlaneseq
    %v2765 = vshrl.u32 %v2764, 7
    %v2766 = vsub.s32 0, %v2765
    %v2767 = vrot.slane %v2762, %v2766
    %v2768 = vlaneseq
    %v2769 = vshrl.u32 %v2768, 7
    %v2770 = vsub.s32 1, %v2769
    %v2771 = vrot.slane %v2762, %v2770
    %v2772 = vlaneseq
    %v2773 = vshrl.u32 %v2772, 7
    %v2774 = vsub.s32 2, %v2773
    %v2775 = vrot.slane %v2762, %v2774
    %v2776 = vlaneseq
    %v2777 = vshrl.u32 %v2776, 7
    %v2778 = vsub.s32 3, %v2777
    %v2779 = vrot.slane %v2762, %v2778
    %v2784 = vadd.f32 %v2754, %v2767
    %v2785 = vadd.f32 %v2755, %v2771
    %v2786 = vadd.f32 %v2756, %v2775
    %v2787 = vadd.f32 %v2757, %v2779
    %v2788 = vadd.f32 %v2758, %v2767
    %v2789 = vadd.f32 %v2759, %v2771
    %v2790 = vadd.f32 %v2760, %v2775
    %v2791 = vadd.f32 %v2761, %v2779
    %v2792 = vmax.f32 %v2784, 0.0
    %v2793 = vmax.f32 %v2785, 0.0
    %v2794 = vmax.f32 %v2786, 0.0
    %v2795 = vmax.f32 %v2787, 0.0
    %v2796 = vmax.f32 %v2788, 0.0
    %v2797 = vmax.f32 %v2789, 0.0
    %v2798 = vmax.f32 %v2790, 0.0
    %v2799 = vmax.f32 %v2791, 0.0
    %v2800 = vld [vmem:[%s9] sm:$0xf]
    %v2801 = vld [vmem:[%s9 + $0x4] sm:$0xf]
    %v2802 = vld [vmem:[%s9 + $0x8] sm:$0xf]
    %v2803 = vld [vmem:[%s9 + $0xc] sm:$0xf]
    %v2804 = vpack.c.bf16 %v2796, %v2792
    %v2805 = vpack.c.bf16 %v2797, %v2793
    %v2806 = vpack.c.bf16 %v2798, %v2794
    %v2807 = vpack.c.bf16 %v2799, %v2795
    %v2812 = vunpack.c.l.b16 %v2800
    %v2813 = vunpack.c.l.b16 %v2801
    %v2814 = vunpack.c.l.b16 %v2802
    %v2815 = vunpack.c.l.b16 %v2803
    %v2816 = vpack.c.b16 %v2813, %v2812
    %v2817 = vpack.c.b16 %v2815, %v2814
    %vm2818 = vcmask 130048
    %v2820 = vsel %vm2818, %v2816, 0
    %v2823 = vsel %vm2818, %v2817, 0
    %2825 = vmatprep.subr.bf16.mxu0 %v2805
    %2826 = vmatpush1.bf16.msra.mxu0 %v2804
    %2827 = vmatprep.subr.bf16.mxu0 0
    %2828 = vmatpush1.bf16.msra.mxu0 0
    %2829 = vmatprep.subr.bf16.mxu0 0
    %2830 = vmatpush1.bf16.msra.mxu0 0
    %2831 = vmatprep.subr.bf16.mxu0 0
    %2832 = vmatpush1.bf16.msra.mxu0 0
    %2833 = vmatprep.subr.bf16.mxu0 0
    %2834 = vmatpush1.bf16.msra.mxu0 0
    %2835 = vmatprep.subr.bf16.mxu0 0
    %2836 = vmatpush1.bf16.msra.mxu0 0
    %2837 = vmatprep.subr.bf16.mxu0 0
    %2838 = vmatpush1.bf16.msra.mxu0 0
    %2839 = vmatprep.subr.bf16.mxu0 0
    %2840 = vmatpush1.bf16.msra.mxu0 0
    %2841 = vmatprep.subr.bf16.mxu0 0
    %2842 = vmatpush1.bf16.msra.mxu0 0
    %2843 = vmatprep.subr.bf16.mxu0 0
    %2844 = vmatpush1.bf16.msra.mxu0 0
    %2845 = vmatprep.subr.bf16.mxu0 0
    %2846 = vmatpush1.bf16.msra.mxu0 0
    %2847 = vmatprep.subr.bf16.mxu0 0
    %2848 = vmatpush1.bf16.msra.mxu0 0
    %2849 = vmatprep.subr.bf16.mxu0 0
    %2850 = vmatpush1.bf16.msra.mxu0 0
    %2851 = vmatprep.subr.bf16.mxu0 0
    %2852 = vmatpush1.bf16.msra.mxu0 0
    %2853 = vmatprep.subr.bf16.mxu0 0
    %2854 = vmatpush1.bf16.msra.mxu0 0
    %2855 = vmatprep.subr.bf16.mxu0 0
    %2856 = vmatpush1.bf16.msra.mxu0 0
    %2857 = vmatprep.mubr.bf16.mxu0 0
    %2858 = vmatmul.mubr.bf16.gmra.mrb[0].mxu0 %v2820
    %v2859 = vpop.f32.mrb[0].mxu0
    %v2860 = vadd.f32 0.0, %v2859
    %v2861 = vpop.f32.mrb[0].mxu0
    %v2862 = vadd.f32 0.0, %v2861
    %v2863 = vpop.f32.mrb[0].mxu0
    %v2864 = vadd.f32 0.0, %v2863
    %v2865 = vpop.f32.mrb[0].mxu0
    %v2866 = vadd.f32 0.0, %v2865
    %2867 = vmatprep.mubr.bf16.mxu0 0
    %2868 = vmatmul.mubr.bf16.gmra.mrb[0].mxu0 %v2823
    %v2869 = vpop.f32.mrb[0].mxu0
    %v2870 = vadd.f32 0.0, %v2869
    %v2871 = vpop.f32.mrb[0].mxu0
    %v2872 = vadd.f32 0.0, %v2871
    %v2873 = vpop.f32.mrb[0].mxu0
    %v2874 = vadd.f32 0.0, %v2873
    %v2875 = vpop.f32.mrb[0].mxu0
    %v2876 = vadd.f32 0.0, %v2875
    %2877 = vdwg.mxu0
    %2878 = vmatprep.subr.bf16.mxu0 %v2807
    %2879 = vmatpush1.bf16.msra.mxu0 %v2806
    %2880 = vmatprep.subr.bf16.mxu0 0
    %2881 = vmatpush1.bf16.msra.mxu0 0
    %2882 = vmatprep.subr.bf16.mxu0 0
    %2883 = vmatpush1.bf16.msra.mxu0 0
    %2884 = vmatprep.subr.bf16.mxu0 0
    %2885 = vmatpush1.bf16.msra.mxu0 0
    %2886 = vmatprep.subr.bf16.mxu0 0
    %2887 = vmatpush1.bf16.msra.mxu0 0
    %2888 = vmatprep.subr.bf16.mxu0 0
    %2889 = vmatpush1.bf16.msra.mxu0 0
    %2890 = vmatprep.subr.bf16.mxu0 0
    %2891 = vmatpush1.bf16.msra.mxu0 0
    %2892 = vmatprep.subr.bf16.mxu0 0
    %2893 = vmatpush1.bf16.msra.mxu0 0
    %2894 = vmatprep.subr.bf16.mxu0 0
    %2895 = vmatpush1.bf16.msra.mxu0 0
    %2896 = vmatprep.subr.bf16.mxu0 0
    %2897 = vmatpush1.bf16.msra.mxu0 0
    %2898 = vmatprep.subr.bf16.mxu0 0
    %2899 = vmatpush1.bf16.msra.mxu0 0
    %2900 = vmatprep.subr.bf16.mxu0 0
    %2901 = vmatpush1.bf16.msra.mxu0 0
    %2902 = vmatprep.subr.bf16.mxu0 0
    %2903 = vmatpush1.bf16.msra.mxu0 0
    %2904 = vmatprep.subr.bf16.mxu0 0
    %2905 = vmatpush1.bf16.msra.mxu0 0
    %2906 = vmatprep.subr.bf16.mxu0 0
    %2907 = vmatpush1.bf16.msra.mxu0 0
    %2908 = vmatprep.subr.bf16.mxu0 0
    %2909 = vmatpush1.bf16.msra.mxu0 0
    %2910 = vmatprep.mubr.bf16.mxu0 0
    %2911 = vmatmul.mubr.bf16.gmra.mrb[0].mxu0 %v2820
    %v2912 = vpop.f32.mrb[0].mxu0
    %v2913 = vadd.f32 0.0, %v2912
    %v2914 = vpop.f32.mrb[0].mxu0
    %v2915 = vadd.f32 0.0, %v2914
    %v2916 = vpop.f32.mrb[0].mxu0
    %v2917 = vadd.f32 0.0, %v2916
    %v2918 = vpop.f32.mrb[0].mxu0
    %v2919 = vadd.f32 0.0, %v2918
    %2920 = vmatprep.mubr.bf16.mxu0 0
    %2921 = vmatmul.mubr.bf16.gmra.mrb[0].mxu0 %v2823
    %v2922 = vpop.f32.mrb[0].mxu0
    %v2923 = vadd.f32 0.0, %v2922
    %v2924 = vpop.f32.mrb[0].mxu0
    %v2925 = vadd.f32 0.0, %v2924
    %v2926 = vpop.f32.mrb[0].mxu0
    %v2927 = vadd.f32 0.0, %v2926
    %v2928 = vpop.f32.mrb[0].mxu0
    %v2929 = vadd.f32 0.0, %v2928
    %2930 = vdwg.mxu0
    %v2931 = vpack.c.bf16 %v2864, %v2860
    %v2932 = vpack.c.bf16 %v2866, %v2862
    %v2933 = vpack.c.bf16 %v2917, %v2913
    %v2934 = vpack.c.bf16 %v2919, %v2915
    %v2935 = vpack.c.bf16 %v2874, %v2870
    %v2936 = vpack.c.bf16 %v2876, %v2872
    %v2937 = vpack.c.bf16 %v2927, %v2923
    %v2938 = vpack.c.bf16 %v2929, %v2925
    %s2939 = smul.u32 %s1539, 3
    %s2940 = sshll.u32 %s2939, 4
    %2941 = dma.done %s282, %s2940
    %v2942 = vld [vmem:[#allocation4] sm:$0xff]
    %v2943 = vld [vmem:[#allocation4 + $0x8] sm:$0xff]
    %v2944 = vld [vmem:[#allocation4 + $0x10] sm:$0xff]
    %v2945 = vld [vmem:[#allocation4 + $0x18] sm:$0xff]
    %v2946 = vld [vmem:[#allocation4 + $0x20] sm:$0xff]
    %v2947 = vld [vmem:[#allocation4 + $0x28] sm:$0xff]
    %v2948 = vld [vmem:[#allocation4 + $0x30] sm:$0xff]
    %v2949 = vld [vmem:[#allocation4 + $0x38] sm:$0xff]
    %v2950 = vld [vmem:[#allocation4 + $0x40] sm:$0xff]
    %v2951 = vld [vmem:[#allocation4 + $0x48] sm:$0xff]
    %v2952 = vld [vmem:[#allocation4 + $0x50] sm:$0xff]
    %v2953 = vld [vmem:[#allocation4 + $0x58] sm:$0xff]
    %v2954 = vld [vmem:[#allocation4 + $0x60] sm:$0xff]
    %v2955 = vld [vmem:[#allocation4 + $0x68] sm:$0xff]
    %v2956 = vld [vmem:[#allocation4 + $0x70] sm:$0xff]
    %v2957 = vld [vmem:[#allocation4 + $0x78] sm:$0xff]
    %v2958 = vld [vmem:[#allocation4 + $0x80] sm:$0xff]
    %v2959 = vld [vmem:[#allocation4 + $0x88] sm:$0xff]
    %v2960 = vld [vmem:[#allocation4 + $0x90] sm:$0xff]
    %v2961 = vld [vmem:[#allocation4 + $0x98] sm:$0xff]
    %v2962 = vld [vmem:[#allocation4 + $0xa0] sm:$0xff]
    %v2963 = vld [vmem:[#allocation4 + $0xa8] sm:$0xff]
    %v2964 = vld [vmem:[#allocation4 + $0xb0] sm:$0xff]
    %v2965 = vld [vmem:[#allocation4 + $0xb8] sm:$0xff]
    %v2966 = vld [vmem:[#allocation4 + $0xc0] sm:$0xff]
    %v2967 = vld [vmem:[#allocation4 + $0xc8] sm:$0xff]
    %v2968 = vld [vmem:[#allocation4 + $0xd0] sm:$0xff]
    %v2969 = vld [vmem:[#allocation4 + $0xd8] sm:$0xff]
    %v2970 = vld [vmem:[#allocation4 + $0xe0] sm:$0xff]
    %v2971 = vld [vmem:[#allocation4 + $0xe8] sm:$0xff]
    %v2972 = vld [vmem:[#allocation4 + $0xf0] sm:$0xff]
    %v2973 = vld [vmem:[#allocation4 + $0xf8] sm:$0xff]
    %v2974 = vld [vmem:[#allocation4 + $0x100] sm:$0xff]
    %v2975 = vld [vmem:[#allocation4 + $0x108] sm:$0xff]
    %v2976 = vld [vmem:[#allocation4 + $0x110] sm:$0xff]
    %v2977 = vld [vmem:[#allocation4 + $0x118] sm:$0xff]
    %v2978 = vld [vmem:[#allocation4 + $0x120] sm:$0xff]
    %v2979 = vld [vmem:[#allocation4 + $0x128] sm:$0xff]
    %v2980 = vld [vmem:[#allocation4 + $0x130] sm:$0xff]
    %v2981 = vld [vmem:[#allocation4 + $0x138] sm:$0xff]
    %v2982 = vld [vmem:[#allocation4 + $0x140] sm:$0xff]
    %v2983 = vld [vmem:[#allocation4 + $0x148] sm:$0xff]
    %v2984 = vld [vmem:[#allocation4 + $0x150] sm:$0xff]
    %v2985 = vld [vmem:[#allocation4 + $0x158] sm:$0xff]
    %v2986 = vld [vmem:[#allocation4 + $0x160] sm:$0xff]
    %v2987 = vld [vmem:[#allocation4 + $0x168] sm:$0xff]
    %v2988 = vld [vmem:[#allocation4 + $0x170] sm:$0xff]
    %v2989 = vld [vmem:[#allocation4 + $0x178] sm:$0xff]
    %v2990 = vld [vmem:[#allocation4 + $0x180] sm:$0xff]
    %v2991 = vld [vmem:[#allocation4 + $0x188] sm:$0xff]
    %v2992 = vld [vmem:[#allocation4 + $0x190] sm:$0xff]
    %v2993 = vld [vmem:[#allocation4 + $0x198] sm:$0xff]
    %v2994 = vld [vmem:[#allocation4 + $0x1a0] sm:$0xff]
    %v2995 = vld [vmem:[#allocation4 + $0x1a8] sm:$0xff]
    %v2996 = vld [vmem:[#allocation4 + $0x1b0] sm:$0xff]
    %v2997 = vld [vmem:[#allocation4 + $0x1b8] sm:$0xff]
    %v2998 = vld [vmem:[#allocation4 + $0x1c0] sm:$0xff]
    %v2999 = vld [vmem:[#allocation4 + $0x1c8] sm:$0xff]
    %v3000 = vld [vmem:[#allocation4 + $0x1d0] sm:$0xff]
    %v3001 = vld [vmem:[#allocation4 + $0x1d8] sm:$0xff]
    %v3002 = vld [vmem:[#allocation4 + $0x1e0] sm:$0xff]
    %v3003 = vld [vmem:[#allocation4 + $0x1e8] sm:$0xff]
    %v3004 = vld [vmem:[#allocation4 + $0x1f0] sm:$0xff]
    %v3005 = vld [vmem:[#allocation4 + $0x1f8] sm:$0xff]
    %v3006 = vld [vmem:[#allocation4 + $0x200] sm:$0xff]
    %v3007 = vld [vmem:[#allocation4 + $0x208] sm:$0xff]
    %v3008 = vld [vmem:[#allocation4 + $0x210] sm:$0xff]
    %v3009 = vld [vmem:[#allocation4 + $0x218] sm:$0xff]
    %v3010 = vld [vmem:[#allocation4 + $0x220] sm:$0xff]
    %v3011 = vld [vmem:[#allocation4 + $0x228] sm:$0xff]
    %v3012 = vld [vmem:[#allocation4 + $0x230] sm:$0xff]
    %v3013 = vld [vmem:[#allocation4 + $0x238] sm:$0xff]
    %v3014 = vld [vmem:[#allocation4 + $0x240] sm:$0xff]
    %v3015 = vld [vmem:[#allocation4 + $0x248] sm:$0xff]
    %v3016 = vld [vmem:[#allocation4 + $0x250] sm:$0xff]
    %v3017 = vld [vmem:[#allocation4 + $0x258] sm:$0xff]
    %v3018 = vld [vmem:[#allocation4 + $0x260] sm:$0xff]
    %v3019 = vld [vmem:[#allocation4 + $0x268] sm:$0xff]
    %v3020 = vld [vmem:[#allocation4 + $0x270] sm:$0xff]
    %v3021 = vld [vmem:[#allocation4 + $0x278] sm:$0xff]
    %v3022 = vld [vmem:[#allocation4 + $0x280] sm:$0xff]
    %v3023 = vld [vmem:[#allocation4 + $0x288] sm:$0xff]
    %v3024 = vld [vmem:[#allocation4 + $0x290] sm:$0xff]
    %v3025 = vld [vmem:[#allocation4 + $0x298] sm:$0xff]
    %v3026 = vld [vmem:[#allocation4 + $0x2a0] sm:$0xff]
    %v3027 = vld [vmem:[#allocation4 + $0x2a8] sm:$0xff]
    %v3028 = vld [vmem:[#allocation4 + $0x2b0] sm:$0xff]
    %v3029 = vld [vmem:[#allocation4 + $0x2b8] sm:$0xff]
    %v3030 = vld [vmem:[#allocation4 + $0x2c0] sm:$0xff]
    %v3031 = vld [vmem:[#allocation4 + $0x2c8] sm:$0xff]
    %v3032 = vld [vmem:[#allocation4 + $0x2d0] sm:$0xff]
    %v3033 = vld [vmem:[#allocation4 + $0x2d8] sm:$0xff]
    %v3034 = vld [vmem:[#allocation4 + $0x2e0] sm:$0xff]
    %v3035 = vld [vmem:[#allocation4 + $0x2e8] sm:$0xff]
    %v3036 = vld [vmem:[#allocation4 + $0x2f0] sm:$0xff]
    %v3037 = vld [vmem:[#allocation4 + $0x2f8] sm:$0xff]
    %s3038 = scalar_lea.vmem [#allocation4], 768
    %v3039 = vld [vmem:[%s3038] sm:$0xff]
    %v3040 = vld [vmem:[%s3038 + $0x8] sm:$0xff]
    %v3041 = vld [vmem:[%s3038 + $0x10] sm:$0xff]
    %v3042 = vld [vmem:[%s3038 + $0x18] sm:$0xff]
    %v3043 = vld [vmem:[%s3038 + $0x20] sm:$0xff]
    %v3044 = vld [vmem:[%s3038 + $0x28] sm:$0xff]
    %v3045 = vld [vmem:[%s3038 + $0x30] sm:$0xff]
    %v3046 = vld [vmem:[%s3038 + $0x38] sm:$0xff]
    %v3047 = vld [vmem:[%s3038 + $0x40] sm:$0xff]
    %v3048 = vld [vmem:[%s3038 + $0x48] sm:$0xff]
    %v3049 = vld [vmem:[%s3038 + $0x50] sm:$0xff]
    %v3050 = vld [vmem:[%s3038 + $0x58] sm:$0xff]
    %v3051 = vld [vmem:[%s3038 + $0x60] sm:$0xff]
    %v3052 = vld [vmem:[%s3038 + $0x68] sm:$0xff]
    %v3053 = vld [vmem:[%s3038 + $0x70] sm:$0xff]
    %v3054 = vld [vmem:[%s3038 + $0x78] sm:$0xff]
    %v3055 = vld [vmem:[%s3038 + $0x80] sm:$0xff]
    %v3056 = vld [vmem:[%s3038 + $0x88] sm:$0xff]
    %v3057 = vld [vmem:[%s3038 + $0x90] sm:$0xff]
    %v3058 = vld [vmem:[%s3038 + $0x98] sm:$0xff]
    %v3059 = vld [vmem:[%s3038 + $0xa0] sm:$0xff]
    %v3060 = vld [vmem:[%s3038 + $0xa8] sm:$0xff]
    %v3061 = vld [vmem:[%s3038 + $0xb0] sm:$0xff]
    %v3062 = vld [vmem:[%s3038 + $0xb8] sm:$0xff]
    %v3063 = vld [vmem:[%s3038 + $0xc0] sm:$0xff]
    %v3064 = vld [vmem:[%s3038 + $0xc8] sm:$0xff]
    %v3065 = vld [vmem:[%s3038 + $0xd0] sm:$0xff]
    %v3066 = vld [vmem:[%s3038 + $0xd8] sm:$0xff]
    %v3067 = vld [vmem:[%s3038 + $0xe0] sm:$0xff]
    %v3068 = vld [vmem:[%s3038 + $0xe8] sm:$0xff]
    %v3069 = vld [vmem:[%s3038 + $0xf0] sm:$0xff]
    %v3070 = vld [vmem:[%s3038 + $0xf8] sm:$0xff]
    %v3071 = vld [vmem:[%s3038 + $0x100] sm:$0xff]
    %v3072 = vld [vmem:[%s3038 + $0x108] sm:$0xff]
    %v3073 = vld [vmem:[%s3038 + $0x110] sm:$0xff]
    %v3074 = vld [vmem:[%s3038 + $0x118] sm:$0xff]
    %v3075 = vld [vmem:[%s3038 + $0x120] sm:$0xff]
    %v3076 = vld [vmem:[%s3038 + $0x128] sm:$0xff]
    %v3077 = vld [vmem:[%s3038 + $0x130] sm:$0xff]
    %v3078 = vld [vmem:[%s3038 + $0x138] sm:$0xff]
    %v3079 = vld [vmem:[%s3038 + $0x140] sm:$0xff]
    %v3080 = vld [vmem:[%s3038 + $0x148] sm:$0xff]
    %v3081 = vld [vmem:[%s3038 + $0x150] sm:$0xff]
    %v3082 = vld [vmem:[%s3038 + $0x158] sm:$0xff]
    %v3083 = vld [vmem:[%s3038 + $0x160] sm:$0xff]
    %v3084 = vld [vmem:[%s3038 + $0x168] sm:$0xff]
    %v3085 = vld [vmem:[%s3038 + $0x170] sm:$0xff]
    %v3086 = vld [vmem:[%s3038 + $0x178] sm:$0xff]
    %v3087 = vld [vmem:[%s3038 + $0x180] sm:$0xff]
    %v3088 = vld [vmem:[%s3038 + $0x188] sm:$0xff]
    %v3089 = vld [vmem:[%s3038 + $0x190] sm:$0xff]
    %v3090 = vld [vmem:[%s3038 + $0x198] sm:$0xff]
    %v3091 = vld [vmem:[%s3038 + $0x1a0] sm:$0xff]
    %v3092 = vld [vmem:[%s3038 + $0x1a8] sm:$0xff]
    %v3093 = vld [vmem:[%s3038 + $0x1b0] sm:$0xff]
    %v3094 = vld [vmem:[%s3038 + $0x1b8] sm:$0xff]
    %v3095 = vld [vmem:[%s3038 + $0x1c0] sm:$0xff]
    %v3096 = vld [vmem:[%s3038 + $0x1c8] sm:$0xff]
    %v3097 = vld [vmem:[%s3038 + $0x1d0] sm:$0xff]
    %v3098 = vld [vmem:[%s3038 + $0x1d8] sm:$0xff]
    %v3099 = vld [vmem:[%s3038 + $0x1e0] sm:$0xff]
    %v3100 = vld [vmem:[%s3038 + $0x1e8] sm:$0xff]
    %v3101 = vld [vmem:[%s3038 + $0x1f0] sm:$0xff]
    %v3102 = vld [vmem:[%s3038 + $0x1f8] sm:$0xff]
    %v3103 = vld [vmem:[%s3038 + $0x200] sm:$0xff]
    %v3104 = vld [vmem:[%s3038 + $0x208] sm:$0xff]
    %v3105 = vld [vmem:[%s3038 + $0x210] sm:$0xff]
    %v3106 = vld [vmem:[%s3038 + $0x218] sm:$0xff]
    %v3107 = vld [vmem:[%s3038 + $0x220] sm:$0xff]
    %v3108 = vld [vmem:[%s3038 + $0x228] sm:$0xff]
    %v3109 = vld [vmem:[%s3038 + $0x230] sm:$0xff]
    %v3110 = vld [vmem:[%s3038 + $0x238] sm:$0xff]
    %v3111 = vld [vmem:[%s3038 + $0x240] sm:$0xff]
    %v3112 = vld [vmem:[%s3038 + $0x248] sm:$0xff]
    %v3113 = vld [vmem:[%s3038 + $0x250] sm:$0xff]
    %v3114 = vld [vmem:[%s3038 + $0x258] sm:$0xff]
    %v3115 = vld [vmem:[%s3038 + $0x260] sm:$0xff]
    %v3116 = vld [vmem:[%s3038 + $0x268] sm:$0xff]
    %v3117 = vld [vmem:[%s3038 + $0x270] sm:$0xff]
    %v3118 = vld [vmem:[%s3038 + $0x278] sm:$0xff]
    %v3119 = vld [vmem:[%s3038 + $0x280] sm:$0xff]
    %v3120 = vld [vmem:[%s3038 + $0x288] sm:$0xff]
    %v3121 = vld [vmem:[%s3038 + $0x290] sm:$0xff]
    %v3122 = vld [vmem:[%s3038 + $0x298] sm:$0xff]
    %v3123 = vld [vmem:[%s3038 + $0x2a0] sm:$0xff]
    %v3124 = vld [vmem:[%s3038 + $0x2a8] sm:$0xff]
    %v3125 = vld [vmem:[%s3038 + $0x2b0] sm:$0xff]
    %v3126 = vld [vmem:[%s3038 + $0x2b8] sm:$0xff]
    %v3127 = vld [vmem:[%s3038 + $0x2c0] sm:$0xff]
    %v3128 = vld [vmem:[%s3038 + $0x2c8] sm:$0xff]
    %v3129 = vld [vmem:[%s3038 + $0x2d0] sm:$0xff]
    %v3130 = vld [vmem:[%s3038 + $0x2d8] sm:$0xff]
    %v3131 = vld [vmem:[%s3038 + $0x2e0] sm:$0xff]
    %v3132 = vld [vmem:[%s3038 + $0x2e8] sm:$0xff]
    %v3133 = vld [vmem:[%s3038 + $0x2f0] sm:$0xff]
    %v3134 = vld [vmem:[%s3038 + $0x2f8] sm:$0xff]
    %v3139 = vrot.slane %v2931, 4
    %v3140 = vrot.slane %v2932, 4
    %v3141 = vrot.slane %v2933, 4
    %v3142 = vrot.slane %v2934, 4
    %3147 = vmatprep.subr.bf16.mxu0 %v3040
    %3148 = vmatpush1.bf16.msra.mxu0 %v3039
    %3149 = vmatprep.subr.bf16.mxu0 %v3043
    %3150 = vmatpush1.bf16.msra.mxu0 %v3042
    %3151 = vmatprep.subr.bf16.mxu0 %v3046
    %3152 = vmatpush1.bf16.msra.mxu0 %v3045
    %3153 = vmatprep.subr.bf16.mxu0 %v3049
    %3154 = vmatpush1.bf16.msra.mxu0 %v3048
    %3155 = vmatprep.subr.bf16.mxu0 %v3052
    %3156 = vmatpush1.bf16.msra.mxu0 %v3051
    %3157 = vmatprep.subr.bf16.mxu0 %v3055
    %3158 = vmatpush1.bf16.msra.mxu0 %v3054
    %3159 = vmatprep.subr.bf16.mxu0 %v3058
    %3160 = vmatpush1.bf16.msra.mxu0 %v3057
    %3161 = vmatprep.subr.bf16.mxu0 %v3061
    %3162 = vmatpush1.bf16.msra.mxu0 %v3060
    %3163 = vmatprep.subr.bf16.mxu0 %v3064
    %3164 = vmatpush1.bf16.msra.mxu0 %v3063
    %3165 = vmatprep.subr.bf16.mxu0 %v3067
    %3166 = vmatpush1.bf16.msra.mxu0 %v3066
    %3167 = vmatprep.subr.bf16.mxu0 %v3070
    %3168 = vmatpush1.bf16.msra.mxu0 %v3069
    %3169 = vmatprep.subr.bf16.mxu0 %v3073
    %3170 = vmatpush1.bf16.msra.mxu0 %v3072
    %3171 = vmatprep.subr.bf16.mxu0 %v3076
    %3172 = vmatpush1.bf16.msra.mxu0 %v3075
    %3173 = vmatprep.subr.bf16.mxu0 %v3079
    %3174 = vmatpush1.bf16.msra.mxu0 %v3078
    %3175 = vmatprep.subr.bf16.mxu0 %v3082
    %3176 = vmatpush1.bf16.msra.mxu0 %v3081
    %3177 = vmatprep.subr.bf16.mxu0 %v3085
    %3178 = vmatpush1.bf16.msra.mxu0 %v3084
    %3179 = vmatprep.mubr.bf16.mxu0 %v3140
    %3180 = vmatmul.mubr.bf16.gmra.mrb[0].mxu0 %v3139
    %v3181 = vpop.f32.mrb[0].mxu0
    %v3182 = vadd.f32 0.0, %v3181
    %v3183 = vpop.f32.mrb[0].mxu0
    %v3184 = vadd.f32 0.0, %v3183
    %v3185 = vpop.f32.mrb[0].mxu0
    %v3186 = vpop.f32.mrb[0].mxu0
    %3187 = vdwg.mxu0
    %3188 = vmatprep.subr.bf16.mxu0 %v3088
    %3189 = vmatpush1.bf16.msra.mxu0 %v3087
    %3190 = vmatprep.subr.bf16.mxu0 %v3091
    %3191 = vmatpush1.bf16.msra.mxu0 %v3090
    %3192 = vmatprep.subr.bf16.mxu0 %v3094
    %3193 = vmatpush1.bf16.msra.mxu0 %v3093
    %3194 = vmatprep.subr.bf16.mxu0 %v3097
    %3195 = vmatpush1.bf16.msra.mxu0 %v3096
    %3196 = vmatprep.subr.bf16.mxu0 %v3100
    %3197 = vmatpush1.bf16.msra.mxu0 %v3099
    %3198 = vmatprep.subr.bf16.mxu0 %v3103
    %3199 = vmatpush1.bf16.msra.mxu0 %v3102
    %3200 = vmatprep.subr.bf16.mxu0 %v3106
    %3201 = vmatpush1.bf16.msra.mxu0 %v3105
    %3202 = vmatprep.subr.bf16.mxu0 %v3109
    %3203 = vmatpush1.bf16.msra.mxu0 %v3108
    %3204 = vmatprep.subr.bf16.mxu0 %v3112
    %3205 = vmatpush1.bf16.msra.mxu0 %v3111
    %3206 = vmatprep.subr.bf16.mxu0 %v3115
    %3207 = vmatpush1.bf16.msra.mxu0 %v3114
    %3208 = vmatprep.subr.bf16.mxu0 %v3118
    %3209 = vmatpush1.bf16.msra.mxu0 %v3117
    %3210 = vmatprep.subr.bf16.mxu0 %v3121
    %3211 = vmatpush1.bf16.msra.mxu0 %v3120
    %3212 = vmatprep.subr.bf16.mxu0 %v3124
    %3213 = vmatpush1.bf16.msra.mxu0 %v3123
    %3214 = vmatprep.subr.bf16.mxu0 %v3127
    %3215 = vmatpush1.bf16.msra.mxu0 %v3126
    %3216 = vmatprep.subr.bf16.mxu0 %v3130
    %3217 = vmatpush1.bf16.msra.mxu0 %v3129
    %3218 = vmatprep.subr.bf16.mxu0 %v3133
    %3219 = vmatpush1.bf16.msra.mxu0 %v3132
    %3220 = vmatprep.mubr.bf16.mxu0 %v3142
    %3221 = vmatmul.mubr.bf16.gmra.mrb[0].mxu0 %v3141
    %v3222 = vpop.f32.mrb[0].mxu0
    %v3223 = vadd.f32 %v3182, %v3222
    %v3224 = vpop.f32.mrb[0].mxu0
    %v3225 = vadd.f32 %v3184, %v3224
    %v3226 = vpop.f32.mrb[0].mxu0
    %v3227 = vpop.f32.mrb[0].mxu0
    %3228 = vdwg.mxu0
    %3229 = vmatprep.subr.bf16.mxu0 0
    %3230 = vmatpush1.bf16.msra.mxu0 %v3041
    %3231 = vmatprep.subr.bf16.mxu0 0
    %3232 = vmatpush1.bf16.msra.mxu0 %v3044
    %3233 = vmatprep.subr.bf16.mxu0 0
    %3234 = vmatpush1.bf16.msra.mxu0 %v3047
    %3235 = vmatprep.subr.bf16.mxu0 0
    %3236 = vmatpush1.bf16.msra.mxu0 %v3050
    %3237 = vmatprep.subr.bf16.mxu0 0
    %3238 = vmatpush1.bf16.msra.mxu0 %v3053
    %3239 = vmatprep.subr.bf16.mxu0 0
    %3240 = vmatpush1.bf16.msra.mxu0 %v3056
    %3241 = vmatprep.subr.bf16.mxu0 0
    %3242 = vmatpush1.bf16.msra.mxu0 %v3059
    %3243 = vmatprep.subr.bf16.mxu0 0
    %3244 = vmatpush1.bf16.msra.mxu0 %v3062
    %3245 = vmatprep.subr.bf16.mxu0 0
    %3246 = vmatpush1.bf16.msra.mxu0 %v3065
    %3247 = vmatprep.subr.bf16.mxu0 0
    %3248 = vmatpush1.bf16.msra.mxu0 %v3068
    %3249 = vmatprep.subr.bf16.mxu0 0
    %3250 = vmatpush1.bf16.msra.mxu0 %v3071
    %3251 = vmatprep.subr.bf16.mxu0 0
    %3252 = vmatpush1.bf16.msra.mxu0 %v3074
    %3253 = vmatprep.subr.bf16.mxu0 0
    %3254 = vmatpush1.bf16.msra.mxu0 %v3077
    %3255 = vmatprep.subr.bf16.mxu0 0
    %3256 = vmatpush1.bf16.msra.mxu0 %v3080
    %3257 = vmatprep.subr.bf16.mxu0 0
    %3258 = vmatpush1.bf16.msra.mxu0 %v3083
    %3259 = vmatprep.subr.bf16.mxu0 0
    %3260 = vmatpush1.bf16.msra.mxu0 %v3086
    %3261 = vmatprep.mubr.bf16.mxu0 %v3140
    %3262 = vmatmul.mubr.bf16.gmra.mrb[0].mxu0 %v3139
    %v3263 = vpop.f32.mrb[0].mxu0
    %v3264 = vadd.f32 0.0, %v3263
    %v3265 = vpop.f32.mrb[0].mxu0
    %v3266 = vpop.f32.mrb[0].mxu0
    %v3267 = vpop.f32.mrb[0].mxu0
    %3268 = vdwg.mxu0
    %3269 = vmatprep.subr.bf16.mxu0 0
    %3270 = vmatpush1.bf16.msra.mxu0 %v3089
    %3271 = vmatprep.subr.bf16.mxu0 0
    %3272 = vmatpush1.bf16.msra.mxu0 %v3092
    %3273 = vmatprep.subr.bf16.mxu0 0
    %3274 = vmatpush1.bf16.msra.mxu0 %v3095
    %3275 = vmatprep.subr.bf16.mxu0 0
    %3276 = vmatpush1.bf16.msra.mxu0 %v3098
    %3277 = vmatprep.subr.bf16.mxu0 0
    %3278 = vmatpush1.bf16.msra.mxu0 %v3101
    %3279 = vmatprep.subr.bf16.mxu0 0
    %3280 = vmatpush1.bf16.msra.mxu0 %v3104
    %3281 = vmatprep.subr.bf16.mxu0 0
    %3282 = vmatpush1.bf16.msra.mxu0 %v3107
    %3283 = vmatprep.subr.bf16.mxu0 0
    %3284 = vmatpush1.bf16.msra.mxu0 %v3110
    %3285 = vmatprep.subr.bf16.mxu0 0
    %3286 = vmatpush1.bf16.msra.mxu0 %v3113
    %3287 = vmatprep.subr.bf16.mxu0 0
    %3288 = vmatpush1.bf16.msra.mxu0 %v3116
    %3289 = vmatprep.subr.bf16.mxu0 0
    %3290 = vmatpush1.bf16.msra.mxu0 %v3119
    %3291 = vmatprep.subr.bf16.mxu0 0
    %3292 = vmatpush1.bf16.msra.mxu0 %v3122
    %3293 = vmatprep.subr.bf16.mxu0 0
    %3294 = vmatpush1.bf16.msra.mxu0 %v3125
    %3295 = vmatprep.subr.bf16.mxu0 0
    %3296 = vmatpush1.bf16.msra.mxu0 %v3128
    %3297 = vmatprep.subr.bf16.mxu0 0
    %3298 = vmatpush1.bf16.msra.mxu0 %v3131
    %3299 = vmatprep.subr.bf16.mxu0 0
    %3300 = vmatpush1.bf16.msra.mxu0 %v3134
    %3301 = vmatprep.mubr.bf16.mxu0 %v3142
    %3302 = vmatmul.mubr.bf16.gmra.mrb[0].mxu0 %v3141
    %v3303 = vpop.f32.mrb[0].mxu0
    %v3304 = vadd.f32 %v3264, %v3303
    %v3305 = vpop.f32.mrb[0].mxu0
    %v3306 = vpop.f32.mrb[0].mxu0
    %v3307 = vpop.f32.mrb[0].mxu0
    %3308 = vdwg.mxu0
    %3309 = vmatprep.subr.bf16.mxu0 %v2943
    %3310 = vmatpush1.bf16.msra.mxu0 %v2942
    %3311 = vmatprep.subr.bf16.mxu0 %v2946
    %3312 = vmatpush1.bf16.msra.mxu0 %v2945
    %3313 = vmatprep.subr.bf16.mxu0 %v2949
    %3314 = vmatpush1.bf16.msra.mxu0 %v2948
    %3315 = vmatprep.subr.bf16.mxu0 %v2952
    %3316 = vmatpush1.bf16.msra.mxu0 %v2951
    %3317 = vmatprep.subr.bf16.mxu0 %v2955
    %3318 = vmatpush1.bf16.msra.mxu0 %v2954
    %3319 = vmatprep.subr.bf16.mxu0 %v2958
    %3320 = vmatpush1.bf16.msra.mxu0 %v2957
    %3321 = vmatprep.subr.bf16.mxu0 %v2961
    %3322 = vmatpush1.bf16.msra.mxu0 %v2960
    %3323 = vmatprep.subr.bf16.mxu0 %v2964
    %3324 = vmatpush1.bf16.msra.mxu0 %v2963
    %3325 = vmatprep.subr.bf16.mxu0 %v2967
    %3326 = vmatpush1.bf16.msra.mxu0 %v2966
    %3327 = vmatprep.subr.bf16.mxu0 %v2970
    %3328 = vmatpush1.bf16.msra.mxu0 %v2969
    %3329 = vmatprep.subr.bf16.mxu0 %v2973
    %3330 = vmatpush1.bf16.msra.mxu0 %v2972
    %3331 = vmatprep.subr.bf16.mxu0 %v2976
    %3332 = vmatpush1.bf16.msra.mxu0 %v2975
    %3333 = vmatprep.subr.bf16.mxu0 %v2979
    %3334 = vmatpush1.bf16.msra.mxu0 %v2978
    %3335 = vmatprep.subr.bf16.mxu0 %v2982
    %3336 = vmatpush1.bf16.msra.mxu0 %v2981
    %3337 = vmatprep.subr.bf16.mxu0 %v2985
    %3338 = vmatpush1.bf16.msra.mxu0 %v2984
    %3339 = vmatprep.subr.bf16.mxu0 %v2988
    %3340 = vmatpush1.bf16.msra.mxu0 %v2987
    %3341 = vmatprep.mubr.bf16.mxu0 %v2932
    %3342 = vmatmul.mubr.bf16.gmra.mrb[0].mxu0 %v2931
    %v3343 = vpop.f32.mrb[0].mxu0
    %v3344 = vadd.f32 %v3223, %v3343
    %v3345 = vpop.f32.mrb[0].mxu0
    %v3346 = vadd.f32 %v3225, %v3345
    %v3347 = vpop.f32.mrb[0].mxu0
    %v3348 = vpop.f32.mrb[0].mxu0
    %3349 = vdwg.mxu0
    %3350 = vmatprep.subr.bf16.mxu0 %v2991
    %3351 = vmatpush1.bf16.msra.mxu0 %v2990
    %3352 = vmatprep.subr.bf16.mxu0 %v2994
    %3353 = vmatpush1.bf16.msra.mxu0 %v2993
    %3354 = vmatprep.subr.bf16.mxu0 %v2997
    %3355 = vmatpush1.bf16.msra.mxu0 %v2996
    %3356 = vmatprep.subr.bf16.mxu0 %v3000
    %3357 = vmatpush1.bf16.msra.mxu0 %v2999
    %3358 = vmatprep.subr.bf16.mxu0 %v3003
    %3359 = vmatpush1.bf16.msra.mxu0 %v3002
    %3360 = vmatprep.subr.bf16.mxu0 %v3006
    %3361 = vmatpush1.bf16.msra.mxu0 %v3005
    %3362 = vmatprep.subr.bf16.mxu0 %v3009
    %3363 = vmatpush1.bf16.msra.mxu0 %v3008
    %3364 = vmatprep.subr.bf16.mxu0 %v3012
    %3365 = vmatpush1.bf16.msra.mxu0 %v3011
    %3366 = vmatprep.subr.bf16.mxu0 %v3015
    %3367 = vmatpush1.bf16.msra.mxu0 %v3014
    %3368 = vmatprep.subr.bf16.mxu0 %v3018
    %3369 = vmatpush1.bf16.msra.mxu0 %v3017
    %3370 = vmatprep.subr.bf16.mxu0 %v3021
    %3371 = vmatpush1.bf16.msra.mxu0 %v3020
    %3372 = vmatprep.subr.bf16.mxu0 %v3024
    %3373 = vmatpush1.bf16.msra.mxu0 %v3023
    %3374 = vmatprep.subr.bf16.mxu0 %v3027
    %3375 = vmatpush1.bf16.msra.mxu0 %v3026
    %3376 = vmatprep.subr.bf16.mxu0 %v3030
    %3377 = vmatpush1.bf16.msra.mxu0 %v3029
    %3378 = vmatprep.subr.bf16.mxu0 %v3033
    %3379 = vmatpush1.bf16.msra.mxu0 %v3032
    %3380 = vmatprep.subr.bf16.mxu0 %v3036
    %3381 = vmatpush1.bf16.msra.mxu0 %v3035
    %3382 = vmatprep.mubr.bf16.mxu0 %v2934
    %3383 = vmatmul.mubr.bf16.gmra.mrb[0].mxu0 %v2933
    %v3384 = vpop.f32.mrb[0].mxu0
    %v3385 = vadd.f32 %v3344, %v3384
    %v3386 = vpop.f32.mrb[0].mxu0
    %v3387 = vadd.f32 %v3346, %v3386
    %v3388 = vpop.f32.mrb[0].mxu0
    %v3389 = vpop.f32.mrb[0].mxu0
    %3390 = vdwg.mxu0
    %3391 = vmatprep.subr.bf16.mxu0 0
    %3392 = vmatpush1.bf16.msra.mxu0 %v2944
    %3393 = vmatprep.subr.bf16.mxu0 0
    %3394 = vmatpush1.bf16.msra.mxu0 %v2947
    %3395 = vmatprep.subr.bf16.mxu0 0
    %3396 = vmatpush1.bf16.msra.mxu0 %v2950
    %3397 = vmatprep.subr.bf16.mxu0 0
    %3398 = vmatpush1.bf16.msra.mxu0 %v2953
    %3399 = vmatprep.subr.bf16.mxu0 0
    %3400 = vmatpush1.bf16.msra.mxu0 %v2956
    %3401 = vmatprep.subr.bf16.mxu0 0
    %3402 = vmatpush1.bf16.msra.mxu0 %v2959
    %3403 = vmatprep.subr.bf16.mxu0 0
    %3404 = vmatpush1.bf16.msra.mxu0 %v2962
    %3405 = vmatprep.subr.bf16.mxu0 0
    %3406 = vmatpush1.bf16.msra.mxu0 %v2965
    %3407 = vmatprep.subr.bf16.mxu0 0
    %3408 = vmatpush1.bf16.msra.mxu0 %v2968
    %3409 = vmatprep.subr.bf16.mxu0 0
    %3410 = vmatpush1.bf16.msra.mxu0 %v2971
    %3411 = vmatprep.subr.bf16.mxu0 0
    %3412 = vmatpush1.bf16.msra.mxu0 %v2974
    %3413 = vmatprep.subr.bf16.mxu0 0
    %3414 = vmatpush1.bf16.msra.mxu0 %v2977
    %3415 = vmatprep.subr.bf16.mxu0 0
    %3416 = vmatpush1.bf16.msra.mxu0 %v2980
    %3417 = vmatprep.subr.bf16.mxu0 0
    %3418 = vmatpush1.bf16.msra.mxu0 %v2983
    %3419 = vmatprep.subr.bf16.mxu0 0
    %3420 = vmatpush1.bf16.msra.mxu0 %v2986
    %3421 = vmatprep.subr.bf16.mxu0 0
    %3422 = vmatpush1.bf16.msra.mxu0 %v2989
    %3423 = vmatprep.mubr.bf16.mxu0 %v2932
    %3424 = vmatmul.mubr.bf16.gmra.mrb[0].mxu0 %v2931
    %v3425 = vpop.f32.mrb[0].mxu0
    %v3426 = vadd.f32 %v3304, %v3425
    %v3427 = vpop.f32.mrb[0].mxu0
    %v3428 = vpop.f32.mrb[0].mxu0
    %v3429 = vpop.f32.mrb[0].mxu0
    %3430 = vdwg.mxu0
    %3431 = vmatprep.subr.bf16.mxu0 0
    %3432 = vmatpush1.bf16.msra.mxu0 %v2992
    %3433 = vmatprep.subr.bf16.mxu0 0
    %3434 = vmatpush1.bf16.msra.mxu0 %v2995
    %3435 = vmatprep.subr.bf16.mxu0 0
    %3436 = vmatpush1.bf16.msra.mxu0 %v2998
    %3437 = vmatprep.subr.bf16.mxu0 0
    %3438 = vmatpush1.bf16.msra.mxu0 %v3001
    %3439 = vmatprep.subr.bf16.mxu0 0
    %3440 = vmatpush1.bf16.msra.mxu0 %v3004
    %3441 = vmatprep.subr.bf16.mxu0 0
    %3442 = vmatpush1.bf16.msra.mxu0 %v3007
    %3443 = vmatprep.subr.bf16.mxu0 0
    %3444 = vmatpush1.bf16.msra.mxu0 %v3010
    %3445 = vmatprep.subr.bf16.mxu0 0
    %3446 = vmatpush1.bf16.msra.mxu0 %v3013
    %3447 = vmatprep.subr.bf16.mxu0 0
    %3448 = vmatpush1.bf16.msra.mxu0 %v3016
    %3449 = vmatprep.subr.bf16.mxu0 0
    %3450 = vmatpush1.bf16.msra.mxu0 %v3019
    %3451 = vmatprep.subr.bf16.mxu0 0
    %3452 = vmatpush1.bf16.msra.mxu0 %v3022
    %3453 = vmatprep.subr.bf16.mxu0 0
    %3454 = vmatpush1.bf16.msra.mxu0 %v3025
    %3455 = vmatprep.subr.bf16.mxu0 0
    %3456 = vmatpush1.bf16.msra.mxu0 %v3028
    %3457 = vmatprep.subr.bf16.mxu0 0
    %3458 = vmatpush1.bf16.msra.mxu0 %v3031
    %3459 = vmatprep.subr.bf16.mxu0 0
    %3460 = vmatpush1.bf16.msra.mxu0 %v3034
    %3461 = vmatprep.subr.bf16.mxu0 0
    %3462 = vmatpush1.bf16.msra.mxu0 %v3037
    %3463 = vmatprep.mubr.bf16.mxu0 %v2934
    %3464 = vmatmul.mubr.bf16.gmra.mrb[0].mxu0 %v2933
    %v3465 = vpop.f32.mrb[0].mxu0
    %v3466 = vadd.f32 %v3426, %v3465
    %v3467 = vpop.f32.mrb[0].mxu0
    %v3468 = vpop.f32.mrb[0].mxu0
    %v3469 = vpop.f32.mrb[0].mxu0
    %3470 = vdwg.mxu0
    %s3471 = scalar_lea.vmem [#allocation4], 1536
    %v3472 = vld [vmem:[%s3471] sm:$0xff]
    %v3473 = vld [vmem:[%s3471 + $0x8] sm:$0xff]
    %v3474 = vld [vmem:[%s3471 + $0x10] sm:$0xff]
    %v3475 = vld [vmem:[%s3471 + $0x18] sm:$0xff]
    %v3476 = vld [vmem:[%s3471 + $0x20] sm:$0xff]
    %v3477 = vld [vmem:[%s3471 + $0x28] sm:$0xff]
    %v3478 = vld [vmem:[%s3471 + $0x30] sm:$0xff]
    %v3479 = vld [vmem:[%s3471 + $0x38] sm:$0xff]
    %v3480 = vld [vmem:[%s3471 + $0x40] sm:$0xff]
    %v3481 = vld [vmem:[%s3471 + $0x48] sm:$0xff]
    %v3482 = vld [vmem:[%s3471 + $0x50] sm:$0xff]
    %v3483 = vld [vmem:[%s3471 + $0x58] sm:$0xff]
    %v3484 = vld [vmem:[%s3471 + $0x60] sm:$0xff]
    %v3485 = vld [vmem:[%s3471 + $0x68] sm:$0xff]
    %v3486 = vld [vmem:[%s3471 + $0x70] sm:$0xff]
    %v3487 = vld [vmem:[%s3471 + $0x78] sm:$0xff]
    %v3488 = vld [vmem:[%s3471 + $0x80] sm:$0xff]
    %v3489 = vld [vmem:[%s3471 + $0x88] sm:$0xff]
    %v3490 = vld [vmem:[%s3471 + $0x90] sm:$0xff]
    %v3491 = vld [vmem:[%s3471 + $0x98] sm:$0xff]
    %v3492 = vld [vmem:[%s3471 + $0xa0] sm:$0xff]
    %v3493 = vld [vmem:[%s3471 + $0xa8] sm:$0xff]
    %v3494 = vld [vmem:[%s3471 + $0xb0] sm:$0xff]
    %v3495 = vld [vmem:[%s3471 + $0xb8] sm:$0xff]
    %v3496 = vld [vmem:[%s3471 + $0xc0] sm:$0xff]
    %v3497 = vld [vmem:[%s3471 + $0xc8] sm:$0xff]
    %v3498 = vld [vmem:[%s3471 + $0xd0] sm:$0xff]
    %v3499 = vld [vmem:[%s3471 + $0xd8] sm:$0xff]
    %v3500 = vld [vmem:[%s3471 + $0xe0] sm:$0xff]
    %v3501 = vld [vmem:[%s3471 + $0xe8] sm:$0xff]
    %v3502 = vld [vmem:[%s3471 + $0xf0] sm:$0xff]
    %v3503 = vld [vmem:[%s3471 + $0xf8] sm:$0xff]
    %v3504 = vld [vmem:[%s3471 + $0x100] sm:$0xff]
    %v3505 = vld [vmem:[%s3471 + $0x108] sm:$0xff]
    %v3506 = vld [vmem:[%s3471 + $0x110] sm:$0xff]
    %v3507 = vld [vmem:[%s3471 + $0x118] sm:$0xff]
    %v3508 = vld [vmem:[%s3471 + $0x120] sm:$0xff]
    %v3509 = vld [vmem:[%s3471 + $0x128] sm:$0xff]
    %v3510 = vld [vmem:[%s3471 + $0x130] sm:$0xff]
    %v3511 = vld [vmem:[%s3471 + $0x138] sm:$0xff]
    %v3512 = vld [vmem:[%s3471 + $0x140] sm:$0xff]
    %v3513 = vld [vmem:[%s3471 + $0x148] sm:$0xff]
    %v3514 = vld [vmem:[%s3471 + $0x150] sm:$0xff]
    %v3515 = vld [vmem:[%s3471 + $0x158] sm:$0xff]
    %v3516 = vld [vmem:[%s3471 + $0x160] sm:$0xff]
    %v3517 = vld [vmem:[%s3471 + $0x168] sm:$0xff]
    %v3518 = vld [vmem:[%s3471 + $0x170] sm:$0xff]
    %v3519 = vld [vmem:[%s3471 + $0x178] sm:$0xff]
    %v3520 = vld [vmem:[%s3471 + $0x180] sm:$0xff]
    %v3521 = vld [vmem:[%s3471 + $0x188] sm:$0xff]
    %v3522 = vld [vmem:[%s3471 + $0x190] sm:$0xff]
    %v3523 = vld [vmem:[%s3471 + $0x198] sm:$0xff]
    %v3524 = vld [vmem:[%s3471 + $0x1a0] sm:$0xff]
    %v3525 = vld [vmem:[%s3471 + $0x1a8] sm:$0xff]
    %v3526 = vld [vmem:[%s3471 + $0x1b0] sm:$0xff]
    %v3527 = vld [vmem:[%s3471 + $0x1b8] sm:$0xff]
    %v3528 = vld [vmem:[%s3471 + $0x1c0] sm:$0xff]
    %v3529 = vld [vmem:[%s3471 + $0x1c8] sm:$0xff]
    %v3530 = vld [vmem:[%s3471 + $0x1d0] sm:$0xff]
    %v3531 = vld [vmem:[%s3471 + $0x1d8] sm:$0xff]
    %v3532 = vld [vmem:[%s3471 + $0x1e0] sm:$0xff]
    %v3533 = vld [vmem:[%s3471 + $0x1e8] sm:$0xff]
    %v3534 = vld [vmem:[%s3471 + $0x1f0] sm:$0xff]
    %v3535 = vld [vmem:[%s3471 + $0x1f8] sm:$0xff]
    %v3536 = vld [vmem:[%s3471 + $0x200] sm:$0xff]
    %v3537 = vld [vmem:[%s3471 + $0x208] sm:$0xff]
    %v3538 = vld [vmem:[%s3471 + $0x210] sm:$0xff]
    %v3539 = vld [vmem:[%s3471 + $0x218] sm:$0xff]
    %v3540 = vld [vmem:[%s3471 + $0x220] sm:$0xff]
    %v3541 = vld [vmem:[%s3471 + $0x228] sm:$0xff]
    %v3542 = vld [vmem:[%s3471 + $0x230] sm:$0xff]
    %v3543 = vld [vmem:[%s3471 + $0x238] sm:$0xff]
    %v3544 = vld [vmem:[%s3471 + $0x240] sm:$0xff]
    %v3545 = vld [vmem:[%s3471 + $0x248] sm:$0xff]
    %v3546 = vld [vmem:[%s3471 + $0x250] sm:$0xff]
    %v3547 = vld [vmem:[%s3471 + $0x258] sm:$0xff]
    %v3548 = vld [vmem:[%s3471 + $0x260] sm:$0xff]
    %v3549 = vld [vmem:[%s3471 + $0x268] sm:$0xff]
    %v3550 = vld [vmem:[%s3471 + $0x270] sm:$0xff]
    %v3551 = vld [vmem:[%s3471 + $0x278] sm:$0xff]
    %v3552 = vld [vmem:[%s3471 + $0x280] sm:$0xff]
    %v3553 = vld [vmem:[%s3471 + $0x288] sm:$0xff]
    %v3554 = vld [vmem:[%s3471 + $0x290] sm:$0xff]
    %v3555 = vld [vmem:[%s3471 + $0x298] sm:$0xff]
    %v3556 = vld [vmem:[%s3471 + $0x2a0] sm:$0xff]
    %v3557 = vld [vmem:[%s3471 + $0x2a8] sm:$0xff]
    %v3558 = vld [vmem:[%s3471 + $0x2b0] sm:$0xff]
    %v3559 = vld [vmem:[%s3471 + $0x2b8] sm:$0xff]
    %v3560 = vld [vmem:[%s3471 + $0x2c0] sm:$0xff]
    %v3561 = vld [vmem:[%s3471 + $0x2c8] sm:$0xff]
    %v3562 = vld [vmem:[%s3471 + $0x2d0] sm:$0xff]
    %v3563 = vld [vmem:[%s3471 + $0x2d8] sm:$0xff]
    %v3564 = vld [vmem:[%s3471 + $0x2e0] sm:$0xff]
    %v3565 = vld [vmem:[%s3471 + $0x2e8] sm:$0xff]
    %v3566 = vld [vmem:[%s3471 + $0x2f0] sm:$0xff]
    %v3567 = vld [vmem:[%s3471 + $0x2f8] sm:$0xff]
    %3568 = vmatprep.subr.bf16.mxu0 %v3473
    %3569 = vmatpush1.bf16.msra.mxu0 %v3472
    %3570 = vmatprep.subr.bf16.mxu0 %v3476
    %3571 = vmatpush1.bf16.msra.mxu0 %v3475
    %3572 = vmatprep.subr.bf16.mxu0 %v3479
    %3573 = vmatpush1.bf16.msra.mxu0 %v3478
    %3574 = vmatprep.subr.bf16.mxu0 %v3482
    %3575 = vmatpush1.bf16.msra.mxu0 %v3481
    %3576 = vmatprep.subr.bf16.mxu0 %v3485
    %3577 = vmatpush1.bf16.msra.mxu0 %v3484
    %3578 = vmatprep.subr.bf16.mxu0 %v3488
    %3579 = vmatpush1.bf16.msra.mxu0 %v3487
    %3580 = vmatprep.subr.bf16.mxu0 %v3491
    %3581 = vmatpush1.bf16.msra.mxu0 %v3490
    %3582 = vmatprep.subr.bf16.mxu0 %v3494
    %3583 = vmatpush1.bf16.msra.mxu0 %v3493
    %3584 = vmatprep.subr.bf16.mxu0 %v3497
    %3585 = vmatpush1.bf16.msra.mxu0 %v3496
    %3586 = vmatprep.subr.bf16.mxu0 %v3500
    %3587 = vmatpush1.bf16.msra.mxu0 %v3499
    %3588 = vmatprep.subr.bf16.mxu0 %v3503
    %3589 = vmatpush1.bf16.msra.mxu0 %v3502
    %3590 = vmatprep.subr.bf16.mxu0 %v3506
    %3591 = vmatpush1.bf16.msra.mxu0 %v3505
    %3592 = vmatprep.subr.bf16.mxu0 %v3509
    %3593 = vmatpush1.bf16.msra.mxu0 %v3508
    %3594 = vmatprep.subr.bf16.mxu0 %v3512
    %3595 = vmatpush1.bf16.msra.mxu0 %v3511
    %3596 = vmatprep.subr.bf16.mxu0 %v3515
    %3597 = vmatpush1.bf16.msra.mxu0 %v3514
    %3598 = vmatprep.subr.bf16.mxu0 %v3518
    %3599 = vmatpush1.bf16.msra.mxu0 %v3517
    %3600 = vmatprep.mubr.bf16.mxu0 %v2936
    %3601 = vmatmul.mubr.bf16.gmra.mrb[0].mxu0 %v2935
    %v3602 = vpop.f32.mrb[0].mxu0
    %v3603 = vadd.f32 0.0, %v3602
    %v3604 = vpop.f32.mrb[0].mxu0
    %v3605 = vadd.f32 0.0, %v3604
    %v3606 = vpop.f32.mrb[0].mxu0
    %v3607 = vpop.f32.mrb[0].mxu0
    %3608 = vdwg.mxu0
    %3609 = vmatprep.subr.bf16.mxu0 %v3521
    %3610 = vmatpush1.bf16.msra.mxu0 %v3520
    %3611 = vmatprep.subr.bf16.mxu0 %v3524
    %3612 = vmatpush1.bf16.msra.mxu0 %v3523
    %3613 = vmatprep.subr.bf16.mxu0 %v3527
    %3614 = vmatpush1.bf16.msra.mxu0 %v3526
    %3615 = vmatprep.subr.bf16.mxu0 %v3530
    %3616 = vmatpush1.bf16.msra.mxu0 %v3529
    %3617 = vmatprep.subr.bf16.mxu0 %v3533
    %3618 = vmatpush1.bf16.msra.mxu0 %v3532
    %3619 = vmatprep.subr.bf16.mxu0 %v3536
    %3620 = vmatpush1.bf16.msra.mxu0 %v3535
    %3621 = vmatprep.subr.bf16.mxu0 %v3539
    %3622 = vmatpush1.bf16.msra.mxu0 %v3538
    %3623 = vmatprep.subr.bf16.mxu0 %v3542
    %3624 = vmatpush1.bf16.msra.mxu0 %v3541
    %3625 = vmatprep.subr.bf16.mxu0 %v3545
    %3626 = vmatpush1.bf16.msra.mxu0 %v3544
    %3627 = vmatprep.subr.bf16.mxu0 %v3548
    %3628 = vmatpush1.bf16.msra.mxu0 %v3547
    %3629 = vmatprep.subr.bf16.mxu0 %v3551
    %3630 = vmatpush1.bf16.msra.mxu0 %v3550
    %3631 = vmatprep.subr.bf16.mxu0 %v3554
    %3632 = vmatpush1.bf16.msra.mxu0 %v3553
    %3633 = vmatprep.subr.bf16.mxu0 %v3557
    %3634 = vmatpush1.bf16.msra.mxu0 %v3556
    %3635 = vmatprep.subr.bf16.mxu0 %v3560
    %3636 = vmatpush1.bf16.msra.mxu0 %v3559
    %3637 = vmatprep.subr.bf16.mxu0 %v3563
    %3638 = vmatpush1.bf16.msra.mxu0 %v3562
    %3639 = vmatprep.subr.bf16.mxu0 %v3566
    %3640 = vmatpush1.bf16.msra.mxu0 %v3565
    %3641 = vmatprep.mubr.bf16.mxu0 %v2938
    %3642 = vmatmul.mubr.bf16.gmra.mrb[0].mxu0 %v2937
    %v3643 = vpop.f32.mrb[0].mxu0
    %v3644 = vadd.f32 %v3603, %v3643
    %v3645 = vpop.f32.mrb[0].mxu0
    %v3646 = vadd.f32 %v3605, %v3645
    %v3647 = vpop.f32.mrb[0].mxu0
    %v3648 = vpop.f32.mrb[0].mxu0
    %3649 = vdwg.mxu0
    %3650 = vmatprep.subr.bf16.mxu0 0
    %3651 = vmatpush1.bf16.msra.mxu0 %v3474
    %3652 = vmatprep.subr.bf16.mxu0 0
    %3653 = vmatpush1.bf16.msra.mxu0 %v3477
    %3654 = vmatprep.subr.bf16.mxu0 0
    %3655 = vmatpush1.bf16.msra.mxu0 %v3480
    %3656 = vmatprep.subr.bf16.mxu0 0
    %3657 = vmatpush1.bf16.msra.mxu0 %v3483
    %3658 = vmatprep.subr.bf16.mxu0 0
    %3659 = vmatpush1.bf16.msra.mxu0 %v3486
    %3660 = vmatprep.subr.bf16.mxu0 0
    %3661 = vmatpush1.bf16.msra.mxu0 %v3489
    %3662 = vmatprep.subr.bf16.mxu0 0
    %3663 = vmatpush1.bf16.msra.mxu0 %v3492
    %3664 = vmatprep.subr.bf16.mxu0 0
    %3665 = vmatpush1.bf16.msra.mxu0 %v3495
    %3666 = vmatprep.subr.bf16.mxu0 0
    %3667 = vmatpush1.bf16.msra.mxu0 %v3498
    %3668 = vmatprep.subr.bf16.mxu0 0
    %3669 = vmatpush1.bf16.msra.mxu0 %v3501
    %3670 = vmatprep.subr.bf16.mxu0 0
    %3671 = vmatpush1.bf16.msra.mxu0 %v3504
    %3672 = vmatprep.subr.bf16.mxu0 0
    %3673 = vmatpush1.bf16.msra.mxu0 %v3507
    %3674 = vmatprep.subr.bf16.mxu0 0
    %3675 = vmatpush1.bf16.msra.mxu0 %v3510
    %3676 = vmatprep.subr.bf16.mxu0 0
    %3677 = vmatpush1.bf16.msra.mxu0 %v3513
    %3678 = vmatprep.subr.bf16.mxu0 0
    %3679 = vmatpush1.bf16.msra.mxu0 %v3516
    %3680 = vmatprep.subr.bf16.mxu0 0
    %3681 = vmatpush1.bf16.msra.mxu0 %v3519
    %3682 = vmatprep.mubr.bf16.mxu0 %v2936
    %3683 = vmatmul.mubr.bf16.gmra.mrb[0].mxu0 %v2935
    %v3684 = vpop.f32.mrb[0].mxu0
    %v3685 = vadd.f32 0.0, %v3684
    %v3686 = vpop.f32.mrb[0].mxu0
    %v3687 = vpop.f32.mrb[0].mxu0
    %v3688 = vpop.f32.mrb[0].mxu0
    %3689 = vdwg.mxu0
    %3690 = vmatprep.subr.bf16.mxu0 0
    %3691 = vmatpush1.bf16.msra.mxu0 %v3522
    %3692 = vmatprep.subr.bf16.mxu0 0
    %3693 = vmatpush1.bf16.msra.mxu0 %v3525
    %3694 = vmatprep.subr.bf16.mxu0 0
    %3695 = vmatpush1.bf16.msra.mxu0 %v3528
    %3696 = vmatprep.subr.bf16.mxu0 0
    %3697 = vmatpush1.bf16.msra.mxu0 %v3531
    %3698 = vmatprep.subr.bf16.mxu0 0
    %3699 = vmatpush1.bf16.msra.mxu0 %v3534
    %3700 = vmatprep.subr.bf16.mxu0 0
    %3701 = vmatpush1.bf16.msra.mxu0 %v3537
    %3702 = vmatprep.subr.bf16.mxu0 0
    %3703 = vmatpush1.bf16.msra.mxu0 %v3540
    %3704 = vmatprep.subr.bf16.mxu0 0
    %3705 = vmatpush1.bf16.msra.mxu0 %v3543
    %3706 = vmatprep.subr.bf16.mxu0 0
    %3707 = vmatpush1.bf16.msra.mxu0 %v3546
    %3708 = vmatprep.subr.bf16.mxu0 0
    %3709 = vmatpush1.bf16.msra.mxu0 %v3549
    %3710 = vmatprep.subr.bf16.mxu0 0
    %3711 = vmatpush1.bf16.msra.mxu0 %v3552
    %3712 = vmatprep.subr.bf16.mxu0 0
    %3713 = vmatpush1.bf16.msra.mxu0 %v3555
    %3714 = vmatprep.subr.bf16.mxu0 0
    %3715 = vmatpush1.bf16.msra.mxu0 %v3558
    %3716 = vmatprep.subr.bf16.mxu0 0
    %3717 = vmatpush1.bf16.msra.mxu0 %v3561
    %3718 = vmatprep.subr.bf16.mxu0 0
    %3719 = vmatpush1.bf16.msra.mxu0 %v3564
    %3720 = vmatprep.subr.bf16.mxu0 0
    %3721 = vmatpush1.bf16.msra.mxu0 %v3567
    %3722 = vmatprep.mubr.bf16.mxu0 %v2938
    %3723 = vmatmul.mubr.bf16.gmra.mrb[0].mxu0 %v2937
    %v3724 = vpop.f32.mrb[0].mxu0
    %v3725 = vadd.f32 %v3685, %v3724
    %v3726 = vpop.f32.mrb[0].mxu0
    %v3727 = vpop.f32.mrb[0].mxu0
    %v3728 = vpop.f32.mrb[0].mxu0
    %3729 = vdwg.mxu0
    %v3730 = vadd.f32 %v3385, %v3644
    %v3731 = vadd.f32 %v3387, %v3646
    %v3732 = vadd.f32 %v3466, %v3725
    %s3733 = scalar_lea.vmem [#allocation4], 2304
    %v3734 = vld [vmem:[%s3733] sm:$0xff]
    %v3735 = vld [vmem:[%s3733 + $0x8] sm:$0xff]
    %v3736 = vld [vmem:[%s3733 + $0x10] sm:$0xff]
    %v3737 = vld [vmem:[%s3733 + $0x18] sm:$0xff]
    %v3738 = vld [vmem:[%s3733 + $0x20] sm:$0xff]
    %v3739 = vld [vmem:[%s3733 + $0x28] sm:$0xff]
    %v3740 = vld [vmem:[%s3733 + $0x30] sm:$0xff]
    %v3741 = vld [vmem:[%s3733 + $0x38] sm:$0xff]
    %v3742 = vld [vmem:[%s3733 + $0x40] sm:$0xff]
    %v3743 = vld [vmem:[%s3733 + $0x48] sm:$0xff]
    %v3744 = vld [vmem:[%s3733 + $0x50] sm:$0xff]
    %v3745 = vld [vmem:[%s3733 + $0x58] sm:$0xff]
    %v3746 = vld [vmem:[%s3733 + $0x60] sm:$0xff]
    %v3747 = vld [vmem:[%s3733 + $0x68] sm:$0xff]
    %v3748 = vld [vmem:[%s3733 + $0x70] sm:$0xff]
    %v3749 = vld [vmem:[%s3733 + $0x78] sm:$0xff]
    %v3750 = vld [vmem:[%s3733 + $0x80] sm:$0xff]
    %v3751 = vld [vmem:[%s3733 + $0x88] sm:$0xff]
    %v3752 = vld [vmem:[%s3733 + $0x90] sm:$0xff]
    %v3753 = vld [vmem:[%s3733 + $0x98] sm:$0xff]
    %v3754 = vld [vmem:[%s3733 + $0xa0] sm:$0xff]
    %v3755 = vld [vmem:[%s3733 + $0xa8] sm:$0xff]
    %v3756 = vld [vmem:[%s3733 + $0xb0] sm:$0xff]
    %v3757 = vld [vmem:[%s3733 + $0xb8] sm:$0xff]
    %v3758 = vld [vmem:[%s3733 + $0xc0] sm:$0xff]
    %v3759 = vld [vmem:[%s3733 + $0xc8] sm:$0xff]
    %v3760 = vld [vmem:[%s3733 + $0xd0] sm:$0xff]
    %v3761 = vld [vmem:[%s3733 + $0xd8] sm:$0xff]
    %v3762 = vld [vmem:[%s3733 + $0xe0] sm:$0xff]
    %v3763 = vld [vmem:[%s3733 + $0xe8] sm:$0xff]
    %v3764 = vld [vmem:[%s3733 + $0xf0] sm:$0xff]
    %v3765 = vld [vmem:[%s3733 + $0xf8] sm:$0xff]
    %v3766 = vld [vmem:[%s3733 + $0x100] sm:$0xff]
    %v3767 = vld [vmem:[%s3733 + $0x108] sm:$0xff]
    %v3768 = vld [vmem:[%s3733 + $0x110] sm:$0xff]
    %v3769 = vld [vmem:[%s3733 + $0x118] sm:$0xff]
    %v3770 = vld [vmem:[%s3733 + $0x120] sm:$0xff]
    %v3771 = vld [vmem:[%s3733 + $0x128] sm:$0xff]
    %v3772 = vld [vmem:[%s3733 + $0x130] sm:$0xff]
    %v3773 = vld [vmem:[%s3733 + $0x138] sm:$0xff]
    %v3774 = vld [vmem:[%s3733 + $0x140] sm:$0xff]
    %v3775 = vld [vmem:[%s3733 + $0x148] sm:$0xff]
    %v3776 = vld [vmem:[%s3733 + $0x150] sm:$0xff]
    %v3777 = vld [vmem:[%s3733 + $0x158] sm:$0xff]
    %v3778 = vld [vmem:[%s3733 + $0x160] sm:$0xff]
    %v3779 = vld [vmem:[%s3733 + $0x168] sm:$0xff]
    %v3780 = vld [vmem:[%s3733 + $0x170] sm:$0xff]
    %v3781 = vld [vmem:[%s3733 + $0x178] sm:$0xff]
    %v3782 = vld [vmem:[%s3733 + $0x180] sm:$0xff]
    %v3783 = vld [vmem:[%s3733 + $0x188] sm:$0xff]
    %v3784 = vld [vmem:[%s3733 + $0x190] sm:$0xff]
    %v3785 = vld [vmem:[%s3733 + $0x198] sm:$0xff]
    %v3786 = vld [vmem:[%s3733 + $0x1a0] sm:$0xff]
    %v3787 = vld [vmem:[%s3733 + $0x1a8] sm:$0xff]
    %v3788 = vld [vmem:[%s3733 + $0x1b0] sm:$0xff]
    %v3789 = vld [vmem:[%s3733 + $0x1b8] sm:$0xff]
    %v3790 = vld [vmem:[%s3733 + $0x1c0] sm:$0xff]
    %v3791 = vld [vmem:[%s3733 + $0x1c8] sm:$0xff]
    %v3792 = vld [vmem:[%s3733 + $0x1d0] sm:$0xff]
    %v3793 = vld [vmem:[%s3733 + $0x1d8] sm:$0xff]
    %v3794 = vld [vmem:[%s3733 + $0x1e0] sm:$0xff]
    %v3795 = vld [vmem:[%s3733 + $0x1e8] sm:$0xff]
    %v3796 = vld [vmem:[%s3733 + $0x1f0] sm:$0xff]
    %v3797 = vld [vmem:[%s3733 + $0x1f8] sm:$0xff]
    %v3798 = vld [vmem:[%s3733 + $0x200] sm:$0xff]
    %v3799 = vld [vmem:[%s3733 + $0x208] sm:$0xff]
    %v3800 = vld [vmem:[%s3733 + $0x210] sm:$0xff]
    %v3801 = vld [vmem:[%s3733 + $0x218] sm:$0xff]
    %v3802 = vld [vmem:[%s3733 + $0x220] sm:$0xff]
    %v3803 = vld [vmem:[%s3733 + $0x228] sm:$0xff]
    %v3804 = vld [vmem:[%s3733 + $0x230] sm:$0xff]
    %v3805 = vld [vmem:[%s3733 + $0x238] sm:$0xff]
    %v3806 = vld [vmem:[%s3733 + $0x240] sm:$0xff]
    %v3807 = vld [vmem:[%s3733 + $0x248] sm:$0xff]
    %v3808 = vld [vmem:[%s3733 + $0x250] sm:$0xff]
    %v3809 = vld [vmem:[%s3733 + $0x258] sm:$0xff]
    %v3810 = vld [vmem:[%s3733 + $0x260] sm:$0xff]
    %v3811 = vld [vmem:[%s3733 + $0x268] sm:$0xff]
    %v3812 = vld [vmem:[%s3733 + $0x270] sm:$0xff]
    %v3813 = vld [vmem:[%s3733 + $0x278] sm:$0xff]
    %v3814 = vld [vmem:[%s3733 + $0x280] sm:$0xff]
    %v3815 = vld [vmem:[%s3733 + $0x288] sm:$0xff]
    %v3816 = vld [vmem:[%s3733 + $0x290] sm:$0xff]
    %v3817 = vld [vmem:[%s3733 + $0x298] sm:$0xff]
    %v3818 = vld [vmem:[%s3733 + $0x2a0] sm:$0xff]
    %v3819 = vld [vmem:[%s3733 + $0x2a8] sm:$0xff]
    %v3820 = vld [vmem:[%s3733 + $0x2b0] sm:$0xff]
    %v3821 = vld [vmem:[%s3733 + $0x2b8] sm:$0xff]
    %v3822 = vld [vmem:[%s3733 + $0x2c0] sm:$0xff]
    %v3823 = vld [vmem:[%s3733 + $0x2c8] sm:$0xff]
    %v3824 = vld [vmem:[%s3733 + $0x2d0] sm:$0xff]
    %v3825 = vld [vmem:[%s3733 + $0x2d8] sm:$0xff]
    %v3826 = vld [vmem:[%s3733 + $0x2e0] sm:$0xff]
    %v3827 = vld [vmem:[%s3733 + $0x2e8] sm:$0xff]
    %v3828 = vld [vmem:[%s3733 + $0x2f0] sm:$0xff]
    %v3829 = vld [vmem:[%s3733 + $0x2f8] sm:$0xff]
    %v3834 = vrot.slane %v2935, 4
    %v3835 = vrot.slane %v2936, 4
    %v3836 = vrot.slane %v2937, 4
    %v3837 = vrot.slane %v2938, 4
    %3842 = vmatprep.subr.bf16.mxu0 %v3735
    %3843 = vmatpush1.bf16.msra.mxu0 %v3734
    %3844 = vmatprep.subr.bf16.mxu0 %v3738
    %3845 = vmatpush1.bf16.msra.mxu0 %v3737
    %3846 = vmatprep.subr.bf16.mxu0 %v3741
    %3847 = vmatpush1.bf16.msra.mxu0 %v3740
    %3848 = vmatprep.subr.bf16.mxu0 %v3744
    %3849 = vmatpush1.bf16.msra.mxu0 %v3743
    %3850 = vmatprep.subr.bf16.mxu0 %v3747
    %3851 = vmatpush1.bf16.msra.mxu0 %v3746
    %3852 = vmatprep.subr.bf16.mxu0 %v3750
    %3853 = vmatpush1.bf16.msra.mxu0 %v3749
    %3854 = vmatprep.subr.bf16.mxu0 %v3753
    %3855 = vmatpush1.bf16.msra.mxu0 %v3752
    %3856 = vmatprep.subr.bf16.mxu0 %v3756
    %3857 = vmatpush1.bf16.msra.mxu0 %v3755
    %3858 = vmatprep.subr.bf16.mxu0 %v3759
    %3859 = vmatpush1.bf16.msra.mxu0 %v3758
    %3860 = vmatprep.subr.bf16.mxu0 %v3762
    %3861 = vmatpush1.bf16.msra.mxu0 %v3761
    %3862 = vmatprep.subr.bf16.mxu0 %v3765
    %3863 = vmatpush1.bf16.msra.mxu0 %v3764
    %3864 = vmatprep.subr.bf16.mxu0 %v3768
    %3865 = vmatpush1.bf16.msra.mxu0 %v3767
    %3866 = vmatprep.subr.bf16.mxu0 %v3771
    %3867 = vmatpush1.bf16.msra.mxu0 %v3770
    %3868 = vmatprep.subr.bf16.mxu0 %v3774
    %3869 = vmatpush1.bf16.msra.mxu0 %v3773
    %3870 = vmatprep.subr.bf16.mxu0 %v3777
    %3871 = vmatpush1.bf16.msra.mxu0 %v3776
    %3872 = vmatprep.subr.bf16.mxu0 %v3780
    %3873 = vmatpush1.bf16.msra.mxu0 %v3779
    %3874 = vmatprep.mubr.bf16.mxu0 %v3835
    %3875 = vmatmul.mubr.bf16.gmra.mrb[0].mxu0 %v3834
    %v3876 = vpop.f32.mrb[0].mxu0
    %v3877 = vadd.f32 0.0, %v3876
    %v3878 = vpop.f32.mrb[0].mxu0
    %v3879 = vadd.f32 0.0, %v3878
    %v3880 = vpop.f32.mrb[0].mxu0
    %v3881 = vpop.f32.mrb[0].mxu0
    %3882 = vdwg.mxu0
    %3883 = vmatprep.subr.bf16.mxu0 %v3783
    %3884 = vmatpush1.bf16.msra.mxu0 %v3782
    %3885 = vmatprep.subr.bf16.mxu0 %v3786
    %3886 = vmatpush1.bf16.msra.mxu0 %v3785
    %3887 = vmatprep.subr.bf16.mxu0 %v3789
    %3888 = vmatpush1.bf16.msra.mxu0 %v3788
    %3889 = vmatprep.subr.bf16.mxu0 %v3792
    %3890 = vmatpush1.bf16.msra.mxu0 %v3791
    %3891 = vmatprep.subr.bf16.mxu0 %v3795
    %3892 = vmatpush1.bf16.msra.mxu0 %v3794
    %3893 = vmatprep.subr.bf16.mxu0 %v3798
    %3894 = vmatpush1.bf16.msra.mxu0 %v3797
    %3895 = vmatprep.subr.bf16.mxu0 %v3801
    %3896 = vmatpush1.bf16.msra.mxu0 %v3800
    %3897 = vmatprep.subr.bf16.mxu0 %v3804
    %3898 = vmatpush1.bf16.msra.mxu0 %v3803
    %3899 = vmatprep.subr.bf16.mxu0 %v3807
    %3900 = vmatpush1.bf16.msra.mxu0 %v3806
    %3901 = vmatprep.subr.bf16.mxu0 %v3810
    %3902 = vmatpush1.bf16.msra.mxu0 %v3809
    %3903 = vmatprep.subr.bf16.mxu0 %v3813
    %3904 = vmatpush1.bf16.msra.mxu0 %v3812
    %3905 = vmatprep.subr.bf16.mxu0 %v3816
    %3906 = vmatpush1.bf16.msra.mxu0 %v3815
    %3907 = vmatprep.subr.bf16.mxu0 %v3819
    %3908 = vmatpush1.bf16.msra.mxu0 %v3818
    %3909 = vmatprep.subr.bf16.mxu0 %v3822
    %3910 = vmatpush1.bf16.msra.mxu0 %v3821
    %3911 = vmatprep.subr.bf16.mxu0 %v3825
    %3912 = vmatpush1.bf16.msra.mxu0 %v3824
    %3913 = vmatprep.subr.bf16.mxu0 %v3828
    %3914 = vmatpush1.bf16.msra.mxu0 %v3827
    %3915 = vmatprep.mubr.bf16.mxu0 %v3837
    %3916 = vmatmul.mubr.bf16.gmra.mrb[0].mxu0 %v3836
    %v3917 = vpop.f32.mrb[0].mxu0
    %v3918 = vadd.f32 %v3877, %v3917
    %v3919 = vpop.f32.mrb[0].mxu0
    %v3920 = vadd.f32 %v3879, %v3919
    %v3921 = vpop.f32.mrb[0].mxu0
    %v3922 = vpop.f32.mrb[0].mxu0
    %3923 = vdwg.mxu0
    %3924 = vmatprep.subr.bf16.mxu0 0
    %3925 = vmatpush1.bf16.msra.mxu0 %v3736
    %3926 = vmatprep.subr.bf16.mxu0 0
    %3927 = vmatpush1.bf16.msra.mxu0 %v3739
    %3928 = vmatprep.subr.bf16.mxu0 0
    %3929 = vmatpush1.bf16.msra.mxu0 %v3742
    %3930 = vmatprep.subr.bf16.mxu0 0
    %3931 = vmatpush1.bf16.msra.mxu0 %v3745
    %3932 = vmatprep.subr.bf16.mxu0 0
    %3933 = vmatpush1.bf16.msra.mxu0 %v3748
    %3934 = vmatprep.subr.bf16.mxu0 0
    %3935 = vmatpush1.bf16.msra.mxu0 %v3751
    %3936 = vmatprep.subr.bf16.mxu0 0
    %3937 = vmatpush1.bf16.msra.mxu0 %v3754
    %3938 = vmatprep.subr.bf16.mxu0 0
    %3939 = vmatpush1.bf16.msra.mxu0 %v3757
    %3940 = vmatprep.subr.bf16.mxu0 0
    %3941 = vmatpush1.bf16.msra.mxu0 %v3760
    %3942 = vmatprep.subr.bf16.mxu0 0
    %3943 = vmatpush1.bf16.msra.mxu0 %v3763
    %3944 = vmatprep.subr.bf16.mxu0 0
    %3945 = vmatpush1.bf16.msra.mxu0 %v3766
    %3946 = vmatprep.subr.bf16.mxu0 0
    %3947 = vmatpush1.bf16.msra.mxu0 %v3769
    %3948 = vmatprep.subr.bf16.mxu0 0
    %3949 = vmatpush1.bf16.msra.mxu0 %v3772
    %3950 = vmatprep.subr.bf16.mxu0 0
    %3951 = vmatpush1.bf16.msra.mxu0 %v3775
    %3952 = vmatprep.subr.bf16.mxu0 0
    %3953 = vmatpush1.bf16.msra.mxu0 %v3778
    %3954 = vmatprep.subr.bf16.mxu0 0
    %3955 = vmatpush1.bf16.msra.mxu0 %v3781
    %3956 = vmatprep.mubr.bf16.mxu0 %v3835
    %3957 = vmatmul.mubr.bf16.gmra.mrb[0].mxu0 %v3834
    %v3958 = vpop.f32.mrb[0].mxu0
    %v3959 = vadd.f32 0.0, %v3958
    %v3960 = vpop.f32.mrb[0].mxu0
    %v3961 = vpop.f32.mrb[0].mxu0
    %v3962 = vpop.f32.mrb[0].mxu0
    %3963 = vdwg.mxu0
    %3964 = vmatprep.subr.bf16.mxu0 0
    %3965 = vmatpush1.bf16.msra.mxu0 %v3784
    %3966 = vmatprep.subr.bf16.mxu0 0
    %3967 = vmatpush1.bf16.msra.mxu0 %v3787
    %3968 = vmatprep.subr.bf16.mxu0 0
    %3969 = vmatpush1.bf16.msra.mxu0 %v3790
    %3970 = vmatprep.subr.bf16.mxu0 0
    %3971 = vmatpush1.bf16.msra.mxu0 %v3793
    %3972 = vmatprep.subr.bf16.mxu0 0
    %3973 = vmatpush1.bf16.msra.mxu0 %v3796
    %3974 = vmatprep.subr.bf16.mxu0 0
    %3975 = vmatpush1.bf16.msra.mxu0 %v3799
    %3976 = vmatprep.subr.bf16.mxu0 0
    %3977 = vmatpush1.bf16.msra.mxu0 %v3802
    %3978 = vmatprep.subr.bf16.mxu0 0
    %3979 = vmatpush1.bf16.msra.mxu0 %v3805
    %3980 = vmatprep.subr.bf16.mxu0 0
    %3981 = vmatpush1.bf16.msra.mxu0 %v3808
    %3982 = vmatprep.subr.bf16.mxu0 0
    %3983 = vmatpush1.bf16.msra.mxu0 %v3811
    %3984 = vmatprep.subr.bf16.mxu0 0
    %3985 = vmatpush1.bf16.msra.mxu0 %v3814
    %3986 = vmatprep.subr.bf16.mxu0 0
    %3987 = vmatpush1.bf16.msra.mxu0 %v3817
    %3988 = vmatprep.subr.bf16.mxu0 0
    %3989 = vmatpush1.bf16.msra.mxu0 %v3820
    %3990 = vmatprep.subr.bf16.mxu0 0
    %3991 = vmatpush1.bf16.msra.mxu0 %v3823
    %3992 = vmatprep.subr.bf16.mxu0 0
    %3993 = vmatpush1.bf16.msra.mxu0 %v3826
    %3994 = vmatprep.subr.bf16.mxu0 0
    %3995 = vmatpush1.bf16.msra.mxu0 %v3829
    %3996 = vmatprep.mubr.bf16.mxu0 %v3837
    %3997 = vmatmul.mubr.bf16.gmra.mrb[0].mxu0 %v3836
    %v3998 = vpop.f32.mrb[0].mxu0
    %v3999 = vadd.f32 %v3959, %v3998
    %v4000 = vpop.f32.mrb[0].mxu0
    %v4001 = vpop.f32.mrb[0].mxu0
    %v4002 = vpop.f32.mrb[0].mxu0
    %4003 = vdwg.mxu0
    %v4004 = vadd.f32 %v3730, %v3918
    %v4005 = vadd.f32 %v3731, %v3920
    %v4006 = vadd.f32 %v3732, %v3999
    %v4007 = vld [vmem:[#allocation16] sm:$0x7]
    %v4009 = vlaneseq
    %v4010 = vshrl.u32 %v4009, 7
    %v4011 = vsub.s32 0, %v4010
    %v4012 = vrot.slane %v4007, %v4011
    %v4013 = vlaneseq
    %v4014 = vshrl.u32 %v4013, 7
    %v4015 = vsub.s32 1, %v4014
    %v4016 = vrot.slane %v4007, %v4015
    %v4017 = vlaneseq
    %v4018 = vshrl.u32 %v4017, 7
    %v4019 = vsub.s32 2, %v4018
    %v4020 = vrot.slane %v4007, %v4019
    %v4024 = vadd.f32 %v4004, %v4012
    %v4025 = vadd.f32 %v4005, %v4016
    %v4026 = vadd.f32 %v4006, %v4020
    %v4027 = vmax.f32 %v4024, 0.0
    %v4028 = vmax.f32 %v4025, 0.0
    %v4029 = vmax.f32 %v4026, 0.0
    %v4030 = vld [vmem:[%s11] sm:$0xf]
    %v4031 = vld [vmem:[%s11 + $0x4] sm:$0xf]
    %v4032 = vld [vmem:[%s11 + $0x8] sm:$0xf]
    %v4033 = vpack.c.bf16 %v4027, %v4027
    %v4034 = vpack.c.bf16 %v4028, %v4028
    %v4035 = vpack.c.bf16 %v4029, %v4029
    %v4039 = vunpack.c.l.b16 %v4030
    %v4040 = vunpack.c.l.b16 %v4031
    %v4041 = vunpack.c.l.b16 %v4032
    %v4042 = vpack.c.b16 %v4040, %v4039
    %v4043 = vpack.c.b16 %v4041, %v4041
    %vm4044 = vcmask 64512
    %v4046 = vsel %vm4044, %v4042, 0
    %v4049 = vsel %vm4044, %v4043, 0
    %v4052 = vsel %vm573, %v4033, 0
    %v4055 = vsel %vm573, %v4034, 0
    %v4058 = vsel %vm573, %v4035, 0
    %4060 = vmatprep.subr.bf16.mxu0 %v4055
    %4061 = vmatpush1.bf16.msra.mxu0 %v4052
    %4062 = vmatprep.subr.bf16.mxu0 0
    %4063 = vmatpush1.bf16.msra.mxu0 0
    %4064 = vmatprep.subr.bf16.mxu0 0
    %4065 = vmatpush1.bf16.msra.mxu0 0
    %4066 = vmatprep.subr.bf16.mxu0 0
    %4067 = vmatpush1.bf16.msra.mxu0 0
    %4068 = vmatprep.subr.bf16.mxu0 0
    %4069 = vmatpush1.bf16.msra.mxu0 0
    %4070 = vmatprep.subr.bf16.mxu0 0
    %4071 = vmatpush1.bf16.msra.mxu0 0
    %4072 = vmatprep.subr.bf16.mxu0 0
    %4073 = vmatpush1.bf16.msra.mxu0 0
    %4074 = vmatprep.subr.bf16.mxu0 0
    %4075 = vmatpush1.bf16.msra.mxu0 0
    %4076 = vmatprep.subr.bf16.mxu0 0
    %4077 = vmatpush1.bf16.msra.mxu0 0
    %4078 = vmatprep.subr.bf16.mxu0 0
    %4079 = vmatpush1.bf16.msra.mxu0 0
    %4080 = vmatprep.subr.bf16.mxu0 0
    %4081 = vmatpush1.bf16.msra.mxu0 0
    %4082 = vmatprep.subr.bf16.mxu0 0
    %4083 = vmatpush1.bf16.msra.mxu0 0
    %4084 = vmatprep.subr.bf16.mxu0 0
    %4085 = vmatpush1.bf16.msra.mxu0 0
    %4086 = vmatprep.subr.bf16.mxu0 0
    %4087 = vmatpush1.bf16.msra.mxu0 0
    %4088 = vmatprep.subr.bf16.mxu0 0
    %4089 = vmatpush1.bf16.msra.mxu0 0
    %4090 = vmatprep.subr.bf16.mxu0 0
    %4091 = vmatpush1.bf16.msra.mxu0 0
    %4092 = vmatprep.mubr.bf16.mxu0 0
    %4093 = vmatmul.mubr.bf16.gmra.mrb[0].mxu0 %v4046
    %v4094 = vpop.f32.mrb[0].mxu0
    %v4095 = vadd.f32 0.0, %v4094
    %v4096 = vpop.f32.mrb[0].mxu0
    %v4097 = vadd.f32 0.0, %v4096
    %v4098 = vpop.f32.mrb[0].mxu0
    %v4099 = vadd.f32 0.0, %v4098
    %v4100 = vpop.f32.mrb[0].mxu0
    %v4101 = vadd.f32 0.0, %v4100
    %4102 = vmatprep.mubr.bf16.mxu0 0
    %4103 = vmatmul.mubr.bf16.gmra.mrb[0].mxu0 %v4049
    %v4104 = vpop.f32.mrb[0].mxu0
    %v4105 = vadd.f32 0.0, %v4104
    %v4106 = vpop.f32.mrb[0].mxu0
    %v4107 = vadd.f32 0.0, %v4106
    %v4108 = vpop.f32.mrb[0].mxu0
    %v4109 = vpop.f32.mrb[0].mxu0
    %4110 = vdwg.mxu0
    %4111 = vmatprep.subr.bf16.mxu0 0
    %4112 = vmatpush1.bf16.msra.mxu0 %v4058
    %4113 = vmatprep.subr.bf16.mxu0 0
    %4114 = vmatpush1.bf16.msra.mxu0 0
    %4115 = vmatprep.subr.bf16.mxu0 0
    %4116 = vmatpush1.bf16.msra.mxu0 0
    %4117 = vmatprep.subr.bf16.mxu0 0
    %4118 = vmatpush1.bf16.msra.mxu0 0
    %4119 = vmatprep.subr.bf16.mxu0 0
    %4120 = vmatpush1.bf16.msra.mxu0 0
    %4121 = vmatprep.subr.bf16.mxu0 0
    %4122 = vmatpush1.bf16.msra.mxu0 0
    %4123 = vmatprep.subr.bf16.mxu0 0
    %4124 = vmatpush1.bf16.msra.mxu0 0
    %4125 = vmatprep.subr.bf16.mxu0 0
    %4126 = vmatpush1.bf16.msra.mxu0 0
    %4127 = vmatprep.subr.bf16.mxu0 0
    %4128 = vmatpush1.bf16.msra.mxu0 0
    %4129 = vmatprep.subr.bf16.mxu0 0
    %4130 = vmatpush1.bf16.msra.mxu0 0
    %4131 = vmatprep.subr.bf16.mxu0 0
    %4132 = vmatpush1.bf16.msra.mxu0 0
    %4133 = vmatprep.subr.bf16.mxu0 0
    %4134 = vmatpush1.bf16.msra.mxu0 0
    %4135 = vmatprep.subr.bf16.mxu0 0
    %4136 = vmatpush1.bf16.msra.mxu0 0
    %4137 = vmatprep.subr.bf16.mxu0 0
    %4138 = vmatpush1.bf16.msra.mxu0 0
    %4139 = vmatprep.subr.bf16.mxu0 0
    %4140 = vmatpush1.bf16.msra.mxu0 0
    %4141 = vmatprep.subr.bf16.mxu0 0
    %4142 = vmatpush1.bf16.msra.mxu0 0
    %4143 = vmatprep.mubr.bf16.mxu0 0
    %4144 = vmatmul.mubr.bf16.gmra.mrb[0].mxu0 %v4046
    %v4145 = vpop.f32.mrb[0].mxu0
    %v4146 = vadd.f32 0.0, %v4145
    %v4147 = vpop.f32.mrb[0].mxu0
    %v4148 = vpop.f32.mrb[0].mxu0
    %v4149 = vadd.f32 0.0, %v4148
    %v4150 = vpop.f32.mrb[0].mxu0
    %4151 = vmatprep.mubr.bf16.mxu0 0
    %4152 = vmatmul.mubr.bf16.gmra.mrb[0].mxu0 %v4049
    %v4153 = vpop.f32.mrb[0].mxu0
    %v4154 = vadd.f32 0.0, %v4153
    %v4155 = vpop.f32.mrb[0].mxu0
    %v4156 = vpop.f32.mrb[0].mxu0
    %v4157 = vpop.f32.mrb[0].mxu0
    %4158 = vdwg.mxu0
    %v4159 = vpack.c.bf16 %v4099, %v4095
    %v4160 = vpack.c.bf16 %v4101, %v4097
    %v4161 = vpack.c.bf16 %v4149, %v4146
    %v4162 = vpack.c.bf16 %v4105, %v4105
    %v4163 = vpack.c.bf16 %v4107, %v4107
    %v4164 = vpack.c.bf16 %v4154, %v4154
    %s4165 = smul.u32 4, 3
    %s4166 = smul.u32 %s4165, 48
    %s4167 = smul.u32 %s4166, 2
    %s4168 = sshll.u32 %s4167, 4
    %4169 = dma.done %s317, %s4168
    %v4170 = vld [vmem:[#allocation5] sm:$0xff]
    %v4171 = vld [vmem:[#allocation5 + $0x8] sm:$0xff]
    %v4172 = vld [vmem:[#allocation5 + $0x10] sm:$0xff]
    %v4173 = vld [vmem:[#allocation5 + $0x18] sm:$0xff]
    %v4174 = vld [vmem:[#allocation5 + $0x20] sm:$0xff]
    %v4175 = vld [vmem:[#allocation5 + $0x28] sm:$0xff]
    %v4176 = vld [vmem:[#allocation5 + $0x30] sm:$0xff]
    %v4177 = vld [vmem:[#allocation5 + $0x38] sm:$0xff]
    %v4178 = vld [vmem:[#allocation5 + $0x40] sm:$0xff]
    %v4179 = vld [vmem:[#allocation5 + $0x48] sm:$0xff]
    %v4180 = vld [vmem:[#allocation5 + $0x50] sm:$0xff]
    %v4181 = vld [vmem:[#allocation5 + $0x58] sm:$0xff]
    %v4182 = vld [vmem:[#allocation5 + $0x60] sm:$0xff]
    %v4183 = vld [vmem:[#allocation5 + $0x68] sm:$0xff]
    %v4184 = vld [vmem:[#allocation5 + $0x70] sm:$0xff]
    %v4185 = vld [vmem:[#allocation5 + $0x78] sm:$0xff]
    %v4186 = vld [vmem:[#allocation5 + $0x80] sm:$0xff]
    %v4187 = vld [vmem:[#allocation5 + $0x88] sm:$0xff]
    %v4188 = vld [vmem:[#allocation5 + $0x90] sm:$0xff]
    %v4189 = vld [vmem:[#allocation5 + $0x98] sm:$0xff]
    %v4190 = vld [vmem:[#allocation5 + $0xa0] sm:$0xff]
    %v4191 = vld [vmem:[#allocation5 + $0xa8] sm:$0xff]
    %v4192 = vld [vmem:[#allocation5 + $0xb0] sm:$0xff]
    %v4193 = vld [vmem:[#allocation5 + $0xb8] sm:$0xff]
    %v4194 = vld [vmem:[#allocation5 + $0xc0] sm:$0xff]
    %v4195 = vld [vmem:[#allocation5 + $0xc8] sm:$0xff]
    %v4196 = vld [vmem:[#allocation5 + $0xd0] sm:$0xff]
    %v4197 = vld [vmem:[#allocation5 + $0xd8] sm:$0xff]
    %v4198 = vld [vmem:[#allocation5 + $0xe0] sm:$0xff]
    %v4199 = vld [vmem:[#allocation5 + $0xe8] sm:$0xff]
    %v4200 = vld [vmem:[#allocation5 + $0xf0] sm:$0xff]
    %v4201 = vld [vmem:[#allocation5 + $0xf8] sm:$0xff]
    %v4202 = vld [vmem:[#allocation5 + $0x100] sm:$0xff]
    %v4203 = vld [vmem:[#allocation5 + $0x108] sm:$0xff]
    %v4204 = vld [vmem:[#allocation5 + $0x110] sm:$0xff]
    %v4205 = vld [vmem:[#allocation5 + $0x118] sm:$0xff]
    %v4206 = vld [vmem:[#allocation5 + $0x120] sm:$0xff]
    %v4207 = vld [vmem:[#allocation5 + $0x128] sm:$0xff]
    %v4208 = vld [vmem:[#allocation5 + $0x130] sm:$0xff]
    %v4209 = vld [vmem:[#allocation5 + $0x138] sm:$0xff]
    %v4210 = vld [vmem:[#allocation5 + $0x140] sm:$0xff]
    %v4211 = vld [vmem:[#allocation5 + $0x148] sm:$0xff]
    %v4212 = vld [vmem:[#allocation5 + $0x150] sm:$0xff]
    %v4213 = vld [vmem:[#allocation5 + $0x158] sm:$0xff]
    %v4214 = vld [vmem:[#allocation5 + $0x160] sm:$0xff]
    %v4215 = vld [vmem:[#allocation5 + $0x168] sm:$0xff]
    %v4216 = vld [vmem:[#allocation5 + $0x170] sm:$0xff]
    %v4217 = vld [vmem:[#allocation5 + $0x178] sm:$0xff]
    %s4218 = scalar_lea.vmem [#allocation5], 384
    %v4219 = vld [vmem:[%s4218] sm:$0xff]
    %v4220 = vld [vmem:[%s4218 + $0x8] sm:$0xff]
    %v4221 = vld [vmem:[%s4218 + $0x10] sm:$0xff]
    %v4222 = vld [vmem:[%s4218 + $0x18] sm:$0xff]
    %v4223 = vld [vmem:[%s4218 + $0x20] sm:$0xff]
    %v4224 = vld [vmem:[%s4218 + $0x28] sm:$0xff]
    %v4225 = vld [vmem:[%s4218 + $0x30] sm:$0xff]
    %v4226 = vld [vmem:[%s4218 + $0x38] sm:$0xff]
    %v4227 = vld [vmem:[%s4218 + $0x40] sm:$0xff]
    %v4228 = vld [vmem:[%s4218 + $0x48] sm:$0xff]
    %v4229 = vld [vmem:[%s4218 + $0x50] sm:$0xff]
    %v4230 = vld [vmem:[%s4218 + $0x58] sm:$0xff]
    %v4231 = vld [vmem:[%s4218 + $0x60] sm:$0xff]
    %v4232 = vld [vmem:[%s4218 + $0x68] sm:$0xff]
    %v4233 = vld [vmem:[%s4218 + $0x70] sm:$0xff]
    %v4234 = vld [vmem:[%s4218 + $0x78] sm:$0xff]
    %v4235 = vld [vmem:[%s4218 + $0x80] sm:$0xff]
    %v4236 = vld [vmem:[%s4218 + $0x88] sm:$0xff]
    %v4237 = vld [vmem:[%s4218 + $0x90] sm:$0xff]
    %v4238 = vld [vmem:[%s4218 + $0x98] sm:$0xff]
    %v4239 = vld [vmem:[%s4218 + $0xa0] sm:$0xff]
    %v4240 = vld [vmem:[%s4218 + $0xa8] sm:$0xff]
    %v4241 = vld [vmem:[%s4218 + $0xb0] sm:$0xff]
    %v4242 = vld [vmem:[%s4218 + $0xb8] sm:$0xff]
    %v4243 = vld [vmem:[%s4218 + $0xc0] sm:$0xff]
    %v4244 = vld [vmem:[%s4218 + $0xc8] sm:$0xff]
    %v4245 = vld [vmem:[%s4218 + $0xd0] sm:$0xff]
    %v4246 = vld [vmem:[%s4218 + $0xd8] sm:$0xff]
    %v4247 = vld [vmem:[%s4218 + $0xe0] sm:$0xff]
    %v4248 = vld [vmem:[%s4218 + $0xe8] sm:$0xff]
    %v4249 = vld [vmem:[%s4218 + $0xf0] sm:$0xff]
    %v4250 = vld [vmem:[%s4218 + $0xf8] sm:$0xff]
    %v4251 = vld [vmem:[%s4218 + $0x100] sm:$0xff]
    %v4252 = vld [vmem:[%s4218 + $0x108] sm:$0xff]
    %v4253 = vld [vmem:[%s4218 + $0x110] sm:$0xff]
    %v4254 = vld [vmem:[%s4218 + $0x118] sm:$0xff]
    %v4255 = vld [vmem:[%s4218 + $0x120] sm:$0xff]
    %v4256 = vld [vmem:[%s4218 + $0x128] sm:$0xff]
    %v4257 = vld [vmem:[%s4218 + $0x130] sm:$0xff]
    %v4258 = vld [vmem:[%s4218 + $0x138] sm:$0xff]
    %v4259 = vld [vmem:[%s4218 + $0x140] sm:$0xff]
    %v4260 = vld [vmem:[%s4218 + $0x148] sm:$0xff]
    %v4261 = vld [vmem:[%s4218 + $0x150] sm:$0xff]
    %v4262 = vld [vmem:[%s4218 + $0x158] sm:$0xff]
    %v4263 = vld [vmem:[%s4218 + $0x160] sm:$0xff]
    %v4264 = vld [vmem:[%s4218 + $0x168] sm:$0xff]
    %v4265 = vld [vmem:[%s4218 + $0x170] sm:$0xff]
    %v4266 = vld [vmem:[%s4218 + $0x178] sm:$0xff]
    %v4270 = vrot.slane %v4159, 4
    %v4271 = vrot.slane %v4160, 4
    %v4272 = vrot.slane %v4161, 4
    %4276 = vmatprep.subr.bf16.mxu0 %v4220
    %4277 = vmatpush1.bf16.msra.mxu0 %v4219
    %4278 = vmatprep.subr.bf16.mxu0 %v4222
    %4279 = vmatpush1.bf16.msra.mxu0 %v4221
    %4280 = vmatprep.subr.bf16.mxu0 %v4224
    %4281 = vmatpush1.bf16.msra.mxu0 %v4223
    %4282 = vmatprep.subr.bf16.mxu0 %v4226
    %4283 = vmatpush1.bf16.msra.mxu0 %v4225
    %4284 = vmatprep.subr.bf16.mxu0 %v4228
    %4285 = vmatpush1.bf16.msra.mxu0 %v4227
    %4286 = vmatprep.subr.bf16.mxu0 %v4230
    %4287 = vmatpush1.bf16.msra.mxu0 %v4229
    %4288 = vmatprep.subr.bf16.mxu0 %v4232
    %4289 = vmatpush1.bf16.msra.mxu0 %v4231
    %4290 = vmatprep.subr.bf16.mxu0 %v4234
    %4291 = vmatpush1.bf16.msra.mxu0 %v4233
    %4292 = vmatprep.subr.bf16.mxu0 %v4236
    %4293 = vmatpush1.bf16.msra.mxu0 %v4235
    %4294 = vmatprep.subr.bf16.mxu0 %v4238
    %4295 = vmatpush1.bf16.msra.mxu0 %v4237
    %4296 = vmatprep.subr.bf16.mxu0 %v4240
    %4297 = vmatpush1.bf16.msra.mxu0 %v4239
    %4298 = vmatprep.subr.bf16.mxu0 %v4242
    %4299 = vmatpush1.bf16.msra.mxu0 %v4241
    %4300 = vmatprep.subr.bf16.mxu0 %v4244
    %4301 = vmatpush1.bf16.msra.mxu0 %v4243
    %4302 = vmatprep.subr.bf16.mxu0 %v4246
    %4303 = vmatpush1.bf16.msra.mxu0 %v4245
    %4304 = vmatprep.subr.bf16.mxu0 %v4248
    %4305 = vmatpush1.bf16.msra.mxu0 %v4247
    %4306 = vmatprep.subr.bf16.mxu0 %v4250
    %4307 = vmatpush1.bf16.msra.mxu0 %v4249
    %4308 = vmatprep.mubr.bf16.mxu0 %v4271
    %4309 = vmatmul.mubr.bf16.gmra.mrb[0].mxu0 %v4270
    %v4310 = vpop.f32.mrb[0].mxu0
    %v4311 = vadd.f32 0.0, %v4310
    %v4312 = vpop.f32.mrb[0].mxu0
    %v4313 = vadd.f32 0.0, %v4312
    %v4314 = vpop.f32.mrb[0].mxu0
    %v4315 = vpop.f32.mrb[0].mxu0
    %4316 = vdwg.mxu0
    %4317 = vmatprep.subr.bf16.mxu0 %v4252
    %4318 = vmatpush1.bf16.msra.mxu0 %v4251
    %4319 = vmatprep.subr.bf16.mxu0 %v4254
    %4320 = vmatpush1.bf16.msra.mxu0 %v4253
    %4321 = vmatprep.subr.bf16.mxu0 %v4256
    %4322 = vmatpush1.bf16.msra.mxu0 %v4255
    %4323 = vmatprep.subr.bf16.mxu0 %v4258
    %4324 = vmatpush1.bf16.msra.mxu0 %v4257
    %4325 = vmatprep.subr.bf16.mxu0 %v4260
    %4326 = vmatpush1.bf16.msra.mxu0 %v4259
    %4327 = vmatprep.subr.bf16.mxu0 %v4262
    %4328 = vmatpush1.bf16.msra.mxu0 %v4261
    %4329 = vmatprep.subr.bf16.mxu0 %v4264
    %4330 = vmatpush1.bf16.msra.mxu0 %v4263
    %4331 = vmatprep.subr.bf16.mxu0 %v4266
    %4332 = vmatpush1.bf16.msra.mxu0 %v4265
    %4333 = vmatprep.subr.bf16.mxu0 0
    %4334 = vmatpush1.bf16.msra.mxu0 0
    %4335 = vmatprep.subr.bf16.mxu0 0
    %4336 = vmatpush1.bf16.msra.mxu0 0
    %4337 = vmatprep.subr.bf16.mxu0 0
    %4338 = vmatpush1.bf16.msra.mxu0 0
    %4339 = vmatprep.subr.bf16.mxu0 0
    %4340 = vmatpush1.bf16.msra.mxu0 0
    %4341 = vmatprep.subr.bf16.mxu0 0
    %4342 = vmatpush1.bf16.msra.mxu0 0
    %4343 = vmatprep.subr.bf16.mxu0 0
    %4344 = vmatpush1.bf16.msra.mxu0 0
    %4345 = vmatprep.subr.bf16.mxu0 0
    %4346 = vmatpush1.bf16.msra.mxu0 0
    %4347 = vmatprep.subr.bf16.mxu0 0
    %4348 = vmatpush1.bf16.msra.mxu0 0
    %4349 = vmatprep.mubr.bf16.mxu0 0
    %4350 = vmatmul.mubr.bf16.gmra.mrb[0].mxu0 %v4272
    %v4351 = vpop.f32.mrb[0].mxu0
    %v4352 = vadd.f32 %v4311, %v4351
    %v4353 = vpop.f32.mrb[0].mxu0
    %v4354 = vadd.f32 %v4313, %v4353
    %v4355 = vpop.f32.mrb[0].mxu0
    %v4356 = vpop.f32.mrb[0].mxu0
    %4357 = vdwg.mxu0
    %4358 = vmatprep.subr.bf16.mxu0 %v4171
    %4359 = vmatpush1.bf16.msra.mxu0 %v4170
    %4360 = vmatprep.subr.bf16.mxu0 %v4173
    %4361 = vmatpush1.bf16.msra.mxu0 %v4172
    %4362 = vmatprep.subr.bf16.mxu0 %v4175
    %4363 = vmatpush1.bf16.msra.mxu0 %v4174
    %4364 = vmatprep.subr.bf16.mxu0 %v4177
    %4365 = vmatpush1.bf16.msra.mxu0 %v4176
    %4366 = vmatprep.subr.bf16.mxu0 %v4179
    %4367 = vmatpush1.bf16.msra.mxu0 %v4178
    %4368 = vmatprep.subr.bf16.mxu0 %v4181
    %4369 = vmatpush1.bf16.msra.mxu0 %v4180
    %4370 = vmatprep.subr.bf16.mxu0 %v4183
    %4371 = vmatpush1.bf16.msra.mxu0 %v4182
    %4372 = vmatprep.subr.bf16.mxu0 %v4185
    %4373 = vmatpush1.bf16.msra.mxu0 %v4184
    %4374 = vmatprep.subr.bf16.mxu0 %v4187
    %4375 = vmatpush1.bf16.msra.mxu0 %v4186
    %4376 = vmatprep.subr.bf16.mxu0 %v4189
    %4377 = vmatpush1.bf16.msra.mxu0 %v4188
    %4378 = vmatprep.subr.bf16.mxu0 %v4191
    %4379 = vmatpush1.bf16.msra.mxu0 %v4190
    %4380 = vmatprep.subr.bf16.mxu0 %v4193
    %4381 = vmatpush1.bf16.msra.mxu0 %v4192
    %4382 = vmatprep.subr.bf16.mxu0 %v4195
    %4383 = vmatpush1.bf16.msra.mxu0 %v4194
    %4384 = vmatprep.subr.bf16.mxu0 %v4197
    %4385 = vmatpush1.bf16.msra.mxu0 %v4196
    %4386 = vmatprep.subr.bf16.mxu0 %v4199
    %4387 = vmatpush1.bf16.msra.mxu0 %v4198
    %4388 = vmatprep.subr.bf16.mxu0 %v4201
    %4389 = vmatpush1.bf16.msra.mxu0 %v4200
    %4390 = vmatprep.mubr.bf16.mxu0 %v4160
    %4391 = vmatmul.mubr.bf16.gmra.mrb[0].mxu0 %v4159
    %v4392 = vpop.f32.mrb[0].mxu0
    %v4393 = vadd.f32 %v4352, %v4392
    %v4394 = vpop.f32.mrb[0].mxu0
    %v4395 = vadd.f32 %v4354, %v4394
    %v4396 = vpop.f32.mrb[0].mxu0
    %v4397 = vpop.f32.mrb[0].mxu0
    %4398 = vdwg.mxu0
    %4399 = vmatprep.subr.bf16.mxu0 %v4203
    %4400 = vmatpush1.bf16.msra.mxu0 %v4202
    %4401 = vmatprep.subr.bf16.mxu0 %v4205
    %4402 = vmatpush1.bf16.msra.mxu0 %v4204
    %4403 = vmatprep.subr.bf16.mxu0 %v4207
    %4404 = vmatpush1.bf16.msra.mxu0 %v4206
    %4405 = vmatprep.subr.bf16.mxu0 %v4209
    %4406 = vmatpush1.bf16.msra.mxu0 %v4208
    %4407 = vmatprep.subr.bf16.mxu0 %v4211
    %4408 = vmatpush1.bf16.msra.mxu0 %v4210
    %4409 = vmatprep.subr.bf16.mxu0 %v4213
    %4410 = vmatpush1.bf16.msra.mxu0 %v4212
    %4411 = vmatprep.subr.bf16.mxu0 %v4215
    %4412 = vmatpush1.bf16.msra.mxu0 %v4214
    %4413 = vmatprep.subr.bf16.mxu0 %v4217
    %4414 = vmatpush1.bf16.msra.mxu0 %v4216
    %4415 = vmatprep.subr.bf16.mxu0 0
    %4416 = vmatpush1.bf16.msra.mxu0 0
    %4417 = vmatprep.subr.bf16.mxu0 0
    %4418 = vmatpush1.bf16.msra.mxu0 0
    %4419 = vmatprep.subr.bf16.mxu0 0
    %4420 = vmatpush1.bf16.msra.mxu0 0
    %4421 = vmatprep.subr.bf16.mxu0 0
    %4422 = vmatpush1.bf16.msra.mxu0 0
    %4423 = vmatprep.subr.bf16.mxu0 0
    %4424 = vmatpush1.bf16.msra.mxu0 0
    %4425 = vmatprep.subr.bf16.mxu0 0
    %4426 = vmatpush1.bf16.msra.mxu0 0
    %4427 = vmatprep.subr.bf16.mxu0 0
    %4428 = vmatpush1.bf16.msra.mxu0 0
    %4429 = vmatprep.subr.bf16.mxu0 0
    %4430 = vmatpush1.bf16.msra.mxu0 0
    %4431 = vmatprep.mubr.bf16.mxu0 0
    %4432 = vmatmul.mubr.bf16.gmra.mrb[0].mxu0 %v4161
    %v4433 = vpop.f32.mrb[0].mxu0
    %v4434 = vadd.f32 %v4393, %v4433
    %v4435 = vpop.f32.mrb[0].mxu0
    %v4436 = vadd.f32 %v4395, %v4435
    %v4437 = vpop.f32.mrb[0].mxu0
    %v4438 = vpop.f32.mrb[0].mxu0
    %4439 = vdwg.mxu0
    %s4440 = scalar_lea.vmem [#allocation5], 768
    %v4441 = vld [vmem:[%s4440] sm:$0xff]
    %v4442 = vld [vmem:[%s4440 + $0x8] sm:$0xff]
    %v4443 = vld [vmem:[%s4440 + $0x10] sm:$0xff]
    %v4444 = vld [vmem:[%s4440 + $0x18] sm:$0xff]
    %v4445 = vld [vmem:[%s4440 + $0x20] sm:$0xff]
    %v4446 = vld [vmem:[%s4440 + $0x28] sm:$0xff]
    %v4447 = vld [vmem:[%s4440 + $0x30] sm:$0xff]
    %v4448 = vld [vmem:[%s4440 + $0x38] sm:$0xff]
    %v4449 = vld [vmem:[%s4440 + $0x40] sm:$0xff]
    %v4450 = vld [vmem:[%s4440 + $0x48] sm:$0xff]
    %v4451 = vld [vmem:[%s4440 + $0x50] sm:$0xff]
    %v4452 = vld [vmem:[%s4440 + $0x58] sm:$0xff]
    %v4453 = vld [vmem:[%s4440 + $0x60] sm:$0xff]
    %v4454 = vld [vmem:[%s4440 + $0x68] sm:$0xff]
    %v4455 = vld [vmem:[%s4440 + $0x70] sm:$0xff]
    %v4456 = vld [vmem:[%s4440 + $0x78] sm:$0xff]
    %v4457 = vld [vmem:[%s4440 + $0x80] sm:$0xff]
    %v4458 = vld [vmem:[%s4440 + $0x88] sm:$0xff]
    %v4459 = vld [vmem:[%s4440 + $0x90] sm:$0xff]
    %v4460 = vld [vmem:[%s4440 + $0x98] sm:$0xff]
    %v4461 = vld [vmem:[%s4440 + $0xa0] sm:$0xff]
    %v4462 = vld [vmem:[%s4440 + $0xa8] sm:$0xff]
    %v4463 = vld [vmem:[%s4440 + $0xb0] sm:$0xff]
    %v4464 = vld [vmem:[%s4440 + $0xb8] sm:$0xff]
    %v4465 = vld [vmem:[%s4440 + $0xc0] sm:$0xff]
    %v4466 = vld [vmem:[%s4440 + $0xc8] sm:$0xff]
    %v4467 = vld [vmem:[%s4440 + $0xd0] sm:$0xff]
    %v4468 = vld [vmem:[%s4440 + $0xd8] sm:$0xff]
    %v4469 = vld [vmem:[%s4440 + $0xe0] sm:$0xff]
    %v4470 = vld [vmem:[%s4440 + $0xe8] sm:$0xff]
    %v4471 = vld [vmem:[%s4440 + $0xf0] sm:$0xff]
    %v4472 = vld [vmem:[%s4440 + $0xf8] sm:$0xff]
    %v4473 = vld [vmem:[%s4440 + $0x100] sm:$0xff]
    %v4474 = vld [vmem:[%s4440 + $0x108] sm:$0xff]
    %v4475 = vld [vmem:[%s4440 + $0x110] sm:$0xff]
    %v4476 = vld [vmem:[%s4440 + $0x118] sm:$0xff]
    %v4477 = vld [vmem:[%s4440 + $0x120] sm:$0xff]
    %v4478 = vld [vmem:[%s4440 + $0x128] sm:$0xff]
    %v4479 = vld [vmem:[%s4440 + $0x130] sm:$0xff]
    %v4480 = vld [vmem:[%s4440 + $0x138] sm:$0xff]
    %v4481 = vld [vmem:[%s4440 + $0x140] sm:$0xff]
    %v4482 = vld [vmem:[%s4440 + $0x148] sm:$0xff]
    %v4483 = vld [vmem:[%s4440 + $0x150] sm:$0xff]
    %v4484 = vld [vmem:[%s4440 + $0x158] sm:$0xff]
    %v4485 = vld [vmem:[%s4440 + $0x160] sm:$0xff]
    %v4486 = vld [vmem:[%s4440 + $0x168] sm:$0xff]
    %v4487 = vld [vmem:[%s4440 + $0x170] sm:$0xff]
    %v4488 = vld [vmem:[%s4440 + $0x178] sm:$0xff]
    %4489 = vmatprep.subr.bf16.mxu0 %v4442
    %4490 = vmatpush1.bf16.msra.mxu0 %v4441
    %4491 = vmatprep.subr.bf16.mxu0 %v4444
    %4492 = vmatpush1.bf16.msra.mxu0 %v4443
    %4493 = vmatprep.subr.bf16.mxu0 %v4446
    %4494 = vmatpush1.bf16.msra.mxu0 %v4445
    %4495 = vmatprep.subr.bf16.mxu0 %v4448
    %4496 = vmatpush1.bf16.msra.mxu0 %v4447
    %4497 = vmatprep.subr.bf16.mxu0 %v4450
    %4498 = vmatpush1.bf16.msra.mxu0 %v4449
    %4499 = vmatprep.subr.bf16.mxu0 %v4452
    %4500 = vmatpush1.bf16.msra.mxu0 %v4451
    %4501 = vmatprep.subr.bf16.mxu0 %v4454
    %4502 = vmatpush1.bf16.msra.mxu0 %v4453
    %4503 = vmatprep.subr.bf16.mxu0 %v4456
    %4504 = vmatpush1.bf16.msra.mxu0 %v4455
    %4505 = vmatprep.subr.bf16.mxu0 %v4458
    %4506 = vmatpush1.bf16.msra.mxu0 %v4457
    %4507 = vmatprep.subr.bf16.mxu0 %v4460
    %4508 = vmatpush1.bf16.msra.mxu0 %v4459
    %4509 = vmatprep.subr.bf16.mxu0 %v4462
    %4510 = vmatpush1.bf16.msra.mxu0 %v4461
    %4511 = vmatprep.subr.bf16.mxu0 %v4464
    %4512 = vmatpush1.bf16.msra.mxu0 %v4463
    %4513 = vmatprep.subr.bf16.mxu0 %v4466
    %4514 = vmatpush1.bf16.msra.mxu0 %v4465
    %4515 = vmatprep.subr.bf16.mxu0 %v4468
    %4516 = vmatpush1.bf16.msra.mxu0 %v4467
    %4517 = vmatprep.subr.bf16.mxu0 %v4470
    %4518 = vmatpush1.bf16.msra.mxu0 %v4469
    %4519 = vmatprep.subr.bf16.mxu0 %v4472
    %4520 = vmatpush1.bf16.msra.mxu0 %v4471
    %4521 = vmatprep.mubr.bf16.mxu0 %v4163
    %4522 = vmatmul.mubr.bf16.gmra.mrb[0].mxu0 %v4162
    %v4523 = vpop.f32.mrb[0].mxu0
    %v4524 = vadd.f32 0.0, %v4523
    %v4525 = vpop.f32.mrb[0].mxu0
    %v4526 = vadd.f32 0.0, %v4525
    %v4527 = vpop.f32.mrb[0].mxu0
    %v4528 = vpop.f32.mrb[0].mxu0
    %4529 = vdwg.mxu0
    %4530 = vmatprep.subr.bf16.mxu0 %v4474
    %4531 = vmatpush1.bf16.msra.mxu0 %v4473
    %4532 = vmatprep.subr.bf16.mxu0 %v4476
    %4533 = vmatpush1.bf16.msra.mxu0 %v4475
    %4534 = vmatprep.subr.bf16.mxu0 %v4478
    %4535 = vmatpush1.bf16.msra.mxu0 %v4477
    %4536 = vmatprep.subr.bf16.mxu0 %v4480
    %4537 = vmatpush1.bf16.msra.mxu0 %v4479
    %4538 = vmatprep.subr.bf16.mxu0 %v4482
    %4539 = vmatpush1.bf16.msra.mxu0 %v4481
    %4540 = vmatprep.subr.bf16.mxu0 %v4484
    %4541 = vmatpush1.bf16.msra.mxu0 %v4483
    %4542 = vmatprep.subr.bf16.mxu0 %v4486
    %4543 = vmatpush1.bf16.msra.mxu0 %v4485
    %4544 = vmatprep.subr.bf16.mxu0 %v4488
    %4545 = vmatpush1.bf16.msra.mxu0 %v4487
    %4546 = vmatprep.subr.bf16.mxu0 0
    %4547 = vmatpush1.bf16.msra.mxu0 0
    %4548 = vmatprep.subr.bf16.mxu0 0
    %4549 = vmatpush1.bf16.msra.mxu0 0
    %4550 = vmatprep.subr.bf16.mxu0 0
    %4551 = vmatpush1.bf16.msra.mxu0 0
    %4552 = vmatprep.subr.bf16.mxu0 0
    %4553 = vmatpush1.bf16.msra.mxu0 0
    %4554 = vmatprep.subr.bf16.mxu0 0
    %4555 = vmatpush1.bf16.msra.mxu0 0
    %4556 = vmatprep.subr.bf16.mxu0 0
    %4557 = vmatpush1.bf16.msra.mxu0 0
    %4558 = vmatprep.subr.bf16.mxu0 0
    %4559 = vmatpush1.bf16.msra.mxu0 0
    %4560 = vmatprep.subr.bf16.mxu0 0
    %4561 = vmatpush1.bf16.msra.mxu0 0
    %4562 = vmatprep.mubr.bf16.mxu0 0
    %4563 = vmatmul.mubr.bf16.gmra.mrb[0].mxu0 %v4164
    %v4564 = vpop.f32.mrb[0].mxu0
    %v4565 = vadd.f32 %v4524, %v4564
    %v4566 = vpop.f32.mrb[0].mxu0
    %v4567 = vadd.f32 %v4526, %v4566
    %v4568 = vpop.f32.mrb[0].mxu0
    %v4569 = vpop.f32.mrb[0].mxu0
    %4570 = vdwg.mxu0
    %v4571 = vadd.f32 %v4434, %v4565
    %v4572 = vadd.f32 %v4436, %v4567
    %v4573 = vld [vmem:[#allocation17] sm:$0x3]
    %v4575 = vlaneseq
    %v4576 = vshrl.u32 %v4575, 7
    %v4577 = vsub.s32 0, %v4576
    %v4578 = vrot.slane %v4573, %v4577
    %v4579 = vlaneseq
    %v4580 = vshrl.u32 %v4579, 7
    %v4581 = vsub.s32 1, %v4580
    %v4582 = vrot.slane %v4573, %v4581
    %v4585 = vadd.f32 %v4571, %v4578
    %v4586 = vadd.f32 %v4572, %v4582
    %4587 = vst [vmem:[%s59] sm:$0xff] %v4585
    %4588 = vst [vmem:[%s59 + $0x8] sm:$0xff] %v4586
    %v4589 = vld [vmem:[%s3] sm:$0xff]
    %v4590 = vmul.f32 %v4586, 0.5
    %v4591 = vmul.f32 %v4590, 1.442695
    %v4592 = vpow.pop %v4591
    %v4593 = vmul.f32 %v4589, %v4592
    %v4594 = vadd.f32 %v4585, %v4593
    %v4595 = vld [vmem:[%s13] sm:$0xf]
    %v4596 = vld [vmem:[%s13 + $0x4] sm:$0xf]
    %v4597 = vld [vmem:[%s13 + $0x8] sm:$0xf]
    %v4598 = vpack.c.bf16 %v4594, %v4594
    %v4602 = vunpack.c.l.b16 %v4595
    %v4603 = vunpack.c.l.b16 %v4596
    %v4604 = vunpack.c.l.b16 %v4597
    %v4605 = vpack.c.b16 %v4603, %v4602
    %v4606 = vpack.c.b16 %v4604, %v4604
    %v4608 = vsel %vm4044, %v4605, 0
    %v4611 = vsel %vm4044, %v4606, 0
    %v4614 = vsel %vm573, %v4598, 0
    %4616 = vmatprep.subr.bf16.mxu0 0
    %4617 = vmatpush1.bf16.msra.mxu0 %v4614
    %4618 = vmatprep.subr.bf16.mxu0 0
    %4619 = vmatpush1.bf16.msra.mxu0 0
    %4620 = vmatprep.subr.bf16.mxu0 0
    %4621 = vmatpush1.bf16.msra.mxu0 0
    %4622 = vmatprep.subr.bf16.mxu0 0
    %4623 = vmatpush1.bf16.msra.mxu0 0
    %4624 = vmatprep.subr.bf16.mxu0 0
    %4625 = vmatpush1.bf16.msra.mxu0 0
    %4626 = vmatprep.subr.bf16.mxu0 0
    %4627 = vmatpush1.bf16.msra.mxu0 0
    %4628 = vmatprep.subr.bf16.mxu0 0
    %4629 = vmatpush1.bf16.msra.mxu0 0
    %4630 = vmatprep.subr.bf16.mxu0 0
    %4631 = vmatpush1.bf16.msra.mxu0 0
    %4632 = vmatprep.subr.bf16.mxu0 0
    %4633 = vmatpush1.bf16.msra.mxu0 0
    %4634 = vmatprep.subr.bf16.mxu0 0
    %4635 = vmatpush1.bf16.msra.mxu0 0
    %4636 = vmatprep.subr.bf16.mxu0 0
    %4637 = vmatpush1.bf16.msra.mxu0 0
    %4638 = vmatprep.subr.bf16.mxu0 0
    %4639 = vmatpush1.bf16.msra.mxu0 0
    %4640 = vmatprep.subr.bf16.mxu0 0
    %4641 = vmatpush1.bf16.msra.mxu0 0
    %4642 = vmatprep.subr.bf16.mxu0 0
    %4643 = vmatpush1.bf16.msra.mxu0 0
    %4644 = vmatprep.subr.bf16.mxu0 0
    %4645 = vmatpush1.bf16.msra.mxu0 0
    %4646 = vmatprep.subr.bf16.mxu0 0
    %4647 = vmatpush1.bf16.msra.mxu0 0
    %4648 = vmatprep.mubr.bf16.mxu0 0
    %4649 = vmatmul.mubr.bf16.gmra.mrb[0].mxu0 %v4608
    %v4650 = vpop.f32.mrb[0].mxu0
    %v4651 = vadd.f32 0.0, %v4650
    %v4652 = vpop.f32.mrb[0].mxu0
    %v4653 = vpop.f32.mrb[0].mxu0
    %v4654 = vadd.f32 0.0, %v4653
    %v4655 = vpop.f32.mrb[0].mxu0
    %4656 = vmatprep.mubr.bf16.mxu0 0
    %4657 = vmatmul.mubr.bf16.gmra.mrb[0].mxu0 %v4611
    %v4658 = vpop.f32.mrb[0].mxu0
    %v4659 = vadd.f32 0.0, %v4658
    %v4660 = vpop.f32.mrb[0].mxu0
    %v4661 = vpop.f32.mrb[0].mxu0
    %v4662 = vpop.f32.mrb[0].mxu0
    %4663 = vdwg.mxu0
    %v4664 = vpack.c.bf16 %v4654, %v4651
    %v4665 = vpack.c.bf16 %v4659, %v4659
    %s4666 = smul.u32 %s4165, 16
    %s4667 = smul.u32 %s4666, 3
    %s4668 = sshll.u32 %s4667, 4
    %4669 = dma.done %s352, %s4668
    %v4670 = vld [vmem:[#allocation6] sm:$0xff]
    %v4671 = vld [vmem:[#allocation6 + $0x8] sm:$0xff]
    %v4672 = vld [vmem:[#allocation6 + $0x10] sm:$0xff]
    %v4673 = vld [vmem:[#allocation6 + $0x18] sm:$0xff]
    %v4674 = vld [vmem:[#allocation6 + $0x20] sm:$0xff]
    %v4675 = vld [vmem:[#allocation6 + $0x28] sm:$0xff]
    %v4676 = vld [vmem:[#allocation6 + $0x30] sm:$0xff]
    %v4677 = vld [vmem:[#allocation6 + $0x38] sm:$0xff]
    %v4678 = vld [vmem:[#allocation6 + $0x40] sm:$0xff]
    %v4679 = vld [vmem:[#allocation6 + $0x48] sm:$0xff]
    %v4680 = vld [vmem:[#allocation6 + $0x50] sm:$0xff]
    %v4681 = vld [vmem:[#allocation6 + $0x58] sm:$0xff]
    %v4682 = vld [vmem:[#allocation6 + $0x60] sm:$0xff]
    %v4683 = vld [vmem:[#allocation6 + $0x68] sm:$0xff]
    %v4684 = vld [vmem:[#allocation6 + $0x70] sm:$0xff]
    %v4685 = vld [vmem:[#allocation6 + $0x78] sm:$0xff]
    %v4686 = vld [vmem:[#allocation6 + $0x80] sm:$0xff]
    %v4687 = vld [vmem:[#allocation6 + $0x88] sm:$0xff]
    %v4688 = vld [vmem:[#allocation6 + $0x90] sm:$0xff]
    %v4689 = vld [vmem:[#allocation6 + $0x98] sm:$0xff]
    %v4690 = vld [vmem:[#allocation6 + $0xa0] sm:$0xff]
    %v4691 = vld [vmem:[#allocation6 + $0xa8] sm:$0xff]
    %v4692 = vld [vmem:[#allocation6 + $0xb0] sm:$0xff]
    %v4693 = vld [vmem:[#allocation6 + $0xb8] sm:$0xff]
    %s4694 = scalar_lea.vmem [#allocation6], 192
    %v4695 = vld [vmem:[%s4694] sm:$0xff]
    %v4696 = vld [vmem:[%s4694 + $0x8] sm:$0xff]
    %v4697 = vld [vmem:[%s4694 + $0x10] sm:$0xff]
    %v4698 = vld [vmem:[%s4694 + $0x18] sm:$0xff]
    %v4699 = vld [vmem:[%s4694 + $0x20] sm:$0xff]
    %v4700 = vld [vmem:[%s4694 + $0x28] sm:$0xff]
    %v4701 = vld [vmem:[%s4694 + $0x30] sm:$0xff]
    %v4702 = vld [vmem:[%s4694 + $0x38] sm:$0xff]
    %v4703 = vld [vmem:[%s4694 + $0x40] sm:$0xff]
    %v4704 = vld [vmem:[%s4694 + $0x48] sm:$0xff]
    %v4705 = vld [vmem:[%s4694 + $0x50] sm:$0xff]
    %v4706 = vld [vmem:[%s4694 + $0x58] sm:$0xff]
    %v4707 = vld [vmem:[%s4694 + $0x60] sm:$0xff]
    %v4708 = vld [vmem:[%s4694 + $0x68] sm:$0xff]
    %v4709 = vld [vmem:[%s4694 + $0x70] sm:$0xff]
    %v4710 = vld [vmem:[%s4694 + $0x78] sm:$0xff]
    %v4711 = vld [vmem:[%s4694 + $0x80] sm:$0xff]
    %v4712 = vld [vmem:[%s4694 + $0x88] sm:$0xff]
    %v4713 = vld [vmem:[%s4694 + $0x90] sm:$0xff]
    %v4714 = vld [vmem:[%s4694 + $0x98] sm:$0xff]
    %v4715 = vld [vmem:[%s4694 + $0xa0] sm:$0xff]
    %v4716 = vld [vmem:[%s4694 + $0xa8] sm:$0xff]
    %v4717 = vld [vmem:[%s4694 + $0xb0] sm:$0xff]
    %v4718 = vld [vmem:[%s4694 + $0xb8] sm:$0xff]
    %v4720 = vrot.slane %v4664, 4
    %4722 = vmatprep.subr.bf16.mxu0 %v4696
    %4723 = vmatpush1.bf16.msra.mxu0 %v4695
    %4724 = vmatprep.subr.bf16.mxu0 %v4699
    %4725 = vmatpush1.bf16.msra.mxu0 %v4698
    %4726 = vmatprep.subr.bf16.mxu0 %v4702
    %4727 = vmatpush1.bf16.msra.mxu0 %v4701
    %4728 = vmatprep.subr.bf16.mxu0 %v4705
    %4729 = vmatpush1.bf16.msra.mxu0 %v4704
    %4730 = vmatprep.subr.bf16.mxu0 %v4708
    %4731 = vmatpush1.bf16.msra.mxu0 %v4707
    %4732 = vmatprep.subr.bf16.mxu0 %v4711
    %4733 = vmatpush1.bf16.msra.mxu0 %v4710
    %4734 = vmatprep.subr.bf16.mxu0 %v4714
    %4735 = vmatpush1.bf16.msra.mxu0 %v4713
    %4736 = vmatprep.subr.bf16.mxu0 %v4717
    %4737 = vmatpush1.bf16.msra.mxu0 %v4716
    %4738 = vmatprep.subr.bf16.mxu0 0
    %4739 = vmatpush1.bf16.msra.mxu0 0
    %4740 = vmatprep.subr.bf16.mxu0 0
    %4741 = vmatpush1.bf16.msra.mxu0 0
    %4742 = vmatprep.subr.bf16.mxu0 0
    %4743 = vmatpush1.bf16.msra.mxu0 0
    %4744 = vmatprep.subr.bf16.mxu0 0
    %4745 = vmatpush1.bf16.msra.mxu0 0
    %4746 = vmatprep.subr.bf16.mxu0 0
    %4747 = vmatpush1.bf16.msra.mxu0 0
    %4748 = vmatprep.subr.bf16.mxu0 0
    %4749 = vmatpush1.bf16.msra.mxu0 0
    %4750 = vmatprep.subr.bf16.mxu0 0
    %4751 = vmatpush1.bf16.msra.mxu0 0
    %4752 = vmatprep.subr.bf16.mxu0 0
    %4753 = vmatpush1.bf16.msra.mxu0 0
    %4754 = vmatprep.mubr.bf16.mxu0 0
    %4755 = vmatmul.mubr.bf16.gmra.mrb[0].mxu0 %v4720
    %v4756 = vpop.f32.mrb[0].mxu0
    %v4757 = vadd.f32 0.0, %v4756
    %v4758 = vpop.f32.mrb[0].mxu0
    %v4759 = vadd.f32 0.0, %v4758
    %v4760 = vpop.f32.mrb[0].mxu0
    %v4761 = vpop.f32.mrb[0].mxu0
    %4762 = vdwg.mxu0
    %4763 = vmatprep.subr.bf16.mxu0 0
    %4764 = vmatpush1.bf16.msra.mxu0 %v4697
    %4765 = vmatprep.subr.bf16.mxu0 0
    %4766 = vmatpush1.bf16.msra.mxu0 %v4700
    %4767 = vmatprep.subr.bf16.mxu0 0
    %4768 = vmatpush1.bf16.msra.mxu0 %v4703
    %4769 = vmatprep.subr.bf16.mxu0 0
    %4770 = vmatpush1.bf16.msra.mxu0 %v4706
    %4771 = vmatprep.subr.bf16.mxu0 0
    %4772 = vmatpush1.bf16.msra.mxu0 %v4709
    %4773 = vmatprep.subr.bf16.mxu0 0
    %4774 = vmatpush1.bf16.msra.mxu0 %v4712
    %4775 = vmatprep.subr.bf16.mxu0 0
    %4776 = vmatpush1.bf16.msra.mxu0 %v4715
    %4777 = vmatprep.subr.bf16.mxu0 0
    %4778 = vmatpush1.bf16.msra.mxu0 %v4718
    %4779 = vmatprep.subr.bf16.mxu0 0
    %4780 = vmatpush1.bf16.msra.mxu0 0
    %4781 = vmatprep.subr.bf16.mxu0 0
    %4782 = vmatpush1.bf16.msra.mxu0 0
    %4783 = vmatprep.subr.bf16.mxu0 0
    %4784 = vmatpush1.bf16.msra.mxu0 0
    %4785 = vmatprep.subr.bf16.mxu0 0
    %4786 = vmatpush1.bf16.msra.mxu0 0
    %4787 = vmatprep.subr.bf16.mxu0 0
    %4788 = vmatpush1.bf16.msra.mxu0 0
    %4789 = vmatprep.subr.bf16.mxu0 0
    %4790 = vmatpush1.bf16.msra.mxu0 0
    %4791 = vmatprep.subr.bf16.mxu0 0
    %4792 = vmatpush1.bf16.msra.mxu0 0
    %4793 = vmatprep.subr.bf16.mxu0 0
    %4794 = vmatpush1.bf16.msra.mxu0 0
    %4795 = vmatprep.mubr.bf16.mxu0 0
    %4796 = vmatmul.mubr.bf16.gmra.mrb[0].mxu0 %v4720
    %v4797 = vpop.f32.mrb[0].mxu0
    %v4798 = vadd.f32 0.0, %v4797
    %v4799 = vpop.f32.mrb[0].mxu0
    %v4800 = vpop.f32.mrb[0].mxu0
    %v4801 = vpop.f32.mrb[0].mxu0
    %4802 = vdwg.mxu0
    %4803 = vmatprep.subr.bf16.mxu0 %v4671
    %4804 = vmatpush1.bf16.msra.mxu0 %v4670
    %4805 = vmatprep.subr.bf16.mxu0 %v4674
    %4806 = vmatpush1.bf16.msra.mxu0 %v4673
    %4807 = vmatprep.subr.bf16.mxu0 %v4677
    %4808 = vmatpush1.bf16.msra.mxu0 %v4676
    %4809 = vmatprep.subr.bf16.mxu0 %v4680
    %4810 = vmatpush1.bf16.msra.mxu0 %v4679
    %4811 = vmatprep.subr.bf16.mxu0 %v4683
    %4812 = vmatpush1.bf16.msra.mxu0 %v4682
    %4813 = vmatprep.subr.bf16.mxu0 %v4686
    %4814 = vmatpush1.bf16.msra.mxu0 %v4685
    %4815 = vmatprep.subr.bf16.mxu0 %v4689
    %4816 = vmatpush1.bf16.msra.mxu0 %v4688
    %4817 = vmatprep.subr.bf16.mxu0 %v4692
    %4818 = vmatpush1.bf16.msra.mxu0 %v4691
    %4819 = vmatprep.subr.bf16.mxu0 0
    %4820 = vmatpush1.bf16.msra.mxu0 0
    %4821 = vmatprep.subr.bf16.mxu0 0
    %4822 = vmatpush1.bf16.msra.mxu0 0
    %4823 = vmatprep.subr.bf16.mxu0 0
    %4824 = vmatpush1.bf16.msra.mxu0 0
    %4825 = vmatprep.subr.bf16.mxu0 0
    %4826 = vmatpush1.bf16.msra.mxu0 0
    %4827 = vmatprep.subr.bf16.mxu0 0
    %4828 = vmatpush1.bf16.msra.mxu0 0
    %4829 = vmatprep.subr.bf16.mxu0 0
    %4830 = vmatpush1.bf16.msra.mxu0 0
    %4831 = vmatprep.subr.bf16.mxu0 0
    %4832 = vmatpush1.bf16.msra.mxu0 0
    %4833 = vmatprep.subr.bf16.mxu0 0
    %4834 = vmatpush1.bf16.msra.mxu0 0
    %4835 = vmatprep.mubr.bf16.mxu0 0
    %4836 = vmatmul.mubr.bf16.gmra.mrb[0].mxu0 %v4664
    %v4837 = vpop.f32.mrb[0].mxu0
    %v4838 = vadd.f32 %v4757, %v4837
    %v4839 = vpop.f32.mrb[0].mxu0
    %v4840 = vadd.f32 %v4759, %v4839
    %v4841 = vpop.f32.mrb[0].mxu0
    %v4842 = vpop.f32.mrb[0].mxu0
    %4843 = vdwg.mxu0
    %4844 = vmatprep.subr.bf16.mxu0 0
    %4845 = vmatpush1.bf16.msra.mxu0 %v4672
    %4846 = vmatprep.subr.bf16.mxu0 0
    %4847 = vmatpush1.bf16.msra.mxu0 %v4675
    %4848 = vmatprep.subr.bf16.mxu0 0
    %4849 = vmatpush1.bf16.msra.mxu0 %v4678
    %4850 = vmatprep.subr.bf16.mxu0 0
    %4851 = vmatpush1.bf16.msra.mxu0 %v4681
    %4852 = vmatprep.subr.bf16.mxu0 0
    %4853 = vmatpush1.bf16.msra.mxu0 %v4684
    %4854 = vmatprep.subr.bf16.mxu0 0
    %4855 = vmatpush1.bf16.msra.mxu0 %v4687
    %4856 = vmatprep.subr.bf16.mxu0 0
    %4857 = vmatpush1.bf16.msra.mxu0 %v4690
    %4858 = vmatprep.subr.bf16.mxu0 0
    %4859 = vmatpush1.bf16.msra.mxu0 %v4693
    %4860 = vmatprep.subr.bf16.mxu0 0
    %4861 = vmatpush1.bf16.msra.mxu0 0
    %4862 = vmatprep.subr.bf16.mxu0 0
    %4863 = vmatpush1.bf16.msra.mxu0 0
    %4864 = vmatprep.subr.bf16.mxu0 0
    %4865 = vmatpush1.bf16.msra.mxu0 0
    %4866 = vmatprep.subr.bf16.mxu0 0
    %4867 = vmatpush1.bf16.msra.mxu0 0
    %4868 = vmatprep.subr.bf16.mxu0 0
    %4869 = vmatpush1.bf16.msra.mxu0 0
    %4870 = vmatprep.subr.bf16.mxu0 0
    %4871 = vmatpush1.bf16.msra.mxu0 0
    %4872 = vmatprep.subr.bf16.mxu0 0
    %4873 = vmatpush1.bf16.msra.mxu0 0
    %4874 = vmatprep.subr.bf16.mxu0 0
    %4875 = vmatpush1.bf16.msra.mxu0 0
    %4876 = vmatprep.mubr.bf16.mxu0 0
    %4877 = vmatmul.mubr.bf16.gmra.mrb[0].mxu0 %v4664
    %v4878 = vpop.f32.mrb[0].mxu0
    %v4879 = vadd.f32 %v4798, %v4878
    %v4880 = vpop.f32.mrb[0].mxu0
    %v4881 = vpop.f32.mrb[0].mxu0
    %v4882 = vpop.f32.mrb[0].mxu0
    %4883 = vdwg.mxu0
    %s4884 = scalar_lea.vmem [#allocation6], 384
    %v4885 = vld [vmem:[%s4884] sm:$0xff]
    %v4886 = vld [vmem:[%s4884 + $0x8] sm:$0xff]
    %v4887 = vld [vmem:[%s4884 + $0x10] sm:$0xff]
    %v4888 = vld [vmem:[%s4884 + $0x18] sm:$0xff]
    %v4889 = vld [vmem:[%s4884 + $0x20] sm:$0xff]
    %v4890 = vld [vmem:[%s4884 + $0x28] sm:$0xff]
    %v4891 = vld [vmem:[%s4884 + $0x30] sm:$0xff]
    %v4892 = vld [vmem:[%s4884 + $0x38] sm:$0xff]
    %v4893 = vld [vmem:[%s4884 + $0x40] sm:$0xff]
    %v4894 = vld [vmem:[%s4884 + $0x48] sm:$0xff]
    %v4895 = vld [vmem:[%s4884 + $0x50] sm:$0xff]
    %v4896 = vld [vmem:[%s4884 + $0x58] sm:$0xff]
    %v4897 = vld [vmem:[%s4884 + $0x60] sm:$0xff]
    %v4898 = vld [vmem:[%s4884 + $0x68] sm:$0xff]
    %v4899 = vld [vmem:[%s4884 + $0x70] sm:$0xff]
    %v4900 = vld [vmem:[%s4884 + $0x78] sm:$0xff]
    %v4901 = vld [vmem:[%s4884 + $0x80] sm:$0xff]
    %v4902 = vld [vmem:[%s4884 + $0x88] sm:$0xff]
    %v4903 = vld [vmem:[%s4884 + $0x90] sm:$0xff]
    %v4904 = vld [vmem:[%s4884 + $0x98] sm:$0xff]
    %v4905 = vld [vmem:[%s4884 + $0xa0] sm:$0xff]
    %v4906 = vld [vmem:[%s4884 + $0xa8] sm:$0xff]
    %v4907 = vld [vmem:[%s4884 + $0xb0] sm:$0xff]
    %v4908 = vld [vmem:[%s4884 + $0xb8] sm:$0xff]
    %4909 = vmatprep.subr.bf16.mxu0 %v4886
    %4910 = vmatpush1.bf16.msra.mxu0 %v4885
    %4911 = vmatprep.subr.bf16.mxu0 %v4889
    %4912 = vmatpush1.bf16.msra.mxu0 %v4888
    %4913 = vmatprep.subr.bf16.mxu0 %v4892
    %4914 = vmatpush1.bf16.msra.mxu0 %v4891
    %4915 = vmatprep.subr.bf16.mxu0 %v4895
    %4916 = vmatpush1.bf16.msra.mxu0 %v4894
    %4917 = vmatprep.subr.bf16.mxu0 %v4898
    %4918 = vmatpush1.bf16.msra.mxu0 %v4897
    %4919 = vmatprep.subr.bf16.mxu0 %v4901
    %4920 = vmatpush1.bf16.msra.mxu0 %v4900
    %4921 = vmatprep.subr.bf16.mxu0 %v4904
    %4922 = vmatpush1.bf16.msra.mxu0 %v4903
    %4923 = vmatprep.subr.bf16.mxu0 %v4907
    %4924 = vmatpush1.bf16.msra.mxu0 %v4906
    %4925 = vmatprep.subr.bf16.mxu0 0
    %4926 = vmatpush1.bf16.msra.mxu0 0
    %4927 = vmatprep.subr.bf16.mxu0 0
    %4928 = vmatpush1.bf16.msra.mxu0 0
    %4929 = vmatprep.subr.bf16.mxu0 0
    %4930 = vmatpush1.bf16.msra.mxu0 0
    %4931 = vmatprep.subr.bf16.mxu0 0
    %4932 = vmatpush1.bf16.msra.mxu0 0
    %4933 = vmatprep.subr.bf16.mxu0 0
    %4934 = vmatpush1.bf16.msra.mxu0 0
    %4935 = vmatprep.subr.bf16.mxu0 0
    %4936 = vmatpush1.bf16.msra.mxu0 0
    %4937 = vmatprep.subr.bf16.mxu0 0
    %4938 = vmatpush1.bf16.msra.mxu0 0
    %4939 = vmatprep.subr.bf16.mxu0 0
    %4940 = vmatpush1.bf16.msra.mxu0 0
    %4941 = vmatprep.mubr.bf16.mxu0 0
    %4942 = vmatmul.mubr.bf16.gmra.mrb[0].mxu0 %v4665
    %v4943 = vpop.f32.mrb[0].mxu0
    %v4944 = vadd.f32 0.0, %v4943
    %v4945 = vpop.f32.mrb[0].mxu0
    %v4946 = vadd.f32 0.0, %v4945
    %v4947 = vpop.f32.mrb[0].mxu0
    %v4948 = vpop.f32.mrb[0].mxu0
    %4949 = vdwg.mxu0
    %4950 = vmatprep.subr.bf16.mxu0 0
    %4951 = vmatpush1.bf16.msra.mxu0 %v4887
    %4952 = vmatprep.subr.bf16.mxu0 0
    %4953 = vmatpush1.bf16.msra.mxu0 %v4890
    %4954 = vmatprep.subr.bf16.mxu0 0
    %4955 = vmatpush1.bf16.msra.mxu0 %v4893
    %4956 = vmatprep.subr.bf16.mxu0 0
    %4957 = vmatpush1.bf16.msra.mxu0 %v4896
    %4958 = vmatprep.subr.bf16.mxu0 0
    %4959 = vmatpush1.bf16.msra.mxu0 %v4899
    %4960 = vmatprep.subr.bf16.mxu0 0
    %4961 = vmatpush1.bf16.msra.mxu0 %v4902
    %4962 = vmatprep.subr.bf16.mxu0 0
    %4963 = vmatpush1.bf16.msra.mxu0 %v4905
    %4964 = vmatprep.subr.bf16.mxu0 0
    %4965 = vmatpush1.bf16.msra.mxu0 %v4908
    %4966 = vmatprep.subr.bf16.mxu0 0
    %4967 = vmatpush1.bf16.msra.mxu0 0
    %4968 = vmatprep.subr.bf16.mxu0 0
    %4969 = vmatpush1.bf16.msra.mxu0 0
    %4970 = vmatprep.subr.bf16.mxu0 0
    %4971 = vmatpush1.bf16.msra.mxu0 0
    %4972 = vmatprep.subr.bf16.mxu0 0
    %4973 = vmatpush1.bf16.msra.mxu0 0
    %4974 = vmatprep.subr.bf16.mxu0 0
    %4975 = vmatpush1.bf16.msra.mxu0 0
    %4976 = vmatprep.subr.bf16.mxu0 0
    %4977 = vmatpush1.bf16.msra.mxu0 0
    %4978 = vmatprep.subr.bf16.mxu0 0
    %4979 = vmatpush1.bf16.msra.mxu0 0
    %4980 = vmatprep.subr.bf16.mxu0 0
    %4981 = vmatpush1.bf16.msra.mxu0 0
    %4982 = vmatprep.mubr.bf16.mxu0 0
    %4983 = vmatmul.mubr.bf16.gmra.mrb[0].mxu0 %v4665
    %v4984 = vpop.f32.mrb[0].mxu0
    %v4985 = vadd.f32 0.0, %v4984
    %v4986 = vpop.f32.mrb[0].mxu0
    %v4987 = vpop.f32.mrb[0].mxu0
    %v4988 = vpop.f32.mrb[0].mxu0
    %4989 = vdwg.mxu0
    %v4990 = vadd.f32 %v4838, %v4944
    %v4991 = vadd.f32 %v4840, %v4946
    %v4992 = vadd.f32 %v4879, %v4985
    %v4993 = vld [vmem:[#allocation19] sm:$0xff]
    %v4994 = vld [vmem:[#allocation19 + $0x8] sm:$0xff]
    %v4995 = vld [vmem:[#allocation19 + $0x10] sm:$0xff]
    %v4996 = vadd.f32 %v4990, %v4993
    %v4997 = vadd.f32 %v4991, %v4994
    %v4998 = vadd.f32 %v4992, %v4995
    %v4999 = vld [vmem:[%s15] sm:$0xf]
    %v5000 = vld [vmem:[%s15 + $0x4] sm:$0xf]
    %v5001 = vld [vmem:[%s15 + $0x8] sm:$0xf]
    %v5002 = vld [vmem:[%s15 + $0xc] sm:$0xf]
    %v5003 = vld [vmem:[%s15 + $0x10] sm:$0xf]
    %v5004 = vld [vmem:[%s15 + $0x14] sm:$0xf]
    %v5005 = vld [vmem:[%s15 + $0x18] sm:$0xf]
    %v5006 = vld [vmem:[%s15 + $0x1c] sm:$0xf]
    %v5007 = vpack.c.bf16 %v4996, %v4996
    %v5008 = vpack.c.bf16 %v4997, %v4997
    %v5009 = vpack.c.bf16 %v4998, %v4998
    %v5018 = vunpack.c.l.b16 %v4999
    %v5019 = vunpack.c.l.b16 %v5000
    %v5020 = vunpack.c.l.b16 %v5001
    %v5021 = vunpack.c.l.b16 %v5002
    %v5022 = vunpack.c.l.b16 %v5003
    %v5023 = vunpack.c.l.b16 %v5004
    %v5024 = vunpack.c.l.b16 %v5005
    %v5025 = vunpack.c.l.b16 %v5006
    %v5026 = vpack.c.b16 %v5019, %v5018
    %v5027 = vpack.c.b16 %v5021, %v5020
    %v5028 = vpack.c.b16 %v5023, %v5022
    %v5029 = vpack.c.b16 %v5025, %v5024
    %v5031 = vsel %vm4044, %v5026, 0
    %v5034 = vsel %vm4044, %v5027, 0
    %v5037 = vsel %vm4044, %v5028, 0
    %v5040 = vsel %vm4044, %v5029, 0
    %v5043 = vsel %vm573, %v5007, 0
    %v5046 = vsel %vm573, %v5008, 0
    %v5049 = vsel %vm573, %v5009, 0
    %5051 = vmatprep.subr.bf16.mxu0 %v5046
    %5052 = vmatpush1.bf16.msra.mxu0 %v5043
    %5053 = vmatprep.subr.bf16.mxu0 0
    %5054 = vmatpush1.bf16.msra.mxu0 0
    %5055 = vmatprep.subr.bf16.mxu0 0
    %5056 = vmatpush1.bf16.msra.mxu0 0
    %5057 = vmatprep.subr.bf16.mxu0 0
    %5058 = vmatpush1.bf16.msra.mxu0 0
    %5059 = vmatprep.subr.bf16.mxu0 0
    %5060 = vmatpush1.bf16.msra.mxu0 0
    %5061 = vmatprep.subr.bf16.mxu0 0
    %5062 = vmatpush1.bf16.msra.mxu0 0
    %5063 = vmatprep.subr.bf16.mxu0 0
    %5064 = vmatpush1.bf16.msra.mxu0 0
    %5065 = vmatprep.subr.bf16.mxu0 0
    %5066 = vmatpush1.bf16.msra.mxu0 0
    %5067 = vmatprep.subr.bf16.mxu0 0
    %5068 = vmatpush1.bf16.msra.mxu0 0
    %5069 = vmatprep.subr.bf16.mxu0 0
    %5070 = vmatpush1.bf16.msra.mxu0 0
    %5071 = vmatprep.subr.bf16.mxu0 0
    %5072 = vmatpush1.bf16.msra.mxu0 0
    %5073 = vmatprep.subr.bf16.mxu0 0
    %5074 = vmatpush1.bf16.msra.mxu0 0
    %5075 = vmatprep.subr.bf16.mxu0 0
    %5076 = vmatpush1.bf16.msra.mxu0 0
    %5077 = vmatprep.subr.bf16.mxu0 0
    %5078 = vmatpush1.bf16.msra.mxu0 0
    %5079 = vmatprep.subr.bf16.mxu0 0
    %5080 = vmatpush1.bf16.msra.mxu0 0
    %5081 = vmatprep.subr.bf16.mxu0 0
    %5082 = vmatpush1.bf16.msra.mxu0 0
    %5083 = vmatprep.mubr.bf16.mxu0 0
    %5084 = vmatmul.mubr.bf16.gmra.mrb[0].mxu0 %v5031
    %v5085 = vpop.f32.mrb[0].mxu0
    %v5086 = vadd.f32 0.0, %v5085
    %v5087 = vpop.f32.mrb[0].mxu0
    %v5088 = vadd.f32 0.0, %v5087
    %v5089 = vpop.f32.mrb[0].mxu0
    %v5090 = vadd.f32 0.0, %v5089
    %v5091 = vpop.f32.mrb[0].mxu0
    %v5092 = vadd.f32 0.0, %v5091
    %5093 = vmatprep.mubr.bf16.mxu0 0
    %5094 = vmatmul.mubr.bf16.gmra.mrb[0].mxu0 %v5034
    %v5095 = vpop.f32.mrb[0].mxu0
    %v5096 = vadd.f32 0.0, %v5095
    %v5097 = vpop.f32.mrb[0].mxu0
    %v5098 = vadd.f32 0.0, %v5097
    %v5099 = vpop.f32.mrb[0].mxu0
    %v5100 = vadd.f32 0.0, %v5099
    %v5101 = vpop.f32.mrb[0].mxu0
    %v5102 = vadd.f32 0.0, %v5101
    %5103 = vmatprep.mubr.bf16.mxu0 0
    %5104 = vmatmul.mubr.bf16.gmra.mrb[0].mxu0 %v5037
    %v5105 = vpop.f32.mrb[0].mxu0
    %v5106 = vadd.f32 0.0, %v5105
    %v5107 = vpop.f32.mrb[0].mxu0
    %v5108 = vadd.f32 0.0, %v5107
    %v5109 = vpop.f32.mrb[0].mxu0
    %v5110 = vadd.f32 0.0, %v5109
    %v5111 = vpop.f32.mrb[0].mxu0
    %v5112 = vadd.f32 0.0, %v5111
    %5113 = vmatprep.mubr.bf16.mxu0 0
    %5114 = vmatmul.mubr.bf16.gmra.mrb[0].mxu0 %v5040
    %v5115 = vpop.f32.mrb[0].mxu0
    %v5116 = vadd.f32 0.0, %v5115
    %v5117 = vpop.f32.mrb[0].mxu0
    %v5118 = vadd.f32 0.0, %v5117
    %v5119 = vpop.f32.mrb[0].mxu0
    %v5120 = vadd.f32 0.0, %v5119
    %v5121 = vpop.f32.mrb[0].mxu0
    %v5122 = vadd.f32 0.0, %v5121
    %5123 = vdwg.mxu0
    %5124 = vmatprep.subr.bf16.mxu0 0
    %5125 = vmatpush1.bf16.msra.mxu0 %v5049
    %5126 = vmatprep.subr.bf16.mxu0 0
    %5127 = vmatpush1.bf16.msra.mxu0 0
    %5128 = vmatprep.subr.bf16.mxu0 0
    %5129 = vmatpush1.bf16.msra.mxu0 0
    %5130 = vmatprep.subr.bf16.mxu0 0
    %5131 = vmatpush1.bf16.msra.mxu0 0
    %5132 = vmatprep.subr.bf16.mxu0 0
    %5133 = vmatpush1.bf16.msra.mxu0 0
    %5134 = vmatprep.subr.bf16.mxu0 0
    %5135 = vmatpush1.bf16.msra.mxu0 0
    %5136 = vmatprep.subr.bf16.mxu0 0
    %5137 = vmatpush1.bf16.msra.mxu0 0
    %5138 = vmatprep.subr.bf16.mxu0 0
    %5139 = vmatpush1.bf16.msra.mxu0 0
    %5140 = vmatprep.subr.bf16.mxu0 0
    %5141 = vmatpush1.bf16.msra.mxu0 0
    %5142 = vmatprep.subr.bf16.mxu0 0
    %5143 = vmatpush1.bf16.msra.mxu0 0
    %5144 = vmatprep.subr.bf16.mxu0 0
    %5145 = vmatpush1.bf16.msra.mxu0 0
    %5146 = vmatprep.subr.bf16.mxu0 0
    %5147 = vmatpush1.bf16.msra.mxu0 0
    %5148 = vmatprep.subr.bf16.mxu0 0
    %5149 = vmatpush1.bf16.msra.mxu0 0
    %5150 = vmatprep.subr.bf16.mxu0 0
    %5151 = vmatpush1.bf16.msra.mxu0 0
    %5152 = vmatprep.subr.bf16.mxu0 0
    %5153 = vmatpush1.bf16.msra.mxu0 0
    %5154 = vmatprep.subr.bf16.mxu0 0
    %5155 = vmatpush1.bf16.msra.mxu0 0
    %5156 = vmatprep.mubr.bf16.mxu0 0
    %5157 = vmatmul.mubr.bf16.gmra.mrb[0].mxu0 %v5031
    %v5158 = vpop.f32.mrb[0].mxu0
    %v5159 = vadd.f32 0.0, %v5158
    %v5160 = vpop.f32.mrb[0].mxu0
    %v5161 = vpop.f32.mrb[0].mxu0
    %v5162 = vadd.f32 0.0, %v5161
    %v5163 = vpop.f32.mrb[0].mxu0
    %5164 = vmatprep.mubr.bf16.mxu0 0
    %5165 = vmatmul.mubr.bf16.gmra.mrb[0].mxu0 %v5034
    %v5166 = vpop.f32.mrb[0].mxu0
    %v5167 = vadd.f32 0.0, %v5166
    %v5168 = vpop.f32.mrb[0].mxu0
    %v5169 = vpop.f32.mrb[0].mxu0
    %v5170 = vadd.f32 0.0, %v5169
    %v5171 = vpop.f32.mrb[0].mxu0
    %5172 = vmatprep.mubr.bf16.mxu0 0
    %5173 = vmatmul.mubr.bf16.gmra.mrb[0].mxu0 %v5037
    %v5174 = vpop.f32.mrb[0].mxu0
    %v5175 = vadd.f32 0.0, %v5174
    %v5176 = vpop.f32.mrb[0].mxu0
    %v5177 = vpop.f32.mrb[0].mxu0
    %v5178 = vadd.f32 0.0, %v5177
    %v5179 = vpop.f32.mrb[0].mxu0
    %5180 = vmatprep.mubr.bf16.mxu0 0
    %5181 = vmatmul.mubr.bf16.gmra.mrb[0].mxu0 %v5040
    %v5182 = vpop.f32.mrb[0].mxu0
    %v5183 = vadd.f32 0.0, %v5182
    %v5184 = vpop.f32.mrb[0].mxu0
    %v5185 = vpop.f32.mrb[0].mxu0
    %v5186 = vadd.f32 0.0, %v5185
    %v5187 = vpop.f32.mrb[0].mxu0
    %5188 = vdwg.mxu0
    %v5189 = vpack.c.bf16 %v5090, %v5086
    %v5190 = vpack.c.bf16 %v5092, %v5088
    %v5191 = vpack.c.bf16 %v5162, %v5159
    %v5192 = vpack.c.bf16 %v5100, %v5096
    %v5193 = vpack.c.bf16 %v5102, %v5098
    %v5194 = vpack.c.bf16 %v5170, %v5167
    %v5195 = vpack.c.bf16 %v5110, %v5106
    %v5196 = vpack.c.bf16 %v5112, %v5108
    %v5197 = vpack.c.bf16 %v5178, %v5175
    %v5198 = vpack.c.bf16 %v5120, %v5116
    %v5199 = vpack.c.bf16 %v5122, %v5118
    %v5200 = vpack.c.bf16 %v5186, %v5183
    %s5201 = smul.u32 %s682, 48
    %s5202 = smul.u32 %s5201, 3
    %s5203 = sshll.u32 %s5202, 4
    %5204 = dma.done %s387, %s5203
    %v5205 = vld [vmem:[#allocation7] sm:$0xff]
    %v5206 = vld [vmem:[#allocation7 + $0x8] sm:$0xff]
    %v5207 = vld [vmem:[#allocation7 + $0x10] sm:$0xff]
    %v5208 = vld [vmem:[#allocation7 + $0x18] sm:$0xff]
    %v5209 = vld [vmem:[#allocation7 + $0x20] sm:$0xff]
    %v5210 = vld [vmem:[#allocation7 + $0x28] sm:$0xff]
    %v5211 = vld [vmem:[#allocation7 + $0x30] sm:$0xff]
    %v5212 = vld [vmem:[#allocation7 + $0x38] sm:$0xff]
    %v5213 = vld [vmem:[#allocation7 + $0x40] sm:$0xff]
    %v5214 = vld [vmem:[#allocation7 + $0x48] sm:$0xff]
    %v5215 = vld [vmem:[#allocation7 + $0x50] sm:$0xff]
    %v5216 = vld [vmem:[#allocation7 + $0x58] sm:$0xff]
    %v5217 = vld [vmem:[#allocation7 + $0x60] sm:$0xff]
    %v5218 = vld [vmem:[#allocation7 + $0x68] sm:$0xff]
    %v5219 = vld [vmem:[#allocation7 + $0x70] sm:$0xff]
    %v5220 = vld [vmem:[#allocation7 + $0x78] sm:$0xff]
    %v5221 = vld [vmem:[#allocation7 + $0x80] sm:$0xff]
    %v5222 = vld [vmem:[#allocation7 + $0x88] sm:$0xff]
    %v5223 = vld [vmem:[#allocation7 + $0x90] sm:$0xff]
    %v5224 = vld [vmem:[#allocation7 + $0x98] sm:$0xff]
    %v5225 = vld [vmem:[#allocation7 + $0xa0] sm:$0xff]
    %v5226 = vld [vmem:[#allocation7 + $0xa8] sm:$0xff]
    %v5227 = vld [vmem:[#allocation7 + $0xb0] sm:$0xff]
    %v5228 = vld [vmem:[#allocation7 + $0xb8] sm:$0xff]
    %v5229 = vld [vmem:[#allocation7 + $0xc0] sm:$0xff]
    %v5230 = vld [vmem:[#allocation7 + $0xc8] sm:$0xff]
    %v5231 = vld [vmem:[#allocation7 + $0xd0] sm:$0xff]
    %v5232 = vld [vmem:[#allocation7 + $0xd8] sm:$0xff]
    %v5233 = vld [vmem:[#allocation7 + $0xe0] sm:$0xff]
    %v5234 = vld [vmem:[#allocation7 + $0xe8] sm:$0xff]
    %v5235 = vld [vmem:[#allocation7 + $0xf0] sm:$0xff]
    %v5236 = vld [vmem:[#allocation7 + $0xf8] sm:$0xff]
    %v5237 = vld [vmem:[#allocation7 + $0x100] sm:$0xff]
    %v5238 = vld [vmem:[#allocation7 + $0x108] sm:$0xff]
    %v5239 = vld [vmem:[#allocation7 + $0x110] sm:$0xff]
    %v5240 = vld [vmem:[#allocation7 + $0x118] sm:$0xff]
    %v5241 = vld [vmem:[#allocation7 + $0x120] sm:$0xff]
    %v5242 = vld [vmem:[#allocation7 + $0x128] sm:$0xff]
    %v5243 = vld [vmem:[#allocation7 + $0x130] sm:$0xff]
    %v5244 = vld [vmem:[#allocation7 + $0x138] sm:$0xff]
    %v5245 = vld [vmem:[#allocation7 + $0x140] sm:$0xff]
    %v5246 = vld [vmem:[#allocation7 + $0x148] sm:$0xff]
    %v5247 = vld [vmem:[#allocation7 + $0x150] sm:$0xff]
    %v5248 = vld [vmem:[#allocation7 + $0x158] sm:$0xff]
    %v5249 = vld [vmem:[#allocation7 + $0x160] sm:$0xff]
    %v5250 = vld [vmem:[#allocation7 + $0x168] sm:$0xff]
    %v5251 = vld [vmem:[#allocation7 + $0x170] sm:$0xff]
    %v5252 = vld [vmem:[#allocation7 + $0x178] sm:$0xff]
    %v5253 = vld [vmem:[#allocation7 + $0x180] sm:$0xff]
    %v5254 = vld [vmem:[#allocation7 + $0x188] sm:$0xff]
    %v5255 = vld [vmem:[#allocation7 + $0x190] sm:$0xff]
    %v5256 = vld [vmem:[#allocation7 + $0x198] sm:$0xff]
    %v5257 = vld [vmem:[#allocation7 + $0x1a0] sm:$0xff]
    %v5258 = vld [vmem:[#allocation7 + $0x1a8] sm:$0xff]
    %v5259 = vld [vmem:[#allocation7 + $0x1b0] sm:$0xff]
    %v5260 = vld [vmem:[#allocation7 + $0x1b8] sm:$0xff]
    %v5261 = vld [vmem:[#allocation7 + $0x1c0] sm:$0xff]
    %v5262 = vld [vmem:[#allocation7 + $0x1c8] sm:$0xff]
    %v5263 = vld [vmem:[#allocation7 + $0x1d0] sm:$0xff]
    %v5264 = vld [vmem:[#allocation7 + $0x1d8] sm:$0xff]
    %v5265 = vld [vmem:[#allocation7 + $0x1e0] sm:$0xff]
    %v5266 = vld [vmem:[#allocation7 + $0x1e8] sm:$0xff]
    %v5267 = vld [vmem:[#allocation7 + $0x1f0] sm:$0xff]
    %v5268 = vld [vmem:[#allocation7 + $0x1f8] sm:$0xff]
    %v5269 = vld [vmem:[#allocation7 + $0x200] sm:$0xff]
    %v5270 = vld [vmem:[#allocation7 + $0x208] sm:$0xff]
    %v5271 = vld [vmem:[#allocation7 + $0x210] sm:$0xff]
    %v5272 = vld [vmem:[#allocation7 + $0x218] sm:$0xff]
    %v5273 = vld [vmem:[#allocation7 + $0x220] sm:$0xff]
    %v5274 = vld [vmem:[#allocation7 + $0x228] sm:$0xff]
    %v5275 = vld [vmem:[#allocation7 + $0x230] sm:$0xff]
    %v5276 = vld [vmem:[#allocation7 + $0x238] sm:$0xff]
    %s5277 = scalar_lea.vmem [#allocation7], 576
    %v5278 = vld [vmem:[%s5277] sm:$0xff]
    %v5279 = vld [vmem:[%s5277 + $0x8] sm:$0xff]
    %v5280 = vld [vmem:[%s5277 + $0x10] sm:$0xff]
    %v5281 = vld [vmem:[%s5277 + $0x18] sm:$0xff]
    %v5282 = vld [vmem:[%s5277 + $0x20] sm:$0xff]
    %v5283 = vld [vmem:[%s5277 + $0x28] sm:$0xff]
    %v5284 = vld [vmem:[%s5277 + $0x30] sm:$0xff]
    %v5285 = vld [vmem:[%s5277 + $0x38] sm:$0xff]
    %v5286 = vld [vmem:[%s5277 + $0x40] sm:$0xff]
    %v5287 = vld [vmem:[%s5277 + $0x48] sm:$0xff]
    %v5288 = vld [vmem:[%s5277 + $0x50] sm:$0xff]
    %v5289 = vld [vmem:[%s5277 + $0x58] sm:$0xff]
    %v5290 = vld [vmem:[%s5277 + $0x60] sm:$0xff]
    %v5291 = vld [vmem:[%s5277 + $0x68] sm:$0xff]
    %v5292 = vld [vmem:[%s5277 + $0x70] sm:$0xff]
    %v5293 = vld [vmem:[%s5277 + $0x78] sm:$0xff]
    %v5294 = vld [vmem:[%s5277 + $0x80] sm:$0xff]
    %v5295 = vld [vmem:[%s5277 + $0x88] sm:$0xff]
    %v5296 = vld [vmem:[%s5277 + $0x90] sm:$0xff]
    %v5297 = vld [vmem:[%s5277 + $0x98] sm:$0xff]
    %v5298 = vld [vmem:[%s5277 + $0xa0] sm:$0xff]
    %v5299 = vld [vmem:[%s5277 + $0xa8] sm:$0xff]
    %v5300 = vld [vmem:[%s5277 + $0xb0] sm:$0xff]
    %v5301 = vld [vmem:[%s5277 + $0xb8] sm:$0xff]
    %v5302 = vld [vmem:[%s5277 + $0xc0] sm:$0xff]
    %v5303 = vld [vmem:[%s5277 + $0xc8] sm:$0xff]
    %v5304 = vld [vmem:[%s5277 + $0xd0] sm:$0xff]
    %v5305 = vld [vmem:[%s5277 + $0xd8] sm:$0xff]
    %v5306 = vld [vmem:[%s5277 + $0xe0] sm:$0xff]
    %v5307 = vld [vmem:[%s5277 + $0xe8] sm:$0xff]
    %v5308 = vld [vmem:[%s5277 + $0xf0] sm:$0xff]
    %v5309 = vld [vmem:[%s5277 + $0xf8] sm:$0xff]
    %v5310 = vld [vmem:[%s5277 + $0x100] sm:$0xff]
    %v5311 = vld [vmem:[%s5277 + $0x108] sm:$0xff]
    %v5312 = vld [vmem:[%s5277 + $0x110] sm:$0xff]
    %v5313 = vld [vmem:[%s5277 + $0x118] sm:$0xff]
    %v5314 = vld [vmem:[%s5277 + $0x120] sm:$0xff]
    %v5315 = vld [vmem:[%s5277 + $0x128] sm:$0xff]
    %v5316 = vld [vmem:[%s5277 + $0x130] sm:$0xff]
    %v5317 = vld [vmem:[%s5277 + $0x138] sm:$0xff]
    %v5318 = vld [vmem:[%s5277 + $0x140] sm:$0xff]
    %v5319 = vld [vmem:[%s5277 + $0x148] sm:$0xff]
    %v5320 = vld [vmem:[%s5277 + $0x150] sm:$0xff]
    %v5321 = vld [vmem:[%s5277 + $0x158] sm:$0xff]
    %v5322 = vld [vmem:[%s5277 + $0x160] sm:$0xff]
    %v5323 = vld [vmem:[%s5277 + $0x168] sm:$0xff]
    %v5324 = vld [vmem:[%s5277 + $0x170] sm:$0xff]
    %v5325 = vld [vmem:[%s5277 + $0x178] sm:$0xff]
    %v5326 = vld [vmem:[%s5277 + $0x180] sm:$0xff]
    %v5327 = vld [vmem:[%s5277 + $0x188] sm:$0xff]
    %v5328 = vld [vmem:[%s5277 + $0x190] sm:$0xff]
    %v5329 = vld [vmem:[%s5277 + $0x198] sm:$0xff]
    %v5330 = vld [vmem:[%s5277 + $0x1a0] sm:$0xff]
    %v5331 = vld [vmem:[%s5277 + $0x1a8] sm:$0xff]
    %v5332 = vld [vmem:[%s5277 + $0x1b0] sm:$0xff]
    %v5333 = vld [vmem:[%s5277 + $0x1b8] sm:$0xff]
    %v5334 = vld [vmem:[%s5277 + $0x1c0] sm:$0xff]
    %v5335 = vld [vmem:[%s5277 + $0x1c8] sm:$0xff]
    %v5336 = vld [vmem:[%s5277 + $0x1d0] sm:$0xff]
    %v5337 = vld [vmem:[%s5277 + $0x1d8] sm:$0xff]
    %v5338 = vld [vmem:[%s5277 + $0x1e0] sm:$0xff]
    %v5339 = vld [vmem:[%s5277 + $0x1e8] sm:$0xff]
    %v5340 = vld [vmem:[%s5277 + $0x1f0] sm:$0xff]
    %v5341 = vld [vmem:[%s5277 + $0x1f8] sm:$0xff]
    %v5342 = vld [vmem:[%s5277 + $0x200] sm:$0xff]
    %v5343 = vld [vmem:[%s5277 + $0x208] sm:$0xff]
    %v5344 = vld [vmem:[%s5277 + $0x210] sm:$0xff]
    %v5345 = vld [vmem:[%s5277 + $0x218] sm:$0xff]
    %v5346 = vld [vmem:[%s5277 + $0x220] sm:$0xff]
    %v5347 = vld [vmem:[%s5277 + $0x228] sm:$0xff]
    %v5348 = vld [vmem:[%s5277 + $0x230] sm:$0xff]
    %v5349 = vld [vmem:[%s5277 + $0x238] sm:$0xff]
    %5350 = vmatprep.subr.bf16.mxu0 %v5279
    %5351 = vmatpush1.bf16.msra.mxu0 %v5278
    %5352 = vmatprep.subr.bf16.mxu0 %v5282
    %5353 = vmatpush1.bf16.msra.mxu0 %v5281
    %5354 = vmatprep.subr.bf16.mxu0 %v5285
    %5355 = vmatpush1.bf16.msra.mxu0 %v5284
    %5356 = vmatprep.subr.bf16.mxu0 %v5288
    %5357 = vmatpush1.bf16.msra.mxu0 %v5287
    %5358 = vmatprep.subr.bf16.mxu0 %v5291
    %5359 = vmatpush1.bf16.msra.mxu0 %v5290
    %5360 = vmatprep.subr.bf16.mxu0 %v5294
    %5361 = vmatpush1.bf16.msra.mxu0 %v5293
    %5362 = vmatprep.subr.bf16.mxu0 %v5297
    %5363 = vmatpush1.bf16.msra.mxu0 %v5296
    %5364 = vmatprep.subr.bf16.mxu0 %v5300
    %5365 = vmatpush1.bf16.msra.mxu0 %v5299
    %5366 = vmatprep.subr.bf16.mxu0 %v5303
    %5367 = vmatpush1.bf16.msra.mxu0 %v5302
    %5368 = vmatprep.subr.bf16.mxu0 %v5306
    %5369 = vmatpush1.bf16.msra.mxu0 %v5305
    %5370 = vmatprep.subr.bf16.mxu0 %v5309
    %5371 = vmatpush1.bf16.msra.mxu0 %v5308
    %5372 = vmatprep.subr.bf16.mxu0 %v5312
    %5373 = vmatpush1.bf16.msra.mxu0 %v5311
    %5374 = vmatprep.subr.bf16.mxu0 %v5315
    %5375 = vmatpush1.bf16.msra.mxu0 %v5314
    %5376 = vmatprep.subr.bf16.mxu0 %v5318
    %5377 = vmatpush1.bf16.msra.mxu0 %v5317
    %5378 = vmatprep.subr.bf16.mxu0 %v5321
    %5379 = vmatpush1.bf16.msra.mxu0 %v5320
    %5380 = vmatprep.subr.bf16.mxu0 %v5324
    %5381 = vmatpush1.bf16.msra.mxu0 %v5323
    %5382 = vmatprep.mubr.bf16.mxu0 %v5193
    %5383 = vmatmul.mubr.bf16.gmra.mrb[0].mxu0 %v5192
    %v5384 = vpop.f32.mrb[0].mxu0
    %v5385 = vadd.f32 0.0, %v5384
    %v5386 = vpop.f32.mrb[0].mxu0
    %v5387 = vadd.f32 0.0, %v5386
    %v5388 = vpop.f32.mrb[0].mxu0
    %v5389 = vadd.f32 0.0, %v5388
    %v5390 = vpop.f32.mrb[0].mxu0
    %v5391 = vadd.f32 0.0, %v5390
    %5392 = vdwg.mxu0
    %5393 = vmatprep.subr.bf16.mxu0 %v5327
    %5394 = vmatpush1.bf16.msra.mxu0 %v5326
    %5395 = vmatprep.subr.bf16.mxu0 %v5330
    %5396 = vmatpush1.bf16.msra.mxu0 %v5329
    %5397 = vmatprep.subr.bf16.mxu0 %v5333
    %5398 = vmatpush1.bf16.msra.mxu0 %v5332
    %5399 = vmatprep.subr.bf16.mxu0 %v5336
    %5400 = vmatpush1.bf16.msra.mxu0 %v5335
    %5401 = vmatprep.subr.bf16.mxu0 %v5339
    %5402 = vmatpush1.bf16.msra.mxu0 %v5338
    %5403 = vmatprep.subr.bf16.mxu0 %v5342
    %5404 = vmatpush1.bf16.msra.mxu0 %v5341
    %5405 = vmatprep.subr.bf16.mxu0 %v5345
    %5406 = vmatpush1.bf16.msra.mxu0 %v5344
    %5407 = vmatprep.subr.bf16.mxu0 %v5348
    %5408 = vmatpush1.bf16.msra.mxu0 %v5347
    %5409 = vmatprep.subr.bf16.mxu0 0
    %5410 = vmatpush1.bf16.msra.mxu0 0
    %5411 = vmatprep.subr.bf16.mxu0 0
    %5412 = vmatpush1.bf16.msra.mxu0 0
    %5413 = vmatprep.subr.bf16.mxu0 0
    %5414 = vmatpush1.bf16.msra.mxu0 0
    %5415 = vmatprep.subr.bf16.mxu0 0
    %5416 = vmatpush1.bf16.msra.mxu0 0
    %5417 = vmatprep.subr.bf16.mxu0 0
    %5418 = vmatpush1.bf16.msra.mxu0 0
    %5419 = vmatprep.subr.bf16.mxu0 0
    %5420 = vmatpush1.bf16.msra.mxu0 0
    %5421 = vmatprep.subr.bf16.mxu0 0
    %5422 = vmatpush1.bf16.msra.mxu0 0
    %5423 = vmatprep.subr.bf16.mxu0 0
    %5424 = vmatpush1.bf16.msra.mxu0 0
    %5425 = vmatprep.mubr.bf16.mxu0 0
    %5426 = vmatmul.mubr.bf16.gmra.mrb[0].mxu0 %v5194
    %v5427 = vpop.f32.mrb[0].mxu0
    %v5428 = vadd.f32 %v5385, %v5427
    %v5429 = vpop.f32.mrb[0].mxu0
    %v5430 = vadd.f32 %v5387, %v5429
    %v5431 = vpop.f32.mrb[0].mxu0
    %v5432 = vadd.f32 %v5389, %v5431
    %v5433 = vpop.f32.mrb[0].mxu0
    %v5434 = vadd.f32 %v5391, %v5433
    %5435 = vdwg.mxu0
    %5436 = vmatprep.subr.bf16.mxu0 0
    %5437 = vmatpush1.bf16.msra.mxu0 %v5280
    %5438 = vmatprep.subr.bf16.mxu0 0
    %5439 = vmatpush1.bf16.msra.mxu0 %v5283
    %5440 = vmatprep.subr.bf16.mxu0 0
    %5441 = vmatpush1.bf16.msra.mxu0 %v5286
    %5442 = vmatprep.subr.bf16.mxu0 0
    %5443 = vmatpush1.bf16.msra.mxu0 %v5289
    %5444 = vmatprep.subr.bf16.mxu0 0
    %5445 = vmatpush1.bf16.msra.mxu0 %v5292
    %5446 = vmatprep.subr.bf16.mxu0 0
    %5447 = vmatpush1.bf16.msra.mxu0 %v5295
    %5448 = vmatprep.subr.bf16.mxu0 0
    %5449 = vmatpush1.bf16.msra.mxu0 %v5298
    %5450 = vmatprep.subr.bf16.mxu0 0
    %5451 = vmatpush1.bf16.msra.mxu0 %v5301
    %5452 = vmatprep.subr.bf16.mxu0 0
    %5453 = vmatpush1.bf16.msra.mxu0 %v5304
    %5454 = vmatprep.subr.bf16.mxu0 0
    %5455 = vmatpush1.bf16.msra.mxu0 %v5307
    %5456 = vmatprep.subr.bf16.mxu0 0
    %5457 = vmatpush1.bf16.msra.mxu0 %v5310
    %5458 = vmatprep.subr.bf16.mxu0 0
    %5459 = vmatpush1.bf16.msra.mxu0 %v5313
    %5460 = vmatprep.subr.bf16.mxu0 0
    %5461 = vmatpush1.bf16.msra.mxu0 %v5316
    %5462 = vmatprep.subr.bf16.mxu0 0
    %5463 = vmatpush1.bf16.msra.mxu0 %v5319
    %5464 = vmatprep.subr.bf16.mxu0 0
    %5465 = vmatpush1.bf16.msra.mxu0 %v5322
    %5466 = vmatprep.subr.bf16.mxu0 0
    %5467 = vmatpush1.bf16.msra.mxu0 %v5325
    %5468 = vmatprep.mubr.bf16.mxu0 %v5193
    %5469 = vmatmul.mubr.bf16.gmra.mrb[0].mxu0 %v5192
    %v5470 = vpop.f32.mrb[0].mxu0
    %v5471 = vadd.f32 0.0, %v5470
    %v5472 = vpop.f32.mrb[0].mxu0
    %v5473 = vpop.f32.mrb[0].mxu0
    %v5474 = vadd.f32 0.0, %v5473
    %v5475 = vpop.f32.mrb[0].mxu0
    %5476 = vdwg.mxu0
    %5477 = vmatprep.subr.bf16.mxu0 0
    %5478 = vmatpush1.bf16.msra.mxu0 %v5328
    %5479 = vmatprep.subr.bf16.mxu0 0
    %5480 = vmatpush1.bf16.msra.mxu0 %v5331
    %5481 = vmatprep.subr.bf16.mxu0 0
    %5482 = vmatpush1.bf16.msra.mxu0 %v5334
    %5483 = vmatprep.subr.bf16.mxu0 0
    %5484 = vmatpush1.bf16.msra.mxu0 %v5337
    %5485 = vmatprep.subr.bf16.mxu0 0
    %5486 = vmatpush1.bf16.msra.mxu0 %v5340
    %5487 = vmatprep.subr.bf16.mxu0 0
    %5488 = vmatpush1.bf16.msra.mxu0 %v5343
    %5489 = vmatprep.subr.bf16.mxu0 0
    %5490 = vmatpush1.bf16.msra.mxu0 %v5346
    %5491 = vmatprep.subr.bf16.mxu0 0
    %5492 = vmatpush1.bf16.msra.mxu0 %v5349
    %5493 = vmatprep.subr.bf16.mxu0 0
    %5494 = vmatpush1.bf16.msra.mxu0 0
    %5495 = vmatprep.subr.bf16.mxu0 0
    %5496 = vmatpush1.bf16.msra.mxu0 0
    %5497 = vmatprep.subr.bf16.mxu0 0
    %5498 = vmatpush1.bf16.msra.mxu0 0
    %5499 = vmatprep.subr.bf16.mxu0 0
    %5500 = vmatpush1.bf16.msra.mxu0 0
    %5501 = vmatprep.subr.bf16.mxu0 0
    %5502 = vmatpush1.bf16.msra.mxu0 0
    %5503 = vmatprep.subr.bf16.mxu0 0
    %5504 = vmatpush1.bf16.msra.mxu0 0
    %5505 = vmatprep.subr.bf16.mxu0 0
    %5506 = vmatpush1.bf16.msra.mxu0 0
    %5507 = vmatprep.subr.bf16.mxu0 0
    %5508 = vmatpush1.bf16.msra.mxu0 0
    %5509 = vmatprep.mubr.bf16.mxu0 0
    %5510 = vmatmul.mubr.bf16.gmra.mrb[0].mxu0 %v5194
    %v5511 = vpop.f32.mrb[0].mxu0
    %v5512 = vadd.f32 %v5471, %v5511
    %v5513 = vpop.f32.mrb[0].mxu0
    %v5514 = vpop.f32.mrb[0].mxu0
    %v5515 = vadd.f32 %v5474, %v5514
    %v5516 = vpop.f32.mrb[0].mxu0
    %5517 = vdwg.mxu0
    %5518 = vmatprep.subr.bf16.mxu0 %v5206
    %5519 = vmatpush1.bf16.msra.mxu0 %v5205
    %5520 = vmatprep.subr.bf16.mxu0 %v5209
    %5521 = vmatpush1.bf16.msra.mxu0 %v5208
    %5522 = vmatprep.subr.bf16.mxu0 %v5212
    %5523 = vmatpush1.bf16.msra.mxu0 %v5211
    %5524 = vmatprep.subr.bf16.mxu0 %v5215
    %5525 = vmatpush1.bf16.msra.mxu0 %v5214
    %5526 = vmatprep.subr.bf16.mxu0 %v5218
    %5527 = vmatpush1.bf16.msra.mxu0 %v5217
    %5528 = vmatprep.subr.bf16.mxu0 %v5221
    %5529 = vmatpush1.bf16.msra.mxu0 %v5220
    %5530 = vmatprep.subr.bf16.mxu0 %v5224
    %5531 = vmatpush1.bf16.msra.mxu0 %v5223
    %5532 = vmatprep.subr.bf16.mxu0 %v5227
    %5533 = vmatpush1.bf16.msra.mxu0 %v5226
    %5534 = vmatprep.subr.bf16.mxu0 %v5230
    %5535 = vmatpush1.bf16.msra.mxu0 %v5229
    %5536 = vmatprep.subr.bf16.mxu0 %v5233
    %5537 = vmatpush1.bf16.msra.mxu0 %v5232
    %5538 = vmatprep.subr.bf16.mxu0 %v5236
    %5539 = vmatpush1.bf16.msra.mxu0 %v5235
    %5540 = vmatprep.subr.bf16.mxu0 %v5239
    %5541 = vmatpush1.bf16.msra.mxu0 %v5238
    %5542 = vmatprep.subr.bf16.mxu0 %v5242
    %5543 = vmatpush1.bf16.msra.mxu0 %v5241
    %5544 = vmatprep.subr.bf16.mxu0 %v5245
    %5545 = vmatpush1.bf16.msra.mxu0 %v5244
    %5546 = vmatprep.subr.bf16.mxu0 %v5248
    %5547 = vmatpush1.bf16.msra.mxu0 %v5247
    %5548 = vmatprep.subr.bf16.mxu0 %v5251
    %5549 = vmatpush1.bf16.msra.mxu0 %v5250
    %5550 = vmatprep.mubr.bf16.mxu0 %v5190
    %5551 = vmatmul.mubr.bf16.gmra.mrb[0].mxu0 %v5189
    %v5552 = vpop.f32.mrb[0].mxu0
    %v5553 = vadd.f32 %v5428, %v5552
    %v5554 = vpop.f32.mrb[0].mxu0
    %v5555 = vadd.f32 %v5430, %v5554
    %v5556 = vpop.f32.mrb[0].mxu0
    %v5557 = vadd.f32 %v5432, %v5556
    %v5558 = vpop.f32.mrb[0].mxu0
    %v5559 = vadd.f32 %v5434, %v5558
    %5560 = vdwg.mxu0
    %5561 = vmatprep.subr.bf16.mxu0 %v5254
    %5562 = vmatpush1.bf16.msra.mxu0 %v5253
    %5563 = vmatprep.subr.bf16.mxu0 %v5257
    %5564 = vmatpush1.bf16.msra.mxu0 %v5256
    %5565 = vmatprep.subr.bf16.mxu0 %v5260
    %5566 = vmatpush1.bf16.msra.mxu0 %v5259
    %5567 = vmatprep.subr.bf16.mxu0 %v5263
    %5568 = vmatpush1.bf16.msra.mxu0 %v5262
    %5569 = vmatprep.subr.bf16.mxu0 %v5266
    %5570 = vmatpush1.bf16.msra.mxu0 %v5265
    %5571 = vmatprep.subr.bf16.mxu0 %v5269
    %5572 = vmatpush1.bf16.msra.mxu0 %v5268
    %5573 = vmatprep.subr.bf16.mxu0 %v5272
    %5574 = vmatpush1.bf16.msra.mxu0 %v5271
    %5575 = vmatprep.subr.bf16.mxu0 %v5275
    %5576 = vmatpush1.bf16.msra.mxu0 %v5274
    %5577 = vmatprep.subr.bf16.mxu0 0
    %5578 = vmatpush1.bf16.msra.mxu0 0
    %5579 = vmatprep.subr.bf16.mxu0 0
    %5580 = vmatpush1.bf16.msra.mxu0 0
    %5581 = vmatprep.subr.bf16.mxu0 0
    %5582 = vmatpush1.bf16.msra.mxu0 0
    %5583 = vmatprep.subr.bf16.mxu0 0
    %5584 = vmatpush1.bf16.msra.mxu0 0
    %5585 = vmatprep.subr.bf16.mxu0 0
    %5586 = vmatpush1.bf16.msra.mxu0 0
    %5587 = vmatprep.subr.bf16.mxu0 0
    %5588 = vmatpush1.bf16.msra.mxu0 0
    %5589 = vmatprep.subr.bf16.mxu0 0
    %5590 = vmatpush1.bf16.msra.mxu0 0
    %5591 = vmatprep.subr.bf16.mxu0 0
    %5592 = vmatpush1.bf16.msra.mxu0 0
    %5593 = vmatprep.mubr.bf16.mxu0 0
    %5594 = vmatmul.mubr.bf16.gmra.mrb[0].mxu0 %v5191
    %v5595 = vpop.f32.mrb[0].mxu0
    %v5596 = vadd.f32 %v5553, %v5595
    %v5597 = vpop.f32.mrb[0].mxu0
    %v5598 = vadd.f32 %v5555, %v5597
    %v5599 = vpop.f32.mrb[0].mxu0
    %v5600 = vadd.f32 %v5557, %v5599
    %v5601 = vpop.f32.mrb[0].mxu0
    %v5602 = vadd.f32 %v5559, %v5601
    %5603 = vdwg.mxu0
    %5604 = vmatprep.subr.bf16.mxu0 0
    %5605 = vmatpush1.bf16.msra.mxu0 %v5207
    %5606 = vmatprep.subr.bf16.mxu0 0
    %5607 = vmatpush1.bf16.msra.mxu0 %v5210
    %5608 = vmatprep.subr.bf16.mxu0 0
    %5609 = vmatpush1.bf16.msra.mxu0 %v5213
    %5610 = vmatprep.subr.bf16.mxu0 0
    %5611 = vmatpush1.bf16.msra.mxu0 %v5216
    %5612 = vmatprep.subr.bf16.mxu0 0
    %5613 = vmatpush1.bf16.msra.mxu0 %v5219
    %5614 = vmatprep.subr.bf16.mxu0 0
    %5615 = vmatpush1.bf16.msra.mxu0 %v5222
    %5616 = vmatprep.subr.bf16.mxu0 0
    %5617 = vmatpush1.bf16.msra.mxu0 %v5225
    %5618 = vmatprep.subr.bf16.mxu0 0
    %5619 = vmatpush1.bf16.msra.mxu0 %v5228
    %5620 = vmatprep.subr.bf16.mxu0 0
    %5621 = vmatpush1.bf16.msra.mxu0 %v5231
    %5622 = vmatprep.subr.bf16.mxu0 0
    %5623 = vmatpush1.bf16.msra.mxu0 %v5234
    %5624 = vmatprep.subr.bf16.mxu0 0
    %5625 = vmatpush1.bf16.msra.mxu0 %v5237
    %5626 = vmatprep.subr.bf16.mxu0 0
    %5627 = vmatpush1.bf16.msra.mxu0 %v5240
    %5628 = vmatprep.subr.bf16.mxu0 0
    %5629 = vmatpush1.bf16.msra.mxu0 %v5243
    %5630 = vmatprep.subr.bf16.mxu0 0
    %5631 = vmatpush1.bf16.msra.mxu0 %v5246
    %5632 = vmatprep.subr.bf16.mxu0 0
    %5633 = vmatpush1.bf16.msra.mxu0 %v5249
    %5634 = vmatprep.subr.bf16.mxu0 0
    %5635 = vmatpush1.bf16.msra.mxu0 %v5252
    %5636 = vmatprep.mubr.bf16.mxu0 %v5190
    %5637 = vmatmul.mubr.bf16.gmra.mrb[0].mxu0 %v5189
    %v5638 = vpop.f32.mrb[0].mxu0
    %v5639 = vadd.f32 %v5512, %v5638
    %v5640 = vpop.f32.mrb[0].mxu0
    %v5641 = vpop.f32.mrb[0].mxu0
    %v5642 = vadd.f32 %v5515, %v5641
    %v5643 = vpop.f32.mrb[0].mxu0
    %5644 = vdwg.mxu0
    %5645 = vmatprep.subr.bf16.mxu0 0
    %5646 = vmatpush1.bf16.msra.mxu0 %v5255
    %5647 = vmatprep.subr.bf16.mxu0 0
    %5648 = vmatpush1.bf16.msra.mxu0 %v5258
    %5649 = vmatprep.subr.bf16.mxu0 0
    %5650 = vmatpush1.bf16.msra.mxu0 %v5261
    %5651 = vmatprep.subr.bf16.mxu0 0
    %5652 = vmatpush1.bf16.msra.mxu0 %v5264
    %5653 = vmatprep.subr.bf16.mxu0 0
    %5654 = vmatpush1.bf16.msra.mxu0 %v5267
    %5655 = vmatprep.subr.bf16.mxu0 0
    %5656 = vmatpush1.bf16.msra.mxu0 %v5270
    %5657 = vmatprep.subr.bf16.mxu0 0
    %5658 = vmatpush1.bf16.msra.mxu0 %v5273
    %5659 = vmatprep.subr.bf16.mxu0 0
    %5660 = vmatpush1.bf16.msra.mxu0 %v5276
    %5661 = vmatprep.subr.bf16.mxu0 0
    %5662 = vmatpush1.bf16.msra.mxu0 0
    %5663 = vmatprep.subr.bf16.mxu0 0
    %5664 = vmatpush1.bf16.msra.mxu0 0
    %5665 = vmatprep.subr.bf16.mxu0 0
    %5666 = vmatpush1.bf16.msra.mxu0 0
    %5667 = vmatprep.subr.bf16.mxu0 0
    %5668 = vmatpush1.bf16.msra.mxu0 0
    %5669 = vmatprep.subr.bf16.mxu0 0
    %5670 = vmatpush1.bf16.msra.mxu0 0
    %5671 = vmatprep.subr.bf16.mxu0 0
    %5672 = vmatpush1.bf16.msra.mxu0 0
    %5673 = vmatprep.subr.bf16.mxu0 0
    %5674 = vmatpush1.bf16.msra.mxu0 0
    %5675 = vmatprep.subr.bf16.mxu0 0
    %5676 = vmatpush1.bf16.msra.mxu0 0
    %5677 = vmatprep.mubr.bf16.mxu0 0
    %5678 = vmatmul.mubr.bf16.gmra.mrb[0].mxu0 %v5191
    %v5679 = vpop.f32.mrb[0].mxu0
    %v5680 = vadd.f32 %v5639, %v5679
    %v5681 = vpop.f32.mrb[0].mxu0
    %v5682 = vpop.f32.mrb[0].mxu0
    %v5683 = vadd.f32 %v5642, %v5682
    %v5684 = vpop.f32.mrb[0].mxu0
    %5685 = vdwg.mxu0
    %s5686 = scalar_lea.vmem [#allocation7], 1152
    %v5687 = vld [vmem:[%s5686] sm:$0xff]
    %v5688 = vld [vmem:[%s5686 + $0x8] sm:$0xff]
    %v5689 = vld [vmem:[%s5686 + $0x10] sm:$0xff]
    %v5690 = vld [vmem:[%s5686 + $0x18] sm:$0xff]
    %v5691 = vld [vmem:[%s5686 + $0x20] sm:$0xff]
    %v5692 = vld [vmem:[%s5686 + $0x28] sm:$0xff]
    %v5693 = vld [vmem:[%s5686 + $0x30] sm:$0xff]
    %v5694 = vld [vmem:[%s5686 + $0x38] sm:$0xff]
    %v5695 = vld [vmem:[%s5686 + $0x40] sm:$0xff]
    %v5696 = vld [vmem:[%s5686 + $0x48] sm:$0xff]
    %v5697 = vld [vmem:[%s5686 + $0x50] sm:$0xff]
    %v5698 = vld [vmem:[%s5686 + $0x58] sm:$0xff]
    %v5699 = vld [vmem:[%s5686 + $0x60] sm:$0xff]
    %v5700 = vld [vmem:[%s5686 + $0x68] sm:$0xff]
    %v5701 = vld [vmem:[%s5686 + $0x70] sm:$0xff]
    %v5702 = vld [vmem:[%s5686 + $0x78] sm:$0xff]
    %v5703 = vld [vmem:[%s5686 + $0x80] sm:$0xff]
    %v5704 = vld [vmem:[%s5686 + $0x88] sm:$0xff]
    %v5705 = vld [vmem:[%s5686 + $0x90] sm:$0xff]
    %v5706 = vld [vmem:[%s5686 + $0x98] sm:$0xff]
    %v5707 = vld [vmem:[%s5686 + $0xa0] sm:$0xff]
    %v5708 = vld [vmem:[%s5686 + $0xa8] sm:$0xff]
    %v5709 = vld [vmem:[%s5686 + $0xb0] sm:$0xff]
    %v5710 = vld [vmem:[%s5686 + $0xb8] sm:$0xff]
    %v5711 = vld [vmem:[%s5686 + $0xc0] sm:$0xff]
    %v5712 = vld [vmem:[%s5686 + $0xc8] sm:$0xff]
    %v5713 = vld [vmem:[%s5686 + $0xd0] sm:$0xff]
    %v5714 = vld [vmem:[%s5686 + $0xd8] sm:$0xff]
    %v5715 = vld [vmem:[%s5686 + $0xe0] sm:$0xff]
    %v5716 = vld [vmem:[%s5686 + $0xe8] sm:$0xff]
    %v5717 = vld [vmem:[%s5686 + $0xf0] sm:$0xff]
    %v5718 = vld [vmem:[%s5686 + $0xf8] sm:$0xff]
    %v5719 = vld [vmem:[%s5686 + $0x100] sm:$0xff]
    %v5720 = vld [vmem:[%s5686 + $0x108] sm:$0xff]
    %v5721 = vld [vmem:[%s5686 + $0x110] sm:$0xff]
    %v5722 = vld [vmem:[%s5686 + $0x118] sm:$0xff]
    %v5723 = vld [vmem:[%s5686 + $0x120] sm:$0xff]
    %v5724 = vld [vmem:[%s5686 + $0x128] sm:$0xff]
    %v5725 = vld [vmem:[%s5686 + $0x130] sm:$0xff]
    %v5726 = vld [vmem:[%s5686 + $0x138] sm:$0xff]
    %v5727 = vld [vmem:[%s5686 + $0x140] sm:$0xff]
    %v5728 = vld [vmem:[%s5686 + $0x148] sm:$0xff]
    %v5729 = vld [vmem:[%s5686 + $0x150] sm:$0xff]
    %v5730 = vld [vmem:[%s5686 + $0x158] sm:$0xff]
    %v5731 = vld [vmem:[%s5686 + $0x160] sm:$0xff]
    %v5732 = vld [vmem:[%s5686 + $0x168] sm:$0xff]
    %v5733 = vld [vmem:[%s5686 + $0x170] sm:$0xff]
    %v5734 = vld [vmem:[%s5686 + $0x178] sm:$0xff]
    %v5735 = vld [vmem:[%s5686 + $0x180] sm:$0xff]
    %v5736 = vld [vmem:[%s5686 + $0x188] sm:$0xff]
    %v5737 = vld [vmem:[%s5686 + $0x190] sm:$0xff]
    %v5738 = vld [vmem:[%s5686 + $0x198] sm:$0xff]
    %v5739 = vld [vmem:[%s5686 + $0x1a0] sm:$0xff]
    %v5740 = vld [vmem:[%s5686 + $0x1a8] sm:$0xff]
    %v5741 = vld [vmem:[%s5686 + $0x1b0] sm:$0xff]
    %v5742 = vld [vmem:[%s5686 + $0x1b8] sm:$0xff]
    %v5743 = vld [vmem:[%s5686 + $0x1c0] sm:$0xff]
    %v5744 = vld [vmem:[%s5686 + $0x1c8] sm:$0xff]
    %v5745 = vld [vmem:[%s5686 + $0x1d0] sm:$0xff]
    %v5746 = vld [vmem:[%s5686 + $0x1d8] sm:$0xff]
    %v5747 = vld [vmem:[%s5686 + $0x1e0] sm:$0xff]
    %v5748 = vld [vmem:[%s5686 + $0x1e8] sm:$0xff]
    %v5749 = vld [vmem:[%s5686 + $0x1f0] sm:$0xff]
    %v5750 = vld [vmem:[%s5686 + $0x1f8] sm:$0xff]
    %v5751 = vld [vmem:[%s5686 + $0x200] sm:$0xff]
    %v5752 = vld [vmem:[%s5686 + $0x208] sm:$0xff]
    %v5753 = vld [vmem:[%s5686 + $0x210] sm:$0xff]
    %v5754 = vld [vmem:[%s5686 + $0x218] sm:$0xff]
    %v5755 = vld [vmem:[%s5686 + $0x220] sm:$0xff]
    %v5756 = vld [vmem:[%s5686 + $0x228] sm:$0xff]
    %v5757 = vld [vmem:[%s5686 + $0x230] sm:$0xff]
    %v5758 = vld [vmem:[%s5686 + $0x238] sm:$0xff]
    %5759 = vmatprep.subr.bf16.mxu0 %v5688
    %5760 = vmatpush1.bf16.msra.mxu0 %v5687
    %5761 = vmatprep.subr.bf16.mxu0 %v5691
    %5762 = vmatpush1.bf16.msra.mxu0 %v5690
    %5763 = vmatprep.subr.bf16.mxu0 %v5694
    %5764 = vmatpush1.bf16.msra.mxu0 %v5693
    %5765 = vmatprep.subr.bf16.mxu0 %v5697
    %5766 = vmatpush1.bf16.msra.mxu0 %v5696
    %5767 = vmatprep.subr.bf16.mxu0 %v5700
    %5768 = vmatpush1.bf16.msra.mxu0 %v5699
    %5769 = vmatprep.subr.bf16.mxu0 %v5703
    %5770 = vmatpush1.bf16.msra.mxu0 %v5702
    %5771 = vmatprep.subr.bf16.mxu0 %v5706
    %5772 = vmatpush1.bf16.msra.mxu0 %v5705
    %5773 = vmatprep.subr.bf16.mxu0 %v5709
    %5774 = vmatpush1.bf16.msra.mxu0 %v5708
    %5775 = vmatprep.subr.bf16.mxu0 %v5712
    %5776 = vmatpush1.bf16.msra.mxu0 %v5711
    %5777 = vmatprep.subr.bf16.mxu0 %v5715
    %5778 = vmatpush1.bf16.msra.mxu0 %v5714
    %5779 = vmatprep.subr.bf16.mxu0 %v5718
    %5780 = vmatpush1.bf16.msra.mxu0 %v5717
    %5781 = vmatprep.subr.bf16.mxu0 %v5721
    %5782 = vmatpush1.bf16.msra.mxu0 %v5720
    %5783 = vmatprep.subr.bf16.mxu0 %v5724
    %5784 = vmatpush1.bf16.msra.mxu0 %v5723
    %5785 = vmatprep.subr.bf16.mxu0 %v5727
    %5786 = vmatpush1.bf16.msra.mxu0 %v5726
    %5787 = vmatprep.subr.bf16.mxu0 %v5730
    %5788 = vmatpush1.bf16.msra.mxu0 %v5729
    %5789 = vmatprep.subr.bf16.mxu0 %v5733
    %5790 = vmatpush1.bf16.msra.mxu0 %v5732
    %5791 = vmatprep.mubr.bf16.mxu0 %v5196
    %5792 = vmatmul.mubr.bf16.gmra.mrb[0].mxu0 %v5195
    %v5793 = vpop.f32.mrb[0].mxu0
    %v5794 = vadd.f32 0.0, %v5793
    %v5795 = vpop.f32.mrb[0].mxu0
    %v5796 = vadd.f32 0.0, %v5795
    %v5797 = vpop.f32.mrb[0].mxu0
    %v5798 = vadd.f32 0.0, %v5797
    %v5799 = vpop.f32.mrb[0].mxu0
    %v5800 = vadd.f32 0.0, %v5799
    %5801 = vdwg.mxu0
    %5802 = vmatprep.subr.bf16.mxu0 %v5736
    %5803 = vmatpush1.bf16.msra.mxu0 %v5735
    %5804 = vmatprep.subr.bf16.mxu0 %v5739
    %5805 = vmatpush1.bf16.msra.mxu0 %v5738
    %5806 = vmatprep.subr.bf16.mxu0 %v5742
    %5807 = vmatpush1.bf16.msra.mxu0 %v5741
    %5808 = vmatprep.subr.bf16.mxu0 %v5745
    %5809 = vmatpush1.bf16.msra.mxu0 %v5744
    %5810 = vmatprep.subr.bf16.mxu0 %v5748
    %5811 = vmatpush1.bf16.msra.mxu0 %v5747
    %5812 = vmatprep.subr.bf16.mxu0 %v5751
    %5813 = vmatpush1.bf16.msra.mxu0 %v5750
    %5814 = vmatprep.subr.bf16.mxu0 %v5754
    %5815 = vmatpush1.bf16.msra.mxu0 %v5753
    %5816 = vmatprep.subr.bf16.mxu0 %v5757
    %5817 = vmatpush1.bf16.msra.mxu0 %v5756
    %5818 = vmatprep.subr.bf16.mxu0 0
    %5819 = vmatpush1.bf16.msra.mxu0 0
    %5820 = vmatprep.subr.bf16.mxu0 0
    %5821 = vmatpush1.bf16.msra.mxu0 0
    %5822 = vmatprep.subr.bf16.mxu0 0
    %5823 = vmatpush1.bf16.msra.mxu0 0
    %5824 = vmatprep.subr.bf16.mxu0 0
    %5825 = vmatpush1.bf16.msra.mxu0 0
    %5826 = vmatprep.subr.bf16.mxu0 0
    %5827 = vmatpush1.bf16.msra.mxu0 0
    %5828 = vmatprep.subr.bf16.mxu0 0
    %5829 = vmatpush1.bf16.msra.mxu0 0
    %5830 = vmatprep.subr.bf16.mxu0 0
    %5831 = vmatpush1.bf16.msra.mxu0 0
    %5832 = vmatprep.subr.bf16.mxu0 0
    %5833 = vmatpush1.bf16.msra.mxu0 0
    %5834 = vmatprep.mubr.bf16.mxu0 0
    %5835 = vmatmul.mubr.bf16.gmra.mrb[0].mxu0 %v5197
    %v5836 = vpop.f32.mrb[0].mxu0
    %v5837 = vadd.f32 %v5794, %v5836
    %v5838 = vpop.f32.mrb[0].mxu0
    %v5839 = vadd.f32 %v5796, %v5838
    %v5840 = vpop.f32.mrb[0].mxu0
    %v5841 = vadd.f32 %v5798, %v5840
    %v5842 = vpop.f32.mrb[0].mxu0
    %v5843 = vadd.f32 %v5800, %v5842
    %5844 = vdwg.mxu0
    %5845 = vmatprep.subr.bf16.mxu0 0
    %5846 = vmatpush1.bf16.msra.mxu0 %v5689
    %5847 = vmatprep.subr.bf16.mxu0 0
    %5848 = vmatpush1.bf16.msra.mxu0 %v5692
    %5849 = vmatprep.subr.bf16.mxu0 0
    %5850 = vmatpush1.bf16.msra.mxu0 %v5695
    %5851 = vmatprep.subr.bf16.mxu0 0
    %5852 = vmatpush1.bf16.msra.mxu0 %v5698
    %5853 = vmatprep.subr.bf16.mxu0 0
    %5854 = vmatpush1.bf16.msra.mxu0 %v5701
    %5855 = vmatprep.subr.bf16.mxu0 0
    %5856 = vmatpush1.bf16.msra.mxu0 %v5704
    %5857 = vmatprep.subr.bf16.mxu0 0
    %5858 = vmatpush1.bf16.msra.mxu0 %v5707
    %5859 = vmatprep.subr.bf16.mxu0 0
    %5860 = vmatpush1.bf16.msra.mxu0 %v5710
    %5861 = vmatprep.subr.bf16.mxu0 0
    %5862 = vmatpush1.bf16.msra.mxu0 %v5713
    %5863 = vmatprep.subr.bf16.mxu0 0
    %5864 = vmatpush1.bf16.msra.mxu0 %v5716
    %5865 = vmatprep.subr.bf16.mxu0 0
    %5866 = vmatpush1.bf16.msra.mxu0 %v5719
    %5867 = vmatprep.subr.bf16.mxu0 0
    %5868 = vmatpush1.bf16.msra.mxu0 %v5722
    %5869 = vmatprep.subr.bf16.mxu0 0
    %5870 = vmatpush1.bf16.msra.mxu0 %v5725
    %5871 = vmatprep.subr.bf16.mxu0 0
    %5872 = vmatpush1.bf16.msra.mxu0 %v5728
    %5873 = vmatprep.subr.bf16.mxu0 0
    %5874 = vmatpush1.bf16.msra.mxu0 %v5731
    %5875 = vmatprep.subr.bf16.mxu0 0
    %5876 = vmatpush1.bf16.msra.mxu0 %v5734
    %5877 = vmatprep.mubr.bf16.mxu0 %v5196
    %5878 = vmatmul.mubr.bf16.gmra.mrb[0].mxu0 %v5195
    %v5879 = vpop.f32.mrb[0].mxu0
    %v5880 = vadd.f32 0.0, %v5879
    %v5881 = vpop.f32.mrb[0].mxu0
    %v5882 = vpop.f32.mrb[0].mxu0
    %v5883 = vadd.f32 0.0, %v5882
    %v5884 = vpop.f32.mrb[0].mxu0
    %5885 = vdwg.mxu0
    %5886 = vmatprep.subr.bf16.mxu0 0
    %5887 = vmatpush1.bf16.msra.mxu0 %v5737
    %5888 = vmatprep.subr.bf16.mxu0 0
    %5889 = vmatpush1.bf16.msra.mxu0 %v5740
    %5890 = vmatprep.subr.bf16.mxu0 0
    %5891 = vmatpush1.bf16.msra.mxu0 %v5743
    %5892 = vmatprep.subr.bf16.mxu0 0
    %5893 = vmatpush1.bf16.msra.mxu0 %v5746
    %5894 = vmatprep.subr.bf16.mxu0 0
    %5895 = vmatpush1.bf16.msra.mxu0 %v5749
    %5896 = vmatprep.subr.bf16.mxu0 0
    %5897 = vmatpush1.bf16.msra.mxu0 %v5752
    %5898 = vmatprep.subr.bf16.mxu0 0
    %5899 = vmatpush1.bf16.msra.mxu0 %v5755
    %5900 = vmatprep.subr.bf16.mxu0 0
    %5901 = vmatpush1.bf16.msra.mxu0 %v5758
    %5902 = vmatprep.subr.bf16.mxu0 0
    %5903 = vmatpush1.bf16.msra.mxu0 0
    %5904 = vmatprep.subr.bf16.mxu0 0
    %5905 = vmatpush1.bf16.msra.mxu0 0
    %5906 = vmatprep.subr.bf16.mxu0 0
    %5907 = vmatpush1.bf16.msra.mxu0 0
    %5908 = vmatprep.subr.bf16.mxu0 0
    %5909 = vmatpush1.bf16.msra.mxu0 0
    %5910 = vmatprep.subr.bf16.mxu0 0
    %5911 = vmatpush1.bf16.msra.mxu0 0
    %5912 = vmatprep.subr.bf16.mxu0 0
    %5913 = vmatpush1.bf16.msra.mxu0 0
    %5914 = vmatprep.subr.bf16.mxu0 0
    %5915 = vmatpush1.bf16.msra.mxu0 0
    %5916 = vmatprep.subr.bf16.mxu0 0
    %5917 = vmatpush1.bf16.msra.mxu0 0
    %5918 = vmatprep.mubr.bf16.mxu0 0
    %5919 = vmatmul.mubr.bf16.gmra.mrb[0].mxu0 %v5197
    %v5920 = vpop.f32.mrb[0].mxu0
    %v5921 = vadd.f32 %v5880, %v5920
    %v5922 = vpop.f32.mrb[0].mxu0
    %v5923 = vpop.f32.mrb[0].mxu0
    %v5924 = vadd.f32 %v5883, %v5923
    %v5925 = vpop.f32.mrb[0].mxu0
    %5926 = vdwg.mxu0
    %v5927 = vadd.f32 %v5596, %v5837
    %v5928 = vadd.f32 %v5598, %v5839
    %v5929 = vadd.f32 %v5680, %v5921
    %v5930 = vadd.f32 %v5600, %v5841
    %v5931 = vadd.f32 %v5602, %v5843
    %v5932 = vadd.f32 %v5683, %v5924
    %s5933 = scalar_lea.vmem [#allocation7], 1728
    %v5934 = vld [vmem:[%s5933] sm:$0xff]
    %v5935 = vld [vmem:[%s5933 + $0x8] sm:$0xff]
    %v5936 = vld [vmem:[%s5933 + $0x10] sm:$0xff]
    %v5937 = vld [vmem:[%s5933 + $0x18] sm:$0xff]
    %v5938 = vld [vmem:[%s5933 + $0x20] sm:$0xff]
    %v5939 = vld [vmem:[%s5933 + $0x28] sm:$0xff]
    %v5940 = vld [vmem:[%s5933 + $0x30] sm:$0xff]
    %v5941 = vld [vmem:[%s5933 + $0x38] sm:$0xff]
    %v5942 = vld [vmem:[%s5933 + $0x40] sm:$0xff]
    %v5943 = vld [vmem:[%s5933 + $0x48] sm:$0xff]
    %v5944 = vld [vmem:[%s5933 + $0x50] sm:$0xff]
    %v5945 = vld [vmem:[%s5933 + $0x58] sm:$0xff]
    %v5946 = vld [vmem:[%s5933 + $0x60] sm:$0xff]
    %v5947 = vld [vmem:[%s5933 + $0x68] sm:$0xff]
    %v5948 = vld [vmem:[%s5933 + $0x70] sm:$0xff]
    %v5949 = vld [vmem:[%s5933 + $0x78] sm:$0xff]
    %v5950 = vld [vmem:[%s5933 + $0x80] sm:$0xff]
    %v5951 = vld [vmem:[%s5933 + $0x88] sm:$0xff]
    %v5952 = vld [vmem:[%s5933 + $0x90] sm:$0xff]
    %v5953 = vld [vmem:[%s5933 + $0x98] sm:$0xff]
    %v5954 = vld [vmem:[%s5933 + $0xa0] sm:$0xff]
    %v5955 = vld [vmem:[%s5933 + $0xa8] sm:$0xff]
    %v5956 = vld [vmem:[%s5933 + $0xb0] sm:$0xff]
    %v5957 = vld [vmem:[%s5933 + $0xb8] sm:$0xff]
    %v5958 = vld [vmem:[%s5933 + $0xc0] sm:$0xff]
    %v5959 = vld [vmem:[%s5933 + $0xc8] sm:$0xff]
    %v5960 = vld [vmem:[%s5933 + $0xd0] sm:$0xff]
    %v5961 = vld [vmem:[%s5933 + $0xd8] sm:$0xff]
    %v5962 = vld [vmem:[%s5933 + $0xe0] sm:$0xff]
    %v5963 = vld [vmem:[%s5933 + $0xe8] sm:$0xff]
    %v5964 = vld [vmem:[%s5933 + $0xf0] sm:$0xff]
    %v5965 = vld [vmem:[%s5933 + $0xf8] sm:$0xff]
    %v5966 = vld [vmem:[%s5933 + $0x100] sm:$0xff]
    %v5967 = vld [vmem:[%s5933 + $0x108] sm:$0xff]
    %v5968 = vld [vmem:[%s5933 + $0x110] sm:$0xff]
    %v5969 = vld [vmem:[%s5933 + $0x118] sm:$0xff]
    %v5970 = vld [vmem:[%s5933 + $0x120] sm:$0xff]
    %v5971 = vld [vmem:[%s5933 + $0x128] sm:$0xff]
    %v5972 = vld [vmem:[%s5933 + $0x130] sm:$0xff]
    %v5973 = vld [vmem:[%s5933 + $0x138] sm:$0xff]
    %v5974 = vld [vmem:[%s5933 + $0x140] sm:$0xff]
    %v5975 = vld [vmem:[%s5933 + $0x148] sm:$0xff]
    %v5976 = vld [vmem:[%s5933 + $0x150] sm:$0xff]
    %v5977 = vld [vmem:[%s5933 + $0x158] sm:$0xff]
    %v5978 = vld [vmem:[%s5933 + $0x160] sm:$0xff]
    %v5979 = vld [vmem:[%s5933 + $0x168] sm:$0xff]
    %v5980 = vld [vmem:[%s5933 + $0x170] sm:$0xff]
    %v5981 = vld [vmem:[%s5933 + $0x178] sm:$0xff]
    %v5982 = vld [vmem:[%s5933 + $0x180] sm:$0xff]
    %v5983 = vld [vmem:[%s5933 + $0x188] sm:$0xff]
    %v5984 = vld [vmem:[%s5933 + $0x190] sm:$0xff]
    %v5985 = vld [vmem:[%s5933 + $0x198] sm:$0xff]
    %v5986 = vld [vmem:[%s5933 + $0x1a0] sm:$0xff]
    %v5987 = vld [vmem:[%s5933 + $0x1a8] sm:$0xff]
    %v5988 = vld [vmem:[%s5933 + $0x1b0] sm:$0xff]
    %v5989 = vld [vmem:[%s5933 + $0x1b8] sm:$0xff]
    %v5990 = vld [vmem:[%s5933 + $0x1c0] sm:$0xff]
    %v5991 = vld [vmem:[%s5933 + $0x1c8] sm:$0xff]
    %v5992 = vld [vmem:[%s5933 + $0x1d0] sm:$0xff]
    %v5993 = vld [vmem:[%s5933 + $0x1d8] sm:$0xff]
    %v5994 = vld [vmem:[%s5933 + $0x1e0] sm:$0xff]
    %v5995 = vld [vmem:[%s5933 + $0x1e8] sm:$0xff]
    %v5996 = vld [vmem:[%s5933 + $0x1f0] sm:$0xff]
    %v5997 = vld [vmem:[%s5933 + $0x1f8] sm:$0xff]
    %v5998 = vld [vmem:[%s5933 + $0x200] sm:$0xff]
    %v5999 = vld [vmem:[%s5933 + $0x208] sm:$0xff]
    %v6000 = vld [vmem:[%s5933 + $0x210] sm:$0xff]
    %v6001 = vld [vmem:[%s5933 + $0x218] sm:$0xff]
    %v6002 = vld [vmem:[%s5933 + $0x220] sm:$0xff]
    %v6003 = vld [vmem:[%s5933 + $0x228] sm:$0xff]
    %v6004 = vld [vmem:[%s5933 + $0x230] sm:$0xff]
    %v6005 = vld [vmem:[%s5933 + $0x238] sm:$0xff]
    %6006 = vmatprep.subr.bf16.mxu0 %v5935
    %6007 = vmatpush1.bf16.msra.mxu0 %v5934
    %6008 = vmatprep.subr.bf16.mxu0 %v5938
    %6009 = vmatpush1.bf16.msra.mxu0 %v5937
    %6010 = vmatprep.subr.bf16.mxu0 %v5941
    %6011 = vmatpush1.bf16.msra.mxu0 %v5940
    %6012 = vmatprep.subr.bf16.mxu0 %v5944
    %6013 = vmatpush1.bf16.msra.mxu0 %v5943
    %6014 = vmatprep.subr.bf16.mxu0 %v5947
    %6015 = vmatpush1.bf16.msra.mxu0 %v5946
    %6016 = vmatprep.subr.bf16.mxu0 %v5950
    %6017 = vmatpush1.bf16.msra.mxu0 %v5949
    %6018 = vmatprep.subr.bf16.mxu0 %v5953
    %6019 = vmatpush1.bf16.msra.mxu0 %v5952
    %6020 = vmatprep.subr.bf16.mxu0 %v5956
    %6021 = vmatpush1.bf16.msra.mxu0 %v5955
    %6022 = vmatprep.subr.bf16.mxu0 %v5959
    %6023 = vmatpush1.bf16.msra.mxu0 %v5958
    %6024 = vmatprep.subr.bf16.mxu0 %v5962
    %6025 = vmatpush1.bf16.msra.mxu0 %v5961
    %6026 = vmatprep.subr.bf16.mxu0 %v5965
    %6027 = vmatpush1.bf16.msra.mxu0 %v5964
    %6028 = vmatprep.subr.bf16.mxu0 %v5968
    %6029 = vmatpush1.bf16.msra.mxu0 %v5967
    %6030 = vmatprep.subr.bf16.mxu0 %v5971
    %6031 = vmatpush1.bf16.msra.mxu0 %v5970
    %6032 = vmatprep.subr.bf16.mxu0 %v5974
    %6033 = vmatpush1.bf16.msra.mxu0 %v5973
    %6034 = vmatprep.subr.bf16.mxu0 %v5977
    %6035 = vmatpush1.bf16.msra.mxu0 %v5976
    %6036 = vmatprep.subr.bf16.mxu0 %v5980
    %6037 = vmatpush1.bf16.msra.mxu0 %v5979
    %6038 = vmatprep.mubr.bf16.mxu0 %v5199
    %6039 = vmatmul.mubr.bf16.gmra.mrb[0].mxu0 %v5198
    %v6040 = vpop.f32.mrb[0].mxu0
    %v6041 = vadd.f32 0.0, %v6040
    %v6042 = vpop.f32.mrb[0].mxu0
    %v6043 = vadd.f32 0.0, %v6042
    %v6044 = vpop.f32.mrb[0].mxu0
    %v6045 = vadd.f32 0.0, %v6044
    %v6046 = vpop.f32.mrb[0].mxu0
    %v6047 = vadd.f32 0.0, %v6046
    %6048 = vdwg.mxu0
    %6049 = vmatprep.subr.bf16.mxu0 %v5983
    %6050 = vmatpush1.bf16.msra.mxu0 %v5982
    %6051 = vmatprep.subr.bf16.mxu0 %v5986
    %6052 = vmatpush1.bf16.msra.mxu0 %v5985
    %6053 = vmatprep.subr.bf16.mxu0 %v5989
    %6054 = vmatpush1.bf16.msra.mxu0 %v5988
    %6055 = vmatprep.subr.bf16.mxu0 %v5992
    %6056 = vmatpush1.bf16.msra.mxu0 %v5991
    %6057 = vmatprep.subr.bf16.mxu0 %v5995
    %6058 = vmatpush1.bf16.msra.mxu0 %v5994
    %6059 = vmatprep.subr.bf16.mxu0 %v5998
    %6060 = vmatpush1.bf16.msra.mxu0 %v5997
    %6061 = vmatprep.subr.bf16.mxu0 %v6001
    %6062 = vmatpush1.bf16.msra.mxu0 %v6000
    %6063 = vmatprep.subr.bf16.mxu0 %v6004
    %6064 = vmatpush1.bf16.msra.mxu0 %v6003
    %6065 = vmatprep.subr.bf16.mxu0 0
    %6066 = vmatpush1.bf16.msra.mxu0 0
    %6067 = vmatprep.subr.bf16.mxu0 0
    %6068 = vmatpush1.bf16.msra.mxu0 0
    %6069 = vmatprep.subr.bf16.mxu0 0
    %6070 = vmatpush1.bf16.msra.mxu0 0
    %6071 = vmatprep.subr.bf16.mxu0 0
    %6072 = vmatpush1.bf16.msra.mxu0 0
    %6073 = vmatprep.subr.bf16.mxu0 0
    %6074 = vmatpush1.bf16.msra.mxu0 0
    %6075 = vmatprep.subr.bf16.mxu0 0
    %6076 = vmatpush1.bf16.msra.mxu0 0
    %6077 = vmatprep.subr.bf16.mxu0 0
    %6078 = vmatpush1.bf16.msra.mxu0 0
    %6079 = vmatprep.subr.bf16.mxu0 0
    %6080 = vmatpush1.bf16.msra.mxu0 0
    %6081 = vmatprep.mubr.bf16.mxu0 0
    %6082 = vmatmul.mubr.bf16.gmra.mrb[0].mxu0 %v5200
    %v6083 = vpop.f32.mrb[0].mxu0
    %v6084 = vadd.f32 %v6041, %v6083
    %v6085 = vpop.f32.mrb[0].mxu0
    %v6086 = vadd.f32 %v6043, %v6085
    %v6087 = vpop.f32.mrb[0].mxu0
    %v6088 = vadd.f32 %v6045, %v6087
    %v6089 = vpop.f32.mrb[0].mxu0
    %v6090 = vadd.f32 %v6047, %v6089
    %6091 = vdwg.mxu0
    %6092 = vmatprep.subr.bf16.mxu0 0
    %6093 = vmatpush1.bf16.msra.mxu0 %v5936
    %6094 = vmatprep.subr.bf16.mxu0 0
    %6095 = vmatpush1.bf16.msra.mxu0 %v5939
    %6096 = vmatprep.subr.bf16.mxu0 0
    %6097 = vmatpush1.bf16.msra.mxu0 %v5942
    %6098 = vmatprep.subr.bf16.mxu0 0
    %6099 = vmatpush1.bf16.msra.mxu0 %v5945
    %6100 = vmatprep.subr.bf16.mxu0 0
    %6101 = vmatpush1.bf16.msra.mxu0 %v5948
    %6102 = vmatprep.subr.bf16.mxu0 0
    %6103 = vmatpush1.bf16.msra.mxu0 %v5951
    %6104 = vmatprep.subr.bf16.mxu0 0
    %6105 = vmatpush1.bf16.msra.mxu0 %v5954
    %6106 = vmatprep.subr.bf16.mxu0 0
    %6107 = vmatpush1.bf16.msra.mxu0 %v5957
    %6108 = vmatprep.subr.bf16.mxu0 0
    %6109 = vmatpush1.bf16.msra.mxu0 %v5960
    %6110 = vmatprep.subr.bf16.mxu0 0
    %6111 = vmatpush1.bf16.msra.mxu0 %v5963
    %6112 = vmatprep.subr.bf16.mxu0 0
    %6113 = vmatpush1.bf16.msra.mxu0 %v5966
    %6114 = vmatprep.subr.bf16.mxu0 0
    %6115 = vmatpush1.bf16.msra.mxu0 %v5969
    %6116 = vmatprep.subr.bf16.mxu0 0
    %6117 = vmatpush1.bf16.msra.mxu0 %v5972
    %6118 = vmatprep.subr.bf16.mxu0 0
    %6119 = vmatpush1.bf16.msra.mxu0 %v5975
    %6120 = vmatprep.subr.bf16.mxu0 0
    %6121 = vmatpush1.bf16.msra.mxu0 %v5978
    %6122 = vmatprep.subr.bf16.mxu0 0
    %6123 = vmatpush1.bf16.msra.mxu0 %v5981
    %6124 = vmatprep.mubr.bf16.mxu0 %v5199
    %6125 = vmatmul.mubr.bf16.gmra.mrb[0].mxu0 %v5198
    %v6126 = vpop.f32.mrb[0].mxu0
    %v6127 = vadd.f32 0.0, %v6126
    %v6128 = vpop.f32.mrb[0].mxu0
    %v6129 = vpop.f32.mrb[0].mxu0
    %v6130 = vadd.f32 0.0, %v6129
    %v6131 = vpop.f32.mrb[0].mxu0
    %6132 = vdwg.mxu0
    %6133 = vmatprep.subr.bf16.mxu0 0
    %6134 = vmatpush1.bf16.msra.mxu0 %v5984
    %6135 = vmatprep.subr.bf16.mxu0 0
    %6136 = vmatpush1.bf16.msra.mxu0 %v5987
    %6137 = vmatprep.subr.bf16.mxu0 0
    %6138 = vmatpush1.bf16.msra.mxu0 %v5990
    %6139 = vmatprep.subr.bf16.mxu0 0
    %6140 = vmatpush1.bf16.msra.mxu0 %v5993
    %6141 = vmatprep.subr.bf16.mxu0 0
    %6142 = vmatpush1.bf16.msra.mxu0 %v5996
    %6143 = vmatprep.subr.bf16.mxu0 0
    %6144 = vmatpush1.bf16.msra.mxu0 %v5999
    %6145 = vmatprep.subr.bf16.mxu0 0
    %6146 = vmatpush1.bf16.msra.mxu0 %v6002
    %6147 = vmatprep.subr.bf16.mxu0 0
    %6148 = vmatpush1.bf16.msra.mxu0 %v6005
    %6149 = vmatprep.subr.bf16.mxu0 0
    %6150 = vmatpush1.bf16.msra.mxu0 0
    %6151 = vmatprep.subr.bf16.mxu0 0
    %6152 = vmatpush1.bf16.msra.mxu0 0
    %6153 = vmatprep.subr.bf16.mxu0 0
    %6154 = vmatpush1.bf16.msra.mxu0 0
    %6155 = vmatprep.subr.bf16.mxu0 0
    %6156 = vmatpush1.bf16.msra.mxu0 0
    %6157 = vmatprep.subr.bf16.mxu0 0
    %6158 = vmatpush1.bf16.msra.mxu0 0
    %6159 = vmatprep.subr.bf16.mxu0 0
    %6160 = vmatpush1.bf16.msra.mxu0 0
    %6161 = vmatprep.subr.bf16.mxu0 0
    %6162 = vmatpush1.bf16.msra.mxu0 0
    %6163 = vmatprep.subr.bf16.mxu0 0
    %6164 = vmatpush1.bf16.msra.mxu0 0
    %6165 = vmatprep.mubr.bf16.mxu0 0
    %6166 = vmatmul.mubr.bf16.gmra.mrb[0].mxu0 %v5200
    %v6167 = vpop.f32.mrb[0].mxu0
    %v6168 = vadd.f32 %v6127, %v6167
    %v6169 = vpop.f32.mrb[0].mxu0
    %v6170 = vpop.f32.mrb[0].mxu0
    %v6171 = vadd.f32 %v6130, %v6170
    %v6172 = vpop.f32.mrb[0].mxu0
    %6173 = vdwg.mxu0
    %v6174 = vadd.f32 %v5927, %v6084
    %v6175 = vadd.f32 %v5928, %v6086
    %v6176 = vadd.f32 %v5929, %v6168
    %v6177 = vadd.f32 %v5930, %v6088
    %v6178 = vadd.f32 %v5931, %v6090
    %v6179 = vadd.f32 %v5932, %v6171
    %v6180 = vld [vmem:[#allocation20] sm:$0x7]
    %v6182 = vlaneseq
    %v6183 = vshrl.u32 %v6182, 7
    %v6184 = vsub.s32 0, %v6183
    %v6185 = vrot.slane %v6180, %v6184
    %v6186 = vlaneseq
    %v6187 = vshrl.u32 %v6186, 7
    %v6188 = vsub.s32 1, %v6187
    %v6189 = vrot.slane %v6180, %v6188
    %v6190 = vlaneseq
    %v6191 = vshrl.u32 %v6190, 7
    %v6192 = vsub.s32 2, %v6191
    %v6193 = vrot.slane %v6180, %v6192
    %v6197 = vadd.f32 %v6174, %v6185
    %v6198 = vadd.f32 %v6175, %v6189
    %v6199 = vadd.f32 %v6176, %v6193
    %v6200 = vadd.f32 %v6177, %v6185
    %v6201 = vadd.f32 %v6178, %v6189
    %v6202 = vadd.f32 %v6179, %v6193
    %v6203 = vmax.f32 %v6197, 0.0
    %v6204 = vmax.f32 %v6198, 0.0
    %v6205 = vmax.f32 %v6199, 0.0
    %v6206 = vmax.f32 %v6200, 0.0
    %v6207 = vmax.f32 %v6201, 0.0
    %v6208 = vmax.f32 %v6202, 0.0
    %v6209 = vld [vmem:[%s17] sm:$0xf]
    %v6210 = vld [vmem:[%s17 + $0x4] sm:$0xf]
    %v6211 = vld [vmem:[%s17 + $0x8] sm:$0xf]
    %v6212 = vld [vmem:[%s17 + $0xc] sm:$0xf]
    %v6213 = vld [vmem:[%s17 + $0x10] sm:$0xf]
    %v6214 = vld [vmem:[%s17 + $0x14] sm:$0xf]
    %v6215 = vld [vmem:[%s17 + $0x18] sm:$0xf]
    %v6216 = vld [vmem:[%s17 + $0x1c] sm:$0xf]
    %v6217 = vld [vmem:[%s17 + $0x20] sm:$0xf]
    %v6218 = vld [vmem:[%s17 + $0x24] sm:$0xf]
    %v6219 = vld [vmem:[%s17 + $0x28] sm:$0xf]
    %v6220 = vld [vmem:[%s17 + $0x2c] sm:$0xf]
    %v6221 = vpack.c.bf16 %v6206, %v6203
    %v6222 = vpack.c.bf16 %v6207, %v6204
    %v6223 = vpack.c.bf16 %v6208, %v6205
    %v6236 = vunpack.c.l.b16 %v6209
    %v6237 = vunpack.c.l.b16 %v6210
    %v6238 = vunpack.c.l.b16 %v6211
    %v6239 = vunpack.c.l.b16 %v6212
    %v6240 = vunpack.c.l.b16 %v6213
    %v6241 = vunpack.c.l.b16 %v6214
    %v6242 = vunpack.c.l.b16 %v6215
    %v6243 = vunpack.c.l.b16 %v6216
    %v6244 = vunpack.c.l.b16 %v6217
    %v6245 = vunpack.c.l.b16 %v6218
    %v6246 = vunpack.c.l.b16 %v6219
    %v6247 = vunpack.c.l.b16 %v6220
    %v6248 = vpack.c.b16 %v6237, %v6236
    %v6249 = vpack.c.b16 %v6239, %v6238
    %v6250 = vpack.c.b16 %v6241, %v6240
    %v6251 = vpack.c.b16 %v6243, %v6242
    %v6252 = vpack.c.b16 %v6245, %v6244
    %v6253 = vpack.c.b16 %v6247, %v6246
    %v6255 = vsel %vm2818, %v6248, 0
    %v6258 = vsel %vm2818, %v6249, 0
    %v6261 = vsel %vm2818, %v6250, 0
    %v6264 = vsel %vm2818, %v6251, 0
    %v6267 = vsel %vm2818, %v6252, 0
    %v6270 = vsel %vm2818, %v6253, 0
    %6272 = vmatprep.subr.bf16.mxu0 %v6222
    %6273 = vmatpush1.bf16.msra.mxu0 %v6221
    %6274 = vmatprep.subr.bf16.mxu0 0
    %6275 = vmatpush1.bf16.msra.mxu0 0
    %6276 = vmatprep.subr.bf16.mxu0 0
    %6277 = vmatpush1.bf16.msra.mxu0 0
    %6278 = vmatprep.subr.bf16.mxu0 0
    %6279 = vmatpush1.bf16.msra.mxu0 0
    %6280 = vmatprep.subr.bf16.mxu0 0
    %6281 = vmatpush1.bf16.msra.mxu0 0
    %6282 = vmatprep.subr.bf16.mxu0 0
    %6283 = vmatpush1.bf16.msra.mxu0 0
    %6284 = vmatprep.subr.bf16.mxu0 0
    %6285 = vmatpush1.bf16.msra.mxu0 0
    %6286 = vmatprep.subr.bf16.mxu0 0
    %6287 = vmatpush1.bf16.msra.mxu0 0
    %6288 = vmatprep.subr.bf16.mxu0 0
    %6289 = vmatpush1.bf16.msra.mxu0 0
    %6290 = vmatprep.subr.bf16.mxu0 0
    %6291 = vmatpush1.bf16.msra.mxu0 0
    %6292 = vmatprep.subr.bf16.mxu0 0
    %6293 = vmatpush1.bf16.msra.mxu0 0
    %6294 = vmatprep.subr.bf16.mxu0 0
    %6295 = vmatpush1.bf16.msra.mxu0 0
    %6296 = vmatprep.subr.bf16.mxu0 0
    %6297 = vmatpush1.bf16.msra.mxu0 0
    %6298 = vmatprep.subr.bf16.mxu0 0
    %6299 = vmatpush1.bf16.msra.mxu0 0
    %6300 = vmatprep.subr.bf16.mxu0 0
    %6301 = vmatpush1.bf16.msra.mxu0 0
    %6302 = vmatprep.subr.bf16.mxu0 0
    %6303 = vmatpush1.bf16.msra.mxu0 0
    %6304 = vmatprep.mubr.bf16.mxu0 0
    %6305 = vmatmul.mubr.bf16.gmra.mrb[0].mxu0 %v6255
    %v6306 = vpop.f32.mrb[0].mxu0
    %v6307 = vadd.f32 0.0, %v6306
    %v6308 = vpop.f32.mrb[0].mxu0
    %v6309 = vadd.f32 0.0, %v6308
    %v6310 = vpop.f32.mrb[0].mxu0
    %v6311 = vadd.f32 0.0, %v6310
    %v6312 = vpop.f32.mrb[0].mxu0
    %v6313 = vadd.f32 0.0, %v6312
    %6314 = vmatprep.mubr.bf16.mxu0 0
    %6315 = vmatmul.mubr.bf16.gmra.mrb[0].mxu0 %v6258
    %v6316 = vpop.f32.mrb[0].mxu0
    %v6317 = vadd.f32 0.0, %v6316
    %v6318 = vpop.f32.mrb[0].mxu0
    %v6319 = vadd.f32 0.0, %v6318
    %v6320 = vpop.f32.mrb[0].mxu0
    %v6321 = vadd.f32 0.0, %v6320
    %v6322 = vpop.f32.mrb[0].mxu0
    %v6323 = vadd.f32 0.0, %v6322
    %6324 = vmatprep.mubr.bf16.mxu0 0
    %6325 = vmatmul.mubr.bf16.gmra.mrb[0].mxu0 %v6261
    %v6326 = vpop.f32.mrb[0].mxu0
    %v6327 = vadd.f32 0.0, %v6326
    %v6328 = vpop.f32.mrb[0].mxu0
    %v6329 = vadd.f32 0.0, %v6328
    %v6330 = vpop.f32.mrb[0].mxu0
    %v6331 = vadd.f32 0.0, %v6330
    %v6332 = vpop.f32.mrb[0].mxu0
    %v6333 = vadd.f32 0.0, %v6332
    %6334 = vmatprep.mubr.bf16.mxu0 0
    %6335 = vmatmul.mubr.bf16.gmra.mrb[0].mxu0 %v6264
    %v6336 = vpop.f32.mrb[0].mxu0
    %v6337 = vadd.f32 0.0, %v6336
    %v6338 = vpop.f32.mrb[0].mxu0
    %v6339 = vadd.f32 0.0, %v6338
    %v6340 = vpop.f32.mrb[0].mxu0
    %v6341 = vadd.f32 0.0, %v6340
    %v6342 = vpop.f32.mrb[0].mxu0
    %v6343 = vadd.f32 0.0, %v6342
    %6344 = vmatprep.mubr.bf16.mxu0 0
    %6345 = vmatmul.mubr.bf16.gmra.mrb[0].mxu0 %v6267
    %v6346 = vpop.f32.mrb[0].mxu0
    %v6347 = vadd.f32 0.0, %v6346
    %v6348 = vpop.f32.mrb[0].mxu0
    %v6349 = vadd.f32 0.0, %v6348
    %v6350 = vpop.f32.mrb[0].mxu0
    %v6351 = vadd.f32 0.0, %v6350
    %v6352 = vpop.f32.mrb[0].mxu0
    %v6353 = vadd.f32 0.0, %v6352
    %6354 = vmatprep.mubr.bf16.mxu0 0
    %6355 = vmatmul.mubr.bf16.gmra.mrb[0].mxu0 %v6270
    %v6356 = vpop.f32.mrb[0].mxu0
    %v6357 = vadd.f32 0.0, %v6356
    %v6358 = vpop.f32.mrb[0].mxu0
    %v6359 = vadd.f32 0.0, %v6358
    %v6360 = vpop.f32.mrb[0].mxu0
    %v6361 = vadd.f32 0.0, %v6360
    %v6362 = vpop.f32.mrb[0].mxu0
    %v6363 = vadd.f32 0.0, %v6362
    %6364 = vdwg.mxu0
    %6365 = vmatprep.subr.bf16.mxu0 0
    %6366 = vmatpush1.bf16.msra.mxu0 %v6223
    %6367 = vmatprep.subr.bf16.mxu0 0
    %6368 = vmatpush1.bf16.msra.mxu0 0
    %6369 = vmatprep.subr.bf16.mxu0 0
    %6370 = vmatpush1.bf16.msra.mxu0 0
    %6371 = vmatprep.subr.bf16.mxu0 0
    %6372 = vmatpush1.bf16.msra.mxu0 0
    %6373 = vmatprep.subr.bf16.mxu0 0
    %6374 = vmatpush1.bf16.msra.mxu0 0
    %6375 = vmatprep.subr.bf16.mxu0 0
    %6376 = vmatpush1.bf16.msra.mxu0 0
    %6377 = vmatprep.subr.bf16.mxu0 0
    %6378 = vmatpush1.bf16.msra.mxu0 0
    %6379 = vmatprep.subr.bf16.mxu0 0
    %6380 = vmatpush1.bf16.msra.mxu0 0
    %6381 = vmatprep.subr.bf16.mxu0 0
    %6382 = vmatpush1.bf16.msra.mxu0 0
    %6383 = vmatprep.subr.bf16.mxu0 0
    %6384 = vmatpush1.bf16.msra.mxu0 0
    %6385 = vmatprep.subr.bf16.mxu0 0
    %6386 = vmatpush1.bf16.msra.mxu0 0
    %6387 = vmatprep.subr.bf16.mxu0 0
    %6388 = vmatpush1.bf16.msra.mxu0 0
    %6389 = vmatprep.subr.bf16.mxu0 0
    %6390 = vmatpush1.bf16.msra.mxu0 0
    %6391 = vmatprep.subr.bf16.mxu0 0
    %6392 = vmatpush1.bf16.msra.mxu0 0
    %6393 = vmatprep.subr.bf16.mxu0 0
    %6394 = vmatpush1.bf16.msra.mxu0 0
    %6395 = vmatprep.subr.bf16.mxu0 0
    %6396 = vmatpush1.bf16.msra.mxu0 0
    %6397 = vmatprep.mubr.bf16.mxu0 0
    %6398 = vmatmul.mubr.bf16.gmra.mrb[0].mxu0 %v6255
    %v6399 = vpop.f32.mrb[0].mxu0
    %v6400 = vadd.f32 0.0, %v6399
    %v6401 = vpop.f32.mrb[0].mxu0
    %v6402 = vpop.f32.mrb[0].mxu0
    %v6403 = vadd.f32 0.0, %v6402
    %v6404 = vpop.f32.mrb[0].mxu0
    %6405 = vmatprep.mubr.bf16.mxu0 0
    %6406 = vmatmul.mubr.bf16.gmra.mrb[0].mxu0 %v6258
    %v6407 = vpop.f32.mrb[0].mxu0
    %v6408 = vadd.f32 0.0, %v6407
    %v6409 = vpop.f32.mrb[0].mxu0
    %v6410 = vpop.f32.mrb[0].mxu0
    %v6411 = vadd.f32 0.0, %v6410
    %v6412 = vpop.f32.mrb[0].mxu0
    %6413 = vmatprep.mubr.bf16.mxu0 0
    %6414 = vmatmul.mubr.bf16.gmra.mrb[0].mxu0 %v6261
    %v6415 = vpop.f32.mrb[0].mxu0
    %v6416 = vadd.f32 0.0, %v6415
    %v6417 = vpop.f32.mrb[0].mxu0
    %v6418 = vpop.f32.mrb[0].mxu0
    %v6419 = vadd.f32 0.0, %v6418
    %v6420 = vpop.f32.mrb[0].mxu0
    %6421 = vmatprep.mubr.bf16.mxu0 0
    %6422 = vmatmul.mubr.bf16.gmra.mrb[0].mxu0 %v6264
    %v6423 = vpop.f32.mrb[0].mxu0
    %v6424 = vadd.f32 0.0, %v6423
    %v6425 = vpop.f32.mrb[0].mxu0
    %v6426 = vpop.f32.mrb[0].mxu0
    %v6427 = vadd.f32 0.0, %v6426
    %v6428 = vpop.f32.mrb[0].mxu0
    %6429 = vmatprep.mubr.bf16.mxu0 0
    %6430 = vmatmul.mubr.bf16.gmra.mrb[0].mxu0 %v6267
    %v6431 = vpop.f32.mrb[0].mxu0
    %v6432 = vadd.f32 0.0, %v6431
    %v6433 = vpop.f32.mrb[0].mxu0
    %v6434 = vpop.f32.mrb[0].mxu0
    %v6435 = vadd.f32 0.0, %v6434
    %v6436 = vpop.f32.mrb[0].mxu0
    %6437 = vmatprep.mubr.bf16.mxu0 0
    %6438 = vmatmul.mubr.bf16.gmra.mrb[0].mxu0 %v6270
    %v6439 = vpop.f32.mrb[0].mxu0
    %v6440 = vadd.f32 0.0, %v6439
    %v6441 = vpop.f32.mrb[0].mxu0
    %v6442 = vpop.f32.mrb[0].mxu0
    %v6443 = vadd.f32 0.0, %v6442
    %v6444 = vpop.f32.mrb[0].mxu0
    %6445 = vdwg.mxu0
    %v6446 = vpack.c.bf16 %v6311, %v6307
    %v6447 = vpack.c.bf16 %v6313, %v6309
    %v6448 = vpack.c.bf16 %v6403, %v6400
    %v6449 = vpack.c.bf16 %v6321, %v6317
    %v6450 = vpack.c.bf16 %v6323, %v6319
    %v6451 = vpack.c.bf16 %v6411, %v6408
    %v6452 = vpack.c.bf16 %v6331, %v6327
    %v6453 = vpack.c.bf16 %v6333, %v6329
    %v6454 = vpack.c.bf16 %v6419, %v6416
    %v6455 = vpack.c.bf16 %v6341, %v6337
    %v6456 = vpack.c.bf16 %v6343, %v6339
    %v6457 = vpack.c.bf16 %v6427, %v6424
    %v6458 = vpack.c.bf16 %v6351, %v6347
    %v6459 = vpack.c.bf16 %v6353, %v6349
    %v6460 = vpack.c.bf16 %v6435, %v6432
    %v6461 = vpack.c.bf16 %v6361, %v6357
    %v6462 = vpack.c.bf16 %v6363, %v6359
    %v6463 = vpack.c.bf16 %v6443, %v6440
    %s6464 = sshll.u32 %s5202, 4
    %6465 = dma.done %s422, %s6464
    %v6466 = vld [vmem:[#allocation8] sm:$0xff]
    %v6467 = vld [vmem:[#allocation8 + $0x8] sm:$0xff]
    %v6468 = vld [vmem:[#allocation8 + $0x10] sm:$0xff]
    %v6469 = vld [vmem:[#allocation8 + $0x18] sm:$0xff]
    %v6470 = vld [vmem:[#allocation8 + $0x20] sm:$0xff]
    %v6471 = vld [vmem:[#allocation8 + $0x28] sm:$0xff]
    %v6472 = vld [vmem:[#allocation8 + $0x30] sm:$0xff]
    %v6473 = vld [vmem:[#allocation8 + $0x38] sm:$0xff]
    %v6474 = vld [vmem:[#allocation8 + $0x40] sm:$0xff]
    %v6475 = vld [vmem:[#allocation8 + $0x48] sm:$0xff]
    %v6476 = vld [vmem:[#allocation8 + $0x50] sm:$0xff]
    %v6477 = vld [vmem:[#allocation8 + $0x58] sm:$0xff]
    %v6478 = vld [vmem:[#allocation8 + $0x60] sm:$0xff]
    %v6479 = vld [vmem:[#allocation8 + $0x68] sm:$0xff]
    %v6480 = vld [vmem:[#allocation8 + $0x70] sm:$0xff]
    %v6481 = vld [vmem:[#allocation8 + $0x78] sm:$0xff]
    %v6482 = vld [vmem:[#allocation8 + $0x80] sm:$0xff]
    %v6483 = vld [vmem:[#allocation8 + $0x88] sm:$0xff]
    %v6484 = vld [vmem:[#allocation8 + $0x90] sm:$0xff]
    %v6485 = vld [vmem:[#allocation8 + $0x98] sm:$0xff]
    %v6486 = vld [vmem:[#allocation8 + $0xa0] sm:$0xff]
    %v6487 = vld [vmem:[#allocation8 + $0xa8] sm:$0xff]
    %v6488 = vld [vmem:[#allocation8 + $0xb0] sm:$0xff]
    %v6489 = vld [vmem:[#allocation8 + $0xb8] sm:$0xff]
    %v6490 = vld [vmem:[#allocation8 + $0xc0] sm:$0xff]
    %v6491 = vld [vmem:[#allocation8 + $0xc8] sm:$0xff]
    %v6492 = vld [vmem:[#allocation8 + $0xd0] sm:$0xff]
    %v6493 = vld [vmem:[#allocation8 + $0xd8] sm:$0xff]
    %v6494 = vld [vmem:[#allocation8 + $0xe0] sm:$0xff]
    %v6495 = vld [vmem:[#allocation8 + $0xe8] sm:$0xff]
    %v6496 = vld [vmem:[#allocation8 + $0xf0] sm:$0xff]
    %v6497 = vld [vmem:[#allocation8 + $0xf8] sm:$0xff]
    %v6498 = vld [vmem:[#allocation8 + $0x100] sm:$0xff]
    %v6499 = vld [vmem:[#allocation8 + $0x108] sm:$0xff]
    %v6500 = vld [vmem:[#allocation8 + $0x110] sm:$0xff]
    %v6501 = vld [vmem:[#allocation8 + $0x118] sm:$0xff]
    %v6502 = vld [vmem:[#allocation8 + $0x120] sm:$0xff]
    %v6503 = vld [vmem:[#allocation8 + $0x128] sm:$0xff]
    %v6504 = vld [vmem:[#allocation8 + $0x130] sm:$0xff]
    %v6505 = vld [vmem:[#allocation8 + $0x138] sm:$0xff]
    %v6506 = vld [vmem:[#allocation8 + $0x140] sm:$0xff]
    %v6507 = vld [vmem:[#allocation8 + $0x148] sm:$0xff]
    %v6508 = vld [vmem:[#allocation8 + $0x150] sm:$0xff]
    %v6509 = vld [vmem:[#allocation8 + $0x158] sm:$0xff]
    %v6510 = vld [vmem:[#allocation8 + $0x160] sm:$0xff]
    %v6511 = vld [vmem:[#allocation8 + $0x168] sm:$0xff]
    %v6512 = vld [vmem:[#allocation8 + $0x170] sm:$0xff]
    %v6513 = vld [vmem:[#allocation8 + $0x178] sm:$0xff]
    %v6514 = vld [vmem:[#allocation8 + $0x180] sm:$0xff]
    %v6515 = vld [vmem:[#allocation8 + $0x188] sm:$0xff]
    %v6516 = vld [vmem:[#allocation8 + $0x190] sm:$0xff]
    %v6517 = vld [vmem:[#allocation8 + $0x198] sm:$0xff]
    %v6518 = vld [vmem:[#allocation8 + $0x1a0] sm:$0xff]
    %v6519 = vld [vmem:[#allocation8 + $0x1a8] sm:$0xff]
    %v6520 = vld [vmem:[#allocation8 + $0x1b0] sm:$0xff]
    %v6521 = vld [vmem:[#allocation8 + $0x1b8] sm:$0xff]
    %v6522 = vld [vmem:[#allocation8 + $0x1c0] sm:$0xff]
    %v6523 = vld [vmem:[#allocation8 + $0x1c8] sm:$0xff]
    %v6524 = vld [vmem:[#allocation8 + $0x1d0] sm:$0xff]
    %v6525 = vld [vmem:[#allocation8 + $0x1d8] sm:$0xff]
    %v6526 = vld [vmem:[#allocation8 + $0x1e0] sm:$0xff]
    %v6527 = vld [vmem:[#allocation8 + $0x1e8] sm:$0xff]
    %v6528 = vld [vmem:[#allocation8 + $0x1f0] sm:$0xff]
    %v6529 = vld [vmem:[#allocation8 + $0x1f8] sm:$0xff]
    %v6530 = vld [vmem:[#allocation8 + $0x200] sm:$0xff]
    %v6531 = vld [vmem:[#allocation8 + $0x208] sm:$0xff]
    %v6532 = vld [vmem:[#allocation8 + $0x210] sm:$0xff]
    %v6533 = vld [vmem:[#allocation8 + $0x218] sm:$0xff]
    %v6534 = vld [vmem:[#allocation8 + $0x220] sm:$0xff]
    %v6535 = vld [vmem:[#allocation8 + $0x228] sm:$0xff]
    %v6536 = vld [vmem:[#allocation8 + $0x230] sm:$0xff]
    %v6537 = vld [vmem:[#allocation8 + $0x238] sm:$0xff]
    %s6538 = scalar_lea.vmem [#allocation8], 576
    %v6539 = vld [vmem:[%s6538] sm:$0xff]
    %v6540 = vld [vmem:[%s6538 + $0x8] sm:$0xff]
    %v6541 = vld [vmem:[%s6538 + $0x10] sm:$0xff]
    %v6542 = vld [vmem:[%s6538 + $0x18] sm:$0xff]
    %v6543 = vld [vmem:[%s6538 + $0x20] sm:$0xff]
    %v6544 = vld [vmem:[%s6538 + $0x28] sm:$0xff]
    %v6545 = vld [vmem:[%s6538 + $0x30] sm:$0xff]
    %v6546 = vld [vmem:[%s6538 + $0x38] sm:$0xff]
    %v6547 = vld [vmem:[%s6538 + $0x40] sm:$0xff]
    %v6548 = vld [vmem:[%s6538 + $0x48] sm:$0xff]
    %v6549 = vld [vmem:[%s6538 + $0x50] sm:$0xff]
    %v6550 = vld [vmem:[%s6538 + $0x58] sm:$0xff]
    %v6551 = vld [vmem:[%s6538 + $0x60] sm:$0xff]
    %v6552 = vld [vmem:[%s6538 + $0x68] sm:$0xff]
    %v6553 = vld [vmem:[%s6538 + $0x70] sm:$0xff]
    %v6554 = vld [vmem:[%s6538 + $0x78] sm:$0xff]
    %v6555 = vld [vmem:[%s6538 + $0x80] sm:$0xff]
    %v6556 = vld [vmem:[%s6538 + $0x88] sm:$0xff]
    %v6557 = vld [vmem:[%s6538 + $0x90] sm:$0xff]
    %v6558 = vld [vmem:[%s6538 + $0x98] sm:$0xff]
    %v6559 = vld [vmem:[%s6538 + $0xa0] sm:$0xff]
    %v6560 = vld [vmem:[%s6538 + $0xa8] sm:$0xff]
    %v6561 = vld [vmem:[%s6538 + $0xb0] sm:$0xff]
    %v6562 = vld [vmem:[%s6538 + $0xb8] sm:$0xff]
    %v6563 = vld [vmem:[%s6538 + $0xc0] sm:$0xff]
    %v6564 = vld [vmem:[%s6538 + $0xc8] sm:$0xff]
    %v6565 = vld [vmem:[%s6538 + $0xd0] sm:$0xff]
    %v6566 = vld [vmem:[%s6538 + $0xd8] sm:$0xff]
    %v6567 = vld [vmem:[%s6538 + $0xe0] sm:$0xff]
    %v6568 = vld [vmem:[%s6538 + $0xe8] sm:$0xff]
    %v6569 = vld [vmem:[%s6538 + $0xf0] sm:$0xff]
    %v6570 = vld [vmem:[%s6538 + $0xf8] sm:$0xff]
    %v6571 = vld [vmem:[%s6538 + $0x100] sm:$0xff]
    %v6572 = vld [vmem:[%s6538 + $0x108] sm:$0xff]
    %v6573 = vld [vmem:[%s6538 + $0x110] sm:$0xff]
    %v6574 = vld [vmem:[%s6538 + $0x118] sm:$0xff]
    %v6575 = vld [vmem:[%s6538 + $0x120] sm:$0xff]
    %v6576 = vld [vmem:[%s6538 + $0x128] sm:$0xff]
    %v6577 = vld [vmem:[%s6538 + $0x130] sm:$0xff]
    %v6578 = vld [vmem:[%s6538 + $0x138] sm:$0xff]
    %v6579 = vld [vmem:[%s6538 + $0x140] sm:$0xff]
    %v6580 = vld [vmem:[%s6538 + $0x148] sm:$0xff]
    %v6581 = vld [vmem:[%s6538 + $0x150] sm:$0xff]
    %v6582 = vld [vmem:[%s6538 + $0x158] sm:$0xff]
    %v6583 = vld [vmem:[%s6538 + $0x160] sm:$0xff]
    %v6584 = vld [vmem:[%s6538 + $0x168] sm:$0xff]
    %v6585 = vld [vmem:[%s6538 + $0x170] sm:$0xff]
    %v6586 = vld [vmem:[%s6538 + $0x178] sm:$0xff]
    %v6587 = vld [vmem:[%s6538 + $0x180] sm:$0xff]
    %v6588 = vld [vmem:[%s6538 + $0x188] sm:$0xff]
    %v6589 = vld [vmem:[%s6538 + $0x190] sm:$0xff]
    %v6590 = vld [vmem:[%s6538 + $0x198] sm:$0xff]
    %v6591 = vld [vmem:[%s6538 + $0x1a0] sm:$0xff]
    %v6592 = vld [vmem:[%s6538 + $0x1a8] sm:$0xff]
    %v6593 = vld [vmem:[%s6538 + $0x1b0] sm:$0xff]
    %v6594 = vld [vmem:[%s6538 + $0x1b8] sm:$0xff]
    %v6595 = vld [vmem:[%s6538 + $0x1c0] sm:$0xff]
    %v6596 = vld [vmem:[%s6538 + $0x1c8] sm:$0xff]
    %v6597 = vld [vmem:[%s6538 + $0x1d0] sm:$0xff]
    %v6598 = vld [vmem:[%s6538 + $0x1d8] sm:$0xff]
    %v6599 = vld [vmem:[%s6538 + $0x1e0] sm:$0xff]
    %v6600 = vld [vmem:[%s6538 + $0x1e8] sm:$0xff]
    %v6601 = vld [vmem:[%s6538 + $0x1f0] sm:$0xff]
    %v6602 = vld [vmem:[%s6538 + $0x1f8] sm:$0xff]
    %v6603 = vld [vmem:[%s6538 + $0x200] sm:$0xff]
    %v6604 = vld [vmem:[%s6538 + $0x208] sm:$0xff]
    %v6605 = vld [vmem:[%s6538 + $0x210] sm:$0xff]
    %v6606 = vld [vmem:[%s6538 + $0x218] sm:$0xff]
    %v6607 = vld [vmem:[%s6538 + $0x220] sm:$0xff]
    %v6608 = vld [vmem:[%s6538 + $0x228] sm:$0xff]
    %v6609 = vld [vmem:[%s6538 + $0x230] sm:$0xff]
    %v6610 = vld [vmem:[%s6538 + $0x238] sm:$0xff]
    %vm6617 = vcmask 1043456
    %v6618 = vrot.slane %v6449, 4
    %v6619 = vrot.slane %v6452, 4
    %v6620 = vsel %vm6617, %v6618, %v6619
    %v6621 = vrot.slane %v6450, 4
    %v6622 = vrot.slane %v6453, 4
    %v6623 = vsel %vm6617, %v6621, %v6622
    %v6624 = vrot.slane %v6451, 4
    %v6625 = vrot.slane %v6454, 4
    %v6626 = vsel %vm6617, %v6624, %v6625
    %6633 = vmatprep.subr.bf16.mxu0 %v6540
    %6634 = vmatpush1.bf16.msra.mxu0 %v6539
    %6635 = vmatprep.subr.bf16.mxu0 %v6543
    %6636 = vmatpush1.bf16.msra.mxu0 %v6542
    %6637 = vmatprep.subr.bf16.mxu0 %v6546
    %6638 = vmatpush1.bf16.msra.mxu0 %v6545
    %6639 = vmatprep.subr.bf16.mxu0 %v6549
    %6640 = vmatpush1.bf16.msra.mxu0 %v6548
    %6641 = vmatprep.subr.bf16.mxu0 %v6552
    %6642 = vmatpush1.bf16.msra.mxu0 %v6551
    %6643 = vmatprep.subr.bf16.mxu0 %v6555
    %6644 = vmatpush1.bf16.msra.mxu0 %v6554
    %6645 = vmatprep.subr.bf16.mxu0 %v6558
    %6646 = vmatpush1.bf16.msra.mxu0 %v6557
    %6647 = vmatprep.subr.bf16.mxu0 %v6561
    %6648 = vmatpush1.bf16.msra.mxu0 %v6560
    %6649 = vmatprep.subr.bf16.mxu0 %v6564
    %6650 = vmatpush1.bf16.msra.mxu0 %v6563
    %6651 = vmatprep.subr.bf16.mxu0 %v6567
    %6652 = vmatpush1.bf16.msra.mxu0 %v6566
    %6653 = vmatprep.subr.bf16.mxu0 %v6570
    %6654 = vmatpush1.bf16.msra.mxu0 %v6569
    %6655 = vmatprep.subr.bf16.mxu0 %v6573
    %6656 = vmatpush1.bf16.msra.mxu0 %v6572
    %6657 = vmatprep.subr.bf16.mxu0 %v6576
    %6658 = vmatpush1.bf16.msra.mxu0 %v6575
    %6659 = vmatprep.subr.bf16.mxu0 %v6579
    %6660 = vmatpush1.bf16.msra.mxu0 %v6578
    %6661 = vmatprep.subr.bf16.mxu0 %v6582
    %6662 = vmatpush1.bf16.msra.mxu0 %v6581
    %6663 = vmatprep.subr.bf16.mxu0 %v6585
    %6664 = vmatpush1.bf16.msra.mxu0 %v6584
    %6665 = vmatprep.mubr.bf16.mxu0 %v6623
    %6666 = vmatmul.mubr.bf16.gmra.mrb[0].mxu0 %v6620
    %v6667 = vpop.f32.mrb[0].mxu0
    %v6668 = vadd.f32 0.0, %v6667
    %v6669 = vpop.f32.mrb[0].mxu0
    %v6670 = vadd.f32 0.0, %v6669
    %v6671 = vpop.f32.mrb[0].mxu0
    %v6672 = vadd.f32 0.0, %v6671
    %v6673 = vpop.f32.mrb[0].mxu0
    %v6674 = vadd.f32 0.0, %v6673
    %6675 = vmatprep.mubr.bf16.mxu0 %v6622
    %6676 = vmatmul.mubr.bf16.gmra.mrb[0].mxu0 %v6619
    %v6677 = vpop.f32.mrb[0].mxu0
    %v6678 = vadd.f32 0.0, %v6677
    %v6679 = vpop.f32.mrb[0].mxu0
    %v6680 = vadd.f32 0.0, %v6679
    %v6681 = vpop.f32.mrb[0].mxu0
    %v6682 = vpop.f32.mrb[0].mxu0
    %6683 = vdwg.mxu0
    %6684 = vmatprep.subr.bf16.mxu0 %v6588
    %6685 = vmatpush1.bf16.msra.mxu0 %v6587
    %6686 = vmatprep.subr.bf16.mxu0 %v6591
    %6687 = vmatpush1.bf16.msra.mxu0 %v6590
    %6688 = vmatprep.subr.bf16.mxu0 %v6594
    %6689 = vmatpush1.bf16.msra.mxu0 %v6593
    %6690 = vmatprep.subr.bf16.mxu0 %v6597
    %6691 = vmatpush1.bf16.msra.mxu0 %v6596
    %6692 = vmatprep.subr.bf16.mxu0 %v6600
    %6693 = vmatpush1.bf16.msra.mxu0 %v6599
    %6694 = vmatprep.subr.bf16.mxu0 %v6603
    %6695 = vmatpush1.bf16.msra.mxu0 %v6602
    %6696 = vmatprep.subr.bf16.mxu0 %v6606
    %6697 = vmatpush1.bf16.msra.mxu0 %v6605
    %6698 = vmatprep.subr.bf16.mxu0 %v6609
    %6699 = vmatpush1.bf16.msra.mxu0 %v6608
    %6700 = vmatprep.subr.bf16.mxu0 0
    %6701 = vmatpush1.bf16.msra.mxu0 0
    %6702 = vmatprep.subr.bf16.mxu0 0
    %6703 = vmatpush1.bf16.msra.mxu0 0
    %6704 = vmatprep.subr.bf16.mxu0 0
    %6705 = vmatpush1.bf16.msra.mxu0 0
    %6706 = vmatprep.subr.bf16.mxu0 0
    %6707 = vmatpush1.bf16.msra.mxu0 0
    %6708 = vmatprep.subr.bf16.mxu0 0
    %6709 = vmatpush1.bf16.msra.mxu0 0
    %6710 = vmatprep.subr.bf16.mxu0 0
    %6711 = vmatpush1.bf16.msra.mxu0 0
    %6712 = vmatprep.subr.bf16.mxu0 0
    %6713 = vmatpush1.bf16.msra.mxu0 0
    %6714 = vmatprep.subr.bf16.mxu0 0
    %6715 = vmatpush1.bf16.msra.mxu0 0
    %6716 = vmatprep.mubr.bf16.mxu0 0
    %6717 = vmatmul.mubr.bf16.gmra.mrb[0].mxu0 %v6626
    %v6718 = vpop.f32.mrb[0].mxu0
    %v6719 = vadd.f32 %v6668, %v6718
    %v6720 = vpop.f32.mrb[0].mxu0
    %v6721 = vadd.f32 %v6670, %v6720
    %v6722 = vpop.f32.mrb[0].mxu0
    %v6723 = vadd.f32 %v6672, %v6722
    %v6724 = vpop.f32.mrb[0].mxu0
    %v6725 = vadd.f32 %v6674, %v6724
    %6726 = vmatprep.mubr.bf16.mxu0 0
    %6727 = vmatmul.mubr.bf16.gmra.mrb[0].mxu0 %v6625
    %v6728 = vpop.f32.mrb[0].mxu0
    %v6729 = vadd.f32 %v6678, %v6728
    %v6730 = vpop.f32.mrb[0].mxu0
    %v6731 = vadd.f32 %v6680, %v6730
    %v6732 = vpop.f32.mrb[0].mxu0
    %v6733 = vpop.f32.mrb[0].mxu0
    %6734 = vdwg.mxu0
    %6735 = vmatprep.subr.bf16.mxu0 0
    %6736 = vmatpush1.bf16.msra.mxu0 %v6541
    %6737 = vmatprep.subr.bf16.mxu0 0
    %6738 = vmatpush1.bf16.msra.mxu0 %v6544
    %6739 = vmatprep.subr.bf16.mxu0 0
    %6740 = vmatpush1.bf16.msra.mxu0 %v6547
    %6741 = vmatprep.subr.bf16.mxu0 0
    %6742 = vmatpush1.bf16.msra.mxu0 %v6550
    %6743 = vmatprep.subr.bf16.mxu0 0
    %6744 = vmatpush1.bf16.msra.mxu0 %v6553
    %6745 = vmatprep.subr.bf16.mxu0 0
    %6746 = vmatpush1.bf16.msra.mxu0 %v6556
    %6747 = vmatprep.subr.bf16.mxu0 0
    %6748 = vmatpush1.bf16.msra.mxu0 %v6559
    %6749 = vmatprep.subr.bf16.mxu0 0
    %6750 = vmatpush1.bf16.msra.mxu0 %v6562
    %6751 = vmatprep.subr.bf16.mxu0 0
    %6752 = vmatpush1.bf16.msra.mxu0 %v6565
    %6753 = vmatprep.subr.bf16.mxu0 0
    %6754 = vmatpush1.bf16.msra.mxu0 %v6568
    %6755 = vmatprep.subr.bf16.mxu0 0
    %6756 = vmatpush1.bf16.msra.mxu0 %v6571
    %6757 = vmatprep.subr.bf16.mxu0 0
    %6758 = vmatpush1.bf16.msra.mxu0 %v6574
    %6759 = vmatprep.subr.bf16.mxu0 0
    %6760 = vmatpush1.bf16.msra.mxu0 %v6577
    %6761 = vmatprep.subr.bf16.mxu0 0
    %6762 = vmatpush1.bf16.msra.mxu0 %v6580
    %6763 = vmatprep.subr.bf16.mxu0 0
    %6764 = vmatpush1.bf16.msra.mxu0 %v6583
    %6765 = vmatprep.subr.bf16.mxu0 0
    %6766 = vmatpush1.bf16.msra.mxu0 %v6586
    %6767 = vmatprep.mubr.bf16.mxu0 %v6623
    %6768 = vmatmul.mubr.bf16.gmra.mrb[0].mxu0 %v6620
    %v6769 = vpop.f32.mrb[0].mxu0
    %v6770 = vadd.f32 0.0, %v6769
    %v6771 = vpop.f32.mrb[0].mxu0
    %v6772 = vpop.f32.mrb[0].mxu0
    %v6773 = vadd.f32 0.0, %v6772
    %v6774 = vpop.f32.mrb[0].mxu0
    %6775 = vmatprep.mubr.bf16.mxu0 %v6622
    %6776 = vmatmul.mubr.bf16.gmra.mrb[0].mxu0 %v6619
    %v6777 = vpop.f32.mrb[0].mxu0
    %v6778 = vadd.f32 0.0, %v6777
    %v6779 = vpop.f32.mrb[0].mxu0
    %v6780 = vpop.f32.mrb[0].mxu0
    %v6781 = vpop.f32.mrb[0].mxu0
    %6782 = vdwg.mxu0
    %6783 = vmatprep.subr.bf16.mxu0 0
    %6784 = vmatpush1.bf16.msra.mxu0 %v6589
    %6785 = vmatprep.subr.bf16.mxu0 0
    %6786 = vmatpush1.bf16.msra.mxu0 %v6592
    %6787 = vmatprep.subr.bf16.mxu0 0
    %6788 = vmatpush1.bf16.msra.mxu0 %v6595
    %6789 = vmatprep.subr.bf16.mxu0 0
    %6790 = vmatpush1.bf16.msra.mxu0 %v6598
    %6791 = vmatprep.subr.bf16.mxu0 0
    %6792 = vmatpush1.bf16.msra.mxu0 %v6601
    %6793 = vmatprep.subr.bf16.mxu0 0
    %6794 = vmatpush1.bf16.msra.mxu0 %v6604
    %6795 = vmatprep.subr.bf16.mxu0 0
    %6796 = vmatpush1.bf16.msra.mxu0 %v6607
    %6797 = vmatprep.subr.bf16.mxu0 0
    %6798 = vmatpush1.bf16.msra.mxu0 %v6610
    %6799 = vmatprep.subr.bf16.mxu0 0
    %6800 = vmatpush1.bf16.msra.mxu0 0
    %6801 = vmatprep.subr.bf16.mxu0 0
    %6802 = vmatpush1.bf16.msra.mxu0 0
    %6803 = vmatprep.subr.bf16.mxu0 0
    %6804 = vmatpush1.bf16.msra.mxu0 0
    %6805 = vmatprep.subr.bf16.mxu0 0
    %6806 = vmatpush1.bf16.msra.mxu0 0
    %6807 = vmatprep.subr.bf16.mxu0 0
    %6808 = vmatpush1.bf16.msra.mxu0 0
    %6809 = vmatprep.subr.bf16.mxu0 0
    %6810 = vmatpush1.bf16.msra.mxu0 0
    %6811 = vmatprep.subr.bf16.mxu0 0
    %6812 = vmatpush1.bf16.msra.mxu0 0
    %6813 = vmatprep.subr.bf16.mxu0 0
    %6814 = vmatpush1.bf16.msra.mxu0 0
    %6815 = vmatprep.mubr.bf16.mxu0 0
    %6816 = vmatmul.mubr.bf16.gmra.mrb[0].mxu0 %v6626
    %v6817 = vpop.f32.mrb[0].mxu0
    %v6818 = vadd.f32 %v6770, %v6817
    %v6819 = vpop.f32.mrb[0].mxu0
    %v6820 = vpop.f32.mrb[0].mxu0
    %v6821 = vadd.f32 %v6773, %v6820
    %v6822 = vpop.f32.mrb[0].mxu0
    %6823 = vmatprep.mubr.bf16.mxu0 0
    %6824 = vmatmul.mubr.bf16.gmra.mrb[0].mxu0 %v6625
    %v6825 = vpop.f32.mrb[0].mxu0
    %v6826 = vadd.f32 %v6778, %v6825
    %v6827 = vpop.f32.mrb[0].mxu0
    %v6828 = vpop.f32.mrb[0].mxu0
    %v6829 = vpop.f32.mrb[0].mxu0
    %6830 = vdwg.mxu0
    %6831 = vmatprep.subr.bf16.mxu0 %v6467
    %6832 = vmatpush1.bf16.msra.mxu0 %v6466
    %6833 = vmatprep.subr.bf16.mxu0 %v6470
    %6834 = vmatpush1.bf16.msra.mxu0 %v6469
    %6835 = vmatprep.subr.bf16.mxu0 %v6473
    %6836 = vmatpush1.bf16.msra.mxu0 %v6472
    %6837 = vmatprep.subr.bf16.mxu0 %v6476
    %6838 = vmatpush1.bf16.msra.mxu0 %v6475
    %6839 = vmatprep.subr.bf16.mxu0 %v6479
    %6840 = vmatpush1.bf16.msra.mxu0 %v6478
    %6841 = vmatprep.subr.bf16.mxu0 %v6482
    %6842 = vmatpush1.bf16.msra.mxu0 %v6481
    %6843 = vmatprep.subr.bf16.mxu0 %v6485
    %6844 = vmatpush1.bf16.msra.mxu0 %v6484
    %6845 = vmatprep.subr.bf16.mxu0 %v6488
    %6846 = vmatpush1.bf16.msra.mxu0 %v6487
    %6847 = vmatprep.subr.bf16.mxu0 %v6491
    %6848 = vmatpush1.bf16.msra.mxu0 %v6490
    %6849 = vmatprep.subr.bf16.mxu0 %v6494
    %6850 = vmatpush1.bf16.msra.mxu0 %v6493
    %6851 = vmatprep.subr.bf16.mxu0 %v6497
    %6852 = vmatpush1.bf16.msra.mxu0 %v6496
    %6853 = vmatprep.subr.bf16.mxu0 %v6500
    %6854 = vmatpush1.bf16.msra.mxu0 %v6499
    %6855 = vmatprep.subr.bf16.mxu0 %v6503
    %6856 = vmatpush1.bf16.msra.mxu0 %v6502
    %6857 = vmatprep.subr.bf16.mxu0 %v6506
    %6858 = vmatpush1.bf16.msra.mxu0 %v6505
    %6859 = vmatprep.subr.bf16.mxu0 %v6509
    %6860 = vmatpush1.bf16.msra.mxu0 %v6508
    %6861 = vmatprep.subr.bf16.mxu0 %v6512
    %6862 = vmatpush1.bf16.msra.mxu0 %v6511
    %6863 = vmatprep.mubr.bf16.mxu0 %v6447
    %6864 = vmatmul.mubr.bf16.gmra.mrb[0].mxu0 %v6446
    %v6865 = vpop.f32.mrb[0].mxu0
    %v6866 = vadd.f32 %v6719, %v6865
    %v6867 = vpop.f32.mrb[0].mxu0
    %v6868 = vadd.f32 %v6721, %v6867
    %v6869 = vpop.f32.mrb[0].mxu0
    %v6870 = vadd.f32 %v6723, %v6869
    %v6871 = vpop.f32.mrb[0].mxu0
    %v6872 = vadd.f32 %v6725, %v6871
    %6873 = vmatprep.mubr.bf16.mxu0 %v6450
    %6874 = vmatmul.mubr.bf16.gmra.mrb[0].mxu0 %v6449
    %v6875 = vpop.f32.mrb[0].mxu0
    %v6876 = vadd.f32 %v6729, %v6875
    %v6877 = vpop.f32.mrb[0].mxu0
    %v6878 = vadd.f32 %v6731, %v6877
    %v6879 = vpop.f32.mrb[0].mxu0
    %v6880 = vpop.f32.mrb[0].mxu0
    %6881 = vdwg.mxu0
    %6882 = vmatprep.subr.bf16.mxu0 %v6515
    %6883 = vmatpush1.bf16.msra.mxu0 %v6514
    %6884 = vmatprep.subr.bf16.mxu0 %v6518
    %6885 = vmatpush1.bf16.msra.mxu0 %v6517
    %6886 = vmatprep.subr.bf16.mxu0 %v6521
    %6887 = vmatpush1.bf16.msra.mxu0 %v6520
    %6888 = vmatprep.subr.bf16.mxu0 %v6524
    %6889 = vmatpush1.bf16.msra.mxu0 %v6523
    %6890 = vmatprep.subr.bf16.mxu0 %v6527
    %6891 = vmatpush1.bf16.msra.mxu0 %v6526
    %6892 = vmatprep.subr.bf16.mxu0 %v6530
    %6893 = vmatpush1.bf16.msra.mxu0 %v6529
    %6894 = vmatprep.subr.bf16.mxu0 %v6533
    %6895 = vmatpush1.bf16.msra.mxu0 %v6532
    %6896 = vmatprep.subr.bf16.mxu0 %v6536
    %6897 = vmatpush1.bf16.msra.mxu0 %v6535
    %6898 = vmatprep.subr.bf16.mxu0 0
    %6899 = vmatpush1.bf16.msra.mxu0 0
    %6900 = vmatprep.subr.bf16.mxu0 0
    %6901 = vmatpush1.bf16.msra.mxu0 0
    %6902 = vmatprep.subr.bf16.mxu0 0
    %6903 = vmatpush1.bf16.msra.mxu0 0
    %6904 = vmatprep.subr.bf16.mxu0 0
    %6905 = vmatpush1.bf16.msra.mxu0 0
    %6906 = vmatprep.subr.bf16.mxu0 0
    %6907 = vmatpush1.bf16.msra.mxu0 0
    %6908 = vmatprep.subr.bf16.mxu0 0
    %6909 = vmatpush1.bf16.msra.mxu0 0
    %6910 = vmatprep.subr.bf16.mxu0 0
    %6911 = vmatpush1.bf16.msra.mxu0 0
    %6912 = vmatprep.subr.bf16.mxu0 0
    %6913 = vmatpush1.bf16.msra.mxu0 0
    %6914 = vmatprep.mubr.bf16.mxu0 0
    %6915 = vmatmul.mubr.bf16.gmra.mrb[0].mxu0 %v6448
    %v6916 = vpop.f32.mrb[0].mxu0
    %v6917 = vadd.f32 %v6866, %v6916
    %v6918 = vpop.f32.mrb[0].mxu0
    %v6919 = vadd.f32 %v6868, %v6918
    %v6920 = vpop.f32.mrb[0].mxu0
    %v6921 = vadd.f32 %v6870, %v6920
    %v6922 = vpop.f32.mrb[0].mxu0
    %v6923 = vadd.f32 %v6872, %v6922
    %6924 = vmatprep.mubr.bf16.mxu0 0
    %6925 = vmatmul.mubr.bf16.gmra.mrb[0].mxu0 %v6451
    %v6926 = vpop.f32.mrb[0].mxu0
    %v6927 = vadd.f32 %v6876, %v6926
    %v6928 = vpop.f32.mrb[0].mxu0
    %v6929 = vadd.f32 %v6878, %v6928
    %v6930 = vpop.f32.mrb[0].mxu0
    %v6931 = vpop.f32.mrb[0].mxu0
    %6932 = vdwg.mxu0
    %6933 = vmatprep.subr.bf16.mxu0 0
    %6934 = vmatpush1.bf16.msra.mxu0 %v6468
    %6935 = vmatprep.subr.bf16.mxu0 0
    %6936 = vmatpush1.bf16.msra.mxu0 %v6471
    %6937 = vmatprep.subr.bf16.mxu0 0
    %6938 = vmatpush1.bf16.msra.mxu0 %v6474
    %6939 = vmatprep.subr.bf16.mxu0 0
    %6940 = vmatpush1.bf16.msra.mxu0 %v6477
    %6941 = vmatprep.subr.bf16.mxu0 0
    %6942 = vmatpush1.bf16.msra.mxu0 %v6480
    %6943 = vmatprep.subr.bf16.mxu0 0
    %6944 = vmatpush1.bf16.msra.mxu0 %v6483
    %6945 = vmatprep.subr.bf16.mxu0 0
    %6946 = vmatpush1.bf16.msra.mxu0 %v6486
    %6947 = vmatprep.subr.bf16.mxu0 0
    %6948 = vmatpush1.bf16.msra.mxu0 %v6489
    %6949 = vmatprep.subr.bf16.mxu0 0
    %6950 = vmatpush1.bf16.msra.mxu0 %v6492
    %6951 = vmatprep.subr.bf16.mxu0 0
    %6952 = vmatpush1.bf16.msra.mxu0 %v6495
    %6953 = vmatprep.subr.bf16.mxu0 0
    %6954 = vmatpush1.bf16.msra.mxu0 %v6498
    %6955 = vmatprep.subr.bf16.mxu0 0
    %6956 = vmatpush1.bf16.msra.mxu0 %v6501
    %6957 = vmatprep.subr.bf16.mxu0 0
    %6958 = vmatpush1.bf16.msra.mxu0 %v6504
    %6959 = vmatprep.subr.bf16.mxu0 0
    %6960 = vmatpush1.bf16.msra.mxu0 %v6507
    %6961 = vmatprep.subr.bf16.mxu0 0
    %6962 = vmatpush1.bf16.msra.mxu0 %v6510
    %6963 = vmatprep.subr.bf16.mxu0 0
    %6964 = vmatpush1.bf16.msra.mxu0 %v6513
    %6965 = vmatprep.mubr.bf16.mxu0 %v6447
    %6966 = vmatmul.mubr.bf16.gmra.mrb[0].mxu0 %v6446
    %v6967 = vpop.f32.mrb[0].mxu0
    %v6968 = vadd.f32 %v6818, %v6967
    %v6969 = vpop.f32.mrb[0].mxu0
    %v6970 = vpop.f32.mrb[0].mxu0
    %v6971 = vadd.f32 %v6821, %v6970
    %v6972 = vpop.f32.mrb[0].mxu0
    %6973 = vmatprep.mubr.bf16.mxu0 %v6450
    %6974 = vmatmul.mubr.bf16.gmra.mrb[0].mxu0 %v6449
    %v6975 = vpop.f32.mrb[0].mxu0
    %v6976 = vadd.f32 %v6826, %v6975
    %v6977 = vpop.f32.mrb[0].mxu0
    %v6978 = vpop.f32.mrb[0].mxu0
    %v6979 = vpop.f32.mrb[0].mxu0
    %6980 = vdwg.mxu0
    %6981 = vmatprep.subr.bf16.mxu0 0
    %6982 = vmatpush1.bf16.msra.mxu0 %v6516
    %6983 = vmatprep.subr.bf16.mxu0 0
    %6984 = vmatpush1.bf16.msra.mxu0 %v6519
    %6985 = vmatprep.subr.bf16.mxu0 0
    %6986 = vmatpush1.bf16.msra.mxu0 %v6522
    %6987 = vmatprep.subr.bf16.mxu0 0
    %6988 = vmatpush1.bf16.msra.mxu0 %v6525
    %6989 = vmatprep.subr.bf16.mxu0 0
    %6990 = vmatpush1.bf16.msra.mxu0 %v6528
    %6991 = vmatprep.subr.bf16.mxu0 0
    %6992 = vmatpush1.bf16.msra.mxu0 %v6531
    %6993 = vmatprep.subr.bf16.mxu0 0
    %6994 = vmatpush1.bf16.msra.mxu0 %v6534
    %6995 = vmatprep.subr.bf16.mxu0 0
    %6996 = vmatpush1.bf16.msra.mxu0 %v6537
    %6997 = vmatprep.subr.bf16.mxu0 0
    %6998 = vmatpush1.bf16.msra.mxu0 0
    %6999 = vmatprep.subr.bf16.mxu0 0
    %7000 = vmatpush1.bf16.msra.mxu0 0
    %7001 = vmatprep.subr.bf16.mxu0 0
    %7002 = vmatpush1.bf16.msra.mxu0 0
    %7003 = vmatprep.subr.bf16.mxu0 0
    %7004 = vmatpush1.bf16.msra.mxu0 0
    %7005 = vmatprep.subr.bf16.mxu0 0
    %7006 = vmatpush1.bf16.msra.mxu0 0
    %7007 = vmatprep.subr.bf16.mxu0 0
    %7008 = vmatpush1.bf16.msra.mxu0 0
    %7009 = vmatprep.subr.bf16.mxu0 0
    %7010 = vmatpush1.bf16.msra.mxu0 0
    %7011 = vmatprep.subr.bf16.mxu0 0
    %7012 = vmatpush1.bf16.msra.mxu0 0
    %7013 = vmatprep.mubr.bf16.mxu0 0
    %7014 = vmatmul.mubr.bf16.gmra.mrb[0].mxu0 %v6448
    %v7015 = vpop.f32.mrb[0].mxu0
    %v7016 = vadd.f32 %v6968, %v7015
    %v7017 = vpop.f32.mrb[0].mxu0
    %v7018 = vpop.f32.mrb[0].mxu0
    %v7019 = vadd.f32 %v6971, %v7018
    %v7020 = vpop.f32.mrb[0].mxu0
    %7021 = vmatprep.mubr.bf16.mxu0 0
    %7022 = vmatmul.mubr.bf16.gmra.mrb[0].mxu0 %v6451
    %v7023 = vpop.f32.mrb[0].mxu0
    %v7024 = vadd.f32 %v6976, %v7023
    %v7025 = vpop.f32.mrb[0].mxu0
    %v7026 = vpop.f32.mrb[0].mxu0
    %v7027 = vpop.f32.mrb[0].mxu0
    %7028 = vdwg.mxu0
    %s7029 = scalar_lea.vmem [#allocation8], 1152
    %v7030 = vld [vmem:[%s7029] sm:$0xff]
    %v7031 = vld [vmem:[%s7029 + $0x8] sm:$0xff]
    %v7032 = vld [vmem:[%s7029 + $0x10] sm:$0xff]
    %v7033 = vld [vmem:[%s7029 + $0x18] sm:$0xff]
    %v7034 = vld [vmem:[%s7029 + $0x20] sm:$0xff]
    %v7035 = vld [vmem:[%s7029 + $0x28] sm:$0xff]
    %v7036 = vld [vmem:[%s7029 + $0x30] sm:$0xff]
    %v7037 = vld [vmem:[%s7029 + $0x38] sm:$0xff]
    %v7038 = vld [vmem:[%s7029 + $0x40] sm:$0xff]
    %v7039 = vld [vmem:[%s7029 + $0x48] sm:$0xff]
    %v7040 = vld [vmem:[%s7029 + $0x50] sm:$0xff]
    %v7041 = vld [vmem:[%s7029 + $0x58] sm:$0xff]
    %v7042 = vld [vmem:[%s7029 + $0x60] sm:$0xff]
    %v7043 = vld [vmem:[%s7029 + $0x68] sm:$0xff]
    %v7044 = vld [vmem:[%s7029 + $0x70] sm:$0xff]
    %v7045 = vld [vmem:[%s7029 + $0x78] sm:$0xff]
    %v7046 = vld [vmem:[%s7029 + $0x80] sm:$0xff]
    %v7047 = vld [vmem:[%s7029 + $0x88] sm:$0xff]
    %v7048 = vld [vmem:[%s7029 + $0x90] sm:$0xff]
    %v7049 = vld [vmem:[%s7029 + $0x98] sm:$0xff]
    %v7050 = vld [vmem:[%s7029 + $0xa0] sm:$0xff]
    %v7051 = vld [vmem:[%s7029 + $0xa8] sm:$0xff]
    %v7052 = vld [vmem:[%s7029 + $0xb0] sm:$0xff]
    %v7053 = vld [vmem:[%s7029 + $0xb8] sm:$0xff]
    %v7054 = vld [vmem:[%s7029 + $0xc0] sm:$0xff]
    %v7055 = vld [vmem:[%s7029 + $0xc8] sm:$0xff]
    %v7056 = vld [vmem:[%s7029 + $0xd0] sm:$0xff]
    %v7057 = vld [vmem:[%s7029 + $0xd8] sm:$0xff]
    %v7058 = vld [vmem:[%s7029 + $0xe0] sm:$0xff]
    %v7059 = vld [vmem:[%s7029 + $0xe8] sm:$0xff]
    %v7060 = vld [vmem:[%s7029 + $0xf0] sm:$0xff]
    %v7061 = vld [vmem:[%s7029 + $0xf8] sm:$0xff]
    %v7062 = vld [vmem:[%s7029 + $0x100] sm:$0xff]
    %v7063 = vld [vmem:[%s7029 + $0x108] sm:$0xff]
    %v7064 = vld [vmem:[%s7029 + $0x110] sm:$0xff]
    %v7065 = vld [vmem:[%s7029 + $0x118] sm:$0xff]
    %v7066 = vld [vmem:[%s7029 + $0x120] sm:$0xff]
    %v7067 = vld [vmem:[%s7029 + $0x128] sm:$0xff]
    %v7068 = vld [vmem:[%s7029 + $0x130] sm:$0xff]
    %v7069 = vld [vmem:[%s7029 + $0x138] sm:$0xff]
    %v7070 = vld [vmem:[%s7029 + $0x140] sm:$0xff]
    %v7071 = vld [vmem:[%s7029 + $0x148] sm:$0xff]
    %v7072 = vld [vmem:[%s7029 + $0x150] sm:$0xff]
    %v7073 = vld [vmem:[%s7029 + $0x158] sm:$0xff]
    %v7074 = vld [vmem:[%s7029 + $0x160] sm:$0xff]
    %v7075 = vld [vmem:[%s7029 + $0x168] sm:$0xff]
    %v7076 = vld [vmem:[%s7029 + $0x170] sm:$0xff]
    %v7077 = vld [vmem:[%s7029 + $0x178] sm:$0xff]
    %v7078 = vld [vmem:[%s7029 + $0x180] sm:$0xff]
    %v7079 = vld [vmem:[%s7029 + $0x188] sm:$0xff]
    %v7080 = vld [vmem:[%s7029 + $0x190] sm:$0xff]
    %v7081 = vld [vmem:[%s7029 + $0x198] sm:$0xff]
    %v7082 = vld [vmem:[%s7029 + $0x1a0] sm:$0xff]
    %v7083 = vld [vmem:[%s7029 + $0x1a8] sm:$0xff]
    %v7084 = vld [vmem:[%s7029 + $0x1b0] sm:$0xff]
    %v7085 = vld [vmem:[%s7029 + $0x1b8] sm:$0xff]
    %v7086 = vld [vmem:[%s7029 + $0x1c0] sm:$0xff]
    %v7087 = vld [vmem:[%s7029 + $0x1c8] sm:$0xff]
    %v7088 = vld [vmem:[%s7029 + $0x1d0] sm:$0xff]
    %v7089 = vld [vmem:[%s7029 + $0x1d8] sm:$0xff]
    %v7090 = vld [vmem:[%s7029 + $0x1e0] sm:$0xff]
    %v7091 = vld [vmem:[%s7029 + $0x1e8] sm:$0xff]
    %v7092 = vld [vmem:[%s7029 + $0x1f0] sm:$0xff]
    %v7093 = vld [vmem:[%s7029 + $0x1f8] sm:$0xff]
    %v7094 = vld [vmem:[%s7029 + $0x200] sm:$0xff]
    %v7095 = vld [vmem:[%s7029 + $0x208] sm:$0xff]
    %v7096 = vld [vmem:[%s7029 + $0x210] sm:$0xff]
    %v7097 = vld [vmem:[%s7029 + $0x218] sm:$0xff]
    %v7098 = vld [vmem:[%s7029 + $0x220] sm:$0xff]
    %v7099 = vld [vmem:[%s7029 + $0x228] sm:$0xff]
    %v7100 = vld [vmem:[%s7029 + $0x230] sm:$0xff]
    %v7101 = vld [vmem:[%s7029 + $0x238] sm:$0xff]
    %7102 = vmatprep.subr.bf16.mxu0 %v7031
    %7103 = vmatpush1.bf16.msra.mxu0 %v7030
    %7104 = vmatprep.subr.bf16.mxu0 %v7034
    %7105 = vmatpush1.bf16.msra.mxu0 %v7033
    %7106 = vmatprep.subr.bf16.mxu0 %v7037
    %7107 = vmatpush1.bf16.msra.mxu0 %v7036
    %7108 = vmatprep.subr.bf16.mxu0 %v7040
    %7109 = vmatpush1.bf16.msra.mxu0 %v7039
    %7110 = vmatprep.subr.bf16.mxu0 %v7043
    %7111 = vmatpush1.bf16.msra.mxu0 %v7042
    %7112 = vmatprep.subr.bf16.mxu0 %v7046
    %7113 = vmatpush1.bf16.msra.mxu0 %v7045
    %7114 = vmatprep.subr.bf16.mxu0 %v7049
    %7115 = vmatpush1.bf16.msra.mxu0 %v7048
    %7116 = vmatprep.subr.bf16.mxu0 %v7052
    %7117 = vmatpush1.bf16.msra.mxu0 %v7051
    %7118 = vmatprep.subr.bf16.mxu0 %v7055
    %7119 = vmatpush1.bf16.msra.mxu0 %v7054
    %7120 = vmatprep.subr.bf16.mxu0 %v7058
    %7121 = vmatpush1.bf16.msra.mxu0 %v7057
    %7122 = vmatprep.subr.bf16.mxu0 %v7061
    %7123 = vmatpush1.bf16.msra.mxu0 %v7060
    %7124 = vmatprep.subr.bf16.mxu0 %v7064
    %7125 = vmatpush1.bf16.msra.mxu0 %v7063
    %7126 = vmatprep.subr.bf16.mxu0 %v7067
    %7127 = vmatpush1.bf16.msra.mxu0 %v7066
    %7128 = vmatprep.subr.bf16.mxu0 %v7070
    %7129 = vmatpush1.bf16.msra.mxu0 %v7069
    %7130 = vmatprep.subr.bf16.mxu0 %v7073
    %7131 = vmatpush1.bf16.msra.mxu0 %v7072
    %7132 = vmatprep.subr.bf16.mxu0 %v7076
    %7133 = vmatpush1.bf16.msra.mxu0 %v7075
    %7134 = vmatprep.mubr.bf16.mxu0 %v6456
    %7135 = vmatmul.mubr.bf16.gmra.mrb[0].mxu0 %v6455
    %v7136 = vpop.f32.mrb[0].mxu0
    %v7137 = vadd.f32 0.0, %v7136
    %v7138 = vpop.f32.mrb[0].mxu0
    %v7139 = vadd.f32 0.0, %v7138
    %v7140 = vpop.f32.mrb[0].mxu0
    %v7141 = vadd.f32 0.0, %v7140
    %v7142 = vpop.f32.mrb[0].mxu0
    %v7143 = vadd.f32 0.0, %v7142
    %7144 = vmatprep.mubr.bf16.mxu0 %v6459
    %7145 = vmatmul.mubr.bf16.gmra.mrb[0].mxu0 %v6458
    %v7146 = vpop.f32.mrb[0].mxu0
    %v7147 = vadd.f32 0.0, %v7146
    %v7148 = vpop.f32.mrb[0].mxu0
    %v7149 = vadd.f32 0.0, %v7148
    %v7150 = vpop.f32.mrb[0].mxu0
    %v7151 = vpop.f32.mrb[0].mxu0
    %7152 = vdwg.mxu0
    %7153 = vmatprep.subr.bf16.mxu0 %v7079
    %7154 = vmatpush1.bf16.msra.mxu0 %v7078
    %7155 = vmatprep.subr.bf16.mxu0 %v7082
    %7156 = vmatpush1.bf16.msra.mxu0 %v7081
    %7157 = vmatprep.subr.bf16.mxu0 %v7085
    %7158 = vmatpush1.bf16.msra.mxu0 %v7084
    %7159 = vmatprep.subr.bf16.mxu0 %v7088
    %7160 = vmatpush1.bf16.msra.mxu0 %v7087
    %7161 = vmatprep.subr.bf16.mxu0 %v7091
    %7162 = vmatpush1.bf16.msra.mxu0 %v7090
    %7163 = vmatprep.subr.bf16.mxu0 %v7094
    %7164 = vmatpush1.bf16.msra.mxu0 %v7093
    %7165 = vmatprep.subr.bf16.mxu0 %v7097
    %7166 = vmatpush1.bf16.msra.mxu0 %v7096
    %7167 = vmatprep.subr.bf16.mxu0 %v7100
    %7168 = vmatpush1.bf16.msra.mxu0 %v7099
    %7169 = vmatprep.subr.bf16.mxu0 0
    %7170 = vmatpush1.bf16.msra.mxu0 0
    %7171 = vmatprep.subr.bf16.mxu0 0
    %7172 = vmatpush1.bf16.msra.mxu0 0
    %7173 = vmatprep.subr.bf16.mxu0 0
    %7174 = vmatpush1.bf16.msra.mxu0 0
    %7175 = vmatprep.subr.bf16.mxu0 0
    %7176 = vmatpush1.bf16.msra.mxu0 0
    %7177 = vmatprep.subr.bf16.mxu0 0
    %7178 = vmatpush1.bf16.msra.mxu0 0
    %7179 = vmatprep.subr.bf16.mxu0 0
    %7180 = vmatpush1.bf16.msra.mxu0 0
    %7181 = vmatprep.subr.bf16.mxu0 0
    %7182 = vmatpush1.bf16.msra.mxu0 0
    %7183 = vmatprep.subr.bf16.mxu0 0
    %7184 = vmatpush1.bf16.msra.mxu0 0
    %7185 = vmatprep.mubr.bf16.mxu0 0
    %7186 = vmatmul.mubr.bf16.gmra.mrb[0].mxu0 %v6457
    %v7187 = vpop.f32.mrb[0].mxu0
    %v7188 = vadd.f32 %v7137, %v7187
    %v7189 = vpop.f32.mrb[0].mxu0
    %v7190 = vadd.f32 %v7139, %v7189
    %v7191 = vpop.f32.mrb[0].mxu0
    %v7192 = vadd.f32 %v7141, %v7191
    %v7193 = vpop.f32.mrb[0].mxu0
    %v7194 = vadd.f32 %v7143, %v7193
    %7195 = vmatprep.mubr.bf16.mxu0 0
    %7196 = vmatmul.mubr.bf16.gmra.mrb[0].mxu0 %v6460
    %v7197 = vpop.f32.mrb[0].mxu0
    %v7198 = vadd.f32 %v7147, %v7197
    %v7199 = vpop.f32.mrb[0].mxu0
    %v7200 = vadd.f32 %v7149, %v7199
    %v7201 = vpop.f32.mrb[0].mxu0
    %v7202 = vpop.f32.mrb[0].mxu0
    %7203 = vdwg.mxu0
    %7204 = vmatprep.subr.bf16.mxu0 0
    %7205 = vmatpush1.bf16.msra.mxu0 %v7032
    %7206 = vmatprep.subr.bf16.mxu0 0
    %7207 = vmatpush1.bf16.msra.mxu0 %v7035
    %7208 = vmatprep.subr.bf16.mxu0 0
    %7209 = vmatpush1.bf16.msra.mxu0 %v7038
    %7210 = vmatprep.subr.bf16.mxu0 0
    %7211 = vmatpush1.bf16.msra.mxu0 %v7041
    %7212 = vmatprep.subr.bf16.mxu0 0
    %7213 = vmatpush1.bf16.msra.mxu0 %v7044
    %7214 = vmatprep.subr.bf16.mxu0 0
    %7215 = vmatpush1.bf16.msra.mxu0 %v7047
    %7216 = vmatprep.subr.bf16.mxu0 0
    %7217 = vmatpush1.bf16.msra.mxu0 %v7050
    %7218 = vmatprep.subr.bf16.mxu0 0
    %7219 = vmatpush1.bf16.msra.mxu0 %v7053
    %7220 = vmatprep.subr.bf16.mxu0 0
    %7221 = vmatpush1.bf16.msra.mxu0 %v7056
    %7222 = vmatprep.subr.bf16.mxu0 0
    %7223 = vmatpush1.bf16.msra.mxu0 %v7059
    %7224 = vmatprep.subr.bf16.mxu0 0
    %7225 = vmatpush1.bf16.msra.mxu0 %v7062
    %7226 = vmatprep.subr.bf16.mxu0 0
    %7227 = vmatpush1.bf16.msra.mxu0 %v7065
    %7228 = vmatprep.subr.bf16.mxu0 0
    %7229 = vmatpush1.bf16.msra.mxu0 %v7068
    %7230 = vmatprep.subr.bf16.mxu0 0
    %7231 = vmatpush1.bf16.msra.mxu0 %v7071
    %7232 = vmatprep.subr.bf16.mxu0 0
    %7233 = vmatpush1.bf16.msra.mxu0 %v7074
    %7234 = vmatprep.subr.bf16.mxu0 0
    %7235 = vmatpush1.bf16.msra.mxu0 %v7077
    %7236 = vmatprep.mubr.bf16.mxu0 %v6456
    %7237 = vmatmul.mubr.bf16.gmra.mrb[0].mxu0 %v6455
    %v7238 = vpop.f32.mrb[0].mxu0
    %v7239 = vadd.f32 0.0, %v7238
    %v7240 = vpop.f32.mrb[0].mxu0
    %v7241 = vpop.f32.mrb[0].mxu0
    %v7242 = vadd.f32 0.0, %v7241
    %v7243 = vpop.f32.mrb[0].mxu0
    %7244 = vmatprep.mubr.bf16.mxu0 %v6459
    %7245 = vmatmul.mubr.bf16.gmra.mrb[0].mxu0 %v6458
    %v7246 = vpop.f32.mrb[0].mxu0
    %v7247 = vadd.f32 0.0, %v7246
    %v7248 = vpop.f32.mrb[0].mxu0
    %v7249 = vpop.f32.mrb[0].mxu0
    %v7250 = vpop.f32.mrb[0].mxu0
    %7251 = vdwg.mxu0
    %7252 = vmatprep.subr.bf16.mxu0 0
    %7253 = vmatpush1.bf16.msra.mxu0 %v7080
    %7254 = vmatprep.subr.bf16.mxu0 0
    %7255 = vmatpush1.bf16.msra.mxu0 %v7083
    %7256 = vmatprep.subr.bf16.mxu0 0
    %7257 = vmatpush1.bf16.msra.mxu0 %v7086
    %7258 = vmatprep.subr.bf16.mxu0 0
    %7259 = vmatpush1.bf16.msra.mxu0 %v7089
    %7260 = vmatprep.subr.bf16.mxu0 0
    %7261 = vmatpush1.bf16.msra.mxu0 %v7092
    %7262 = vmatprep.subr.bf16.mxu0 0
    %7263 = vmatpush1.bf16.msra.mxu0 %v7095
    %7264 = vmatprep.subr.bf16.mxu0 0
    %7265 = vmatpush1.bf16.msra.mxu0 %v7098
    %7266 = vmatprep.subr.bf16.mxu0 0
    %7267 = vmatpush1.bf16.msra.mxu0 %v7101
    %7268 = vmatprep.subr.bf16.mxu0 0
    %7269 = vmatpush1.bf16.msra.mxu0 0
    %7270 = vmatprep.subr.bf16.mxu0 0
    %7271 = vmatpush1.bf16.msra.mxu0 0
    %7272 = vmatprep.subr.bf16.mxu0 0
    %7273 = vmatpush1.bf16.msra.mxu0 0
    %7274 = vmatprep.subr.bf16.mxu0 0
    %7275 = vmatpush1.bf16.msra.mxu0 0
    %7276 = vmatprep.subr.bf16.mxu0 0
    %7277 = vmatpush1.bf16.msra.mxu0 0
    %7278 = vmatprep.subr.bf16.mxu0 0
    %7279 = vmatpush1.bf16.msra.mxu0 0
    %7280 = vmatprep.subr.bf16.mxu0 0
    %7281 = vmatpush1.bf16.msra.mxu0 0
    %7282 = vmatprep.subr.bf16.mxu0 0
    %7283 = vmatpush1.bf16.msra.mxu0 0
    %7284 = vmatprep.mubr.bf16.mxu0 0
    %7285 = vmatmul.mubr.bf16.gmra.mrb[0].mxu0 %v6457
    %v7286 = vpop.f32.mrb[0].mxu0
    %v7287 = vadd.f32 %v7239, %v7286
    %v7288 = vpop.f32.mrb[0].mxu0
    %v7289 = vpop.f32.mrb[0].mxu0
    %v7290 = vadd.f32 %v7242, %v7289
    %v7291 = vpop.f32.mrb[0].mxu0
    %7292 = vmatprep.mubr.bf16.mxu0 0
    %7293 = vmatmul.mubr.bf16.gmra.mrb[0].mxu0 %v6460
    %v7294 = vpop.f32.mrb[0].mxu0
    %v7295 = vadd.f32 %v7247, %v7294
    %v7296 = vpop.f32.mrb[0].mxu0
    %v7297 = vpop.f32.mrb[0].mxu0
    %v7298 = vpop.f32.mrb[0].mxu0
    %7299 = vdwg.mxu0
    %v7300 = vadd.f32 %v6917, %v7188
    %v7301 = vadd.f32 %v6919, %v7190
    %v7302 = vadd.f32 %v7016, %v7287
    %v7303 = vadd.f32 %v6921, %v7192
    %v7304 = vadd.f32 %v6923, %v7194
    %v7305 = vadd.f32 %v7019, %v7290
    %v7306 = vadd.f32 %v6927, %v7198
    %v7307 = vadd.f32 %v6929, %v7200
    %v7308 = vadd.f32 %v7024, %v7295
    %s7309 = scalar_lea.vmem [#allocation8], 1728
    %v7310 = vld [vmem:[%s7309] sm:$0xff]
    %v7311 = vld [vmem:[%s7309 + $0x8] sm:$0xff]
    %v7312 = vld [vmem:[%s7309 + $0x10] sm:$0xff]
    %v7313 = vld [vmem:[%s7309 + $0x18] sm:$0xff]
    %v7314 = vld [vmem:[%s7309 + $0x20] sm:$0xff]
    %v7315 = vld [vmem:[%s7309 + $0x28] sm:$0xff]
    %v7316 = vld [vmem:[%s7309 + $0x30] sm:$0xff]
    %v7317 = vld [vmem:[%s7309 + $0x38] sm:$0xff]
    %v7318 = vld [vmem:[%s7309 + $0x40] sm:$0xff]
    %v7319 = vld [vmem:[%s7309 + $0x48] sm:$0xff]
    %v7320 = vld [vmem:[%s7309 + $0x50] sm:$0xff]
    %v7321 = vld [vmem:[%s7309 + $0x58] sm:$0xff]
    %v7322 = vld [vmem:[%s7309 + $0x60] sm:$0xff]
    %v7323 = vld [vmem:[%s7309 + $0x68] sm:$0xff]
    %v7324 = vld [vmem:[%s7309 + $0x70] sm:$0xff]
    %v7325 = vld [vmem:[%s7309 + $0x78] sm:$0xff]
    %v7326 = vld [vmem:[%s7309 + $0x80] sm:$0xff]
    %v7327 = vld [vmem:[%s7309 + $0x88] sm:$0xff]
    %v7328 = vld [vmem:[%s7309 + $0x90] sm:$0xff]
    %v7329 = vld [vmem:[%s7309 + $0x98] sm:$0xff]
    %v7330 = vld [vmem:[%s7309 + $0xa0] sm:$0xff]
    %v7331 = vld [vmem:[%s7309 + $0xa8] sm:$0xff]
    %v7332 = vld [vmem:[%s7309 + $0xb0] sm:$0xff]
    %v7333 = vld [vmem:[%s7309 + $0xb8] sm:$0xff]
    %v7334 = vld [vmem:[%s7309 + $0xc0] sm:$0xff]
    %v7335 = vld [vmem:[%s7309 + $0xc8] sm:$0xff]
    %v7336 = vld [vmem:[%s7309 + $0xd0] sm:$0xff]
    %v7337 = vld [vmem:[%s7309 + $0xd8] sm:$0xff]
    %v7338 = vld [vmem:[%s7309 + $0xe0] sm:$0xff]
    %v7339 = vld [vmem:[%s7309 + $0xe8] sm:$0xff]
    %v7340 = vld [vmem:[%s7309 + $0xf0] sm:$0xff]
    %v7341 = vld [vmem:[%s7309 + $0xf8] sm:$0xff]
    %v7342 = vld [vmem:[%s7309 + $0x100] sm:$0xff]
    %v7343 = vld [vmem:[%s7309 + $0x108] sm:$0xff]
    %v7344 = vld [vmem:[%s7309 + $0x110] sm:$0xff]
    %v7345 = vld [vmem:[%s7309 + $0x118] sm:$0xff]
    %v7346 = vld [vmem:[%s7309 + $0x120] sm:$0xff]
    %v7347 = vld [vmem:[%s7309 + $0x128] sm:$0xff]
    %v7348 = vld [vmem:[%s7309 + $0x130] sm:$0xff]
    %v7349 = vld [vmem:[%s7309 + $0x138] sm:$0xff]
    %v7350 = vld [vmem:[%s7309 + $0x140] sm:$0xff]
    %v7351 = vld [vmem:[%s7309 + $0x148] sm:$0xff]
    %v7352 = vld [vmem:[%s7309 + $0x150] sm:$0xff]
    %v7353 = vld [vmem:[%s7309 + $0x158] sm:$0xff]
    %v7354 = vld [vmem:[%s7309 + $0x160] sm:$0xff]
    %v7355 = vld [vmem:[%s7309 + $0x168] sm:$0xff]
    %v7356 = vld [vmem:[%s7309 + $0x170] sm:$0xff]
    %v7357 = vld [vmem:[%s7309 + $0x178] sm:$0xff]
    %v7358 = vld [vmem:[%s7309 + $0x180] sm:$0xff]
    %v7359 = vld [vmem:[%s7309 + $0x188] sm:$0xff]
    %v7360 = vld [vmem:[%s7309 + $0x190] sm:$0xff]
    %v7361 = vld [vmem:[%s7309 + $0x198] sm:$0xff]
    %v7362 = vld [vmem:[%s7309 + $0x1a0] sm:$0xff]
    %v7363 = vld [vmem:[%s7309 + $0x1a8] sm:$0xff]
    %v7364 = vld [vmem:[%s7309 + $0x1b0] sm:$0xff]
    %v7365 = vld [vmem:[%s7309 + $0x1b8] sm:$0xff]
    %v7366 = vld [vmem:[%s7309 + $0x1c0] sm:$0xff]
    %v7367 = vld [vmem:[%s7309 + $0x1c8] sm:$0xff]
    %v7368 = vld [vmem:[%s7309 + $0x1d0] sm:$0xff]
    %v7369 = vld [vmem:[%s7309 + $0x1d8] sm:$0xff]
    %v7370 = vld [vmem:[%s7309 + $0x1e0] sm:$0xff]
    %v7371 = vld [vmem:[%s7309 + $0x1e8] sm:$0xff]
    %v7372 = vld [vmem:[%s7309 + $0x1f0] sm:$0xff]
    %v7373 = vld [vmem:[%s7309 + $0x1f8] sm:$0xff]
    %v7374 = vld [vmem:[%s7309 + $0x200] sm:$0xff]
    %v7375 = vld [vmem:[%s7309 + $0x208] sm:$0xff]
    %v7376 = vld [vmem:[%s7309 + $0x210] sm:$0xff]
    %v7377 = vld [vmem:[%s7309 + $0x218] sm:$0xff]
    %v7378 = vld [vmem:[%s7309 + $0x220] sm:$0xff]
    %v7379 = vld [vmem:[%s7309 + $0x228] sm:$0xff]
    %v7380 = vld [vmem:[%s7309 + $0x230] sm:$0xff]
    %v7381 = vld [vmem:[%s7309 + $0x238] sm:$0xff]
    %v7388 = vrot.slane %v6458, 4
    %v7389 = vrot.slane %v6461, 4
    %v7390 = vsel %vm6617, %v7388, %v7389
    %v7391 = vrot.slane %v6459, 4
    %v7392 = vrot.slane %v6462, 4
    %v7393 = vsel %vm6617, %v7391, %v7392
    %v7394 = vrot.slane %v6460, 4
    %v7395 = vrot.slane %v6463, 4
    %v7396 = vsel %vm6617, %v7394, %v7395
    %7403 = vmatprep.subr.bf16.mxu0 %v7311
    %7404 = vmatpush1.bf16.msra.mxu0 %v7310
    %7405 = vmatprep.subr.bf16.mxu0 %v7314
    %7406 = vmatpush1.bf16.msra.mxu0 %v7313
    %7407 = vmatprep.subr.bf16.mxu0 %v7317
    %7408 = vmatpush1.bf16.msra.mxu0 %v7316
    %7409 = vmatprep.subr.bf16.mxu0 %v7320
    %7410 = vmatpush1.bf16.msra.mxu0 %v7319
    %7411 = vmatprep.subr.bf16.mxu0 %v7323
    %7412 = vmatpush1.bf16.msra.mxu0 %v7322
    %7413 = vmatprep.subr.bf16.mxu0 %v7326
    %7414 = vmatpush1.bf16.msra.mxu0 %v7325
    %7415 = vmatprep.subr.bf16.mxu0 %v7329
    %7416 = vmatpush1.bf16.msra.mxu0 %v7328
    %7417 = vmatprep.subr.bf16.mxu0 %v7332
    %7418 = vmatpush1.bf16.msra.mxu0 %v7331
    %7419 = vmatprep.subr.bf16.mxu0 %v7335
    %7420 = vmatpush1.bf16.msra.mxu0 %v7334
    %7421 = vmatprep.subr.bf16.mxu0 %v7338
    %7422 = vmatpush1.bf16.msra.mxu0 %v7337
    %7423 = vmatprep.subr.bf16.mxu0 %v7341
    %7424 = vmatpush1.bf16.msra.mxu0 %v7340
    %7425 = vmatprep.subr.bf16.mxu0 %v7344
    %7426 = vmatpush1.bf16.msra.mxu0 %v7343
    %7427 = vmatprep.subr.bf16.mxu0 %v7347
    %7428 = vmatpush1.bf16.msra.mxu0 %v7346
    %7429 = vmatprep.subr.bf16.mxu0 %v7350
    %7430 = vmatpush1.bf16.msra.mxu0 %v7349
    %7431 = vmatprep.subr.bf16.mxu0 %v7353
    %7432 = vmatpush1.bf16.msra.mxu0 %v7352
    %7433 = vmatprep.subr.bf16.mxu0 %v7356
    %7434 = vmatpush1.bf16.msra.mxu0 %v7355
    %7435 = vmatprep.mubr.bf16.mxu0 %v7393
    %7436 = vmatmul.mubr.bf16.gmra.mrb[0].mxu0 %v7390
    %v7437 = vpop.f32.mrb[0].mxu0
    %v7438 = vadd.f32 0.0, %v7437
    %v7439 = vpop.f32.mrb[0].mxu0
    %v7440 = vadd.f32 0.0, %v7439
    %v7441 = vpop.f32.mrb[0].mxu0
    %v7442 = vadd.f32 0.0, %v7441
    %v7443 = vpop.f32.mrb[0].mxu0
    %v7444 = vadd.f32 0.0, %v7443
    %7445 = vmatprep.mubr.bf16.mxu0 %v7392
    %7446 = vmatmul.mubr.bf16.gmra.mrb[0].mxu0 %v7389
    %v7447 = vpop.f32.mrb[0].mxu0
    %v7448 = vadd.f32 0.0, %v7447
    %v7449 = vpop.f32.mrb[0].mxu0
    %v7450 = vadd.f32 0.0, %v7449
    %v7451 = vpop.f32.mrb[0].mxu0
    %v7452 = vpop.f32.mrb[0].mxu0
    %7453 = vdwg.mxu0
    %7454 = vmatprep.subr.bf16.mxu0 %v7359
    %7455 = vmatpush1.bf16.msra.mxu0 %v7358
    %7456 = vmatprep.subr.bf16.mxu0 %v7362
    %7457 = vmatpush1.bf16.msra.mxu0 %v7361
    %7458 = vmatprep.subr.bf16.mxu0 %v7365
    %7459 = vmatpush1.bf16.msra.mxu0 %v7364
    %7460 = vmatprep.subr.bf16.mxu0 %v7368
    %7461 = vmatpush1.bf16.msra.mxu0 %v7367
    %7462 = vmatprep.subr.bf16.mxu0 %v7371
    %7463 = vmatpush1.bf16.msra.mxu0 %v7370
    %7464 = vmatprep.subr.bf16.mxu0 %v7374
    %7465 = vmatpush1.bf16.msra.mxu0 %v7373
    %7466 = vmatprep.subr.bf16.mxu0 %v7377
    %7467 = vmatpush1.bf16.msra.mxu0 %v7376
    %7468 = vmatprep.subr.bf16.mxu0 %v7380
    %7469 = vmatpush1.bf16.msra.mxu0 %v7379
    %7470 = vmatprep.subr.bf16.mxu0 0
    %7471 = vmatpush1.bf16.msra.mxu0 0
    %7472 = vmatprep.subr.bf16.mxu0 0
    %7473 = vmatpush1.bf16.msra.mxu0 0
    %7474 = vmatprep.subr.bf16.mxu0 0
    %7475 = vmatpush1.bf16.msra.mxu0 0
    %7476 = vmatprep.subr.bf16.mxu0 0
    %7477 = vmatpush1.bf16.msra.mxu0 0
    %7478 = vmatprep.subr.bf16.mxu0 0
    %7479 = vmatpush1.bf16.msra.mxu0 0
    %7480 = vmatprep.subr.bf16.mxu0 0
    %7481 = vmatpush1.bf16.msra.mxu0 0
    %7482 = vmatprep.subr.bf16.mxu0 0
    %7483 = vmatpush1.bf16.msra.mxu0 0
    %7484 = vmatprep.subr.bf16.mxu0 0
    %7485 = vmatpush1.bf16.msra.mxu0 0
    %7486 = vmatprep.mubr.bf16.mxu0 0
    %7487 = vmatmul.mubr.bf16.gmra.mrb[0].mxu0 %v7396
    %v7488 = vpop.f32.mrb[0].mxu0
    %v7489 = vadd.f32 %v7438, %v7488
    %v7490 = vpop.f32.mrb[0].mxu0
    %v7491 = vadd.f32 %v7440, %v7490
    %v7492 = vpop.f32.mrb[0].mxu0
    %v7493 = vadd.f32 %v7442, %v7492
    %v7494 = vpop.f32.mrb[0].mxu0
    %v7495 = vadd.f32 %v7444, %v7494
    %7496 = vmatprep.mubr.bf16.mxu0 0
    %7497 = vmatmul.mubr.bf16.gmra.mrb[0].mxu0 %v7395
    %v7498 = vpop.f32.mrb[0].mxu0
    %v7499 = vadd.f32 %v7448, %v7498
    %v7500 = vpop.f32.mrb[0].mxu0
    %v7501 = vadd.f32 %v7450, %v7500
    %v7502 = vpop.f32.mrb[0].mxu0
    %v7503 = vpop.f32.mrb[0].mxu0
    %7504 = vdwg.mxu0
    %7505 = vmatprep.subr.bf16.mxu0 0
    %7506 = vmatpush1.bf16.msra.mxu0 %v7312
    %7507 = vmatprep.subr.bf16.mxu0 0
    %7508 = vmatpush1.bf16.msra.mxu0 %v7315
    %7509 = vmatprep.subr.bf16.mxu0 0
    %7510 = vmatpush1.bf16.msra.mxu0 %v7318
    %7511 = vmatprep.subr.bf16.mxu0 0
    %7512 = vmatpush1.bf16.msra.mxu0 %v7321
    %7513 = vmatprep.subr.bf16.mxu0 0
    %7514 = vmatpush1.bf16.msra.mxu0 %v7324
    %7515 = vmatprep.subr.bf16.mxu0 0
    %7516 = vmatpush1.bf16.msra.mxu0 %v7327
    %7517 = vmatprep.subr.bf16.mxu0 0
    %7518 = vmatpush1.bf16.msra.mxu0 %v7330
    %7519 = vmatprep.subr.bf16.mxu0 0
    %7520 = vmatpush1.bf16.msra.mxu0 %v7333
    %7521 = vmatprep.subr.bf16.mxu0 0
    %7522 = vmatpush1.bf16.msra.mxu0 %v7336
    %7523 = vmatprep.subr.bf16.mxu0 0
    %7524 = vmatpush1.bf16.msra.mxu0 %v7339
    %7525 = vmatprep.subr.bf16.mxu0 0
    %7526 = vmatpush1.bf16.msra.mxu0 %v7342
    %7527 = vmatprep.subr.bf16.mxu0 0
    %7528 = vmatpush1.bf16.msra.mxu0 %v7345
    %7529 = vmatprep.subr.bf16.mxu0 0
    %7530 = vmatpush1.bf16.msra.mxu0 %v7348
    %7531 = vmatprep.subr.bf16.mxu0 0
    %7532 = vmatpush1.bf16.msra.mxu0 %v7351
    %7533 = vmatprep.subr.bf16.mxu0 0
    %7534 = vmatpush1.bf16.msra.mxu0 %v7354
    %7535 = vmatprep.subr.bf16.mxu0 0
    %7536 = vmatpush1.bf16.msra.mxu0 %v7357
    %7537 = vmatprep.mubr.bf16.mxu0 %v7393
    %7538 = vmatmul.mubr.bf16.gmra.mrb[0].mxu0 %v7390
    %v7539 = vpop.f32.mrb[0].mxu0
    %v7540 = vadd.f32 0.0, %v7539
    %v7541 = vpop.f32.mrb[0].mxu0
    %v7542 = vpop.f32.mrb[0].mxu0
    %v7543 = vadd.f32 0.0, %v7542
    %v7544 = vpop.f32.mrb[0].mxu0
    %7545 = vmatprep.mubr.bf16.mxu0 %v7392
    %7546 = vmatmul.mubr.bf16.gmra.mrb[0].mxu0 %v7389
    %v7547 = vpop.f32.mrb[0].mxu0
    %v7548 = vadd.f32 0.0, %v7547
    %v7549 = vpop.f32.mrb[0].mxu0
    %v7550 = vpop.f32.mrb[0].mxu0
    %v7551 = vpop.f32.mrb[0].mxu0
    %7552 = vdwg.mxu0
    %7553 = vmatprep.subr.bf16.mxu0 0
    %7554 = vmatpush1.bf16.msra.mxu0 %v7360
    %7555 = vmatprep.subr.bf16.mxu0 0
    %7556 = vmatpush1.bf16.msra.mxu0 %v7363
    %7557 = vmatprep.subr.bf16.mxu0 0
    %7558 = vmatpush1.bf16.msra.mxu0 %v7366
    %7559 = vmatprep.subr.bf16.mxu0 0
    %7560 = vmatpush1.bf16.msra.mxu0 %v7369
    %7561 = vmatprep.subr.bf16.mxu0 0
    %7562 = vmatpush1.bf16.msra.mxu0 %v7372
    %7563 = vmatprep.subr.bf16.mxu0 0
    %7564 = vmatpush1.bf16.msra.mxu0 %v7375
    %7565 = vmatprep.subr.bf16.mxu0 0
    %7566 = vmatpush1.bf16.msra.mxu0 %v7378
    %7567 = vmatprep.subr.bf16.mxu0 0
    %7568 = vmatpush1.bf16.msra.mxu0 %v7381
    %7569 = vmatprep.subr.bf16.mxu0 0
    %7570 = vmatpush1.bf16.msra.mxu0 0
    %7571 = vmatprep.subr.bf16.mxu0 0
    %7572 = vmatpush1.bf16.msra.mxu0 0
    %7573 = vmatprep.subr.bf16.mxu0 0
    %7574 = vmatpush1.bf16.msra.mxu0 0
    %7575 = vmatprep.subr.bf16.mxu0 0
    %7576 = vmatpush1.bf16.msra.mxu0 0
    %7577 = vmatprep.subr.bf16.mxu0 0
    %7578 = vmatpush1.bf16.msra.mxu0 0
    %7579 = vmatprep.subr.bf16.mxu0 0
    %7580 = vmatpush1.bf16.msra.mxu0 0
    %7581 = vmatprep.subr.bf16.mxu0 0
    %7582 = vmatpush1.bf16.msra.mxu0 0
    %7583 = vmatprep.subr.bf16.mxu0 0
    %7584 = vmatpush1.bf16.msra.mxu0 0
    %7585 = vmatprep.mubr.bf16.mxu0 0
    %7586 = vmatmul.mubr.bf16.gmra.mrb[0].mxu0 %v7396
    %v7587 = vpop.f32.mrb[0].mxu0
    %v7588 = vadd.f32 %v7540, %v7587
    %v7589 = vpop.f32.mrb[0].mxu0
    %v7590 = vpop.f32.mrb[0].mxu0
    %v7591 = vadd.f32 %v7543, %v7590
    %v7592 = vpop.f32.mrb[0].mxu0
    %7593 = vmatprep.mubr.bf16.mxu0 0
    %7594 = vmatmul.mubr.bf16.gmra.mrb[0].mxu0 %v7395
    %v7595 = vpop.f32.mrb[0].mxu0
    %v7596 = vadd.f32 %v7548, %v7595
    %v7597 = vpop.f32.mrb[0].mxu0
    %v7598 = vpop.f32.mrb[0].mxu0
    %v7599 = vpop.f32.mrb[0].mxu0
    %7600 = vdwg.mxu0
    %v7601 = vadd.f32 %v7300, %v7489
    %v7602 = vadd.f32 %v7301, %v7491
    %v7603 = vadd.f32 %v7302, %v7588
    %v7604 = vadd.f32 %v7303, %v7493
    %v7605 = vadd.f32 %v7304, %v7495
    %v7606 = vadd.f32 %v7305, %v7591
    %v7607 = vadd.f32 %v7306, %v7499
    %v7608 = vadd.f32 %v7307, %v7501
    %v7609 = vadd.f32 %v7308, %v7596
    %v7610 = vld [vmem:[#allocation22] sm:$0x7]
    %v7612 = vlaneseq
    %v7613 = vshrl.u32 %v7612, 7
    %v7614 = vsub.s32 0, %v7613
    %v7615 = vrot.slane %v7610, %v7614
    %v7616 = vlaneseq
    %v7617 = vshrl.u32 %v7616, 7
    %v7618 = vsub.s32 1, %v7617
    %v7619 = vrot.slane %v7610, %v7618
    %v7620 = vlaneseq
    %v7621 = vshrl.u32 %v7620, 7
    %v7622 = vsub.s32 2, %v7621
    %v7623 = vrot.slane %v7610, %v7622
    %v7627 = vadd.f32 %v7601, %v7615
    %v7628 = vadd.f32 %v7602, %v7619
    %v7629 = vadd.f32 %v7603, %v7623
    %v7630 = vadd.f32 %v7604, %v7615
    %v7631 = vadd.f32 %v7605, %v7619
    %v7632 = vadd.f32 %v7606, %v7623
    %v7633 = vadd.f32 %v7607, %v7615
    %v7634 = vadd.f32 %v7608, %v7619
    %v7635 = vadd.f32 %v7609, %v7623
    %v7636 = vmax.f32 %v7627, 0.0
    %v7637 = vmax.f32 %v7628, 0.0
    %v7638 = vmax.f32 %v7629, 0.0
    %v7639 = vmax.f32 %v7630, 0.0
    %v7640 = vmax.f32 %v7631, 0.0
    %v7641 = vmax.f32 %v7632, 0.0
    %v7642 = vmax.f32 %v7633, 0.0
    %v7643 = vmax.f32 %v7634, 0.0
    %v7644 = vmax.f32 %v7635, 0.0
    %v7645 = vld [vmem:[%s19] sm:$0xf]
    %v7646 = vld [vmem:[%s19 + $0x4] sm:$0xf]
    %v7647 = vld [vmem:[%s19 + $0x8] sm:$0xf]
    %v7648 = vld [vmem:[%s19 + $0xc] sm:$0xf]
    %v7649 = vld [vmem:[%s19 + $0x10] sm:$0xf]
    %v7650 = vld [vmem:[%s19 + $0x14] sm:$0xf]
    %v7651 = vld [vmem:[%s19 + $0x18] sm:$0xf]
    %v7652 = vld [vmem:[%s19 + $0x1c] sm:$0xf]
    %v7653 = vld [vmem:[%s19 + $0x20] sm:$0xf]
    %v7654 = vld [vmem:[%s19 + $0x24] sm:$0xf]
    %v7655 = vld [vmem:[%s19 + $0x28] sm:$0xf]
    %v7656 = vld [vmem:[%s19 + $0x2c] sm:$0xf]
    %v7657 = vld [vmem:[%s19 + $0x30] sm:$0xf]
    %v7658 = vld [vmem:[%s19 + $0x34] sm:$0xf]
    %v7659 = vld [vmem:[%s19 + $0x38] sm:$0xf]
    %v7660 = vld [vmem:[%s19 + $0x3c] sm:$0xf]
    %v7661 = vld [vmem:[%s19 + $0x40] sm:$0xf]
    %v7662 = vld [vmem:[%s19 + $0x44] sm:$0xf]
    %v7663 = vld [vmem:[%s19 + $0x48] sm:$0xf]
    %v7664 = vld [vmem:[%s19 + $0x4c] sm:$0xf]
    %v7665 = vld [vmem:[%s19 + $0x50] sm:$0xf]
    %v7666 = vld [vmem:[%s19 + $0x54] sm:$0xf]
    %v7667 = vld [vmem:[%s19 + $0x58] sm:$0xf]
    %v7668 = vld [vmem:[%s19 + $0x5c] sm:$0xf]
    %v7669 = vpack.c.bf16 %v7639, %v7636
    %v7670 = vpack.c.bf16 %v7640, %v7637
    %v7671 = vpack.c.bf16 %v7641, %v7638
    %v7672 = vpack.c.bf16 %v7642, %v7642
    %v7673 = vpack.c.bf16 %v7643, %v7643
    %v7674 = vpack.c.bf16 %v7644, %v7644
    %v7699 = vunpack.c.l.b16 %v7645
    %v7700 = vunpack.c.l.b16 %v7646
    %v7701 = vunpack.c.l.b16 %v7647
    %v7702 = vunpack.c.l.b16 %v7648
    %v7703 = vunpack.c.l.b16 %v7649
    %v7704 = vunpack.c.l.b16 %v7650
    %v7705 = vunpack.c.l.b16 %v7651
    %v7706 = vunpack.c.l.b16 %v7652
    %v7707 = vunpack.c.l.b16 %v7653
    %v7708 = vunpack.c.l.b16 %v7654
    %v7709 = vunpack.c.l.b16 %v7655
    %v7710 = vunpack.c.l.b16 %v7656
    %v7711 = vunpack.c.l.b16 %v7657
    %v7712 = vunpack.c.l.b16 %v7658
    %v7713 = vunpack.c.l.b16 %v7659
    %v7714 = vunpack.c.l.b16 %v7660
    %v7715 = vunpack.c.l.b16 %v7661
    %v7716 = vunpack.c.l.b16 %v7662
    %v7717 = vunpack.c.l.b16 %v7663
    %v7718 = vunpack.c.l.b16 %v7664
    %v7719 = vunpack.c.l.b16 %v7665
    %v7720 = vunpack.c.l.b16 %v7666
    %v7721 = vunpack.c.l.b16 %v7667
    %v7722 = vunpack.c.l.b16 %v7668
    %v7723 = vpack.c.b16 %v7700, %v7699
    %v7724 = vpack.c.b16 %v7702, %v7701
    %v7725 = vpack.c.b16 %v7704, %v7703
    %v7726 = vpack.c.b16 %v7706, %v7705
    %v7727 = vpack.c.b16 %v7708, %v7707
    %v7728 = vpack.c.b16 %v7710, %v7709
    %v7729 = vpack.c.b16 %v7712, %v7711
    %v7730 = vpack.c.b16 %v7714, %v7713
    %v7731 = vpack.c.b16 %v7716, %v7715
    %v7732 = vpack.c.b16 %v7718, %v7717
    %v7733 = vpack.c.b16 %v7720, %v7719
    %v7734 = vpack.c.b16 %v7722, %v7721
    %vm7735 = vcmask 195584
    %v7737 = vsel %vm7735, %v7723, 0
    %v7740 = vsel %vm7735, %v7724, 0
    %v7743 = vsel %vm7735, %v7725, 0
    %v7746 = vsel %vm7735, %v7726, 0
    %v7749 = vsel %vm7735, %v7727, 0
    %v7752 = vsel %vm7735, %v7728, 0
    %v7755 = vsel %vm7735, %v7729, 0
    %v7758 = vsel %vm7735, %v7730, 0
    %v7761 = vsel %vm7735, %v7731, 0
    %v7764 = vsel %vm7735, %v7732, 0
    %v7767 = vsel %vm7735, %v7733, 0
    %v7770 = vsel %vm7735, %v7734, 0
    %v7773 = vsel %vm573, %v7672, 0
    %v7776 = vsel %vm573, %v7673, 0
    %v7779 = vsel %vm573, %v7674, 0
    %7781 = vmatprep.subr.bf16.mxu0 %v7670
    %7782 = vmatpush1.bf16.msra.mxu0 %v7669
    %7783 = vmatprep.subr.bf16.mxu0 %v7776
    %7784 = vmatpush1.bf16.msra.mxu0 %v7773
    %7785 = vmatprep.subr.bf16.mxu0 0
    %7786 = vmatpush1.bf16.msra.mxu0 0
    %7787 = vmatprep.subr.bf16.mxu0 0
    %7788 = vmatpush1.bf16.msra.mxu0 0
    %7789 = vmatprep.subr.bf16.mxu0 0
    %7790 = vmatpush1.bf16.msra.mxu0 0
    %7791 = vmatprep.subr.bf16.mxu0 0
    %7792 = vmatpush1.bf16.msra.mxu0 0
    %7793 = vmatprep.subr.bf16.mxu0 0
    %7794 = vmatpush1.bf16.msra.mxu0 0
    %7795 = vmatprep.subr.bf16.mxu0 0
    %7796 = vmatpush1.bf16.msra.mxu0 0
    %7797 = vmatprep.subr.bf16.mxu0 0
    %7798 = vmatpush1.bf16.msra.mxu0 0
    %7799 = vmatprep.subr.bf16.mxu0 0
    %7800 = vmatpush1.bf16.msra.mxu0 0
    %7801 = vmatprep.subr.bf16.mxu0 0
    %7802 = vmatpush1.bf16.msra.mxu0 0
    %7803 = vmatprep.subr.bf16.mxu0 0
    %7804 = vmatpush1.bf16.msra.mxu0 0
    %7805 = vmatprep.subr.bf16.mxu0 0
    %7806 = vmatpush1.bf16.msra.mxu0 0
    %7807 = vmatprep.subr.bf16.mxu0 0
    %7808 = vmatpush1.bf16.msra.mxu0 0
    %7809 = vmatprep.subr.bf16.mxu0 0
    %7810 = vmatpush1.bf16.msra.mxu0 0
    %7811 = vmatprep.subr.bf16.mxu0 0
    %7812 = vmatpush1.bf16.msra.mxu0 0
    %7813 = vmatprep.mubr.bf16.mxu0 0
    %7814 = vmatmul.mubr.bf16.gmra.mrb[0].mxu0 %v7737
    %v7815 = vpop.f32.mrb[0].mxu0
    %v7816 = vadd.f32 0.0, %v7815
    %v7817 = vpop.f32.mrb[0].mxu0
    %v7818 = vadd.f32 0.0, %v7817
    %v7819 = vpop.f32.mrb[0].mxu0
    %v7820 = vadd.f32 0.0, %v7819
    %v7821 = vpop.f32.mrb[0].mxu0
    %v7822 = vadd.f32 0.0, %v7821
    %7823 = vmatprep.mubr.bf16.mxu0 0
    %7824 = vmatmul.mubr.bf16.gmra.mrb[0].mxu0 %v7740
    %v7825 = vpop.f32.mrb[0].mxu0
    %v7826 = vadd.f32 0.0, %v7825
    %v7827 = vpop.f32.mrb[0].mxu0
    %v7828 = vadd.f32 0.0, %v7827
    %v7829 = vpop.f32.mrb[0].mxu0
    %v7830 = vadd.f32 0.0, %v7829
    %v7831 = vpop.f32.mrb[0].mxu0
    %v7832 = vadd.f32 0.0, %v7831
    %7833 = vmatprep.mubr.bf16.mxu0 0
    %7834 = vmatmul.mubr.bf16.gmra.mrb[0].mxu0 %v7743
    %v7835 = vpop.f32.mrb[0].mxu0
    %v7836 = vadd.f32 0.0, %v7835
    %v7837 = vpop.f32.mrb[0].mxu0
    %v7838 = vadd.f32 0.0, %v7837
    %v7839 = vpop.f32.mrb[0].mxu0
    %v7840 = vadd.f32 0.0, %v7839
    %v7841 = vpop.f32.mrb[0].mxu0
    %v7842 = vadd.f32 0.0, %v7841
    %7843 = vmatprep.mubr.bf16.mxu0 0
    %7844 = vmatmul.mubr.bf16.gmra.mrb[0].mxu0 %v7746
    %v7845 = vpop.f32.mrb[0].mxu0
    %v7846 = vadd.f32 0.0, %v7845
    %v7847 = vpop.f32.mrb[0].mxu0
    %v7848 = vadd.f32 0.0, %v7847
    %v7849 = vpop.f32.mrb[0].mxu0
    %v7850 = vadd.f32 0.0, %v7849
    %v7851 = vpop.f32.mrb[0].mxu0
    %v7852 = vadd.f32 0.0, %v7851
    %7853 = vmatprep.mubr.bf16.mxu0 0
    %7854 = vmatmul.mubr.bf16.gmra.mrb[0].mxu0 %v7749
    %v7855 = vpop.f32.mrb[0].mxu0
    %v7856 = vadd.f32 0.0, %v7855
    %v7857 = vpop.f32.mrb[0].mxu0
    %v7858 = vadd.f32 0.0, %v7857
    %v7859 = vpop.f32.mrb[0].mxu0
    %v7860 = vadd.f32 0.0, %v7859
    %v7861 = vpop.f32.mrb[0].mxu0
    %v7862 = vadd.f32 0.0, %v7861
    %7863 = vmatprep.mubr.bf16.mxu0 0
    %7864 = vmatmul.mubr.bf16.gmra.mrb[0].mxu0 %v7752
    %v7865 = vpop.f32.mrb[0].mxu0
    %v7866 = vadd.f32 0.0, %v7865
    %v7867 = vpop.f32.mrb[0].mxu0
    %v7868 = vadd.f32 0.0, %v7867
    %v7869 = vpop.f32.mrb[0].mxu0
    %v7870 = vadd.f32 0.0, %v7869
    %v7871 = vpop.f32.mrb[0].mxu0
    %v7872 = vadd.f32 0.0, %v7871
    %7873 = vmatprep.mubr.bf16.mxu0 0
    %7874 = vmatmul.mubr.bf16.gmra.mrb[0].mxu0 %v7755
    %v7875 = vpop.f32.mrb[0].mxu0
    %v7876 = vadd.f32 0.0, %v7875
    %v7877 = vpop.f32.mrb[0].mxu0
    %v7878 = vadd.f32 0.0, %v7877
    %v7879 = vpop.f32.mrb[0].mxu0
    %v7880 = vadd.f32 0.0, %v7879
    %v7881 = vpop.f32.mrb[0].mxu0
    %v7882 = vadd.f32 0.0, %v7881
    %7883 = vmatprep.mubr.bf16.mxu0 0
    %7884 = vmatmul.mubr.bf16.gmra.mrb[0].mxu0 %v7758
    %v7885 = vpop.f32.mrb[0].mxu0
    %v7886 = vadd.f32 0.0, %v7885
    %v7887 = vpop.f32.mrb[0].mxu0
    %v7888 = vadd.f32 0.0, %v7887
    %v7889 = vpop.f32.mrb[0].mxu0
    %v7890 = vadd.f32 0.0, %v7889
    %v7891 = vpop.f32.mrb[0].mxu0
    %v7892 = vadd.f32 0.0, %v7891
    %7893 = vmatprep.mubr.bf16.mxu0 0
    %7894 = vmatmul.mubr.bf16.gmra.mrb[0].mxu0 %v7761
    %v7895 = vpop.f32.mrb[0].mxu0
    %v7896 = vadd.f32 0.0, %v7895
    %v7897 = vpop.f32.mrb[0].mxu0
    %v7898 = vadd.f32 0.0, %v7897
    %v7899 = vpop.f32.mrb[0].mxu0
    %v7900 = vadd.f32 0.0, %v7899
    %v7901 = vpop.f32.mrb[0].mxu0
    %v7902 = vadd.f32 0.0, %v7901
    %7903 = vmatprep.mubr.bf16.mxu0 0
    %7904 = vmatmul.mubr.bf16.gmra.mrb[0].mxu0 %v7764
    %v7905 = vpop.f32.mrb[0].mxu0
    %v7906 = vadd.f32 0.0, %v7905
    %v7907 = vpop.f32.mrb[0].mxu0
    %v7908 = vadd.f32 0.0, %v7907
    %v7909 = vpop.f32.mrb[0].mxu0
    %v7910 = vadd.f32 0.0, %v7909
    %v7911 = vpop.f32.mrb[0].mxu0
    %v7912 = vadd.f32 0.0, %v7911
    %7913 = vmatprep.mubr.bf16.mxu0 0
    %7914 = vmatmul.mubr.bf16.gmra.mrb[0].mxu0 %v7767
    %v7915 = vpop.f32.mrb[0].mxu0
    %v7916 = vadd.f32 0.0, %v7915
    %v7917 = vpop.f32.mrb[0].mxu0
    %v7918 = vadd.f32 0.0, %v7917
    %v7919 = vpop.f32.mrb[0].mxu0
    %v7920 = vadd.f32 0.0, %v7919
    %v7921 = vpop.f32.mrb[0].mxu0
    %v7922 = vadd.f32 0.0, %v7921
    %7923 = vmatprep.mubr.bf16.mxu0 0
    %7924 = vmatmul.mubr.bf16.gmra.mrb[0].mxu0 %v7770
    %v7925 = vpop.f32.mrb[0].mxu0
    %v7926 = vadd.f32 0.0, %v7925
    %v7927 = vpop.f32.mrb[0].mxu0
    %v7928 = vadd.f32 0.0, %v7927
    %v7929 = vpop.f32.mrb[0].mxu0
    %v7930 = vadd.f32 0.0, %v7929
    %v7931 = vpop.f32.mrb[0].mxu0
    %v7932 = vadd.f32 0.0, %v7931
    %7933 = vdwg.mxu0
    %7934 = vmatprep.subr.bf16.mxu0 0
    %7935 = vmatpush1.bf16.msra.mxu0 %v7671
    %7936 = vmatprep.subr.bf16.mxu0 0
    %7937 = vmatpush1.bf16.msra.mxu0 %v7779
    %7938 = vmatprep.subr.bf16.mxu0 0
    %7939 = vmatpush1.bf16.msra.mxu0 0
    %7940 = vmatprep.subr.bf16.mxu0 0
    %7941 = vmatpush1.bf16.msra.mxu0 0
    %7942 = vmatprep.subr.bf16.mxu0 0
    %7943 = vmatpush1.bf16.msra.mxu0 0
    %7944 = vmatprep.subr.bf16.mxu0 0
    %7945 = vmatpush1.bf16.msra.mxu0 0
    %7946 = vmatprep.subr.bf16.mxu0 0
    %7947 = vmatpush1.bf16.msra.mxu0 0
    %7948 = vmatprep.subr.bf16.mxu0 0
    %7949 = vmatpush1.bf16.msra.mxu0 0
    %7950 = vmatprep.subr.bf16.mxu0 0
    %7951 = vmatpush1.bf16.msra.mxu0 0
    %7952 = vmatprep.subr.bf16.mxu0 0
    %7953 = vmatpush1.bf16.msra.mxu0 0
    %7954 = vmatprep.subr.bf16.mxu0 0
    %7955 = vmatpush1.bf16.msra.mxu0 0
    %7956 = vmatprep.subr.bf16.mxu0 0
    %7957 = vmatpush1.bf16.msra.mxu0 0
    %7958 = vmatprep.subr.bf16.mxu0 0
    %7959 = vmatpush1.bf16.msra.mxu0 0
    %7960 = vmatprep.subr.bf16.mxu0 0
    %7961 = vmatpush1.bf16.msra.mxu0 0
    %7962 = vmatprep.subr.bf16.mxu0 0
    %7963 = vmatpush1.bf16.msra.mxu0 0
    %7964 = vmatprep.subr.bf16.mxu0 0
    %7965 = vmatpush1.bf16.msra.mxu0 0
    %7966 = vmatprep.mubr.bf16.mxu0 0
    %7967 = vmatmul.mubr.bf16.gmra.mrb[0].mxu0 %v7737
    %v7968 = vpop.f32.mrb[0].mxu0
    %v7969 = vadd.f32 0.0, %v7968
    %v7970 = vpop.f32.mrb[0].mxu0
    %v7971 = vpop.f32.mrb[0].mxu0
    %v7972 = vadd.f32 0.0, %v7971
    %v7973 = vpop.f32.mrb[0].mxu0
    %7974 = vmatprep.mubr.bf16.mxu0 0
    %7975 = vmatmul.mubr.bf16.gmra.mrb[0].mxu0 %v7740
    %v7976 = vpop.f32.mrb[0].mxu0
    %v7977 = vadd.f32 0.0, %v7976
    %v7978 = vpop.f32.mrb[0].mxu0
    %v7979 = vpop.f32.mrb[0].mxu0
    %v7980 = vadd.f32 0.0, %v7979
    %v7981 = vpop.f32.mrb[0].mxu0
    %7982 = vmatprep.mubr.bf16.mxu0 0
    %7983 = vmatmul.mubr.bf16.gmra.mrb[0].mxu0 %v7743
    %v7984 = vpop.f32.mrb[0].mxu0
    %v7985 = vadd.f32 0.0, %v7984
    %v7986 = vpop.f32.mrb[0].mxu0
    %v7987 = vpop.f32.mrb[0].mxu0
    %v7988 = vadd.f32 0.0, %v7987
    %v7989 = vpop.f32.mrb[0].mxu0
    %7990 = vmatprep.mubr.bf16.mxu0 0
    %7991 = vmatmul.mubr.bf16.gmra.mrb[0].mxu0 %v7746
    %v7992 = vpop.f32.mrb[0].mxu0
    %v7993 = vadd.f32 0.0, %v7992
    %v7994 = vpop.f32.mrb[0].mxu0
    %v7995 = vpop.f32.mrb[0].mxu0
    %v7996 = vadd.f32 0.0, %v7995
    %v7997 = vpop.f32.mrb[0].mxu0
    %7998 = vmatprep.mubr.bf16.mxu0 0
    %7999 = vmatmul.mubr.bf16.gmra.mrb[0].mxu0 %v7749
    %v8000 = vpop.f32.mrb[0].mxu0
    %v8001 = vadd.f32 0.0, %v8000
    %v8002 = vpop.f32.mrb[0].mxu0
    %v8003 = vpop.f32.mrb[0].mxu0
    %v8004 = vadd.f32 0.0, %v8003
    %v8005 = vpop.f32.mrb[0].mxu0
    %8006 = vmatprep.mubr.bf16.mxu0 0
    %8007 = vmatmul.mubr.bf16.gmra.mrb[0].mxu0 %v7752
    %v8008 = vpop.f32.mrb[0].mxu0
    %v8009 = vadd.f32 0.0, %v8008
    %v8010 = vpop.f32.mrb[0].mxu0
    %v8011 = vpop.f32.mrb[0].mxu0
    %v8012 = vadd.f32 0.0, %v8011
    %v8013 = vpop.f32.mrb[0].mxu0
    %8014 = vmatprep.mubr.bf16.mxu0 0
    %8015 = vmatmul.mubr.bf16.gmra.mrb[0].mxu0 %v7755
    %v8016 = vpop.f32.mrb[0].mxu0
    %v8017 = vadd.f32 0.0, %v8016
    %v8018 = vpop.f32.mrb[0].mxu0
    %v8019 = vpop.f32.mrb[0].mxu0
    %v8020 = vadd.f32 0.0, %v8019
    %v8021 = vpop.f32.mrb[0].mxu0
    %8022 = vmatprep.mubr.bf16.mxu0 0
    %8023 = vmatmul.mubr.bf16.gmra.mrb[0].mxu0 %v7758
    %v8024 = vpop.f32.mrb[0].mxu0
    %v8025 = vadd.f32 0.0, %v8024
    %v8026 = vpop.f32.mrb[0].mxu0
    %v8027 = vpop.f32.mrb[0].mxu0
    %v8028 = vadd.f32 0.0, %v8027
    %v8029 = vpop.f32.mrb[0].mxu0
    %8030 = vmatprep.mubr.bf16.mxu0 0
    %8031 = vmatmul.mubr.bf16.gmra.mrb[0].mxu0 %v7761
    %v8032 = vpop.f32.mrb[0].mxu0
    %v8033 = vadd.f32 0.0, %v8032
    %v8034 = vpop.f32.mrb[0].mxu0
    %v8035 = vpop.f32.mrb[0].mxu0
    %v8036 = vadd.f32 0.0, %v8035
    %v8037 = vpop.f32.mrb[0].mxu0
    %8038 = vmatprep.mubr.bf16.mxu0 0
    %8039 = vmatmul.mubr.bf16.gmra.mrb[0].mxu0 %v7764
    %v8040 = vpop.f32.mrb[0].mxu0
    %v8041 = vadd.f32 0.0, %v8040
    %v8042 = vpop.f32.mrb[0].mxu0
    %v8043 = vpop.f32.mrb[0].mxu0
    %v8044 = vadd.f32 0.0, %v8043
    %v8045 = vpop.f32.mrb[0].mxu0
    %8046 = vmatprep.mubr.bf16.mxu0 0
    %8047 = vmatmul.mubr.bf16.gmra.mrb[0].mxu0 %v7767
    %v8048 = vpop.f32.mrb[0].mxu0
    %v8049 = vadd.f32 0.0, %v8048
    %v8050 = vpop.f32.mrb[0].mxu0
    %v8051 = vpop.f32.mrb[0].mxu0
    %v8052 = vadd.f32 0.0, %v8051
    %v8053 = vpop.f32.mrb[0].mxu0
    %8054 = vmatprep.mubr.bf16.mxu0 0
    %8055 = vmatmul.mubr.bf16.gmra.mrb[0].mxu0 %v7770
    %v8056 = vpop.f32.mrb[0].mxu0
    %v8057 = vadd.f32 0.0, %v8056
    %v8058 = vpop.f32.mrb[0].mxu0
    %v8059 = vpop.f32.mrb[0].mxu0
    %v8060 = vadd.f32 0.0, %v8059
    %v8061 = vpop.f32.mrb[0].mxu0
    %8062 = vdwg.mxu0
    %v8063 = vpack.c.bf16 %v7820, %v7816
    %v8064 = vpack.c.bf16 %v7822, %v7818
    %v8065 = vpack.c.bf16 %v7972, %v7969
    %v8066 = vpack.c.bf16 %v7830, %v7826
    %v8067 = vpack.c.bf16 %v7832, %v7828
    %v8068 = vpack.c.bf16 %v7980, %v7977
    %v8069 = vpack.c.bf16 %v7840, %v7836
    %v8070 = vpack.c.bf16 %v7842, %v7838
    %v8071 = vpack.c.bf16 %v7988, %v7985
    %v8072 = vpack.c.bf16 %v7850, %v7846
    %v8073 = vpack.c.bf16 %v7852, %v7848
    %v8074 = vpack.c.bf16 %v7996, %v7993
    %v8075 = vpack.c.bf16 %v7860, %v7856
    %v8076 = vpack.c.bf16 %v7862, %v7858
    %v8077 = vpack.c.bf16 %v8004, %v8001
    %v8078 = vpack.c.bf16 %v7870, %v7866
    %v8079 = vpack.c.bf16 %v7872, %v7868
    %v8080 = vpack.c.bf16 %v8012, %v8009
    %v8081 = vpack.c.bf16 %v7880, %v7876
    %v8082 = vpack.c.bf16 %v7882, %v7878
    %v8083 = vpack.c.bf16 %v8020, %v8017
    %v8084 = vpack.c.bf16 %v7890, %v7886
    %v8085 = vpack.c.bf16 %v7892, %v7888
    %v8086 = vpack.c.bf16 %v8028, %v8025
    %v8087 = vpack.c.bf16 %v7900, %v7896
    %v8088 = vpack.c.bf16 %v7902, %v7898
    %v8089 = vpack.c.bf16 %v8036, %v8033
    %v8090 = vpack.c.bf16 %v7910, %v7906
    %v8091 = vpack.c.bf16 %v7912, %v7908
    %v8092 = vpack.c.bf16 %v8044, %v8041
    %v8093 = vpack.c.bf16 %v7920, %v7916
    %v8094 = vpack.c.bf16 %v7922, %v7918
    %v8095 = vpack.c.bf16 %v8052, %v8049
    %v8096 = vpack.c.bf16 %v7930, %v7926
    %v8097 = vpack.c.bf16 %v7932, %v7928
    %v8098 = vpack.c.bf16 %v8060, %v8057
    %s8099 = smul.u32 %s5201, 1
    %s8100 = sshll.u32 %s8099, 4
    %8101 = dma.done %s457, %s8100
    %v8102 = vld [vmem:[#allocation9] sm:$0xff]
    %v8103 = vld [vmem:[#allocation9 + $0x8] sm:$0xff]
    %v8104 = vld [vmem:[#allocation9 + $0x10] sm:$0xff]
    %v8105 = vld [vmem:[#allocation9 + $0x18] sm:$0xff]
    %v8106 = vld [vmem:[#allocation9 + $0x20] sm:$0xff]
    %v8107 = vld [vmem:[#allocation9 + $0x28] sm:$0xff]
    %v8108 = vld [vmem:[#allocation9 + $0x30] sm:$0xff]
    %v8109 = vld [vmem:[#allocation9 + $0x38] sm:$0xff]
    %v8110 = vld [vmem:[#allocation9 + $0x40] sm:$0xff]
    %v8111 = vld [vmem:[#allocation9 + $0x48] sm:$0xff]
    %v8112 = vld [vmem:[#allocation9 + $0x50] sm:$0xff]
    %v8113 = vld [vmem:[#allocation9 + $0x58] sm:$0xff]
    %v8114 = vld [vmem:[#allocation9 + $0x60] sm:$0xff]
    %v8115 = vld [vmem:[#allocation9 + $0x68] sm:$0xff]
    %v8116 = vld [vmem:[#allocation9 + $0x70] sm:$0xff]
    %v8117 = vld [vmem:[#allocation9 + $0x78] sm:$0xff]
    %v8118 = vld [vmem:[#allocation9 + $0x80] sm:$0xff]
    %v8119 = vld [vmem:[#allocation9 + $0x88] sm:$0xff]
    %v8120 = vld [vmem:[#allocation9 + $0x90] sm:$0xff]
    %v8121 = vld [vmem:[#allocation9 + $0x98] sm:$0xff]
    %v8122 = vld [vmem:[#allocation9 + $0xa0] sm:$0xff]
    %v8123 = vld [vmem:[#allocation9 + $0xa8] sm:$0xff]
    %v8124 = vld [vmem:[#allocation9 + $0xb0] sm:$0xff]
    %v8125 = vld [vmem:[#allocation9 + $0xb8] sm:$0xff]
    %s8126 = scalar_lea.vmem [#allocation9], 192
    %v8127 = vld [vmem:[%s8126] sm:$0xff]
    %v8128 = vld [vmem:[%s8126 + $0x8] sm:$0xff]
    %v8129 = vld [vmem:[%s8126 + $0x10] sm:$0xff]
    %v8130 = vld [vmem:[%s8126 + $0x18] sm:$0xff]
    %v8131 = vld [vmem:[%s8126 + $0x20] sm:$0xff]
    %v8132 = vld [vmem:[%s8126 + $0x28] sm:$0xff]
    %v8133 = vld [vmem:[%s8126 + $0x30] sm:$0xff]
    %v8134 = vld [vmem:[%s8126 + $0x38] sm:$0xff]
    %v8135 = vld [vmem:[%s8126 + $0x40] sm:$0xff]
    %v8136 = vld [vmem:[%s8126 + $0x48] sm:$0xff]
    %v8137 = vld [vmem:[%s8126 + $0x50] sm:$0xff]
    %v8138 = vld [vmem:[%s8126 + $0x58] sm:$0xff]
    %v8139 = vld [vmem:[%s8126 + $0x60] sm:$0xff]
    %v8140 = vld [vmem:[%s8126 + $0x68] sm:$0xff]
    %v8141 = vld [vmem:[%s8126 + $0x70] sm:$0xff]
    %v8142 = vld [vmem:[%s8126 + $0x78] sm:$0xff]
    %v8143 = vld [vmem:[%s8126 + $0x80] sm:$0xff]
    %v8144 = vld [vmem:[%s8126 + $0x88] sm:$0xff]
    %v8145 = vld [vmem:[%s8126 + $0x90] sm:$0xff]
    %v8146 = vld [vmem:[%s8126 + $0x98] sm:$0xff]
    %v8147 = vld [vmem:[%s8126 + $0xa0] sm:$0xff]
    %v8148 = vld [vmem:[%s8126 + $0xa8] sm:$0xff]
    %v8149 = vld [vmem:[%s8126 + $0xb0] sm:$0xff]
    %v8150 = vld [vmem:[%s8126 + $0xb8] sm:$0xff]
    %8151 = vmatprep.subr.bf16.mxu0 0
    %8152 = vmatpush1.bf16.msra.mxu0 %v8127
    %8153 = vmatprep.subr.bf16.mxu0 0
    %8154 = vmatpush1.bf16.msra.mxu0 %v8128
    %8155 = vmatprep.subr.bf16.mxu0 0
    %8156 = vmatpush1.bf16.msra.mxu0 %v8129
    %8157 = vmatprep.subr.bf16.mxu0 0
    %8158 = vmatpush1.bf16.msra.mxu0 %v8130
    %8159 = vmatprep.subr.bf16.mxu0 0
    %8160 = vmatpush1.bf16.msra.mxu0 %v8131
    %8161 = vmatprep.subr.bf16.mxu0 0
    %8162 = vmatpush1.bf16.msra.mxu0 %v8132
    %8163 = vmatprep.subr.bf16.mxu0 0
    %8164 = vmatpush1.bf16.msra.mxu0 %v8133
    %8165 = vmatprep.subr.bf16.mxu0 0
    %8166 = vmatpush1.bf16.msra.mxu0 %v8134
    %8167 = vmatprep.subr.bf16.mxu0 0
    %8168 = vmatpush1.bf16.msra.mxu0 %v8135
    %8169 = vmatprep.subr.bf16.mxu0 0
    %8170 = vmatpush1.bf16.msra.mxu0 %v8136
    %8171 = vmatprep.subr.bf16.mxu0 0
    %8172 = vmatpush1.bf16.msra.mxu0 %v8137
    %8173 = vmatprep.subr.bf16.mxu0 0
    %8174 = vmatpush1.bf16.msra.mxu0 %v8138
    %8175 = vmatprep.subr.bf16.mxu0 0
    %8176 = vmatpush1.bf16.msra.mxu0 %v8139
    %8177 = vmatprep.subr.bf16.mxu0 0
    %8178 = vmatpush1.bf16.msra.mxu0 %v8140
    %8179 = vmatprep.subr.bf16.mxu0 0
    %8180 = vmatpush1.bf16.msra.mxu0 %v8141
    %8181 = vmatprep.subr.bf16.mxu0 0
    %8182 = vmatpush1.bf16.msra.mxu0 %v8142
    %8183 = vmatprep.mubr.bf16.mxu0 %v8073
    %8184 = vmatmul.mubr.bf16.gmra.mrb[0].mxu0 %v8072
    %v8185 = vpop.f32.mrb[0].mxu0
    %v8186 = vadd.f32 0.0, %v8185
    %v8187 = vpop.f32.mrb[0].mxu0
    %v8188 = vpop.f32.mrb[0].mxu0
    %v8189 = vadd.f32 0.0, %v8188
    %v8190 = vpop.f32.mrb[0].mxu0
    %8191 = vmatprep.mubr.bf16.mxu0 %v8076
    %8192 = vmatmul.mubr.bf16.gmra.mrb[0].mxu0 %v8075
    %v8193 = vpop.f32.mrb[0].mxu0
    %v8194 = vadd.f32 0.0, %v8193
    %v8195 = vpop.f32.mrb[0].mxu0
    %v8196 = vpop.f32.mrb[0].mxu0
    %v8197 = vadd.f32 0.0, %v8196
    %v8198 = vpop.f32.mrb[0].mxu0
    %8199 = vmatprep.mubr.bf16.mxu0 %v8079
    %8200 = vmatmul.mubr.bf16.gmra.mrb[0].mxu0 %v8078
    %v8201 = vpop.f32.mrb[0].mxu0
    %v8202 = vadd.f32 0.0, %v8201
    %v8203 = vpop.f32.mrb[0].mxu0
    %v8204 = vpop.f32.mrb[0].mxu0
    %v8205 = vadd.f32 0.0, %v8204
    %v8206 = vpop.f32.mrb[0].mxu0
    %8207 = vdwg.mxu0
    %8208 = vmatprep.subr.bf16.mxu0 0
    %8209 = vmatpush1.bf16.msra.mxu0 %v8143
    %8210 = vmatprep.subr.bf16.mxu0 0
    %8211 = vmatpush1.bf16.msra.mxu0 %v8144
    %8212 = vmatprep.subr.bf16.mxu0 0
    %8213 = vmatpush1.bf16.msra.mxu0 %v8145
    %8214 = vmatprep.subr.bf16.mxu0 0
    %8215 = vmatpush1.bf16.msra.mxu0 %v8146
    %8216 = vmatprep.subr.bf16.mxu0 0
    %8217 = vmatpush1.bf16.msra.mxu0 %v8147
    %8218 = vmatprep.subr.bf16.mxu0 0
    %8219 = vmatpush1.bf16.msra.mxu0 %v8148
    %8220 = vmatprep.subr.bf16.mxu0 0
    %8221 = vmatpush1.bf16.msra.mxu0 %v8149
    %8222 = vmatprep.subr.bf16.mxu0 0
    %8223 = vmatpush1.bf16.msra.mxu0 %v8150
    %8224 = vmatprep.subr.bf16.mxu0 0
    %8225 = vmatpush1.bf16.msra.mxu0 0
    %8226 = vmatprep.subr.bf16.mxu0 0
    %8227 = vmatpush1.bf16.msra.mxu0 0
    %8228 = vmatprep.subr.bf16.mxu0 0
    %8229 = vmatpush1.bf16.msra.mxu0 0
    %8230 = vmatprep.subr.bf16.mxu0 0
    %8231 = vmatpush1.bf16.msra.mxu0 0
    %8232 = vmatprep.subr.bf16.mxu0 0
    %8233 = vmatpush1.bf16.msra.mxu0 0
    %8234 = vmatprep.subr.bf16.mxu0 0
    %8235 = vmatpush1.bf16.msra.mxu0 0
    %8236 = vmatprep.subr.bf16.mxu0 0
    %8237 = vmatpush1.bf16.msra.mxu0 0
    %8238 = vmatprep.subr.bf16.mxu0 0
    %8239 = vmatpush1.bf16.msra.mxu0 0
    %8240 = vmatprep.mubr.bf16.mxu0 0
    %8241 = vmatmul.mubr.bf16.gmra.mrb[0].mxu0 %v8074
    %v8242 = vpop.f32.mrb[0].mxu0
    %v8243 = vadd.f32 %v8186, %v8242
    %v8244 = vpop.f32.mrb[0].mxu0
    %v8245 = vpop.f32.mrb[0].mxu0
    %v8246 = vadd.f32 %v8189, %v8245
    %v8247 = vpop.f32.mrb[0].mxu0
    %8248 = vmatprep.mubr.bf16.mxu0 0
    %8249 = vmatmul.mubr.bf16.gmra.mrb[0].mxu0 %v8077
    %v8250 = vpop.f32.mrb[0].mxu0
    %v8251 = vadd.f32 %v8194, %v8250
    %v8252 = vpop.f32.mrb[0].mxu0
    %v8253 = vpop.f32.mrb[0].mxu0
    %v8254 = vadd.f32 %v8197, %v8253
    %v8255 = vpop.f32.mrb[0].mxu0
    %8256 = vmatprep.mubr.bf16.mxu0 0
    %8257 = vmatmul.mubr.bf16.gmra.mrb[0].mxu0 %v8080
    %v8258 = vpop.f32.mrb[0].mxu0
    %v8259 = vadd.f32 %v8202, %v8258
    %v8260 = vpop.f32.mrb[0].mxu0
    %v8261 = vpop.f32.mrb[0].mxu0
    %v8262 = vadd.f32 %v8205, %v8261
    %v8263 = vpop.f32.mrb[0].mxu0
    %8264 = vdwg.mxu0
    %8265 = vmatprep.subr.bf16.mxu0 0
    %8266 = vmatpush1.bf16.msra.mxu0 %v8102
    %8267 = vmatprep.subr.bf16.mxu0 0
    %8268 = vmatpush1.bf16.msra.mxu0 %v8103
    %8269 = vmatprep.subr.bf16.mxu0 0
    %8270 = vmatpush1.bf16.msra.mxu0 %v8104
    %8271 = vmatprep.subr.bf16.mxu0 0
    %8272 = vmatpush1.bf16.msra.mxu0 %v8105
    %8273 = vmatprep.subr.bf16.mxu0 0
    %8274 = vmatpush1.bf16.msra.mxu0 %v8106
    %8275 = vmatprep.subr.bf16.mxu0 0
    %8276 = vmatpush1.bf16.msra.mxu0 %v8107
    %8277 = vmatprep.subr.bf16.mxu0 0
    %8278 = vmatpush1.bf16.msra.mxu0 %v8108
    %8279 = vmatprep.subr.bf16.mxu0 0
    %8280 = vmatpush1.bf16.msra.mxu0 %v8109
    %8281 = vmatprep.subr.bf16.mxu0 0
    %8282 = vmatpush1.bf16.msra.mxu0 %v8110
    %8283 = vmatprep.subr.bf16.mxu0 0
    %8284 = vmatpush1.bf16.msra.mxu0 %v8111
    %8285 = vmatprep.subr.bf16.mxu0 0
    %8286 = vmatpush1.bf16.msra.mxu0 %v8112
    %8287 = vmatprep.subr.bf16.mxu0 0
    %8288 = vmatpush1.bf16.msra.mxu0 %v8113
    %8289 = vmatprep.subr.bf16.mxu0 0
    %8290 = vmatpush1.bf16.msra.mxu0 %v8114
    %8291 = vmatprep.subr.bf16.mxu0 0
    %8292 = vmatpush1.bf16.msra.mxu0 %v8115
    %8293 = vmatprep.subr.bf16.mxu0 0
    %8294 = vmatpush1.bf16.msra.mxu0 %v8116
    %8295 = vmatprep.subr.bf16.mxu0 0
    %8296 = vmatpush1.bf16.msra.mxu0 %v8117
    %8297 = vmatprep.mubr.bf16.mxu0 %v8064
    %8298 = vmatmul.mubr.bf16.gmra.mrb[0].mxu0 %v8063
    %v8299 = vpop.f32.mrb[0].mxu0
    %v8300 = vadd.f32 %v8243, %v8299
    %v8301 = vpop.f32.mrb[0].mxu0
    %v8302 = vpop.f32.mrb[0].mxu0
    %v8303 = vadd.f32 %v8246, %v8302
    %v8304 = vpop.f32.mrb[0].mxu0
    %8305 = vmatprep.mubr.bf16.mxu0 %v8067
    %8306 = vmatmul.mubr.bf16.gmra.mrb[0].mxu0 %v8066
    %v8307 = vpop.f32.mrb[0].mxu0
    %v8308 = vadd.f32 %v8251, %v8307
    %v8309 = vpop.f32.mrb[0].mxu0
    %v8310 = vpop.f32.mrb[0].mxu0
    %v8311 = vadd.f32 %v8254, %v8310
    %v8312 = vpop.f32.mrb[0].mxu0
    %8313 = vmatprep.mubr.bf16.mxu0 %v8070
    %8314 = vmatmul.mubr.bf16.gmra.mrb[0].mxu0 %v8069
    %v8315 = vpop.f32.mrb[0].mxu0
    %v8316 = vadd.f32 %v8259, %v8315
    %v8317 = vpop.f32.mrb[0].mxu0
    %v8318 = vpop.f32.mrb[0].mxu0
    %v8319 = vadd.f32 %v8262, %v8318
    %v8320 = vpop.f32.mrb[0].mxu0
    %8321 = vdwg.mxu0
    %8322 = vmatprep.subr.bf16.mxu0 0
    %8323 = vmatpush1.bf16.msra.mxu0 %v8118
    %8324 = vmatprep.subr.bf16.mxu0 0
    %8325 = vmatpush1.bf16.msra.mxu0 %v8119
    %8326 = vmatprep.subr.bf16.mxu0 0
    %8327 = vmatpush1.bf16.msra.mxu0 %v8120
    %8328 = vmatprep.subr.bf16.mxu0 0
    %8329 = vmatpush1.bf16.msra.mxu0 %v8121
    %8330 = vmatprep.subr.bf16.mxu0 0
    %8331 = vmatpush1.bf16.msra.mxu0 %v8122
    %8332 = vmatprep.subr.bf16.mxu0 0
    %8333 = vmatpush1.bf16.msra.mxu0 %v8123
    %8334 = vmatprep.subr.bf16.mxu0 0
    %8335 = vmatpush1.bf16.msra.mxu0 %v8124
    %8336 = vmatprep.subr.bf16.mxu0 0
    %8337 = vmatpush1.bf16.msra.mxu0 %v8125
    %8338 = vmatprep.subr.bf16.mxu0 0
    %8339 = vmatpush1.bf16.msra.mxu0 0
    %8340 = vmatprep.subr.bf16.mxu0 0
    %8341 = vmatpush1.bf16.msra.mxu0 0
    %8342 = vmatprep.subr.bf16.mxu0 0
    %8343 = vmatpush1.bf16.msra.mxu0 0
    %8344 = vmatprep.subr.bf16.mxu0 0
    %8345 = vmatpush1.bf16.msra.mxu0 0
    %8346 = vmatprep.subr.bf16.mxu0 0
    %8347 = vmatpush1.bf16.msra.mxu0 0
    %8348 = vmatprep.subr.bf16.mxu0 0
    %8349 = vmatpush1.bf16.msra.mxu0 0
    %8350 = vmatprep.subr.bf16.mxu0 0
    %8351 = vmatpush1.bf16.msra.mxu0 0
    %8352 = vmatprep.subr.bf16.mxu0 0
    %8353 = vmatpush1.bf16.msra.mxu0 0
    %8354 = vmatprep.mubr.bf16.mxu0 0
    %8355 = vmatmul.mubr.bf16.gmra.mrb[0].mxu0 %v8065
    %v8356 = vpop.f32.mrb[0].mxu0
    %v8357 = vadd.f32 %v8300, %v8356
    %v8358 = vpop.f32.mrb[0].mxu0
    %v8359 = vpop.f32.mrb[0].mxu0
    %v8360 = vadd.f32 %v8303, %v8359
    %v8361 = vpop.f32.mrb[0].mxu0
    %8362 = vmatprep.mubr.bf16.mxu0 0
    %8363 = vmatmul.mubr.bf16.gmra.mrb[0].mxu0 %v8068
    %v8364 = vpop.f32.mrb[0].mxu0
    %v8365 = vadd.f32 %v8308, %v8364
    %v8366 = vpop.f32.mrb[0].mxu0
    %v8367 = vpop.f32.mrb[0].mxu0
    %v8368 = vadd.f32 %v8311, %v8367
    %v8369 = vpop.f32.mrb[0].mxu0
    %8370 = vmatprep.mubr.bf16.mxu0 0
    %8371 = vmatmul.mubr.bf16.gmra.mrb[0].mxu0 %v8071
    %v8372 = vpop.f32.mrb[0].mxu0
    %v8373 = vadd.f32 %v8316, %v8372
    %v8374 = vpop.f32.mrb[0].mxu0
    %v8375 = vpop.f32.mrb[0].mxu0
    %v8376 = vadd.f32 %v8319, %v8375
    %v8377 = vpop.f32.mrb[0].mxu0
    %8378 = vdwg.mxu0
    %s8379 = scalar_lea.vmem [#allocation9], 384
    %v8380 = vld [vmem:[%s8379] sm:$0xff]
    %v8381 = vld [vmem:[%s8379 + $0x8] sm:$0xff]
    %v8382 = vld [vmem:[%s8379 + $0x10] sm:$0xff]
    %v8383 = vld [vmem:[%s8379 + $0x18] sm:$0xff]
    %v8384 = vld [vmem:[%s8379 + $0x20] sm:$0xff]
    %v8385 = vld [vmem:[%s8379 + $0x28] sm:$0xff]
    %v8386 = vld [vmem:[%s8379 + $0x30] sm:$0xff]
    %v8387 = vld [vmem:[%s8379 + $0x38] sm:$0xff]
    %v8388 = vld [vmem:[%s8379 + $0x40] sm:$0xff]
    %v8389 = vld [vmem:[%s8379 + $0x48] sm:$0xff]
    %v8390 = vld [vmem:[%s8379 + $0x50] sm:$0xff]
    %v8391 = vld [vmem:[%s8379 + $0x58] sm:$0xff]
    %v8392 = vld [vmem:[%s8379 + $0x60] sm:$0xff]
    %v8393 = vld [vmem:[%s8379 + $0x68] sm:$0xff]
    %v8394 = vld [vmem:[%s8379 + $0x70] sm:$0xff]
    %v8395 = vld [vmem:[%s8379 + $0x78] sm:$0xff]
    %v8396 = vld [vmem:[%s8379 + $0x80] sm:$0xff]
    %v8397 = vld [vmem:[%s8379 + $0x88] sm:$0xff]
    %v8398 = vld [vmem:[%s8379 + $0x90] sm:$0xff]
    %v8399 = vld [vmem:[%s8379 + $0x98] sm:$0xff]
    %v8400 = vld [vmem:[%s8379 + $0xa0] sm:$0xff]
    %v8401 = vld [vmem:[%s8379 + $0xa8] sm:$0xff]
    %v8402 = vld [vmem:[%s8379 + $0xb0] sm:$0xff]
    %v8403 = vld [vmem:[%s8379 + $0xb8] sm:$0xff]
    %8404 = vmatprep.subr.bf16.mxu0 0
    %8405 = vmatpush1.bf16.msra.mxu0 %v8380
    %8406 = vmatprep.subr.bf16.mxu0 0
    %8407 = vmatpush1.bf16.msra.mxu0 %v8381
    %8408 = vmatprep.subr.bf16.mxu0 0
    %8409 = vmatpush1.bf16.msra.mxu0 %v8382
    %8410 = vmatprep.subr.bf16.mxu0 0
    %8411 = vmatpush1.bf16.msra.mxu0 %v8383
    %8412 = vmatprep.subr.bf16.mxu0 0
    %8413 = vmatpush1.bf16.msra.mxu0 %v8384
    %8414 = vmatprep.subr.bf16.mxu0 0
    %8415 = vmatpush1.bf16.msra.mxu0 %v8385
    %8416 = vmatprep.subr.bf16.mxu0 0
    %8417 = vmatpush1.bf16.msra.mxu0 %v8386
    %8418 = vmatprep.subr.bf16.mxu0 0
    %8419 = vmatpush1.bf16.msra.mxu0 %v8387
    %8420 = vmatprep.subr.bf16.mxu0 0
    %8421 = vmatpush1.bf16.msra.mxu0 %v8388
    %8422 = vmatprep.subr.bf16.mxu0 0
    %8423 = vmatpush1.bf16.msra.mxu0 %v8389
    %8424 = vmatprep.subr.bf16.mxu0 0
    %8425 = vmatpush1.bf16.msra.mxu0 %v8390
    %8426 = vmatprep.subr.bf16.mxu0 0
    %8427 = vmatpush1.bf16.msra.mxu0 %v8391
    %8428 = vmatprep.subr.bf16.mxu0 0
    %8429 = vmatpush1.bf16.msra.mxu0 %v8392
    %8430 = vmatprep.subr.bf16.mxu0 0
    %8431 = vmatpush1.bf16.msra.mxu0 %v8393
    %8432 = vmatprep.subr.bf16.mxu0 0
    %8433 = vmatpush1.bf16.msra.mxu0 %v8394
    %8434 = vmatprep.subr.bf16.mxu0 0
    %8435 = vmatpush1.bf16.msra.mxu0 %v8395
    %8436 = vmatprep.mubr.bf16.mxu0 %v8082
    %8437 = vmatmul.mubr.bf16.gmra.mrb[0].mxu0 %v8081
    %v8438 = vpop.f32.mrb[0].mxu0
    %v8439 = vadd.f32 0.0, %v8438
    %v8440 = vpop.f32.mrb[0].mxu0
    %v8441 = vpop.f32.mrb[0].mxu0
    %v8442 = vadd.f32 0.0, %v8441
    %v8443 = vpop.f32.mrb[0].mxu0
    %8444 = vmatprep.mubr.bf16.mxu0 %v8085
    %8445 = vmatmul.mubr.bf16.gmra.mrb[0].mxu0 %v8084
    %v8446 = vpop.f32.mrb[0].mxu0
    %v8447 = vadd.f32 0.0, %v8446
    %v8448 = vpop.f32.mrb[0].mxu0
    %v8449 = vpop.f32.mrb[0].mxu0
    %v8450 = vadd.f32 0.0, %v8449
    %v8451 = vpop.f32.mrb[0].mxu0
    %8452 = vmatprep.mubr.bf16.mxu0 %v8088
    %8453 = vmatmul.mubr.bf16.gmra.mrb[0].mxu0 %v8087
    %v8454 = vpop.f32.mrb[0].mxu0
    %v8455 = vadd.f32 0.0, %v8454
    %v8456 = vpop.f32.mrb[0].mxu0
    %v8457 = vpop.f32.mrb[0].mxu0
    %v8458 = vadd.f32 0.0, %v8457
    %v8459 = vpop.f32.mrb[0].mxu0
    %8460 = vdwg.mxu0
    %8461 = vmatprep.subr.bf16.mxu0 0
    %8462 = vmatpush1.bf16.msra.mxu0 %v8396
    %8463 = vmatprep.subr.bf16.mxu0 0
    %8464 = vmatpush1.bf16.msra.mxu0 %v8397
    %8465 = vmatprep.subr.bf16.mxu0 0
    %8466 = vmatpush1.bf16.msra.mxu0 %v8398
    %8467 = vmatprep.subr.bf16.mxu0 0
    %8468 = vmatpush1.bf16.msra.mxu0 %v8399
    %8469 = vmatprep.subr.bf16.mxu0 0
    %8470 = vmatpush1.bf16.msra.mxu0 %v8400
    %8471 = vmatprep.subr.bf16.mxu0 0
    %8472 = vmatpush1.bf16.msra.mxu0 %v8401
    %8473 = vmatprep.subr.bf16.mxu0 0
    %8474 = vmatpush1.bf16.msra.mxu0 %v8402
    %8475 = vmatprep.subr.bf16.mxu0 0
    %8476 = vmatpush1.bf16.msra.mxu0 %v8403
    %8477 = vmatprep.subr.bf16.mxu0 0
    %8478 = vmatpush1.bf16.msra.mxu0 0
    %8479 = vmatprep.subr.bf16.mxu0 0
    %8480 = vmatpush1.bf16.msra.mxu0 0
    %8481 = vmatprep.subr.bf16.mxu0 0
    %8482 = vmatpush1.bf16.msra.mxu0 0
    %8483 = vmatprep.subr.bf16.mxu0 0
    %8484 = vmatpush1.bf16.msra.mxu0 0
    %8485 = vmatprep.subr.bf16.mxu0 0
    %8486 = vmatpush1.bf16.msra.mxu0 0
    %8487 = vmatprep.subr.bf16.mxu0 0
    %8488 = vmatpush1.bf16.msra.mxu0 0
    %8489 = vmatprep.subr.bf16.mxu0 0
    %8490 = vmatpush1.bf16.msra.mxu0 0
    %8491 = vmatprep.subr.bf16.mxu0 0
    %8492 = vmatpush1.bf16.msra.mxu0 0
    %8493 = vmatprep.mubr.bf16.mxu0 0
    %8494 = vmatmul.mubr.bf16.gmra.mrb[0].mxu0 %v8083
    %v8495 = vpop.f32.mrb[0].mxu0
    %v8496 = vadd.f32 %v8439, %v8495
    %v8497 = vpop.f32.mrb[0].mxu0
    %v8498 = vpop.f32.mrb[0].mxu0
    %v8499 = vadd.f32 %v8442, %v8498
    %v8500 = vpop.f32.mrb[0].mxu0
    %8501 = vmatprep.mubr.bf16.mxu0 0
    %8502 = vmatmul.mubr.bf16.gmra.mrb[0].mxu0 %v8086
    %v8503 = vpop.f32.mrb[0].mxu0
    %v8504 = vadd.f32 %v8447, %v8503
    %v8505 = vpop.f32.mrb[0].mxu0
    %v8506 = vpop.f32.mrb[0].mxu0
    %v8507 = vadd.f32 %v8450, %v8506
    %v8508 = vpop.f32.mrb[0].mxu0
    %8509 = vmatprep.mubr.bf16.mxu0 0
    %8510 = vmatmul.mubr.bf16.gmra.mrb[0].mxu0 %v8089
    %v8511 = vpop.f32.mrb[0].mxu0
    %v8512 = vadd.f32 %v8455, %v8511
    %v8513 = vpop.f32.mrb[0].mxu0
    %v8514 = vpop.f32.mrb[0].mxu0
    %v8515 = vadd.f32 %v8458, %v8514
    %v8516 = vpop.f32.mrb[0].mxu0
    %8517 = vdwg.mxu0
    %v8518 = vadd.f32 %v8357, %v8496
    %v8519 = vadd.f32 %v8360, %v8499
    %v8520 = vadd.f32 %v8365, %v8504
    %v8521 = vadd.f32 %v8368, %v8507
    %v8522 = vadd.f32 %v8373, %v8512
    %v8523 = vadd.f32 %v8376, %v8515
    %s8524 = scalar_lea.vmem [#allocation9], 576
    %v8525 = vld [vmem:[%s8524] sm:$0xff]
    %v8526 = vld [vmem:[%s8524 + $0x8] sm:$0xff]
    %v8527 = vld [vmem:[%s8524 + $0x10] sm:$0xff]
    %v8528 = vld [vmem:[%s8524 + $0x18] sm:$0xff]
    %v8529 = vld [vmem:[%s8524 + $0x20] sm:$0xff]
    %v8530 = vld [vmem:[%s8524 + $0x28] sm:$0xff]
    %v8531 = vld [vmem:[%s8524 + $0x30] sm:$0xff]
    %v8532 = vld [vmem:[%s8524 + $0x38] sm:$0xff]
    %v8533 = vld [vmem:[%s8524 + $0x40] sm:$0xff]
    %v8534 = vld [vmem:[%s8524 + $0x48] sm:$0xff]
    %v8535 = vld [vmem:[%s8524 + $0x50] sm:$0xff]
    %v8536 = vld [vmem:[%s8524 + $0x58] sm:$0xff]
    %v8537 = vld [vmem:[%s8524 + $0x60] sm:$0xff]
    %v8538 = vld [vmem:[%s8524 + $0x68] sm:$0xff]
    %v8539 = vld [vmem:[%s8524 + $0x70] sm:$0xff]
    %v8540 = vld [vmem:[%s8524 + $0x78] sm:$0xff]
    %v8541 = vld [vmem:[%s8524 + $0x80] sm:$0xff]
    %v8542 = vld [vmem:[%s8524 + $0x88] sm:$0xff]
    %v8543 = vld [vmem:[%s8524 + $0x90] sm:$0xff]
    %v8544 = vld [vmem:[%s8524 + $0x98] sm:$0xff]
    %v8545 = vld [vmem:[%s8524 + $0xa0] sm:$0xff]
    %v8546 = vld [vmem:[%s8524 + $0xa8] sm:$0xff]
    %v8547 = vld [vmem:[%s8524 + $0xb0] sm:$0xff]
    %v8548 = vld [vmem:[%s8524 + $0xb8] sm:$0xff]
    %8549 = vmatprep.subr.bf16.mxu0 0
    %8550 = vmatpush1.bf16.msra.mxu0 %v8525
    %8551 = vmatprep.subr.bf16.mxu0 0
    %8552 = vmatpush1.bf16.msra.mxu0 %v8526
    %8553 = vmatprep.subr.bf16.mxu0 0
    %8554 = vmatpush1.bf16.msra.mxu0 %v8527
    %8555 = vmatprep.subr.bf16.mxu0 0
    %8556 = vmatpush1.bf16.msra.mxu0 %v8528
    %8557 = vmatprep.subr.bf16.mxu0 0
    %8558 = vmatpush1.bf16.msra.mxu0 %v8529
    %8559 = vmatprep.subr.bf16.mxu0 0
    %8560 = vmatpush1.bf16.msra.mxu0 %v8530
    %8561 = vmatprep.subr.bf16.mxu0 0
    %8562 = vmatpush1.bf16.msra.mxu0 %v8531
    %8563 = vmatprep.subr.bf16.mxu0 0
    %8564 = vmatpush1.bf16.msra.mxu0 %v8532
    %8565 = vmatprep.subr.bf16.mxu0 0
    %8566 = vmatpush1.bf16.msra.mxu0 %v8533
    %8567 = vmatprep.subr.bf16.mxu0 0
    %8568 = vmatpush1.bf16.msra.mxu0 %v8534
    %8569 = vmatprep.subr.bf16.mxu0 0
    %8570 = vmatpush1.bf16.msra.mxu0 %v8535
    %8571 = vmatprep.subr.bf16.mxu0 0
    %8572 = vmatpush1.bf16.msra.mxu0 %v8536
    %8573 = vmatprep.subr.bf16.mxu0 0
    %8574 = vmatpush1.bf16.msra.mxu0 %v8537
    %8575 = vmatprep.subr.bf16.mxu0 0
    %8576 = vmatpush1.bf16.msra.mxu0 %v8538
    %8577 = vmatprep.subr.bf16.mxu0 0
    %8578 = vmatpush1.bf16.msra.mxu0 %v8539
    %8579 = vmatprep.subr.bf16.mxu0 0
    %8580 = vmatpush1.bf16.msra.mxu0 %v8540
    %8581 = vmatprep.mubr.bf16.mxu0 %v8091
    %8582 = vmatmul.mubr.bf16.gmra.mrb[0].mxu0 %v8090
    %v8583 = vpop.f32.mrb[0].mxu0
    %v8584 = vadd.f32 0.0, %v8583
    %v8585 = vpop.f32.mrb[0].mxu0
    %v8586 = vpop.f32.mrb[0].mxu0
    %v8587 = vadd.f32 0.0, %v8586
    %v8588 = vpop.f32.mrb[0].mxu0
    %8589 = vmatprep.mubr.bf16.mxu0 %v8094
    %8590 = vmatmul.mubr.bf16.gmra.mrb[0].mxu0 %v8093
    %v8591 = vpop.f32.mrb[0].mxu0
    %v8592 = vadd.f32 0.0, %v8591
    %v8593 = vpop.f32.mrb[0].mxu0
    %v8594 = vpop.f32.mrb[0].mxu0
    %v8595 = vadd.f32 0.0, %v8594
    %v8596 = vpop.f32.mrb[0].mxu0
    %8597 = vmatprep.mubr.bf16.mxu0 %v8097
    %8598 = vmatmul.mubr.bf16.gmra.mrb[0].mxu0 %v8096
    %v8599 = vpop.f32.mrb[0].mxu0
    %v8600 = vadd.f32 0.0, %v8599
    %v8601 = vpop.f32.mrb[0].mxu0
    %v8602 = vpop.f32.mrb[0].mxu0
    %v8603 = vadd.f32 0.0, %v8602
    %v8604 = vpop.f32.mrb[0].mxu0
    %8605 = vdwg.mxu0
    %8606 = vmatprep.subr.bf16.mxu0 0
    %8607 = vmatpush1.bf16.msra.mxu0 %v8541
    %8608 = vmatprep.subr.bf16.mxu0 0
    %8609 = vmatpush1.bf16.msra.mxu0 %v8542
    %8610 = vmatprep.subr.bf16.mxu0 0
    %8611 = vmatpush1.bf16.msra.mxu0 %v8543
    %8612 = vmatprep.subr.bf16.mxu0 0
    %8613 = vmatpush1.bf16.msra.mxu0 %v8544
    %8614 = vmatprep.subr.bf16.mxu0 0
    %8615 = vmatpush1.bf16.msra.mxu0 %v8545
    %8616 = vmatprep.subr.bf16.mxu0 0
    %8617 = vmatpush1.bf16.msra.mxu0 %v8546
    %8618 = vmatprep.subr.bf16.mxu0 0
    %8619 = vmatpush1.bf16.msra.mxu0 %v8547
    %8620 = vmatprep.subr.bf16.mxu0 0
    %8621 = vmatpush1.bf16.msra.mxu0 %v8548
    %8622 = vmatprep.subr.bf16.mxu0 0
    %8623 = vmatpush1.bf16.msra.mxu0 0
    %8624 = vmatprep.subr.bf16.mxu0 0
    %8625 = vmatpush1.bf16.msra.mxu0 0
    %8626 = vmatprep.subr.bf16.mxu0 0
    %8627 = vmatpush1.bf16.msra.mxu0 0
    %8628 = vmatprep.subr.bf16.mxu0 0
    %8629 = vmatpush1.bf16.msra.mxu0 0
    %8630 = vmatprep.subr.bf16.mxu0 0
    %8631 = vmatpush1.bf16.msra.mxu0 0
    %8632 = vmatprep.subr.bf16.mxu0 0
    %8633 = vmatpush1.bf16.msra.mxu0 0
    %8634 = vmatprep.subr.bf16.mxu0 0
    %8635 = vmatpush1.bf16.msra.mxu0 0
    %8636 = vmatprep.subr.bf16.mxu0 0
    %8637 = vmatpush1.bf16.msra.mxu0 0
    %8638 = vmatprep.mubr.bf16.mxu0 0
    %8639 = vmatmul.mubr.bf16.gmra.mrb[0].mxu0 %v8092
    %v8640 = vpop.f32.mrb[0].mxu0
    %v8641 = vadd.f32 %v8584, %v8640
    %v8642 = vpop.f32.mrb[0].mxu0
    %v8643 = vpop.f32.mrb[0].mxu0
    %v8644 = vadd.f32 %v8587, %v8643
    %v8645 = vpop.f32.mrb[0].mxu0
    %8646 = vmatprep.mubr.bf16.mxu0 0
    %8647 = vmatmul.mubr.bf16.gmra.mrb[0].mxu0 %v8095
    %v8648 = vpop.f32.mrb[0].mxu0
    %v8649 = vadd.f32 %v8592, %v8648
    %v8650 = vpop.f32.mrb[0].mxu0
    %v8651 = vpop.f32.mrb[0].mxu0
    %v8652 = vadd.f32 %v8595, %v8651
    %v8653 = vpop.f32.mrb[0].mxu0
    %8654 = vmatprep.mubr.bf16.mxu0 0
    %8655 = vmatmul.mubr.bf16.gmra.mrb[0].mxu0 %v8098
    %v8656 = vpop.f32.mrb[0].mxu0
    %v8657 = vadd.f32 %v8600, %v8656
    %v8658 = vpop.f32.mrb[0].mxu0
    %v8659 = vpop.f32.mrb[0].mxu0
    %v8660 = vadd.f32 %v8603, %v8659
    %v8661 = vpop.f32.mrb[0].mxu0
    %8662 = vdwg.mxu0
    %v8663 = vadd.f32 %v8518, %v8641
    %v8664 = vadd.f32 %v8519, %v8644
    %v8665 = vadd.f32 %v8520, %v8649
    %v8666 = vadd.f32 %v8521, %v8652
    %v8667 = vadd.f32 %v8522, %v8657
    %v8668 = vadd.f32 %v8523, %v8660
    %v8669 = vld [vmem:[#allocation23] sm:$0x1]
    %v8671 = vlaneseq
    %v8672 = vshrl.u32 %v8671, 7
    %v8673 = vsub.s32 0, %v8672
    %v8674 = vrot.slane %v8669, %v8673
    %v8676 = vadd.f32 %v8663, %v8674
    %v8677 = vadd.f32 %v8664, %v8674
    %v8678 = vadd.f32 %v8665, %v8674
    %v8679 = vadd.f32 %v8666, %v8674
    %v8680 = vadd.f32 %v8667, %v8674
    %v8681 = vadd.f32 %v8668, %v8674
    %v8682 = vmax.f32 %v8676, 0.0
    %v8683 = vmax.f32 %v8677, 0.0
    %v8684 = vmax.f32 %v8678, 0.0
    %v8685 = vmax.f32 %v8679, 0.0
    %v8686 = vmax.f32 %v8680, 0.0
    %v8687 = vmax.f32 %v8681, 0.0
    %v8688 = vld [vmem:[%s21] sm:$0xf]
    %v8689 = vld [vmem:[%s21 + $0x4] sm:$0xf]
    %v8690 = vld [vmem:[%s21 + $0x8] sm:$0xf]
    %v8691 = vld [vmem:[%s21 + $0xc] sm:$0xf]
    %v8692 = vld [vmem:[%s21 + $0x10] sm:$0xf]
    %v8693 = vld [vmem:[%s21 + $0x14] sm:$0xf]
    %v8694 = vld [vmem:[%s21 + $0x18] sm:$0xf]
    %v8695 = vld [vmem:[%s21 + $0x1c] sm:$0xf]
    %v8696 = vld [vmem:[%s21 + $0x20] sm:$0xf]
    %v8697 = vld [vmem:[%s21 + $0x24] sm:$0xf]
    %v8698 = vld [vmem:[%s21 + $0x28] sm:$0xf]
    %v8699 = vld [vmem:[%s21 + $0x2c] sm:$0xf]
    %v8700 = vld [vmem:[%s21 + $0x30] sm:$0xf]
    %v8701 = vld [vmem:[%s21 + $0x34] sm:$0xf]
    %v8702 = vld [vmem:[%s21 + $0x38] sm:$0xf]
    %v8703 = vld [vmem:[%s21 + $0x3c] sm:$0xf]
    %v8704 = vld [vmem:[%s21 + $0x40] sm:$0xf]
    %v8705 = vld [vmem:[%s21 + $0x44] sm:$0xf]
    %v8706 = vld [vmem:[%s21 + $0x48] sm:$0xf]
    %v8707 = vld [vmem:[%s21 + $0x4c] sm:$0xf]
    %v8708 = vld [vmem:[%s21 + $0x50] sm:$0xf]
    %v8709 = vld [vmem:[%s21 + $0x54] sm:$0xf]
    %v8710 = vld [vmem:[%s21 + $0x58] sm:$0xf]
    %v8711 = vld [vmem:[%s21 + $0x5c] sm:$0xf]
    %v8712 = vld [vmem:[%s21 + $0x60] sm:$0xf]
    %v8713 = vld [vmem:[%s21 + $0x64] sm:$0xf]
    %v8714 = vld [vmem:[%s21 + $0x68] sm:$0xf]
    %v8715 = vld [vmem:[%s21 + $0x6c] sm:$0xf]
    %v8716 = vld [vmem:[%s21 + $0x70] sm:$0xf]
    %v8717 = vld [vmem:[%s21 + $0x74] sm:$0xf]
    %v8718 = vld [vmem:[%s21 + $0x78] sm:$0xf]
    %v8719 = vld [vmem:[%s21 + $0x7c] sm:$0xf]
    %v8720 = vld [vmem:[%s21 + $0x80] sm:$0xf]
    %v8721 = vld [vmem:[%s21 + $0x84] sm:$0xf]
    %v8722 = vld [vmem:[%s21 + $0x88] sm:$0xf]
    %v8723 = vpack.c.bf16 %v8683, %v8682
    %v8724 = vpack.c.bf16 %v8685, %v8684
    %v8725 = vpack.c.bf16 %v8687, %v8686
    %v8761 = vunpack.c.l.b16 %v8688
    %v8762 = vunpack.c.l.b16 %v8689
    %v8763 = vunpack.c.l.b16 %v8690
    %v8764 = vunpack.c.l.b16 %v8691
    %v8765 = vunpack.c.l.b16 %v8692
    %v8766 = vunpack.c.l.b16 %v8693
    %v8767 = vunpack.c.l.b16 %v8694
    %v8768 = vunpack.c.l.b16 %v8695
    %v8769 = vunpack.c.l.b16 %v8696
    %v8770 = vunpack.c.l.b16 %v8697
    %v8771 = vunpack.c.l.b16 %v8698
    %v8772 = vunpack.c.l.b16 %v8699
    %v8773 = vunpack.c.l.b16 %v8700
    %v8774 = vunpack.c.l.b16 %v8701
    %v8775 = vunpack.c.l.b16 %v8702
    %v8776 = vunpack.c.l.b16 %v8703
    %v8777 = vunpack.c.l.b16 %v8704
    %v8778 = vunpack.c.l.b16 %v8705
    %v8779 = vunpack.c.l.b16 %v8706
    %v8780 = vunpack.c.l.b16 %v8707
    %v8781 = vunpack.c.l.b16 %v8708
    %v8782 = vunpack.c.l.b16 %v8709
    %v8783 = vunpack.c.l.b16 %v8710
    %v8784 = vunpack.c.l.b16 %v8711
    %v8785 = vunpack.c.l.b16 %v8712
    %v8786 = vunpack.c.l.b16 %v8713
    %v8787 = vunpack.c.l.b16 %v8714
    %v8788 = vunpack.c.l.b16 %v8715
    %v8789 = vunpack.c.l.b16 %v8716
    %v8790 = vunpack.c.l.b16 %v8717
    %v8791 = vunpack.c.l.b16 %v8718
    %v8792 = vunpack.c.l.b16 %v8719
    %v8793 = vunpack.c.l.b16 %v8720
    %v8794 = vunpack.c.l.b16 %v8721
    %v8795 = vunpack.c.l.b16 %v8722
    %v8796 = vpack.c.b16 %v8762, %v8761
    %v8797 = vpack.c.b16 %v8764, %v8763
    %v8798 = vpack.c.b16 %v8766, %v8765
    %v8799 = vpack.c.b16 %v8768, %v8767
    %v8800 = vpack.c.b16 %v8770, %v8769
    %v8801 = vpack.c.b16 %v8772, %v8771
    %v8802 = vpack.c.b16 %v8774, %v8773
    %v8803 = vpack.c.b16 %v8776, %v8775
    %v8804 = vpack.c.b16 %v8778, %v8777
    %v8805 = vpack.c.b16 %v8780, %v8779
    %v8806 = vpack.c.b16 %v8782, %v8781
    %v8807 = vpack.c.b16 %v8784, %v8783
    %v8808 = vpack.c.b16 %v8786, %v8785
    %v8809 = vpack.c.b16 %v8788, %v8787
    %v8810 = vpack.c.b16 %v8790, %v8789
    %v8811 = vpack.c.b16 %v8792, %v8791
    %v8812 = vpack.c.b16 %v8794, %v8793
    %v8813 = vpack.c.b16 %v8795, %v8795
    %vm8814 = vcmask 392192
    %v8816 = vsel %vm8814, %v8796, 0
    %v8819 = vsel %vm8814, %v8797, 0
    %v8822 = vsel %vm8814, %v8798, 0
    %v8825 = vsel %vm8814, %v8799, 0
    %v8828 = vsel %vm8814, %v8800, 0
    %v8831 = vsel %vm8814, %v8801, 0
    %v8834 = vsel %vm8814, %v8802, 0
    %v8837 = vsel %vm8814, %v8803, 0
    %v8840 = vsel %vm8814, %v8804, 0
    %v8843 = vsel %vm8814, %v8805, 0
    %v8846 = vsel %vm8814, %v8806, 0
    %v8849 = vsel %vm8814, %v8807, 0
    %v8852 = vsel %vm8814, %v8808, 0
    %v8855 = vsel %vm8814, %v8809, 0
    %v8858 = vsel %vm8814, %v8810, 0
    %v8861 = vsel %vm8814, %v8811, 0
    %v8864 = vsel %vm8814, %v8812, 0
    %v8867 = vsel %vm8814, %v8813, 0
    %8869 = vmatprep.subr.bf16.mxu0 0
    %8870 = vmatpush1.bf16.msra.mxu0 %v8723
    %8871 = vmatprep.subr.bf16.mxu0 0
    %8872 = vmatpush1.bf16.msra.mxu0 %v8724
    %8873 = vmatprep.subr.bf16.mxu0 0
    %8874 = vmatpush1.bf16.msra.mxu0 %v8725
    %8875 = vmatprep.subr.bf16.mxu0 0
    %8876 = vmatpush1.bf16.msra.mxu0 0
    %8877 = vmatprep.subr.bf16.mxu0 0
    %8878 = vmatpush1.bf16.msra.mxu0 0
    %8879 = vmatprep.subr.bf16.mxu0 0
    %8880 = vmatpush1.bf16.msra.mxu0 0
    %8881 = vmatprep.subr.bf16.mxu0 0
    %8882 = vmatpush1.bf16.msra.mxu0 0
    %8883 = vmatprep.subr.bf16.mxu0 0
    %8884 = vmatpush1.bf16.msra.mxu0 0
    %8885 = vmatprep.subr.bf16.mxu0 0
    %8886 = vmatpush1.bf16.msra.mxu0 0
    %8887 = vmatprep.subr.bf16.mxu0 0
    %8888 = vmatpush1.bf16.msra.mxu0 0
    %8889 = vmatprep.subr.bf16.mxu0 0
    %8890 = vmatpush1.bf16.msra.mxu0 0
    %8891 = vmatprep.subr.bf16.mxu0 0
    %8892 = vmatpush1.bf16.msra.mxu0 0
    %8893 = vmatprep.subr.bf16.mxu0 0
    %8894 = vmatpush1.bf16.msra.mxu0 0
    %8895 = vmatprep.subr.bf16.mxu0 0
    %8896 = vmatpush1.bf16.msra.mxu0 0
    %8897 = vmatprep.subr.bf16.mxu0 0
    %8898 = vmatpush1.bf16.msra.mxu0 0
    %8899 = vmatprep.subr.bf16.mxu0 0
    %8900 = vmatpush1.bf16.msra.mxu0 0
    %8901 = vmatprep.mubr.bf16.mxu0 0
    %8902 = vmatmul.mubr.bf16.gmra.mrb[0].mxu0 %v8816
    %v8903 = vpop.f32.mrb[0].mxu0
    %v8904 = vadd.f32 0.0, %v8903
    %v8905 = vpop.f32.mrb[0].mxu0
    %v8906 = vpop.f32.mrb[0].mxu0
    %v8907 = vadd.f32 0.0, %v8906
    %v8908 = vpop.f32.mrb[0].mxu0
    %8909 = vmatprep.mubr.bf16.mxu0 0
    %8910 = vmatmul.mubr.bf16.gmra.mrb[0].mxu0 %v8819
    %v8911 = vpop.f32.mrb[0].mxu0
    %v8912 = vadd.f32 0.0, %v8911
    %v8913 = vpop.f32.mrb[0].mxu0
    %v8914 = vpop.f32.mrb[0].mxu0
    %v8915 = vadd.f32 0.0, %v8914
    %v8916 = vpop.f32.mrb[0].mxu0
    %8917 = vmatprep.mubr.bf16.mxu0 0
    %8918 = vmatmul.mubr.bf16.gmra.mrb[0].mxu0 %v8822
    %v8919 = vpop.f32.mrb[0].mxu0
    %v8920 = vadd.f32 0.0, %v8919
    %v8921 = vpop.f32.mrb[0].mxu0
    %v8922 = vpop.f32.mrb[0].mxu0
    %v8923 = vadd.f32 0.0, %v8922
    %v8924 = vpop.f32.mrb[0].mxu0
    %8925 = vmatprep.mubr.bf16.mxu0 0
    %8926 = vmatmul.mubr.bf16.gmra.mrb[0].mxu0 %v8825
    %v8927 = vpop.f32.mrb[0].mxu0
    %v8928 = vadd.f32 0.0, %v8927
    %v8929 = vpop.f32.mrb[0].mxu0
    %v8930 = vpop.f32.mrb[0].mxu0
    %v8931 = vadd.f32 0.0, %v8930
    %v8932 = vpop.f32.mrb[0].mxu0
    %8933 = vmatprep.mubr.bf16.mxu0 0
    %8934 = vmatmul.mubr.bf16.gmra.mrb[0].mxu0 %v8828
    %v8935 = vpop.f32.mrb[0].mxu0
    %v8936 = vadd.f32 0.0, %v8935
    %v8937 = vpop.f32.mrb[0].mxu0
    %v8938 = vpop.f32.mrb[0].mxu0
    %v8939 = vadd.f32 0.0, %v8938
    %v8940 = vpop.f32.mrb[0].mxu0
    %8941 = vmatprep.mubr.bf16.mxu0 0
    %8942 = vmatmul.mubr.bf16.gmra.mrb[0].mxu0 %v8831
    %v8943 = vpop.f32.mrb[0].mxu0
    %v8944 = vadd.f32 0.0, %v8943
    %v8945 = vpop.f32.mrb[0].mxu0
    %v8946 = vpop.f32.mrb[0].mxu0
    %v8947 = vadd.f32 0.0, %v8946
    %v8948 = vpop.f32.mrb[0].mxu0
    %8949 = vmatprep.mubr.bf16.mxu0 0
    %8950 = vmatmul.mubr.bf16.gmra.mrb[0].mxu0 %v8834
    %v8951 = vpop.f32.mrb[0].mxu0
    %v8952 = vadd.f32 0.0, %v8951
    %v8953 = vpop.f32.mrb[0].mxu0
    %v8954 = vpop.f32.mrb[0].mxu0
    %v8955 = vadd.f32 0.0, %v8954
    %v8956 = vpop.f32.mrb[0].mxu0
    %8957 = vmatprep.mubr.bf16.mxu0 0
    %8958 = vmatmul.mubr.bf16.gmra.mrb[0].mxu0 %v8837
    %v8959 = vpop.f32.mrb[0].mxu0
    %v8960 = vadd.f32 0.0, %v8959
    %v8961 = vpop.f32.mrb[0].mxu0
    %v8962 = vpop.f32.mrb[0].mxu0
    %v8963 = vadd.f32 0.0, %v8962
    %v8964 = vpop.f32.mrb[0].mxu0
    %8965 = vmatprep.mubr.bf16.mxu0 0
    %8966 = vmatmul.mubr.bf16.gmra.mrb[0].mxu0 %v8840
    %v8967 = vpop.f32.mrb[0].mxu0
    %v8968 = vadd.f32 0.0, %v8967
    %v8969 = vpop.f32.mrb[0].mxu0
    %v8970 = vpop.f32.mrb[0].mxu0
    %v8971 = vadd.f32 0.0, %v8970
    %v8972 = vpop.f32.mrb[0].mxu0
    %8973 = vmatprep.mubr.bf16.mxu0 0
    %8974 = vmatmul.mubr.bf16.gmra.mrb[0].mxu0 %v8843
    %v8975 = vpop.f32.mrb[0].mxu0
    %v8976 = vadd.f32 0.0, %v8975
    %v8977 = vpop.f32.mrb[0].mxu0
    %v8978 = vpop.f32.mrb[0].mxu0
    %v8979 = vadd.f32 0.0, %v8978
    %v8980 = vpop.f32.mrb[0].mxu0
    %8981 = vmatprep.mubr.bf16.mxu0 0
    %8982 = vmatmul.mubr.bf16.gmra.mrb[0].mxu0 %v8846
    %v8983 = vpop.f32.mrb[0].mxu0
    %v8984 = vadd.f32 0.0, %v8983
    %v8985 = vpop.f32.mrb[0].mxu0
    %v8986 = vpop.f32.mrb[0].mxu0
    %v8987 = vadd.f32 0.0, %v8986
    %v8988 = vpop.f32.mrb[0].mxu0
    %8989 = vmatprep.mubr.bf16.mxu0 0
    %8990 = vmatmul.mubr.bf16.gmra.mrb[0].mxu0 %v8849
    %v8991 = vpop.f32.mrb[0].mxu0
    %v8992 = vadd.f32 0.0, %v8991
    %v8993 = vpop.f32.mrb[0].mxu0
    %v8994 = vpop.f32.mrb[0].mxu0
    %v8995 = vadd.f32 0.0, %v8994
    %v8996 = vpop.f32.mrb[0].mxu0
    %8997 = vmatprep.mubr.bf16.mxu0 0
    %8998 = vmatmul.mubr.bf16.gmra.mrb[0].mxu0 %v8852
    %v8999 = vpop.f32.mrb[0].mxu0
    %v9000 = vadd.f32 0.0, %v8999
    %v9001 = vpop.f32.mrb[0].mxu0
    %v9002 = vpop.f32.mrb[0].mxu0
    %v9003 = vadd.f32 0.0, %v9002
    %v9004 = vpop.f32.mrb[0].mxu0
    %9005 = vmatprep.mubr.bf16.mxu0 0
    %9006 = vmatmul.mubr.bf16.gmra.mrb[0].mxu0 %v8855
    %v9007 = vpop.f32.mrb[0].mxu0
    %v9008 = vadd.f32 0.0, %v9007
    %v9009 = vpop.f32.mrb[0].mxu0
    %v9010 = vpop.f32.mrb[0].mxu0
    %v9011 = vadd.f32 0.0, %v9010
    %v9012 = vpop.f32.mrb[0].mxu0
    %9013 = vmatprep.mubr.bf16.mxu0 0
    %9014 = vmatmul.mubr.bf16.gmra.mrb[0].mxu0 %v8858
    %v9015 = vpop.f32.mrb[0].mxu0
    %v9016 = vadd.f32 0.0, %v9015
    %v9017 = vpop.f32.mrb[0].mxu0
    %v9018 = vpop.f32.mrb[0].mxu0
    %v9019 = vadd.f32 0.0, %v9018
    %v9020 = vpop.f32.mrb[0].mxu0
    %9021 = vmatprep.mubr.bf16.mxu0 0
    %9022 = vmatmul.mubr.bf16.gmra.mrb[0].mxu0 %v8861
    %v9023 = vpop.f32.mrb[0].mxu0
    %v9024 = vadd.f32 0.0, %v9023
    %v9025 = vpop.f32.mrb[0].mxu0
    %v9026 = vpop.f32.mrb[0].mxu0
    %v9027 = vadd.f32 0.0, %v9026
    %v9028 = vpop.f32.mrb[0].mxu0
    %9029 = vmatprep.mubr.bf16.mxu0 0
    %9030 = vmatmul.mubr.bf16.gmra.mrb[0].mxu0 %v8864
    %v9031 = vpop.f32.mrb[0].mxu0
    %v9032 = vadd.f32 0.0, %v9031
    %v9033 = vpop.f32.mrb[0].mxu0
    %v9034 = vpop.f32.mrb[0].mxu0
    %v9035 = vadd.f32 0.0, %v9034
    %v9036 = vpop.f32.mrb[0].mxu0
    %9037 = vmatprep.mubr.bf16.mxu0 0
    %9038 = vmatmul.mubr.bf16.gmra.mrb[0].mxu0 %v8867
    %v9039 = vpop.f32.mrb[0].mxu0
    %v9040 = vadd.f32 0.0, %v9039
    %v9041 = vpop.f32.mrb[0].mxu0
    %v9042 = vpop.f32.mrb[0].mxu0
    %v9043 = vpop.f32.mrb[0].mxu0
    %9044 = vdwg.mxu0
    %v9045 = vpack.c.bf16 %v8907, %v8904
    %v9046 = vpack.c.bf16 %v8915, %v8912
    %v9047 = vpack.c.bf16 %v8923, %v8920
    %v9048 = vpack.c.bf16 %v8931, %v8928
    %v9049 = vpack.c.bf16 %v8939, %v8936
    %v9050 = vpack.c.bf16 %v8947, %v8944
    %v9051 = vpack.c.bf16 %v8955, %v8952
    %v9052 = vpack.c.bf16 %v8963, %v8960
    %v9053 = vpack.c.bf16 %v8971, %v8968
    %v9054 = vpack.c.bf16 %v8979, %v8976
    %v9055 = vpack.c.bf16 %v8987, %v8984
    %v9056 = vpack.c.bf16 %v8995, %v8992
    %v9057 = vpack.c.bf16 %v9003, %v9000
    %v9058 = vpack.c.bf16 %v9011, %v9008
    %v9059 = vpack.c.bf16 %v9019, %v9016
    %v9060 = vpack.c.bf16 %v9027, %v9024
    %v9061 = vpack.c.bf16 %v9035, %v9032
    %v9062 = vpack.c.bf16 %v9040, %v9040
    %s9063 = smul.u32 4, 5
    %s9064 = smul.u32 %s9063, 16
    %s9065 = smul.u32 %s9064, 1
    %s9066 = sshll.u32 %s9065, 4
    %9067 = dma.done %s469, %s9066
    %v9068 = vld [vmem:[#allocation10] sm:$0xff]
    %v9069 = vld [vmem:[#allocation10 + $0x8] sm:$0xff]
    %v9070 = vld [vmem:[#allocation10 + $0x10] sm:$0xff]
    %v9071 = vld [vmem:[#allocation10 + $0x18] sm:$0xff]
    %v9072 = vld [vmem:[#allocation10 + $0x20] sm:$0xff]
    %v9073 = vld [vmem:[#allocation10 + $0x28] sm:$0xff]
    %v9074 = vld [vmem:[#allocation10 + $0x30] sm:$0xff]
    %v9075 = vld [vmem:[#allocation10 + $0x38] sm:$0xff]
    %s9076 = scalar_lea.vmem [#allocation10], 64
    %v9077 = vld [vmem:[%s9076] sm:$0xff]
    %v9078 = vld [vmem:[%s9076 + $0x8] sm:$0xff]
    %v9079 = vld [vmem:[%s9076 + $0x10] sm:$0xff]
    %v9080 = vld [vmem:[%s9076 + $0x18] sm:$0xff]
    %v9081 = vld [vmem:[%s9076 + $0x20] sm:$0xff]
    %v9082 = vld [vmem:[%s9076 + $0x28] sm:$0xff]
    %v9083 = vld [vmem:[%s9076 + $0x30] sm:$0xff]
    %v9084 = vld [vmem:[%s9076 + $0x38] sm:$0xff]
    %v9089 = vrot.slane %v9048, 4
    %v9090 = vrot.slane %v9049, 4
    %v9091 = vsel %vm6617, %v9089, %v9090
    %v9092 = vrot.slane %v9050, 4
    %v9093 = vsel %vm6617, %v9090, %v9092
    %v9094 = vrot.slane %v9051, 4
    %v9095 = vsel %vm6617, %v9092, %v9094
    %9100 = vmatprep.subr.bf16.mxu0 0
    %9101 = vmatpush1.bf16.msra.mxu0 %v9077
    %9102 = vmatprep.subr.bf16.mxu0 0
    %9103 = vmatpush1.bf16.msra.mxu0 %v9078
    %9104 = vmatprep.subr.bf16.mxu0 0
    %9105 = vmatpush1.bf16.msra.mxu0 %v9079
    %9106 = vmatprep.subr.bf16.mxu0 0
    %9107 = vmatpush1.bf16.msra.mxu0 %v9080
    %9108 = vmatprep.subr.bf16.mxu0 0
    %9109 = vmatpush1.bf16.msra.mxu0 %v9081
    %9110 = vmatprep.subr.bf16.mxu0 0
    %9111 = vmatpush1.bf16.msra.mxu0 %v9082
    %9112 = vmatprep.subr.bf16.mxu0 0
    %9113 = vmatpush1.bf16.msra.mxu0 %v9083
    %9114 = vmatprep.subr.bf16.mxu0 0
    %9115 = vmatpush1.bf16.msra.mxu0 %v9084
    %9116 = vmatprep.subr.bf16.mxu0 0
    %9117 = vmatpush1.bf16.msra.mxu0 0
    %9118 = vmatprep.subr.bf16.mxu0 0
    %9119 = vmatpush1.bf16.msra.mxu0 0
    %9120 = vmatprep.subr.bf16.mxu0 0
    %9121 = vmatpush1.bf16.msra.mxu0 0
    %9122 = vmatprep.subr.bf16.mxu0 0
    %9123 = vmatpush1.bf16.msra.mxu0 0
    %9124 = vmatprep.subr.bf16.mxu0 0
    %9125 = vmatpush1.bf16.msra.mxu0 0
    %9126 = vmatprep.subr.bf16.mxu0 0
    %9127 = vmatpush1.bf16.msra.mxu0 0
    %9128 = vmatprep.subr.bf16.mxu0 0
    %9129 = vmatpush1.bf16.msra.mxu0 0
    %9130 = vmatprep.subr.bf16.mxu0 0
    %9131 = vmatpush1.bf16.msra.mxu0 0
    %9132 = vmatprep.mubr.bf16.mxu0 0
    %9133 = vmatmul.mubr.bf16.gmra.mrb[0].mxu0 %v9091
    %v9134 = vpop.f32.mrb[0].mxu0
    %v9135 = vadd.f32 0.0, %v9134
    %v9136 = vpop.f32.mrb[0].mxu0
    %v9137 = vpop.f32.mrb[0].mxu0
    %v9138 = vadd.f32 0.0, %v9137
    %v9139 = vpop.f32.mrb[0].mxu0
    %9140 = vmatprep.mubr.bf16.mxu0 0
    %9141 = vmatmul.mubr.bf16.gmra.mrb[0].mxu0 %v9093
    %v9142 = vpop.f32.mrb[0].mxu0
    %v9143 = vadd.f32 0.0, %v9142
    %v9144 = vpop.f32.mrb[0].mxu0
    %v9145 = vpop.f32.mrb[0].mxu0
    %v9146 = vadd.f32 0.0, %v9145
    %v9147 = vpop.f32.mrb[0].mxu0
    %9148 = vmatprep.mubr.bf16.mxu0 0
    %9149 = vmatmul.mubr.bf16.gmra.mrb[0].mxu0 %v9095
    %v9150 = vpop.f32.mrb[0].mxu0
    %v9151 = vadd.f32 0.0, %v9150
    %v9152 = vpop.f32.mrb[0].mxu0
    %v9153 = vpop.f32.mrb[0].mxu0
    %v9154 = vadd.f32 0.0, %v9153
    %v9155 = vpop.f32.mrb[0].mxu0
    %9156 = vmatprep.mubr.bf16.mxu0 0
    %9157 = vmatmul.mubr.bf16.gmra.mrb[0].mxu0 %v9094
    %v9158 = vpop.f32.mrb[0].mxu0
    %v9159 = vadd.f32 0.0, %v9158
    %v9160 = vpop.f32.mrb[0].mxu0
    %v9161 = vpop.f32.mrb[0].mxu0
    %v9162 = vpop.f32.mrb[0].mxu0
    %9163 = vdwg.mxu0
    %9164 = vmatprep.subr.bf16.mxu0 0
    %9165 = vmatpush1.bf16.msra.mxu0 %v9068
    %9166 = vmatprep.subr.bf16.mxu0 0
    %9167 = vmatpush1.bf16.msra.mxu0 %v9069
    %9168 = vmatprep.subr.bf16.mxu0 0
    %9169 = vmatpush1.bf16.msra.mxu0 %v9070
    %9170 = vmatprep.subr.bf16.mxu0 0
    %9171 = vmatpush1.bf16.msra.mxu0 %v9071
    %9172 = vmatprep.subr.bf16.mxu0 0
    %9173 = vmatpush1.bf16.msra.mxu0 %v9072
    %9174 = vmatprep.subr.bf16.mxu0 0
    %9175 = vmatpush1.bf16.msra.mxu0 %v9073
    %9176 = vmatprep.subr.bf16.mxu0 0
    %9177 = vmatpush1.bf16.msra.mxu0 %v9074
    %9178 = vmatprep.subr.bf16.mxu0 0
    %9179 = vmatpush1.bf16.msra.mxu0 %v9075
    %9180 = vmatprep.subr.bf16.mxu0 0
    %9181 = vmatpush1.bf16.msra.mxu0 0
    %9182 = vmatprep.subr.bf16.mxu0 0
    %9183 = vmatpush1.bf16.msra.mxu0 0
    %9184 = vmatprep.subr.bf16.mxu0 0
    %9185 = vmatpush1.bf16.msra.mxu0 0
    %9186 = vmatprep.subr.bf16.mxu0 0
    %9187 = vmatpush1.bf16.msra.mxu0 0
    %9188 = vmatprep.subr.bf16.mxu0 0
    %9189 = vmatpush1.bf16.msra.mxu0 0
    %9190 = vmatprep.subr.bf16.mxu0 0
    %9191 = vmatpush1.bf16.msra.mxu0 0
    %9192 = vmatprep.subr.bf16.mxu0 0
    %9193 = vmatpush1.bf16.msra.mxu0 0
    %9194 = vmatprep.subr.bf16.mxu0 0
    %9195 = vmatpush1.bf16.msra.mxu0 0
    %9196 = vmatprep.mubr.bf16.mxu0 0
    %9197 = vmatmul.mubr.bf16.gmra.mrb[0].mxu0 %v9045
    %v9198 = vpop.f32.mrb[0].mxu0
    %v9199 = vadd.f32 %v9135, %v9198
    %v9200 = vpop.f32.mrb[0].mxu0
    %v9201 = vpop.f32.mrb[0].mxu0
    %v9202 = vadd.f32 %v9138, %v9201
    %v9203 = vpop.f32.mrb[0].mxu0
    %9204 = vmatprep.mubr.bf16.mxu0 0
    %9205 = vmatmul.mubr.bf16.gmra.mrb[0].mxu0 %v9046
    %v9206 = vpop.f32.mrb[0].mxu0
    %v9207 = vadd.f32 %v9143, %v9206
    %v9208 = vpop.f32.mrb[0].mxu0
    %v9209 = vpop.f32.mrb[0].mxu0
    %v9210 = vadd.f32 %v9146, %v9209
    %v9211 = vpop.f32.mrb[0].mxu0
    %9212 = vmatprep.mubr.bf16.mxu0 0
    %9213 = vmatmul.mubr.bf16.gmra.mrb[0].mxu0 %v9047
    %v9214 = vpop.f32.mrb[0].mxu0
    %v9215 = vadd.f32 %v9151, %v9214
    %v9216 = vpop.f32.mrb[0].mxu0
    %v9217 = vpop.f32.mrb[0].mxu0
    %v9218 = vadd.f32 %v9154, %v9217
    %v9219 = vpop.f32.mrb[0].mxu0
    %9220 = vmatprep.mubr.bf16.mxu0 0
    %9221 = vmatmul.mubr.bf16.gmra.mrb[0].mxu0 %v9048
    %v9222 = vpop.f32.mrb[0].mxu0
    %v9223 = vadd.f32 %v9159, %v9222
    %v9224 = vpop.f32.mrb[0].mxu0
    %v9225 = vpop.f32.mrb[0].mxu0
    %v9226 = vpop.f32.mrb[0].mxu0
    %9227 = vdwg.mxu0
    %s9228 = scalar_lea.vmem [#allocation10], 128
    %v9229 = vld [vmem:[%s9228] sm:$0xff]
    %v9230 = vld [vmem:[%s9228 + $0x8] sm:$0xff]
    %v9231 = vld [vmem:[%s9228 + $0x10] sm:$0xff]
    %v9232 = vld [vmem:[%s9228 + $0x18] sm:$0xff]
    %v9233 = vld [vmem:[%s9228 + $0x20] sm:$0xff]
    %v9234 = vld [vmem:[%s9228 + $0x28] sm:$0xff]
    %v9235 = vld [vmem:[%s9228 + $0x30] sm:$0xff]
    %v9236 = vld [vmem:[%s9228 + $0x38] sm:$0xff]
    %9237 = vmatprep.subr.bf16.mxu0 0
    %9238 = vmatpush1.bf16.msra.mxu0 %v9229
    %9239 = vmatprep.subr.bf16.mxu0 0
    %9240 = vmatpush1.bf16.msra.mxu0 %v9230
    %9241 = vmatprep.subr.bf16.mxu0 0
    %9242 = vmatpush1.bf16.msra.mxu0 %v9231
    %9243 = vmatprep.subr.bf16.mxu0 0
    %9244 = vmatpush1.bf16.msra.mxu0 %v9232
    %9245 = vmatprep.subr.bf16.mxu0 0
    %9246 = vmatpush1.bf16.msra.mxu0 %v9233
    %9247 = vmatprep.subr.bf16.mxu0 0
    %9248 = vmatpush1.bf16.msra.mxu0 %v9234
    %9249 = vmatprep.subr.bf16.mxu0 0
    %9250 = vmatpush1.bf16.msra.mxu0 %v9235
    %9251 = vmatprep.subr.bf16.mxu0 0
    %9252 = vmatpush1.bf16.msra.mxu0 %v9236
    %9253 = vmatprep.subr.bf16.mxu0 0
    %9254 = vmatpush1.bf16.msra.mxu0 0
    %9255 = vmatprep.subr.bf16.mxu0 0
    %9256 = vmatpush1.bf16.msra.mxu0 0
    %9257 = vmatprep.subr.bf16.mxu0 0
    %9258 = vmatpush1.bf16.msra.mxu0 0
    %9259 = vmatprep.subr.bf16.mxu0 0
    %9260 = vmatpush1.bf16.msra.mxu0 0
    %9261 = vmatprep.subr.bf16.mxu0 0
    %9262 = vmatpush1.bf16.msra.mxu0 0
    %9263 = vmatprep.subr.bf16.mxu0 0
    %9264 = vmatpush1.bf16.msra.mxu0 0
    %9265 = vmatprep.subr.bf16.mxu0 0
    %9266 = vmatpush1.bf16.msra.mxu0 0
    %9267 = vmatprep.subr.bf16.mxu0 0
    %9268 = vmatpush1.bf16.msra.mxu0 0
    %9269 = vmatprep.mubr.bf16.mxu0 0
    %9270 = vmatmul.mubr.bf16.gmra.mrb[0].mxu0 %v9052
    %v9271 = vpop.f32.mrb[0].mxu0
    %v9272 = vadd.f32 0.0, %v9271
    %v9273 = vpop.f32.mrb[0].mxu0
    %v9274 = vpop.f32.mrb[0].mxu0
    %v9275 = vadd.f32 0.0, %v9274
    %v9276 = vpop.f32.mrb[0].mxu0
    %9277 = vmatprep.mubr.bf16.mxu0 0
    %9278 = vmatmul.mubr.bf16.gmra.mrb[0].mxu0 %v9053
    %v9279 = vpop.f32.mrb[0].mxu0
    %v9280 = vadd.f32 0.0, %v9279
    %v9281 = vpop.f32.mrb[0].mxu0
    %v9282 = vpop.f32.mrb[0].mxu0
    %v9283 = vadd.f32 0.0, %v9282
    %v9284 = vpop.f32.mrb[0].mxu0
    %9285 = vmatprep.mubr.bf16.mxu0 0
    %9286 = vmatmul.mubr.bf16.gmra.mrb[0].mxu0 %v9054
    %v9287 = vpop.f32.mrb[0].mxu0
    %v9288 = vadd.f32 0.0, %v9287
    %v9289 = vpop.f32.mrb[0].mxu0
    %v9290 = vpop.f32.mrb[0].mxu0
    %v9291 = vadd.f32 0.0, %v9290
    %v9292 = vpop.f32.mrb[0].mxu0
    %9293 = vmatprep.mubr.bf16.mxu0 0
    %9294 = vmatmul.mubr.bf16.gmra.mrb[0].mxu0 %v9055
    %v9295 = vpop.f32.mrb[0].mxu0
    %v9296 = vadd.f32 0.0, %v9295
    %v9297 = vpop.f32.mrb[0].mxu0
    %v9298 = vpop.f32.mrb[0].mxu0
    %v9299 = vpop.f32.mrb[0].mxu0
    %9300 = vdwg.mxu0
    %v9301 = vadd.f32 %v9199, %v9272
    %v9302 = vadd.f32 %v9202, %v9275
    %v9303 = vadd.f32 %v9207, %v9280
    %v9304 = vadd.f32 %v9210, %v9283
    %v9305 = vadd.f32 %v9215, %v9288
    %v9306 = vadd.f32 %v9218, %v9291
    %v9307 = vadd.f32 %v9223, %v9296
    %s9308 = scalar_lea.vmem [#allocation10], 192
    %v9309 = vld [vmem:[%s9308] sm:$0xff]
    %v9310 = vld [vmem:[%s9308 + $0x8] sm:$0xff]
    %v9311 = vld [vmem:[%s9308 + $0x10] sm:$0xff]
    %v9312 = vld [vmem:[%s9308 + $0x18] sm:$0xff]
    %v9313 = vld [vmem:[%s9308 + $0x20] sm:$0xff]
    %v9314 = vld [vmem:[%s9308 + $0x28] sm:$0xff]
    %v9315 = vld [vmem:[%s9308 + $0x30] sm:$0xff]
    %v9316 = vld [vmem:[%s9308 + $0x38] sm:$0xff]
    %v9321 = vrot.slane %v9055, 4
    %v9322 = vrot.slane %v9056, 4
    %v9323 = vsel %vm6617, %v9321, %v9322
    %v9324 = vrot.slane %v9057, 4
    %v9325 = vsel %vm6617, %v9322, %v9324
    %v9326 = vrot.slane %v9058, 4
    %v9327 = vsel %vm6617, %v9324, %v9326
    %9332 = vmatprep.subr.bf16.mxu0 0
    %9333 = vmatpush1.bf16.msra.mxu0 %v9309
    %9334 = vmatprep.subr.bf16.mxu0 0
    %9335 = vmatpush1.bf16.msra.mxu0 %v9310
    %9336 = vmatprep.subr.bf16.mxu0 0
    %9337 = vmatpush1.bf16.msra.mxu0 %v9311
    %9338 = vmatprep.subr.bf16.mxu0 0
    %9339 = vmatpush1.bf16.msra.mxu0 %v9312
    %9340 = vmatprep.subr.bf16.mxu0 0
    %9341 = vmatpush1.bf16.msra.mxu0 %v9313
    %9342 = vmatprep.subr.bf16.mxu0 0
    %9343 = vmatpush1.bf16.msra.mxu0 %v9314
    %9344 = vmatprep.subr.bf16.mxu0 0
    %9345 = vmatpush1.bf16.msra.mxu0 %v9315
    %9346 = vmatprep.subr.bf16.mxu0 0
    %9347 = vmatpush1.bf16.msra.mxu0 %v9316
    %9348 = vmatprep.subr.bf16.mxu0 0
    %9349 = vmatpush1.bf16.msra.mxu0 0
    %9350 = vmatprep.subr.bf16.mxu0 0
    %9351 = vmatpush1.bf16.msra.mxu0 0
    %9352 = vmatprep.subr.bf16.mxu0 0
    %9353 = vmatpush1.bf16.msra.mxu0 0
    %9354 = vmatprep.subr.bf16.mxu0 0
    %9355 = vmatpush1.bf16.msra.mxu0 0
    %9356 = vmatprep.subr.bf16.mxu0 0
    %9357 = vmatpush1.bf16.msra.mxu0 0
    %9358 = vmatprep.subr.bf16.mxu0 0
    %9359 = vmatpush1.bf16.msra.mxu0 0
    %9360 = vmatprep.subr.bf16.mxu0 0
    %9361 = vmatpush1.bf16.msra.mxu0 0
    %9362 = vmatprep.subr.bf16.mxu0 0
    %9363 = vmatpush1.bf16.msra.mxu0 0
    %9364 = vmatprep.mubr.bf16.mxu0 0
    %9365 = vmatmul.mubr.bf16.gmra.mrb[0].mxu0 %v9323
    %v9366 = vpop.f32.mrb[0].mxu0
    %v9367 = vadd.f32 0.0, %v9366
    %v9368 = vpop.f32.mrb[0].mxu0
    %v9369 = vpop.f32.mrb[0].mxu0
    %v9370 = vadd.f32 0.0, %v9369
    %v9371 = vpop.f32.mrb[0].mxu0
    %9372 = vmatprep.mubr.bf16.mxu0 0
    %9373 = vmatmul.mubr.bf16.gmra.mrb[0].mxu0 %v9325
    %v9374 = vpop.f32.mrb[0].mxu0
    %v9375 = vadd.f32 0.0, %v9374
    %v9376 = vpop.f32.mrb[0].mxu0
    %v9377 = vpop.f32.mrb[0].mxu0
    %v9378 = vadd.f32 0.0, %v9377
    %v9379 = vpop.f32.mrb[0].mxu0
    %9380 = vmatprep.mubr.bf16.mxu0 0
    %9381 = vmatmul.mubr.bf16.gmra.mrb[0].mxu0 %v9327
    %v9382 = vpop.f32.mrb[0].mxu0
    %v9383 = vadd.f32 0.0, %v9382
    %v9384 = vpop.f32.mrb[0].mxu0
    %v9385 = vpop.f32.mrb[0].mxu0
    %v9386 = vadd.f32 0.0, %v9385
    %v9387 = vpop.f32.mrb[0].mxu0
    %9388 = vmatprep.mubr.bf16.mxu0 0
    %9389 = vmatmul.mubr.bf16.gmra.mrb[0].mxu0 %v9326
    %v9390 = vpop.f32.mrb[0].mxu0
    %v9391 = vadd.f32 0.0, %v9390
    %v9392 = vpop.f32.mrb[0].mxu0
    %v9393 = vpop.f32.mrb[0].mxu0
    %v9394 = vpop.f32.mrb[0].mxu0
    %9395 = vdwg.mxu0
    %v9396 = vadd.f32 %v9301, %v9367
    %v9397 = vadd.f32 %v9302, %v9370
    %v9398 = vadd.f32 %v9303, %v9375
    %v9399 = vadd.f32 %v9304, %v9378
    %v9400 = vadd.f32 %v9305, %v9383
    %v9401 = vadd.f32 %v9306, %v9386
    %v9402 = vadd.f32 %v9307, %v9391
    %s9403 = scalar_lea.vmem [#allocation10], 256
    %v9404 = vld [vmem:[%s9403] sm:$0xff]
    %v9405 = vld [vmem:[%s9403 + $0x8] sm:$0xff]
    %v9406 = vld [vmem:[%s9403 + $0x10] sm:$0xff]
    %v9407 = vld [vmem:[%s9403 + $0x18] sm:$0xff]
    %v9408 = vld [vmem:[%s9403 + $0x20] sm:$0xff]
    %v9409 = vld [vmem:[%s9403 + $0x28] sm:$0xff]
    %v9410 = vld [vmem:[%s9403 + $0x30] sm:$0xff]
    %v9411 = vld [vmem:[%s9403 + $0x38] sm:$0xff]
    %9412 = vmatprep.subr.bf16.mxu0 0
    %9413 = vmatpush1.bf16.msra.mxu0 %v9404
    %9414 = vmatprep.subr.bf16.mxu0 0
    %9415 = vmatpush1.bf16.msra.mxu0 %v9405
    %9416 = vmatprep.subr.bf16.mxu0 0
    %9417 = vmatpush1.bf16.msra.mxu0 %v9406
    %9418 = vmatprep.subr.bf16.mxu0 0
    %9419 = vmatpush1.bf16.msra.mxu0 %v9407
    %9420 = vmatprep.subr.bf16.mxu0 0
    %9421 = vmatpush1.bf16.msra.mxu0 %v9408
    %9422 = vmatprep.subr.bf16.mxu0 0
    %9423 = vmatpush1.bf16.msra.mxu0 %v9409
    %9424 = vmatprep.subr.bf16.mxu0 0
    %9425 = vmatpush1.bf16.msra.mxu0 %v9410
    %9426 = vmatprep.subr.bf16.mxu0 0
    %9427 = vmatpush1.bf16.msra.mxu0 %v9411
    %9428 = vmatprep.subr.bf16.mxu0 0
    %9429 = vmatpush1.bf16.msra.mxu0 0
    %9430 = vmatprep.subr.bf16.mxu0 0
    %9431 = vmatpush1.bf16.msra.mxu0 0
    %9432 = vmatprep.subr.bf16.mxu0 0
    %9433 = vmatpush1.bf16.msra.mxu0 0
    %9434 = vmatprep.subr.bf16.mxu0 0
    %9435 = vmatpush1.bf16.msra.mxu0 0
    %9436 = vmatprep.subr.bf16.mxu0 0
    %9437 = vmatpush1.bf16.msra.mxu0 0
    %9438 = vmatprep.subr.bf16.mxu0 0
    %9439 = vmatpush1.bf16.msra.mxu0 0
    %9440 = vmatprep.subr.bf16.mxu0 0
    %9441 = vmatpush1.bf16.msra.mxu0 0
    %9442 = vmatprep.subr.bf16.mxu0 0
    %9443 = vmatpush1.bf16.msra.mxu0 0
    %9444 = vmatprep.mubr.bf16.mxu0 0
    %9445 = vmatmul.mubr.bf16.gmra.mrb[0].mxu0 %v9059
    %v9446 = vpop.f32.mrb[0].mxu0
    %v9447 = vadd.f32 0.0, %v9446
    %v9448 = vpop.f32.mrb[0].mxu0
    %v9449 = vpop.f32.mrb[0].mxu0
    %v9450 = vadd.f32 0.0, %v9449
    %v9451 = vpop.f32.mrb[0].mxu0
    %9452 = vmatprep.mubr.bf16.mxu0 0
    %9453 = vmatmul.mubr.bf16.gmra.mrb[0].mxu0 %v9060
    %v9454 = vpop.f32.mrb[0].mxu0
    %v9455 = vadd.f32 0.0, %v9454
    %v9456 = vpop.f32.mrb[0].mxu0
    %v9457 = vpop.f32.mrb[0].mxu0
    %v9458 = vadd.f32 0.0, %v9457
    %v9459 = vpop.f32.mrb[0].mxu0
    %9460 = vmatprep.mubr.bf16.mxu0 0
    %9461 = vmatmul.mubr.bf16.gmra.mrb[0].mxu0 %v9061
    %v9462 = vpop.f32.mrb[0].mxu0
    %v9463 = vadd.f32 0.0, %v9462
    %v9464 = vpop.f32.mrb[0].mxu0
    %v9465 = vpop.f32.mrb[0].mxu0
    %v9466 = vadd.f32 0.0, %v9465
    %v9467 = vpop.f32.mrb[0].mxu0
    %9468 = vmatprep.mubr.bf16.mxu0 0
    %9469 = vmatmul.mubr.bf16.gmra.mrb[0].mxu0 %v9062
    %v9470 = vpop.f32.mrb[0].mxu0
    %v9471 = vadd.f32 0.0, %v9470
    %v9472 = vpop.f32.mrb[0].mxu0
    %v9473 = vpop.f32.mrb[0].mxu0
    %v9474 = vpop.f32.mrb[0].mxu0
    %9475 = vdwg.mxu0
    %v9476 = vadd.f32 %v9396, %v9447
    %v9477 = vadd.f32 %v9397, %v9450
    %v9478 = vadd.f32 %v9398, %v9455
    %v9479 = vadd.f32 %v9399, %v9458
    %v9480 = vadd.f32 %v9400, %v9463
    %v9481 = vadd.f32 %v9401, %v9466
    %v9482 = vadd.f32 %v9402, %v9471
    %v9483 = vld [vmem:[#allocation25] sm:$0x1]
    %v9485 = vlaneseq
    %v9486 = vshrl.u32 %v9485, 7
    %v9487 = vsub.s32 0, %v9486
    %v9488 = vrot.slane %v9483, %v9487
    %v9490 = vadd.f32 %v9476, %v9488
    %v9491 = vadd.f32 %v9477, %v9488
    %v9492 = vadd.f32 %v9478, %v9488
    %v9493 = vadd.f32 %v9479, %v9488
    %v9494 = vadd.f32 %v9480, %v9488
    %v9495 = vadd.f32 %v9481, %v9488
    %v9496 = vadd.f32 %v9482, %v9488
    %v9497 = vxor.u32 %v9490, 2147483648
    %v9498 = vxor.u32 %v9491, 2147483648
    %v9499 = vxor.u32 %v9492, 2147483648
    %v9500 = vxor.u32 %v9493, 2147483648
    %v9501 = vxor.u32 %v9494, 2147483648
    %v9502 = vxor.u32 %v9495, 2147483648
    %v9503 = vxor.u32 %v9496, 2147483648
    %v9504 = vmul.f32 %v9497, 1.442695
    %v9505 = vpow.pop %v9504
    %v9506 = vmul.f32 %v9498, 1.442695
    %v9507 = vpow.pop %v9506
    %v9508 = vmul.f32 %v9499, 1.442695
    %v9509 = vpow.pop %v9508
    %v9510 = vmul.f32 %v9500, 1.442695
    %v9511 = vpow.pop %v9510
    %v9512 = vmul.f32 %v9501, 1.442695
    %v9513 = vpow.pop %v9512
    %v9514 = vmul.f32 %v9502, 1.442695
    %v9515 = vpow.pop %v9514
    %v9516 = vmul.f32 %v9503, 1.442695
    %v9517 = vpow.pop %v9516
    %v9518 = vadd.f32 %v9505, 1.0
    %v9519 = vadd.f32 %v9507, 1.0
    %v9520 = vadd.f32 %v9509, 1.0
    %v9521 = vadd.f32 %v9511, 1.0
    %v9522 = vadd.f32 %v9513, 1.0
    %v9523 = vadd.f32 %v9515, 1.0
    %v9524 = vadd.f32 %v9517, 1.0
    %v9525 = vrcp.pop %v9518
    %v9526 = vmul.f32 1.0, %v9525
    %v9527 = vrcp.pop %v9519
    %v9528 = vmul.f32 1.0, %v9527
    %v9529 = vrcp.pop %v9520
    %v9530 = vmul.f32 1.0, %v9529
    %v9531 = vrcp.pop %v9521
    %v9532 = vmul.f32 1.0, %v9531
    %v9533 = vrcp.pop %v9522
    %v9534 = vmul.f32 1.0, %v9533
    %v9535 = vrcp.pop %v9523
    %v9536 = vmul.f32 1.0, %v9535
    %v9537 = vrcp.pop %v9524
    %v9538 = vmul.f32 1.0, %v9537
    %9539 = vst [vmem:[%s61] sm:$0xff] %v9526
    %9540 = vst [vmem:[%s61 + $0x8] sm:$0xff] %v9528
    %9541 = vst [vmem:[%s61 + $0x10] sm:$0xff] %v9530
    %9542 = vst [vmem:[%s61 + $0x18] sm:$0xff] %v9532
    %9543 = vst [vmem:[%s61 + $0x20] sm:$0xff] %v9534
    %9544 = vst [vmem:[%s61 + $0x28] sm:$0xff] %v9536
    %9545 = vst [vmem:[%s61 + $0x30] sm:$0xff] %v9538
    // Predicated region
    $region126: #{cvae_forward.1} parent=1 // pred_check
      _
    $region127: #{cvae_forward.1} parent=1 // pred_check_branch
      %9547 = sbr.rel (0) target = $region129
    $region128: #{cvae_forward.1} parent=1 // pred_region
      _
    $region129: #{cvae_forward.1} parent=1 // pred_fallthru
      _
    // Predicated region
    $region130: #{cvae_forward.1} parent=1 // pred_check
      _
    $region131: #{cvae_forward.1} parent=1 // pred_check_branch
      %9549 = sbr.rel (0) target = $region133
    $region132: #{cvae_forward.1} parent=1 // pred_region
      _
    $region133: #{cvae_forward.1} parent=1 // pred_fallthru
      _
    // Predicated region
    $region134: #{cvae_forward.1} parent=1 // pred_check
      _
    $region135: #{cvae_forward.1} parent=1 // pred_check_branch
      %9551 = sbr.rel (0) target = $region137
    $region136: #{cvae_forward.1} parent=1 // pred_region
      _
    $region137: #{cvae_forward.1} parent=1 // pred_fallthru
      _
    // Predicated region
    $region138: #{cvae_forward.1} parent=1 // pred_check
      _
    $region139: #{cvae_forward.1} parent=1 // pred_check_branch
      %9553 = sbr.rel (0) target = $region141
    $region140: #{cvae_forward.1} parent=1 // pred_region
      _
    $region141: #{cvae_forward.1} parent=1 // pred_fallthru
      _
    %9554 = vsyncpa [#allocation13], 1
    %9555 = vsyncpa [#allocation15], 1
    %9556 = vsyncpa [#allocation18], 1
    %9557 = vsyncpa [#allocation21], 1
    %9558 = vsyncpa [#allocation24], 1
  %9559 = vsyncmov [#allocation11]
  %s9560 = vpop.sfrf %9559
  %p9561 = scmp.eq.s32.totalorder %s9560, 0
  %p9562 = pneg %p9561
  %9564 = shalt.err (%p9562)
  %s9565 = scalar_lea.sflag [#allocation11], 1
  %9566 = vsyncmov %s9565
  %s9567 = vpop.sfrf %9566
  %p9568 = scmp.eq.s32.totalorder %s9567, 0
  %p9569 = pneg %p9568
  %9571 = shalt.err (%p9569)
  %s9572 = scalar_lea.sflag [#allocation11], 2
  %9573 = vsyncmov %s9572
  %s9574 = vpop.sfrf %9573
  %p9575 = scmp.eq.s32.totalorder %s9574, 0
  %p9576 = pneg %p9575
  %9578 = shalt.err (%p9576)
  %s9579 = scalar_lea.sflag [#allocation11], 3
  %9580 = vsyncmov %s9579
  %s9581 = vpop.sfrf %9580
  %p9582 = scmp.eq.s32.totalorder %s9581, 0
  %p9583 = pneg %p9582
  %9585 = shalt.err (%p9583)
  %s9586 = scalar_lea.sflag [#allocation11], 4
  %9587 = vsyncmov %s9586
  %s9588 = vpop.sfrf %9587
  %p9589 = scmp.eq.s32.totalorder %s9588, 0
  %p9590 = pneg %p9589
  %9592 = shalt.err (%p9590)
  %s9593 = scalar_lea.sflag [#allocation11], 5
  %9594 = vsyncmov %s9593
  %s9595 = vpop.sfrf %9594
  %p9596 = scmp.eq.s32.totalorder %s9595, 0
  %p9597 = pneg %p9596
  %9599 = shalt.err (%p9597)
  %s9600 = scalar_lea.sflag [#allocation11], 6
  %9601 = vsyncmov %s9600
  %s9602 = vpop.sfrf %9601
  %p9603 = scmp.eq.s32.totalorder %s9602, 0
  %p9604 = pneg %p9603
  %9606 = shalt.err (%p9604)
  %s9607 = scalar_lea.sflag [#allocation11], 7
  %9608 = vsyncmov %s9607
  %s9609 = vpop.sfrf %9608
  %p9610 = scmp.eq.s32.totalorder %s9609, 0
  %p9611 = pneg %p9610
  %9613 = shalt.err (%p9611)
  %s9614 = scalar_lea.sflag [#allocation11], 8
  %9615 = vsyncmov %s9614
  %s9616 = vpop.sfrf %9615
  %p9617 = scmp.eq.s32.totalorder %s9616, 0
  %p9618 = pneg %p9617
  %9620 = shalt.err (%p9618)

</llo_original>
